<compile_context>
chip_gen: v5e
topology: v5e:2x2
jax: 0.10.0
libtpu: 0.0.40
codegen_flags: <defaults>
</compile_context>

<pallas_src>
import functools

import jax
import jax.numpy as jnp
from jax.experimental import pallas as pl
from jax.experimental.pallas import tpu as pltpu

# ----------------------------------------------------------------------------
# LeNet-5 geometry (CIFAR-style 3x32x32 input, as implied by fc1 = 16*5*5)
# ----------------------------------------------------------------------------
KSZ = 5                      # conv kernel size
C_IN, C1, C2 = 3, 6, 16      # channel counts
H_IN = W_IN = 32
H1 = W1 = 28                 # conv1 valid output grid
HP1 = WP1 = 14               # pool1 output grid
HP2 = WP2 = 5                # pool2 output grid
N_FC1, N_FC2, N_CLS = 120, 84, 10
LANES = 128                  # lane-dense channel/feature width used in-kernel

# In-kernel layout constants
PITCH = 16                   # row pitch of the 14x14 pool1 grid (aligned bf16 reads)
IMG_P1 = HP1 * PITCH         # 224 rows / image in p1, p1w, h2
PAD_W = (KSZ - 1) * PITCH    # 64 extra p1w rows read by the kh-shifted matmuls
PAD_P1 = 80                  # zero tail on p1 (>= PAD_W + (KSZ-1), multiple of 16)
MC = 224                     # M-chunk for conv matmuls (f32 acc = 28 vregs)

assert PAD_W == (KSZ - 1) * PITCH
assert PAD_P1 >= PAD_W + (KSZ - 1) and PAD_P1 % 16 == 0
# valid conv2 outputs never read past their own image's pool1 rows:
assert (HP1 - 1) * PITCH + (2 * HP2 - 1) + (KSZ - 1) < IMG_P1
assert MC % 16 == 0 and IMG_P1 % MC == 0


# ----------------------------------------------------------------------------
# Fused Pallas kernel: whole forward pass for a block of `tb` images
# ----------------------------------------------------------------------------
def _lenet_fused_kernel(pat_ref, w1_ref, b1_ref, w2_ref, b2_ref,
                        wf1_ref, bf1_ref, wf2_ref, bf2_ref, wf3_ref, bf3_ref,
                        out_ref,
                        h1_ref, p1_ref, p1w_ref, h2_ref, p2_ref, *, tb):
    """Row layouts (all lane-dense, 128 wide):
         pat_ref : (tb*784, 128)            conv1 im2col patches, 28x28 grid
         h1_ref  : (tb*784, 128) f32        relu(conv1), 28x28 grid (pitch 28)
         p1_ref  : (tb*224+80, 128) f32     pool1, 14x14 grid at row pitch 16
         p1w_ref : (tb*224+64, 128) bf16    kw-packed pool1 window (cast once)
         h2_ref  : (tb*224, 128) f32        relu(conv2) on the pitch-16 grid
                                            (only h,w < 10 valid; pool2 reads those)
         p2_ref  : (tb*25, 128)  f32        pool2, 5x5 grid
    """
    f32 = jnp.float32
    bf16 = jnp.bfloat16
    n1 = H1 * W1                  # 784
    nsp = HP2 * WP2               # 25
    n_p1 = tb * IMG_P1            # rows of real pool1 data

    # ---- conv1 (+bias, ReLU): chunked slab matmuls on the MXU ----------------
    w1 = w1_ref[...]
    b1 = b1_ref[...]
    assert (tb * n1) % MC == 0    # tb is even => 784*tb is a multiple of 224
    for ci in range((tb * n1) // MC):
        r0 = ci * MC
        acc = jnp.dot(pat_ref[pl.ds(r0, MC), :], w1, preferred_element_type=f32)
        h1_ref[pl.ds(r0, MC), :] = jnp.maximum(acc + b1, 0.0)

    # ---- pool1: 2x2 stride-2 max, 28x28 -> 14x14, stored at row pitch 16 -----
    # Zero-init so pad rows / unused pitch rows are defined zeros (see invariant).
    p1_ref[...] = jnp.zeros_like(p1_ref)
    for t in range(tb):
        for i in range(HP1):
            s0 = t * n1 + (2 * i) * W1
            s1 = s0 + W1
            m = jnp.maximum(
                jnp.maximum(h1_ref[pl.ds(s0, WP1, stride=2), :],
                            h1_ref[pl.ds(s0 + 1, WP1, stride=2), :]),
                jnp.maximum(h1_ref[pl.ds(s1, WP1, stride=2), :],
                            h1_ref[pl.ds(s1 + 1, WP1, stride=2), :]))
            p1_ref[pl.ds(t * IMG_P1 + i * PITCH, WP1), :] = m

    # ---- build the kw-packed conv2 LHS (bf16, cast exactly once) -------------
    # p1w[r, kw*6+c] = p1[r+kw, c].  p1 lanes >= 6 are exactly zero (conv1 weight
    # cols and bias lanes >= 6 are zero, pool of zeros is zero), so the lane roll
    # just drops the 6 channels of each kw-shifted row into a disjoint 6-lane
    # group.  The conv2 weight duplicates each tap's rows at the mirrored lane
    # offset, so either roll direction yields the same matmul result.
    def build_p1w(r0, nrows):
        acc = p1_ref[pl.ds(r0, nrows), :]
        for kw in range(1, KSZ):
            acc = acc + pltpu.roll(p1_ref[pl.ds(r0 + kw, nrows), :],
                                   shift=kw * C1, axis=1)
        p1w_ref[pl.ds(r0, nrows), :] = acc.astype(bf16)

    for ci in range(n_p1 // MC):
        build_p1w(ci * MC, MC)
    build_p1w(n_p1, PAD_W)

    # ---- conv2 (+bias, ReLU): 5 kh-taps, K=128 (30 live lanes), per M-chunk ---
    b2 = b2_ref[...]
    for ci in range(n_p1 // MC):
        r0 = ci * MC
        acc = jnp.dot(p1w_ref[pl.ds(r0, MC), :], w2_ref[pl.ds(0, LANES), :],
                      preferred_element_type=f32)
        for kh in range(1, KSZ):
            acc = acc + jnp.dot(p1w_ref[pl.ds(r0 + kh * PITCH, MC), :],
                                w2_ref[pl.ds(kh * LANES, LANES), :],
                                preferred_element_type=f32)
        h2_ref[pl.ds(r0, MC), :] = jnp.maximum(acc + b2, 0.0)

    # ---- pool2: 2x2 stride-2 max over the valid 10x10 region -> 5x5 ----------
    for t in range(tb):
        for i in range(HP2):
            s0 = t * IMG_P1 + (2 * i) * PITCH
            s1 = s0 + PITCH
            m = jnp.maximum(
                jnp.maximum(h2_ref[pl.ds(s0, WP2, stride=2), :],
                            h2_ref[pl.ds(s0 + 1, WP2, stride=2), :]),
                jnp.maximum(h2_ref[pl.ds(s1, WP2, stride=2), :],
                            h2_ref[pl.ds(s1 + 1, WP2, stride=2), :]))
            p2_ref[pl.ds((t * HP2 + i) * WP2, WP2), :] = m

    # ---- fc1 (+ReLU): 25 spatial taps, bias folded into the accumulator ------
    acc = jnp.zeros((tb, LANES), f32) + bf1_ref[...]
    for s in range(nsp):
        lhs = p2_ref[pl.ds(s, tb, stride=nsp), :].astype(bf16)
        acc = acc + jnp.dot(lhs, wf1_ref[pl.ds(s * LANES, LANES), :],
                            preferred_element_type=f32)
    h = jnp.maximum(acc, 0.0)

    # ---- fc2 (+ReLU), fc3 ----------------------------------------------------
    h = jnp.maximum(
        jnp.dot(h.astype(bf16), wf2_ref[...], preferred_element_type=f32)
        + bf2_ref[...], 0.0)
    out = jnp.dot(h.astype(bf16), wf3_ref[...], preferred_element_type=f32)
    out_ref[...] = (out + bf3_ref[...]).astype(out_ref.dtype)


# ----------------------------------------------------------------------------
# Parameters (PyTorch-equivalent layout) and one-time kernel-side preparation
# ----------------------------------------------------------------------------
def init_lenet_params(key):
    ks = jax.random.split(key, 10)
    s = 0.05
    return {
        # conv weights as (kh, kw, cin, cout); fc weights as (in, out) with the
        # `in` axis in PyTorch's NCHW-flatten order (== torch weight.T).
        "conv1_w": s * jax.random.normal(ks[0], (KSZ, KSZ, C_IN, C1), jnp.float32),
        "conv1_b": s * jax.random.normal(ks[1], (C1,), jnp.float32),
        "conv2_w": s * jax.random.normal(ks[2], (KSZ, KSZ, C1, C2), jnp.float32),
        "conv2_b": s * jax.random.normal(ks[3], (C2,), jnp.float32),
        "fc1_w": s * jax.random.normal(ks[4], (C2 * HP2 * WP2, N_FC1), jnp.float32),
        "fc1_b": s * jax.random.normal(ks[5], (N_FC1,), jnp.float32),
        "fc2_w": s * jax.random.normal(ks[6], (N_FC1, N_FC2), jnp.float32),
        "fc2_b": s * jax.random.normal(ks[7], (N_FC2,), jnp.float32),
        "fc3_w": s * jax.random.normal(ks[8], (N_FC2, N_CLS), jnp.float32),
        "fc3_b": s * jax.random.normal(ks[9], (N_CLS,), jnp.float32),
    }


def _pad2d(a, rows, cols):
    out = jnp.zeros((rows, cols), jnp.float32)
    return out.at[: a.shape[0], : a.shape[1]].set(a.astype(jnp.float32))


def prepare_params(p):
    """One-time padding / permutation / bf16 cast of all weights (at init)."""
    def bias_pad(b):
        return jnp.zeros((1, LANES), jnp.float32).at[0, : b.shape[0]].set(b)

    # conv1 as im2col matmul weight: (75, 6) zero-padded to (128, 128).
    w1 = _pad2d(p["conv1_w"].reshape(KSZ * KSZ * C_IN, C1), LANES, LANES)

    # conv2: one (128,128) weight per kh-tap; row kw*6+c carries
    # conv2_w[kh,kw,c,:].  The same values are duplicated at rows (128-kw*6)+c
    # so the in-kernel lane-roll packing is correct for either rotation
    # direction (the unpopulated lane group multiplies exact zeros).
    w2 = p["conv2_w"]                                        # (5,5,6,16)
    w2k = jnp.zeros((KSZ, LANES, LANES), jnp.float32)
    for kh in range(KSZ):
        for kw in range(KSZ):
            blk = w2[kh, kw]                                 # (6,16)
            w2k = w2k.at[kh, kw * C1: kw * C1 + C1, :C2].set(blk)
            if kw > 0:
                off = LANES - kw * C1
                w2k = w2k.at[kh, off: off + C1, :C2].set(blk)
    w2k = w2k.reshape(KSZ * LANES, LANES)

    # fc1: rows are in NCHW-flatten order (c*25 + s); regroup per spatial
    # position s so the kernel consumes the NHWC-ordered pool2 rows directly.
    wf1 = p["fc1_w"].reshape(C2, HP2 * WP2, N_FC1).transpose(1, 0, 2)  # (25,16,120)
    wf1_p = jnp.zeros((HP2 * WP2, LANES, LANES), jnp.float32)
    wf1_p = wf1_p.at[:, :C2, :N_FC1].set(wf1).reshape(HP2 * WP2 * LANES, LANES)

    return {
        "w1": w1.astype(jnp.bfloat16), "b1": bias_pad(p["conv1_b"]),
        "w2": w2k.astype(jnp.bfloat16), "b2": bias_pad(p["conv2_b"]),
        "wf1": wf1_p.astype(jnp.bfloat16), "bf1": bias_pad(p["fc1_b"]),
        "wf2": _pad2d(p["fc2_w"], LANES, LANES).astype(jnp.bfloat16),
        "bf2": bias_pad(p["fc2_b"]),
        "wf3": _pad2d(p["fc3_w"], LANES, LANES).astype(jnp.bfloat16),
        "bf3": bias_pad(p["fc3_b"]),
    }


# ----------------------------------------------------------------------------
# Forward pass
# ----------------------------------------------------------------------------
def _pick_tile(B):
    """Even batch tile; grid >= 2 for B > 8 so both v7x TensorCores are used."""
    if B <= 8:
        tb = max(2, ((B + 1) // 2) * 2)   # whole (even) batch, grid = 1
    elif B <= 16:
        tb = 8                            # grid = 2
    else:
        tb = 16
    Bp = -(-B // tb) * tb
    return tb, Bp


@jax.jit
def lenet_forward(x_nchw, kp):
    B = x_nchw.shape[0]
    tb, Bp = _pick_tile(B)
    assert tb % 2 == 0 and (tb * H1 * W1) % MC == 0 and Bp % tb == 0

    # NCHW -> NHWC and batch padding (tiny XLA glue on the raw input).
    x = jnp.transpose(x_nchw, (0, 2, 3, 1)).astype(jnp.float32)
    if Bp != B:
        x = jnp.pad(x, ((0, Bp - B), (0, 0), (0, 0), (0, 0)))

    # conv1 im2col patches in XLA (only remaining glue); lane-padded to 128 and
    # cast to bf16.  Everything downstream (incl. conv2's im2col) is in-kernel.
    cols = [x[:, kh:kh + H1, kw:kw + W1, :]
            for kh in range(KSZ) for kw in range(KSZ)]
    patches = jnp.concatenate(cols, axis=-1)                       # (Bp,28,28,75)
    patches = jnp.pad(
        patches, ((0, 0), (0, 0), (0, 0), (0, LANES - KSZ * KSZ * C_IN)))
    patches = patches.reshape(Bp * H1 * W1, LANES).astype(jnp.bfloat16)

    n1, nsp = H1 * W1, HP2 * WP2
    grid_spec = pltpu.PrefetchScalarGridSpec(
        num_scalar_prefetch=0,
        grid=(Bp // tb,),
        in_specs=[
            pl.BlockSpec((tb * n1, LANES), lambda i: (i, 0)),        # patches
            pl.BlockSpec((LANES, LANES), lambda i: (0, 0)),          # w1
            pl.BlockSpec((1, LANES), lambda i: (0, 0)),              # b1
            pl.BlockSpec((KSZ * LANES, LANES), lambda i: (0, 0)),    # w2 (kh taps)
            pl.BlockSpec((1, LANES), lambda i: (0, 0)),              # b2
            pl.BlockSpec((nsp * LANES, LANES), lambda i: (0, 0)),    # wf1
            pl.BlockSpec((1, LANES), lambda i: (0, 0)),              # bf1
            pl.BlockSpec((LANES, LANES), lambda i: (0, 0)),          # wf2
            pl.BlockSpec((1, LANES), lambda i: (0, 0)),              # bf2
            pl.BlockSpec((LANES, LANES), lambda i: (0, 0)),          # wf3
            pl.BlockSpec((1, LANES), lambda i: (0, 0)),              # bf3
        ],
        out_specs=pl.BlockSpec((tb, LANES), lambda i: (i, 0)),
        scratch_shapes=[
            pltpu.VMEM((tb * n1, LANES), jnp.float32),               # h1
            pltpu.VMEM((tb * IMG_P1 + PAD_P1, LANES), jnp.float32),  # p1 (pitch 16)
            pltpu.VMEM((tb * IMG_P1 + PAD_W, LANES), jnp.bfloat16),  # p1w (packed)
            pltpu.VMEM((tb * IMG_P1, LANES), jnp.float32),           # h2
            pltpu.VMEM((tb * nsp, LANES), jnp.float32),              # p2
        ],
    )

    weight_bytes = sum(int(v.size) * v.dtype.itemsize for v in kp.values())
    flops_per_img = 2 * LANES * LANES * (n1 + KSZ * IMG_P1 + nsp + 2)
    cost = pl.CostEstimate(
        flops=int(Bp * flops_per_img),
        transcendentals=0,
        bytes_accessed=int(patches.size) * 2 + weight_bytes + Bp * LANES * 4,
    )

    out = pl.pallas_call(
        functools.partial(_lenet_fused_kernel, tb=tb),
        out_shape=jax.ShapeDtypeStruct((Bp, LANES), jnp.float32),
        grid_spec=grid_spec,
        compiler_params=pltpu.CompilerParams(
            dimension_semantics=("parallel",),
            vmem_limit_bytes=40 * 1024 * 1024),
        cost_estimate=cost,
    )(patches, kp["w1"], kp["b1"], kp["w2"], kp["b2"],
      kp["wf1"], kp["bf1"], kp["wf2"], kp["bf2"], kp["wf3"], kp["bf3"])

    return out[:B, :N_CLS]


# ----------------------------------------------------------------------------
# Pure-JAX reference (f32) with PyTorch LeNet semantics
# ----------------------------------------------------------------------------
def lenet_reference(x_nchw, p):
    x = jnp.transpose(x_nchw, (0, 2, 3, 1)).astype(jnp.float32)

    def conv(a, w, b):
        B, H, W, C = a.shape
        k = w.shape[0]
        Ho, Wo = H - k + 1, W - k + 1
        cols = [a[:, i:i + Ho, j:j + Wo, :] for i in range(k) for j in range(k)]
        pat = jnp.concatenate(cols, axis=-1).reshape(B * Ho * Wo, k * k * C)
        out = pat @ w.reshape(k * k * C, -1) + b
        return out.reshape(B, Ho, Wo, -1)

    def pool(a):
        B, H, W, C = a.shape
        return jnp.max(a.reshape(B, H // 2, 2, W // 2, 2, C), axis=(2, 4))

    h = pool(jax.nn.relu(conv(x, p["conv1_w"], p["conv1_b"])))
    h = pool(jax.nn.relu(conv(h, p["conv2_w"], p["conv2_b"])))
    h = jnp.transpose(h, (0, 3, 1, 2)).reshape(h.shape[0], -1)     # NCHW flatten
    h = jax.nn.relu(h @ p["fc1_w"] + p["fc1_b"])
    h = jax.nn.relu(h @ p["fc2_w"] + p["fc2_b"])
    return h @ p["fc3_w"] + p["fc3_b"]


if __name__ == "__main__":
    key = jax.random.PRNGKey(0)
    k_x, k_p = jax.random.split(key)
    # LeNet (CIFAR-style) expects 3x32x32 so that fc1 sees 16*5*5 features.
    x = jax.random.normal(k_x, (2, 3, 32, 32), jnp.float32)
    params = init_lenet_params(k_p)
    kparams = prepare_params(params)        # one-time pad/permute/bf16 cast

    out = lenet_forward(x, kparams)
    out = jax.block_until_ready(out)
    assert out.shape == (2, 10), out.shape
    assert bool(jnp.all(jnp.isfinite(out)))

    ref = lenet_reference(x, params)
    max_err = float(jnp.max(jnp.abs(out - ref)))
    assert jnp.allclose(out, ref, atol=2e-2, rtol=2e-2), max_err
    print("KERNEL_OK")
</pallas_src>

<mosaic_0001>
module attributes {stable_mosaic.version = 11 : i64} {
  func.func @_lenet_fused_kernel(%arg0: i32, %arg1: memref<1568x128xbf16, #tpu.memory_space<vmem>>, %arg2: memref<128x128xbf16, #tpu.memory_space<vmem>>, %arg3: memref<1x128xf32, #tpu.memory_space<vmem>>, %arg4: memref<640x128xbf16, #tpu.memory_space<vmem>>, %arg5: memref<1x128xf32, #tpu.memory_space<vmem>>, %arg6: memref<3200x128xbf16, #tpu.memory_space<vmem>>, %arg7: memref<1x128xf32, #tpu.memory_space<vmem>>, %arg8: memref<128x128xbf16, #tpu.memory_space<vmem>>, %arg9: memref<1x128xf32, #tpu.memory_space<vmem>>, %arg10: memref<128x128xbf16, #tpu.memory_space<vmem>>, %arg11: memref<1x128xf32, #tpu.memory_space<vmem>>, %arg12: memref<2x128xf32, #tpu.memory_space<vmem>>, %arg13: memref<1568x128xf32, #tpu.memory_space<vmem>>, %arg14: memref<528x128xf32, #tpu.memory_space<vmem>>, %arg15: memref<512x128xbf16, #tpu.memory_space<vmem>>, %arg16: memref<448x128xf32, #tpu.memory_space<vmem>>, %arg17: memref<50x128xf32, #tpu.memory_space<vmem>>) attributes {dimension_semantics = [#tpu.dimension_semantics<parallel>], iteration_bounds = array<i64: 1>, scalar_prefetch = 0 : i64, scratch_operands = 5 : i64, tpu.core_type = #tpu.core_type<tc>, window_params = [{transform_indices = @transform_0, window_bounds = array<i64: 1568, 128>}, {pipeline_mode = #tpu.pipeline_mode<synchronous>, transform_indices = @transform_1, window_bounds = array<i64: 128, 128>}, {pipeline_mode = #tpu.pipeline_mode<synchronous>, transform_indices = @transform_2, window_bounds = array<i64: 1, 128>}, {pipeline_mode = #tpu.pipeline_mode<synchronous>, transform_indices = @transform_3, window_bounds = array<i64: 640, 128>}, {pipeline_mode = #tpu.pipeline_mode<synchronous>, transform_indices = @transform_4, window_bounds = array<i64: 1, 128>}, {pipeline_mode = #tpu.pipeline_mode<synchronous>, transform_indices = @transform_5, window_bounds = array<i64: 3200, 128>}, {pipeline_mode = #tpu.pipeline_mode<synchronous>, transform_indices = @transform_6, window_bounds = array<i64: 1, 128>}, {pipeline_mode = #tpu.pipeline_mode<synchronous>, transform_indices = @transform_7, window_bounds = array<i64: 128, 128>}, {pipeline_mode = #tpu.pipeline_mode<synchronous>, transform_indices = @transform_8, window_bounds = array<i64: 1, 128>}, {pipeline_mode = #tpu.pipeline_mode<synchronous>, transform_indices = @transform_9, window_bounds = array<i64: 128, 128>}, {pipeline_mode = #tpu.pipeline_mode<synchronous>, transform_indices = @transform_10, window_bounds = array<i64: 1, 128>}, {transform_indices = @transform_11, window_bounds = array<i64: 2, 128>}]} {
    %c0 = arith.constant 0 : index
    %c0_0 = arith.constant 0 : index
    %0 = vector.load %arg2[%c0, %c0_0] : memref<128x128xbf16, #tpu.memory_space<vmem>>, vector<128x128xbf16>
    %c0_1 = arith.constant 0 : index
    %c0_2 = arith.constant 0 : index
    %1 = vector.load %arg3[%c0_1, %c0_2] : memref<1x128xf32, #tpu.memory_space<vmem>>, vector<1x128xf32>
    %c0_3 = arith.constant 0 : index
    %c0_4 = arith.constant 0 : index
    %2 = vector.load %arg1[%c0_3, %c0_4] : memref<1568x128xbf16, #tpu.memory_space<vmem>>, vector<224x128xbf16>
    %cst = arith.constant dense<0.000000e+00> : vector<224x128xf32>
    %3 = tpu.matmul %2, %0, %cst {dimension_numbers = #tpu.dot_dimension_numbers<[1], [0], [0], [1], [0, 0, 1, 1], [], []>} : vector<224x128xbf16>, vector<128x128xbf16>, vector<224x128xf32> -> vector<224x128xf32>
    %4 = vector.broadcast %1 : vector<1x128xf32> to vector<224x128xf32>
    %5 = arith.addf %3, %4 : vector<224x128xf32>
    %cst_5 = arith.constant 0.000000e+00 : f32
    %6 = vector.broadcast %cst_5 : f32 to vector<224x128xf32>
    %7 = arith.maximumf %5, %6 : vector<224x128xf32>
    %c0_6 = arith.constant 0 : index
    %c0_7 = arith.constant 0 : index
    %8 = vector.load %arg13[%c0_6, %c0_7] : memref<1568x128xf32, #tpu.memory_space<vmem>>, vector<224x128xf32>
    tpu.vector_store %arg13[%c0_6, %c0_7], %7 {strides = array<i32>} : memref<1568x128xf32, #tpu.memory_space<vmem>>, vector<224x128xf32>,
    %c224 = arith.constant 224 : index
    %c0_8 = arith.constant 0 : index
    %9 = vector.load %arg1[%c224, %c0_8] : memref<1568x128xbf16, #tpu.memory_space<vmem>>, vector<224x128xbf16>
    %cst_9 = arith.constant dense<0.000000e+00> : vector<224x128xf32>
    %10 = tpu.matmul %9, %0, %cst_9 {dimension_numbers = #tpu.dot_dimension_numbers<[1], [0], [0], [1], [0, 0, 1, 1], [], []>} : vector<224x128xbf16>, vector<128x128xbf16>, vector<224x128xf32> -> vector<224x128xf32>
    %11 = vector.broadcast %1 : vector<1x128xf32> to vector<224x128xf32>
    %12 = arith.addf %10, %11 : vector<224x128xf32>
    %cst_10 = arith.constant 0.000000e+00 : f32
    %13 = vector.broadcast %cst_10 : f32 to vector<224x128xf32>
    %14 = arith.maximumf %12, %13 : vector<224x128xf32>
    %c224_11 = arith.constant 224 : index
    %c0_12 = arith.constant 0 : index
    %15 = vector.load %arg13[%c224_11, %c0_12] : memref<1568x128xf32, #tpu.memory_space<vmem>>, vector<224x128xf32>
    tpu.vector_store %arg13[%c224_11, %c0_12], %14 {strides = array<i32>} : memref<1568x128xf32, #tpu.memory_space<vmem>>, vector<224x128xf32>,
    %c448 = arith.constant 448 : index
    %c0_13 = arith.constant 0 : index
    %16 = vector.load %arg1[%c448, %c0_13] : memref<1568x128xbf16, #tpu.memory_space<vmem>>, vector<224x128xbf16>
    %cst_14 = arith.constant dense<0.000000e+00> : vector<224x128xf32>
    %17 = tpu.matmul %16, %0, %cst_14 {dimension_numbers = #tpu.dot_dimension_numbers<[1], [0], [0], [1], [0, 0, 1, 1], [], []>} : vector<224x128xbf16>, vector<128x128xbf16>, vector<224x128xf32> -> vector<224x128xf32>
    %18 = vector.broadcast %1 : vector<1x128xf32> to vector<224x128xf32>
    %19 = arith.addf %17, %18 : vector<224x128xf32>
    %cst_15 = arith.constant 0.000000e+00 : f32
    %20 = vector.broadcast %cst_15 : f32 to vector<224x128xf32>
    %21 = arith.maximumf %19, %20 : vector<224x128xf32>
    %c448_16 = arith.constant 448 : index
    %c0_17 = arith.constant 0 : index
    %22 = vector.load %arg13[%c448_16, %c0_17] : memref<1568x128xf32, #tpu.memory_space<vmem>>, vector<224x128xf32>
    tpu.vector_store %arg13[%c448_16, %c0_17], %21 {strides = array<i32>} : memref<1568x128xf32, #tpu.memory_space<vmem>>, vector<224x128xf32>,
    %c672 = arith.constant 672 : index
    %c0_18 = arith.constant 0 : index
    %23 = vector.load %arg1[%c672, %c0_18] : memref<1568x128xbf16, #tpu.memory_space<vmem>>, vector<224x128xbf16>
    %cst_19 = arith.constant dense<0.000000e+00> : vector<224x128xf32>
    %24 = tpu.matmul %23, %0, %cst_19 {dimension_numbers = #tpu.dot_dimension_numbers<[1], [0], [0], [1], [0, 0, 1, 1], [], []>} : vector<224x128xbf16>, vector<128x128xbf16>, vector<224x128xf32> -> vector<224x128xf32>
    %25 = vector.broadcast %1 : vector<1x128xf32> to vector<224x128xf32>
    %26 = arith.addf %24, %25 : vector<224x128xf32>
    %cst_20 = arith.constant 0.000000e+00 : f32
    %27 = vector.broadcast %cst_20 : f32 to vector<224x128xf32>
    %28 = arith.maximumf %26, %27 : vector<224x128xf32>
    %c672_21 = arith.constant 672 : index
    %c0_22 = arith.constant 0 : index
    %29 = vector.load %arg13[%c672_21, %c0_22] : memref<1568x128xf32, #tpu.memory_space<vmem>>, vector<224x128xf32>
    tpu.vector_store %arg13[%c672_21, %c0_22], %28 {strides = array<i32>} : memref<1568x128xf32, #tpu.memory_space<vmem>>, vector<224x128xf32>,
    %c896 = arith.constant 896 : index
    %c0_23 = arith.constant 0 : index
    %30 = vector.load %arg1[%c896, %c0_23] : memref<1568x128xbf16, #tpu.memory_space<vmem>>, vector<224x128xbf16>
    %cst_24 = arith.constant dense<0.000000e+00> : vector<224x128xf32>
    %31 = tpu.matmul %30, %0, %cst_24 {dimension_numbers = #tpu.dot_dimension_numbers<[1], [0], [0], [1], [0, 0, 1, 1], [], []>} : vector<224x128xbf16>, vector<128x128xbf16>, vector<224x128xf32> -> vector<224x128xf32>
    %32 = vector.broadcast %1 : vector<1x128xf32> to vector<224x128xf32>
    %33 = arith.addf %31, %32 : vector<224x128xf32>
    %cst_25 = arith.constant 0.000000e+00 : f32
    %34 = vector.broadcast %cst_25 : f32 to vector<224x128xf32>
    %35 = arith.maximumf %33, %34 : vector<224x128xf32>
    %c896_26 = arith.constant 896 : index
    %c0_27 = arith.constant 0 : index
    %36 = vector.load %arg13[%c896_26, %c0_27] : memref<1568x128xf32, #tpu.memory_space<vmem>>, vector<224x128xf32>
    tpu.vector_store %arg13[%c896_26, %c0_27], %35 {strides = array<i32>} : memref<1568x128xf32, #tpu.memory_space<vmem>>, vector<224x128xf32>,
    %c1120 = arith.constant 1120 : index
    %c0_28 = arith.constant 0 : index
    %37 = vector.load %arg1[%c1120, %c0_28] : memref<1568x128xbf16, #tpu.memory_space<vmem>>, vector<224x128xbf16>
    %cst_29 = arith.constant dense<0.000000e+00> : vector<224x128xf32>
    %38 = tpu.matmul %37, %0, %cst_29 {dimension_numbers = #tpu.dot_dimension_numbers<[1], [0], [0], [1], [0, 0, 1, 1], [], []>} : vector<224x128xbf16>, vector<128x128xbf16>, vector<224x128xf32> -> vector<224x128xf32>
    %39 = vector.broadcast %1 : vector<1x128xf32> to vector<224x128xf32>
    %40 = arith.addf %38, %39 : vector<224x128xf32>
    %cst_30 = arith.constant 0.000000e+00 : f32
    %41 = vector.broadcast %cst_30 : f32 to vector<224x128xf32>
    %42 = arith.maximumf %40, %41 : vector<224x128xf32>
    %c1120_31 = arith.constant 1120 : index
    %c0_32 = arith.constant 0 : index
    %43 = vector.load %arg13[%c1120_31, %c0_32] : memref<1568x128xf32, #tpu.memory_space<vmem>>, vector<224x128xf32>
    tpu.vector_store %arg13[%c1120_31, %c0_32], %42 {strides = array<i32>} : memref<1568x128xf32, #tpu.memory_space<vmem>>, vector<224x128xf32>,
    %c1344 = arith.constant 1344 : index
    %c0_33 = arith.constant 0 : index
    %44 = vector.load %arg1[%c1344, %c0_33] : memref<1568x128xbf16, #tpu.memory_space<vmem>>, vector<224x128xbf16>
    %cst_34 = arith.constant dense<0.000000e+00> : vector<224x128xf32>
    %45 = tpu.matmul %44, %0, %cst_34 {dimension_numbers = #tpu.dot_dimension_numbers<[1], [0], [0], [1], [0, 0, 1, 1], [], []>} : vector<224x128xbf16>, vector<128x128xbf16>, vector<224x128xf32> -> vector<224x128xf32>
    %46 = vector.broadcast %1 : vector<1x128xf32> to vector<224x128xf32>
    %47 = arith.addf %45, %46 : vector<224x128xf32>
    %cst_35 = arith.constant 0.000000e+00 : f32
    %48 = vector.broadcast %cst_35 : f32 to vector<224x128xf32>
    %49 = arith.maximumf %47, %48 : vector<224x128xf32>
    %c1344_36 = arith.constant 1344 : index
    %c0_37 = arith.constant 0 : index
    %50 = vector.load %arg13[%c1344_36, %c0_37] : memref<1568x128xf32, #tpu.memory_space<vmem>>, vector<224x128xf32>
    tpu.vector_store %arg13[%c1344_36, %c0_37], %49 {strides = array<i32>} : memref<1568x128xf32, #tpu.memory_space<vmem>>, vector<224x128xf32>,
    %cst_38 = arith.constant 0.000000e+00 : f32
    %51 = vector.broadcast %cst_38 : f32 to vector<528x128xf32>
    %c0_39 = arith.constant 0 : index
    %c0_40 = arith.constant 0 : index
    %52 = vector.load %arg14[%c0_39, %c0_40] : memref<528x128xf32, #tpu.memory_space<vmem>>, vector<528x128xf32>
    tpu.vector_store %arg14[%c0_39, %c0_40], %51 {strides = array<i32>} : memref<528x128xf32, #tpu.memory_space<vmem>>, vector<528x128xf32>,
    %c0_41 = arith.constant 0 : index
    %c0_42 = arith.constant 0 : index
    %53 = tpu.strided_load %arg13[%c0_41, %c0_42] {strides = array<i32: 2, 1>} : memref<1568x128xf32, #tpu.memory_space<vmem>>, vector<14x128xf32>
    %c1 = arith.constant 1 : index
    %c0_43 = arith.constant 0 : index
    %54 = tpu.strided_load %arg13[%c1, %c0_43] {strides = array<i32: 2, 1>} : memref<1568x128xf32, #tpu.memory_space<vmem>>, vector<14x128xf32>
    %55 = arith.maximumf %53, %54 : vector<14x128xf32>
    %c28 = arith.constant 28 : index
    %c0_44 = arith.constant 0 : index
    %56 = tpu.strided_load %arg13[%c28, %c0_44] {strides = array<i32: 2, 1>} : memref<1568x128xf32, #tpu.memory_space<vmem>>, vector<14x128xf32>
    %c29 = arith.constant 29 : index
    %c0_45 = arith.constant 0 : index
    %57 = tpu.strided_load %arg13[%c29, %c0_45] {strides = array<i32: 2, 1>} : memref<1568x128xf32, #tpu.memory_space<vmem>>, vector<14x128xf32>
    %58 = arith.maximumf %56, %57 : vector<14x128xf32>
    %59 = arith.maximumf %55, %58 : vector<14x128xf32>
    %c0_46 = arith.constant 0 : index
    %c0_47 = arith.constant 0 : index
    %60 = vector.load %arg14[%c0_46, %c0_47] : memref<528x128xf32, #tpu.memory_space<vmem>>, vector<14x128xf32>
    tpu.vector_store %arg14[%c0_46, %c0_47], %59 {strides = array<i32>} : memref<528x128xf32, #tpu.memory_space<vmem>>, vector<14x128xf32>,
    %c56 = arith.constant 56 : index
    %c0_48 = arith.constant 0 : index
    %61 = tpu.strided_load %arg13[%c56, %c0_48] {strides = array<i32: 2, 1>} : memref<1568x128xf32, #tpu.memory_space<vmem>>, vector<14x128xf32>
    %c57 = arith.constant 57 : index
    %c0_49 = arith.constant 0 : index
    %62 = tpu.strided_load %arg13[%c57, %c0_49] {strides = array<i32: 2, 1>} : memref<1568x128xf32, #tpu.memory_space<vmem>>, vector<14x128xf32>
    %63 = arith.maximumf %61, %62 : vector<14x128xf32>
    %c84 = arith.constant 84 : index
    %c0_50 = arith.constant 0 : index
    %64 = tpu.strided_load %arg13[%c84, %c0_50] {strides = array<i32: 2, 1>} : memref<1568x128xf32, #tpu.memory_space<vmem>>, vector<14x128xf32>
    %c85 = arith.constant 85 : index
    %c0_51 = arith.constant 0 : index
    %65 = tpu.strided_load %arg13[%c85, %c0_51] {strides = array<i32: 2, 1>} : memref<1568x128xf32, #tpu.memory_space<vmem>>, vector<14x128xf32>
    %66 = arith.maximumf %64, %65 : vector<14x128xf32>
    %67 = arith.maximumf %63, %66 : vector<14x128xf32>
    %c16 = arith.constant 16 : index
    %c0_52 = arith.constant 0 : index
    %68 = vector.load %arg14[%c16, %c0_52] : memref<528x128xf32, #tpu.memory_space<vmem>>, vector<14x128xf32>
    tpu.vector_store %arg14[%c16, %c0_52], %67 {strides = array<i32>} : memref<528x128xf32, #tpu.memory_space<vmem>>, vector<14x128xf32>,
    %c112 = arith.constant 112 : index
    %c0_53 = arith.constant 0 : index
    %69 = tpu.strided_load %arg13[%c112, %c0_53] {strides = array<i32: 2, 1>} : memref<1568x128xf32, #tpu.memory_space<vmem>>, vector<14x128xf32>
    %c113 = arith.constant 113 : index
    %c0_54 = arith.constant 0 : index
    %70 = tpu.strided_load %arg13[%c113, %c0_54] {strides = array<i32: 2, 1>} : memref<1568x128xf32, #tpu.memory_space<vmem>>, vector<14x128xf32>
    %71 = arith.maximumf %69, %70 : vector<14x128xf32>
    %c140 = arith.constant 140 : index
    %c0_55 = arith.constant 0 : index
    %72 = tpu.strided_load %arg13[%c140, %c0_55] {strides = array<i32: 2, 1>} : memref<1568x128xf32, #tpu.memory_space<vmem>>, vector<14x128xf32>
    %c141 = arith.constant 141 : index
    %c0_56 = arith.constant 0 : index
    %73 = tpu.strided_load %arg13[%c141, %c0_56] {strides = array<i32: 2, 1>} : memref<1568x128xf32, #tpu.memory_space<vmem>>, vector<14x128xf32>
    %74 = arith.maximumf %72, %73 : vector<14x128xf32>
    %75 = arith.maximumf %71, %74 : vector<14x128xf32>
    %c32 = arith.constant 32 : index
    %c0_57 = arith.constant 0 : index
    %76 = vector.load %arg14[%c32, %c0_57] : memref<528x128xf32, #tpu.memory_space<vmem>>, vector<14x128xf32>
    tpu.vector_store %arg14[%c32, %c0_57], %75 {strides = array<i32>} : memref<528x128xf32, #tpu.memory_space<vmem>>, vector<14x128xf32>,
    %c168 = arith.constant 168 : index
    %c0_58 = arith.constant 0 : index
    %77 = tpu.strided_load %arg13[%c168, %c0_58] {strides = array<i32: 2, 1>} : memref<1568x128xf32, #tpu.memory_space<vmem>>, vector<14x128xf32>
    %c169 = arith.constant 169 : index
    %c0_59 = arith.constant 0 : index
    %78 = tpu.strided_load %arg13[%c169, %c0_59] {strides = array<i32: 2, 1>} : memref<1568x128xf32, #tpu.memory_space<vmem>>, vector<14x128xf32>
    %79 = arith.maximumf %77, %78 : vector<14x128xf32>
    %c196 = arith.constant 196 : index
    %c0_60 = arith.constant 0 : index
    %80 = tpu.strided_load %arg13[%c196, %c0_60] {strides = array<i32: 2, 1>} : memref<1568x128xf32, #tpu.memory_space<vmem>>, vector<14x128xf32>
    %c197 = arith.constant 197 : index
    %c0_61 = arith.constant 0 : index
    %81 = tpu.strided_load %arg13[%c197, %c0_61] {strides = array<i32: 2, 1>} : memref<1568x128xf32, #tpu.memory_space<vmem>>, vector<14x128xf32>
    %82 = arith.maximumf %80, %81 : vector<14x128xf32>
    %83 = arith.maximumf %79, %82 : vector<14x128xf32>
    %c48 = arith.constant 48 : index
    %c0_62 = arith.constant 0 : index
    %84 = vector.load %arg14[%c48, %c0_62] : memref<528x128xf32, #tpu.memory_space<vmem>>, vector<14x128xf32>
    tpu.vector_store %arg14[%c48, %c0_62], %83 {strides = array<i32>} : memref<528x128xf32, #tpu.memory_space<vmem>>, vector<14x128xf32>,
    %c224_63 = arith.constant 224 : index
    %c0_64 = arith.constant 0 : index
    %85 = tpu.strided_load %arg13[%c224_63, %c0_64] {strides = array<i32: 2, 1>} : memref<1568x128xf32, #tpu.memory_space<vmem>>, vector<14x128xf32>
    %c225 = arith.constant 225 : index
    %c0_65 = arith.constant 0 : index
    %86 = tpu.strided_load %arg13[%c225, %c0_65] {strides = array<i32: 2, 1>} : memref<1568x128xf32, #tpu.memory_space<vmem>>, vector<14x128xf32>
    %87 = arith.maximumf %85, %86 : vector<14x128xf32>
    %c252 = arith.constant 252 : index
    %c0_66 = arith.constant 0 : index
    %88 = tpu.strided_load %arg13[%c252, %c0_66] {strides = array<i32: 2, 1>} : memref<1568x128xf32, #tpu.memory_space<vmem>>, vector<14x128xf32>
    %c253 = arith.constant 253 : index
    %c0_67 = arith.constant 0 : index
    %89 = tpu.strided_load %arg13[%c253, %c0_67] {strides = array<i32: 2, 1>} : memref<1568x128xf32, #tpu.memory_space<vmem>>, vector<14x128xf32>
    %90 = arith.maximumf %88, %89 : vector<14x128xf32>
    %91 = arith.maximumf %87, %90 : vector<14x128xf32>
    %c64 = arith.constant 64 : index
    %c0_68 = arith.constant 0 : index
    %92 = vector.load %arg14[%c64, %c0_68] : memref<528x128xf32, #tpu.memory_space<vmem>>, vector<14x128xf32>
    tpu.vector_store %arg14[%c64, %c0_68], %91 {strides = array<i32>} : memref<528x128xf32, #tpu.memory_space<vmem>>, vector<14x128xf32>,
    %c280 = arith.constant 280 : index
    %c0_69 = arith.constant 0 : index
    %93 = tpu.strided_load %arg13[%c280, %c0_69] {strides = array<i32: 2, 1>} : memref<1568x128xf32, #tpu.memory_space<vmem>>, vector<14x128xf32>
    %c281 = arith.constant 281 : index
    %c0_70 = arith.constant 0 : index
    %94 = tpu.strided_load %arg13[%c281, %c0_70] {strides = array<i32: 2, 1>} : memref<1568x128xf32, #tpu.memory_space<vmem>>, vector<14x128xf32>
    %95 = arith.maximumf %93, %94 : vector<14x128xf32>
    %c308 = arith.constant 308 : index
    %c0_71 = arith.constant 0 : index
    %96 = tpu.strided_load %arg13[%c308, %c0_71] {strides = array<i32: 2, 1>} : memref<1568x128xf32, #tpu.memory_space<vmem>>, vector<14x128xf32>
    %c309 = arith.constant 309 : index
    %c0_72 = arith.constant 0 : index
    %97 = tpu.strided_load %arg13[%c309, %c0_72] {strides = array<i32: 2, 1>} : memref<1568x128xf32, #tpu.memory_space<vmem>>, vector<14x128xf32>
    %98 = arith.maximumf %96, %97 : vector<14x128xf32>
    %99 = arith.maximumf %95, %98 : vector<14x128xf32>
    %c80 = arith.constant 80 : index
    %c0_73 = arith.constant 0 : index
    %100 = vector.load %arg14[%c80, %c0_73] : memref<528x128xf32, #tpu.memory_space<vmem>>, vector<14x128xf32>
    tpu.vector_store %arg14[%c80, %c0_73], %99 {strides = array<i32>} : memref<528x128xf32, #tpu.memory_space<vmem>>, vector<14x128xf32>,
    %c336 = arith.constant 336 : index
    %c0_74 = arith.constant 0 : index
    %101 = tpu.strided_load %arg13[%c336, %c0_74] {strides = array<i32: 2, 1>} : memref<1568x128xf32, #tpu.memory_space<vmem>>, vector<14x128xf32>
    %c337 = arith.constant 337 : index
    %c0_75 = arith.constant 0 : index
    %102 = tpu.strided_load %arg13[%c337, %c0_75] {strides = array<i32: 2, 1>} : memref<1568x128xf32, #tpu.memory_space<vmem>>, vector<14x128xf32>
    %103 = arith.maximumf %101, %102 : vector<14x128xf32>
    %c364 = arith.constant 364 : index
    %c0_76 = arith.constant 0 : index
    %104 = tpu.strided_load %arg13[%c364, %c0_76] {strides = array<i32: 2, 1>} : memref<1568x128xf32, #tpu.memory_space<vmem>>, vector<14x128xf32>
    %c365 = arith.constant 365 : index
    %c0_77 = arith.constant 0 : index
    %105 = tpu.strided_load %arg13[%c365, %c0_77] {strides = array<i32: 2, 1>} : memref<1568x128xf32, #tpu.memory_space<vmem>>, vector<14x128xf32>
    %106 = arith.maximumf %104, %105 : vector<14x128xf32>
    %107 = arith.maximumf %103, %106 : vector<14x128xf32>
    %c96 = arith.constant 96 : index
    %c0_78 = arith.constant 0 : index
    %108 = vector.load %arg14[%c96, %c0_78] : memref<528x128xf32, #tpu.memory_space<vmem>>, vector<14x128xf32>
    tpu.vector_store %arg14[%c96, %c0_78], %107 {strides = array<i32>} : memref<528x128xf32, #tpu.memory_space<vmem>>, vector<14x128xf32>,
    %c392 = arith.constant 392 : index
    %c0_79 = arith.constant 0 : index
    %109 = tpu.strided_load %arg13[%c392, %c0_79] {strides = array<i32: 2, 1>} : memref<1568x128xf32, #tpu.memory_space<vmem>>, vector<14x128xf32>
    %c393 = arith.constant 393 : index
    %c0_80 = arith.constant 0 : index
    %110 = tpu.strided_load %arg13[%c393, %c0_80] {strides = array<i32: 2, 1>} : memref<1568x128xf32, #tpu.memory_space<vmem>>, vector<14x128xf32>
    %111 = arith.maximumf %109, %110 : vector<14x128xf32>
    %c420 = arith.constant 420 : index
    %c0_81 = arith.constant 0 : index
    %112 = tpu.strided_load %arg13[%c420, %c0_81] {strides = array<i32: 2, 1>} : memref<1568x128xf32, #tpu.memory_space<vmem>>, vector<14x128xf32>
    %c421 = arith.constant 421 : index
    %c0_82 = arith.constant 0 : index
    %113 = tpu.strided_load %arg13[%c421, %c0_82] {strides = array<i32: 2, 1>} : memref<1568x128xf32, #tpu.memory_space<vmem>>, vector<14x128xf32>
    %114 = arith.maximumf %112, %113 : vector<14x128xf32>
    %115 = arith.maximumf %111, %114 : vector<14x128xf32>
    %c112_83 = arith.constant 112 : index
    %c0_84 = arith.constant 0 : index
    %116 = vector.load %arg14[%c112_83, %c0_84] : memref<528x128xf32, #tpu.memory_space<vmem>>, vector<14x128xf32>
    tpu.vector_store %arg14[%c112_83, %c0_84], %115 {strides = array<i32>} : memref<528x128xf32, #tpu.memory_space<vmem>>, vector<14x128xf32>,
    %c448_85 = arith.constant 448 : index
    %c0_86 = arith.constant 0 : index
    %117 = tpu.strided_load %arg13[%c448_85, %c0_86] {strides = array<i32: 2, 1>} : memref<1568x128xf32, #tpu.memory_space<vmem>>, vector<14x128xf32>
    %c449 = arith.constant 449 : index
    %c0_87 = arith.constant 0 : index
    %118 = tpu.strided_load %arg13[%c449, %c0_87] {strides = array<i32: 2, 1>} : memref<1568x128xf32, #tpu.memory_space<vmem>>, vector<14x128xf32>
    %119 = arith.maximumf %117, %118 : vector<14x128xf32>
    %c476 = arith.constant 476 : index
    %c0_88 = arith.constant 0 : index
    %120 = tpu.strided_load %arg13[%c476, %c0_88] {strides = array<i32: 2, 1>} : memref<1568x128xf32, #tpu.memory_space<vmem>>, vector<14x128xf32>
    %c477 = arith.constant 477 : index
    %c0_89 = arith.constant 0 : index
    %121 = tpu.strided_load %arg13[%c477, %c0_89] {strides = array<i32: 2, 1>} : memref<1568x128xf32, #tpu.memory_space<vmem>>, vector<14x128xf32>
    %122 = arith.maximumf %120, %121 : vector<14x128xf32>
    %123 = arith.maximumf %119, %122 : vector<14x128xf32>
    %c128 = arith.constant 128 : index
    %c0_90 = arith.constant 0 : index
    %124 = vector.load %arg14[%c128, %c0_90] : memref<528x128xf32, #tpu.memory_space<vmem>>, vector<14x128xf32>
    tpu.vector_store %arg14[%c128, %c0_90], %123 {strides = array<i32>} : memref<528x128xf32, #tpu.memory_space<vmem>>, vector<14x128xf32>,
    %c504 = arith.constant 504 : index
    %c0_91 = arith.constant 0 : index
    %125 = tpu.strided_load %arg13[%c504, %c0_91] {strides = array<i32: 2, 1>} : memref<1568x128xf32, #tpu.memory_space<vmem>>, vector<14x128xf32>
    %c505 = arith.constant 505 : index
    %c0_92 = arith.constant 0 : index
    %126 = tpu.strided_load %arg13[%c505, %c0_92] {strides = array<i32: 2, 1>} : memref<1568x128xf32, #tpu.memory_space<vmem>>, vector<14x128xf32>
    %127 = arith.maximumf %125, %126 : vector<14x128xf32>
    %c532 = arith.constant 532 : index
    %c0_93 = arith.constant 0 : index
    %128 = tpu.strided_load %arg13[%c532, %c0_93] {strides = array<i32: 2, 1>} : memref<1568x128xf32, #tpu.memory_space<vmem>>, vector<14x128xf32>
    %c533 = arith.constant 533 : index
    %c0_94 = arith.constant 0 : index
    %129 = tpu.strided_load %arg13[%c533, %c0_94] {strides = array<i32: 2, 1>} : memref<1568x128xf32, #tpu.memory_space<vmem>>, vector<14x128xf32>
    %130 = arith.maximumf %128, %129 : vector<14x128xf32>
    %131 = arith.maximumf %127, %130 : vector<14x128xf32>
    %c144 = arith.constant 144 : index
    %c0_95 = arith.constant 0 : index
    %132 = vector.load %arg14[%c144, %c0_95] : memref<528x128xf32, #tpu.memory_space<vmem>>, vector<14x128xf32>
    tpu.vector_store %arg14[%c144, %c0_95], %131 {strides = array<i32>} : memref<528x128xf32, #tpu.memory_space<vmem>>, vector<14x128xf32>,
    %c560 = arith.constant 560 : index
    %c0_96 = arith.constant 0 : index
    %133 = tpu.strided_load %arg13[%c560, %c0_96] {strides = array<i32: 2, 1>} : memref<1568x128xf32, #tpu.memory_space<vmem>>, vector<14x128xf32>
    %c561 = arith.constant 561 : index
    %c0_97 = arith.constant 0 : index
    %134 = tpu.strided_load %arg13[%c561, %c0_97] {strides = array<i32: 2, 1>} : memref<1568x128xf32, #tpu.memory_space<vmem>>, vector<14x128xf32>
    %135 = arith.maximumf %133, %134 : vector<14x128xf32>
    %c588 = arith.constant 588 : index
    %c0_98 = arith.constant 0 : index
    %136 = tpu.strided_load %arg13[%c588, %c0_98] {strides = array<i32: 2, 1>} : memref<1568x128xf32, #tpu.memory_space<vmem>>, vector<14x128xf32>
    %c589 = arith.constant 589 : index
    %c0_99 = arith.constant 0 : index
    %137 = tpu.strided_load %arg13[%c589, %c0_99] {strides = array<i32: 2, 1>} : memref<1568x128xf32, #tpu.memory_space<vmem>>, vector<14x128xf32>
    %138 = arith.maximumf %136, %137 : vector<14x128xf32>
    %139 = arith.maximumf %135, %138 : vector<14x128xf32>
    %c160 = arith.constant 160 : index
    %c0_100 = arith.constant 0 : index
    %140 = vector.load %arg14[%c160, %c0_100] : memref<528x128xf32, #tpu.memory_space<vmem>>, vector<14x128xf32>
    tpu.vector_store %arg14[%c160, %c0_100], %139 {strides = array<i32>} : memref<528x128xf32, #tpu.memory_space<vmem>>, vector<14x128xf32>,
    %c616 = arith.constant 616 : index
    %c0_101 = arith.constant 0 : index
    %141 = tpu.strided_load %arg13[%c616, %c0_101] {strides = array<i32: 2, 1>} : memref<1568x128xf32, #tpu.memory_space<vmem>>, vector<14x128xf32>
    %c617 = arith.constant 617 : index
    %c0_102 = arith.constant 0 : index
    %142 = tpu.strided_load %arg13[%c617, %c0_102] {strides = array<i32: 2, 1>} : memref<1568x128xf32, #tpu.memory_space<vmem>>, vector<14x128xf32>
    %143 = arith.maximumf %141, %142 : vector<14x128xf32>
    %c644 = arith.constant 644 : index
    %c0_103 = arith.constant 0 : index
    %144 = tpu.strided_load %arg13[%c644, %c0_103] {strides = array<i32: 2, 1>} : memref<1568x128xf32, #tpu.memory_space<vmem>>, vector<14x128xf32>
    %c645 = arith.constant 645 : index
    %c0_104 = arith.constant 0 : index
    %145 = tpu.strided_load %arg13[%c645, %c0_104] {strides = array<i32: 2, 1>} : memref<1568x128xf32, #tpu.memory_space<vmem>>, vector<14x128xf32>
    %146 = arith.maximumf %144, %145 : vector<14x128xf32>
    %147 = arith.maximumf %143, %146 : vector<14x128xf32>
    %c176 = arith.constant 176 : index
    %c0_105 = arith.constant 0 : index
    %148 = vector.load %arg14[%c176, %c0_105] : memref<528x128xf32, #tpu.memory_space<vmem>>, vector<14x128xf32>
    tpu.vector_store %arg14[%c176, %c0_105], %147 {strides = array<i32>} : memref<528x128xf32, #tpu.memory_space<vmem>>, vector<14x128xf32>,
    %c672_106 = arith.constant 672 : index
    %c0_107 = arith.constant 0 : index
    %149 = tpu.strided_load %arg13[%c672_106, %c0_107] {strides = array<i32: 2, 1>} : memref<1568x128xf32, #tpu.memory_space<vmem>>, vector<14x128xf32>
    %c673 = arith.constant 673 : index
    %c0_108 = arith.constant 0 : index
    %150 = tpu.strided_load %arg13[%c673, %c0_108] {strides = array<i32: 2, 1>} : memref<1568x128xf32, #tpu.memory_space<vmem>>, vector<14x128xf32>
    %151 = arith.maximumf %149, %150 : vector<14x128xf32>
    %c700 = arith.constant 700 : index
    %c0_109 = arith.constant 0 : index
    %152 = tpu.strided_load %arg13[%c700, %c0_109] {strides = array<i32: 2, 1>} : memref<1568x128xf32, #tpu.memory_space<vmem>>, vector<14x128xf32>
    %c701 = arith.constant 701 : index
    %c0_110 = arith.constant 0 : index
    %153 = tpu.strided_load %arg13[%c701, %c0_110] {strides = array<i32: 2, 1>} : memref<1568x128xf32, #tpu.memory_space<vmem>>, vector<14x128xf32>
    %154 = arith.maximumf %152, %153 : vector<14x128xf32>
    %155 = arith.maximumf %151, %154 : vector<14x128xf32>
    %c192 = arith.constant 192 : index
    %c0_111 = arith.constant 0 : index
    %156 = vector.load %arg14[%c192, %c0_111] : memref<528x128xf32, #tpu.memory_space<vmem>>, vector<14x128xf32>
    tpu.vector_store %arg14[%c192, %c0_111], %155 {strides = array<i32>} : memref<528x128xf32, #tpu.memory_space<vmem>>, vector<14x128xf32>,
    %c728 = arith.constant 728 : index
    %c0_112 = arith.constant 0 : index
    %157 = tpu.strided_load %arg13[%c728, %c0_112] {strides = array<i32: 2, 1>} : memref<1568x128xf32, #tpu.memory_space<vmem>>, vector<14x128xf32>
    %c729 = arith.constant 729 : index
    %c0_113 = arith.constant 0 : index
    %158 = tpu.strided_load %arg13[%c729, %c0_113] {strides = array<i32: 2, 1>} : memref<1568x128xf32, #tpu.memory_space<vmem>>, vector<14x128xf32>
    %159 = arith.maximumf %157, %158 : vector<14x128xf32>
    %c756 = arith.constant 756 : index
    %c0_114 = arith.constant 0 : index
    %160 = tpu.strided_load %arg13[%c756, %c0_114] {strides = array<i32: 2, 1>} : memref<1568x128xf32, #tpu.memory_space<vmem>>, vector<14x128xf32>
    %c757 = arith.constant 757 : index
    %c0_115 = arith.constant 0 : index
    %161 = tpu.strided_load %arg13[%c757, %c0_115] {strides = array<i32: 2, 1>} : memref<1568x128xf32, #tpu.memory_space<vmem>>, vector<14x128xf32>
    %162 = arith.maximumf %160, %161 : vector<14x128xf32>
    %163 = arith.maximumf %159, %162 : vector<14x128xf32>
    %c208 = arith.constant 208 : index
    %c0_116 = arith.constant 0 : index
    %164 = vector.load %arg14[%c208, %c0_116] : memref<528x128xf32, #tpu.memory_space<vmem>>, vector<14x128xf32>
    tpu.vector_store %arg14[%c208, %c0_116], %163 {strides = array<i32>} : memref<528x128xf32, #tpu.memory_space<vmem>>, vector<14x128xf32>,
    %c784 = arith.constant 784 : index
    %c0_117 = arith.constant 0 : index
    %165 = tpu.strided_load %arg13[%c784, %c0_117] {strides = array<i32: 2, 1>} : memref<1568x128xf32, #tpu.memory_space<vmem>>, vector<14x128xf32>
    %c785 = arith.constant 785 : index
    %c0_118 = arith.constant 0 : index
    %166 = tpu.strided_load %arg13[%c785, %c0_118] {strides = array<i32: 2, 1>} : memref<1568x128xf32, #tpu.memory_space<vmem>>, vector<14x128xf32>
    %167 = arith.maximumf %165, %166 : vector<14x128xf32>
    %c812 = arith.constant 812 : index
    %c0_119 = arith.constant 0 : index
    %168 = tpu.strided_load %arg13[%c812, %c0_119] {strides = array<i32: 2, 1>} : memref<1568x128xf32, #tpu.memory_space<vmem>>, vector<14x128xf32>
    %c813 = arith.constant 813 : index
    %c0_120 = arith.constant 0 : index
    %169 = tpu.strided_load %arg13[%c813, %c0_120] {strides = array<i32: 2, 1>} : memref<1568x128xf32, #tpu.memory_space<vmem>>, vector<14x128xf32>
    %170 = arith.maximumf %168, %169 : vector<14x128xf32>
    %171 = arith.maximumf %167, %170 : vector<14x128xf32>
    %c224_121 = arith.constant 224 : index
    %c0_122 = arith.constant 0 : index
    %172 = vector.load %arg14[%c224_121, %c0_122] : memref<528x128xf32, #tpu.memory_space<vmem>>, vector<14x128xf32>
    tpu.vector_store %arg14[%c224_121, %c0_122], %171 {strides = array<i32>} : memref<528x128xf32, #tpu.memory_space<vmem>>, vector<14x128xf32>,
    %c840 = arith.constant 840 : index
    %c0_123 = arith.constant 0 : index
    %173 = tpu.strided_load %arg13[%c840, %c0_123] {strides = array<i32: 2, 1>} : memref<1568x128xf32, #tpu.memory_space<vmem>>, vector<14x128xf32>
    %c841 = arith.constant 841 : index
    %c0_124 = arith.constant 0 : index
    %174 = tpu.strided_load %arg13[%c841, %c0_124] {strides = array<i32: 2, 1>} : memref<1568x128xf32, #tpu.memory_space<vmem>>, vector<14x128xf32>
    %175 = arith.maximumf %173, %174 : vector<14x128xf32>
    %c868 = arith.constant 868 : index
    %c0_125 = arith.constant 0 : index
    %176 = tpu.strided_load %arg13[%c868, %c0_125] {strides = array<i32: 2, 1>} : memref<1568x128xf32, #tpu.memory_space<vmem>>, vector<14x128xf32>
    %c869 = arith.constant 869 : index
    %c0_126 = arith.constant 0 : index
    %177 = tpu.strided_load %arg13[%c869, %c0_126] {strides = array<i32: 2, 1>} : memref<1568x128xf32, #tpu.memory_space<vmem>>, vector<14x128xf32>
    %178 = arith.maximumf %176, %177 : vector<14x128xf32>
    %179 = arith.maximumf %175, %178 : vector<14x128xf32>
    %c240 = arith.constant 240 : index
    %c0_127 = arith.constant 0 : index
    %180 = vector.load %arg14[%c240, %c0_127] : memref<528x128xf32, #tpu.memory_space<vmem>>, vector<14x128xf32>
    tpu.vector_store %arg14[%c240, %c0_127], %179 {strides = array<i32>} : memref<528x128xf32, #tpu.memory_space<vmem>>, vector<14x128xf32>,
    %c896_128 = arith.constant 896 : index
    %c0_129 = arith.constant 0 : index
    %181 = tpu.strided_load %arg13[%c896_128, %c0_129] {strides = array<i32: 2, 1>} : memref<1568x128xf32, #tpu.memory_space<vmem>>, vector<14x128xf32>
    %c897 = arith.constant 897 : index
    %c0_130 = arith.constant 0 : index
    %182 = tpu.strided_load %arg13[%c897, %c0_130] {strides = array<i32: 2, 1>} : memref<1568x128xf32, #tpu.memory_space<vmem>>, vector<14x128xf32>
    %183 = arith.maximumf %181, %182 : vector<14x128xf32>
    %c924 = arith.constant 924 : index
    %c0_131 = arith.constant 0 : index
    %184 = tpu.strided_load %arg13[%c924, %c0_131] {strides = array<i32: 2, 1>} : memref<1568x128xf32, #tpu.memory_space<vmem>>, vector<14x128xf32>
    %c925 = arith.constant 925 : index
    %c0_132 = arith.constant 0 : index
    %185 = tpu.strided_load %arg13[%c925, %c0_132] {strides = array<i32: 2, 1>} : memref<1568x128xf32, #tpu.memory_space<vmem>>, vector<14x128xf32>
    %186 = arith.maximumf %184, %185 : vector<14x128xf32>
    %187 = arith.maximumf %183, %186 : vector<14x128xf32>
    %c256 = arith.constant 256 : index
    %c0_133 = arith.constant 0 : index
    %188 = vector.load %arg14[%c256, %c0_133] : memref<528x128xf32, #tpu.memory_space<vmem>>, vector<14x128xf32>
    tpu.vector_store %arg14[%c256, %c0_133], %187 {strides = array<i32>} : memref<528x128xf32, #tpu.memory_space<vmem>>, vector<14x128xf32>,
    %c952 = arith.constant 952 : index
    %c0_134 = arith.constant 0 : index
    %189 = tpu.strided_load %arg13[%c952, %c0_134] {strides = array<i32: 2, 1>} : memref<1568x128xf32, #tpu.memory_space<vmem>>, vector<14x128xf32>
    %c953 = arith.constant 953 : index
    %c0_135 = arith.constant 0 : index
    %190 = tpu.strided_load %arg13[%c953, %c0_135] {strides = array<i32: 2, 1>} : memref<1568x128xf32, #tpu.memory_space<vmem>>, vector<14x128xf32>
    %191 = arith.maximumf %189, %190 : vector<14x128xf32>
    %c980 = arith.constant 980 : index
    %c0_136 = arith.constant 0 : index
    %192 = tpu.strided_load %arg13[%c980, %c0_136] {strides = array<i32: 2, 1>} : memref<1568x128xf32, #tpu.memory_space<vmem>>, vector<14x128xf32>
    %c981 = arith.constant 981 : index
    %c0_137 = arith.constant 0 : index
    %193 = tpu.strided_load %arg13[%c981, %c0_137] {strides = array<i32: 2, 1>} : memref<1568x128xf32, #tpu.memory_space<vmem>>, vector<14x128xf32>
    %194 = arith.maximumf %192, %193 : vector<14x128xf32>
    %195 = arith.maximumf %191, %194 : vector<14x128xf32>
    %c272 = arith.constant 272 : index
    %c0_138 = arith.constant 0 : index
    %196 = vector.load %arg14[%c272, %c0_138] : memref<528x128xf32, #tpu.memory_space<vmem>>, vector<14x128xf32>
    tpu.vector_store %arg14[%c272, %c0_138], %195 {strides = array<i32>} : memref<528x128xf32, #tpu.memory_space<vmem>>, vector<14x128xf32>,
    %c1008 = arith.constant 1008 : index
    %c0_139 = arith.constant 0 : index
    %197 = tpu.strided_load %arg13[%c1008, %c0_139] {strides = array<i32: 2, 1>} : memref<1568x128xf32, #tpu.memory_space<vmem>>, vector<14x128xf32>
    %c1009 = arith.constant 1009 : index
    %c0_140 = arith.constant 0 : index
    %198 = tpu.strided_load %arg13[%c1009, %c0_140] {strides = array<i32: 2, 1>} : memref<1568x128xf32, #tpu.memory_space<vmem>>, vector<14x128xf32>
    %199 = arith.maximumf %197, %198 : vector<14x128xf32>
    %c1036 = arith.constant 1036 : index
    %c0_141 = arith.constant 0 : index
    %200 = tpu.strided_load %arg13[%c1036, %c0_141] {strides = array<i32: 2, 1>} : memref<1568x128xf32, #tpu.memory_space<vmem>>, vector<14x128xf32>
    %c1037 = arith.constant 1037 : index
    %c0_142 = arith.constant 0 : index
    %201 = tpu.strided_load %arg13[%c1037, %c0_142] {strides = array<i32: 2, 1>} : memref<1568x128xf32, #tpu.memory_space<vmem>>, vector<14x128xf32>
    %202 = arith.maximumf %200, %201 : vector<14x128xf32>
    %203 = arith.maximumf %199, %202 : vector<14x128xf32>
    %c288 = arith.constant 288 : index
    %c0_143 = arith.constant 0 : index
    %204 = vector.load %arg14[%c288, %c0_143] : memref<528x128xf32, #tpu.memory_space<vmem>>, vector<14x128xf32>
    tpu.vector_store %arg14[%c288, %c0_143], %203 {strides = array<i32>} : memref<528x128xf32, #tpu.memory_space<vmem>>, vector<14x128xf32>,
    %c1064 = arith.constant 1064 : index
    %c0_144 = arith.constant 0 : index
    %205 = tpu.strided_load %arg13[%c1064, %c0_144] {strides = array<i32: 2, 1>} : memref<1568x128xf32, #tpu.memory_space<vmem>>, vector<14x128xf32>
    %c1065 = arith.constant 1065 : index
    %c0_145 = arith.constant 0 : index
    %206 = tpu.strided_load %arg13[%c1065, %c0_145] {strides = array<i32: 2, 1>} : memref<1568x128xf32, #tpu.memory_space<vmem>>, vector<14x128xf32>
    %207 = arith.maximumf %205, %206 : vector<14x128xf32>
    %c1092 = arith.constant 1092 : index
    %c0_146 = arith.constant 0 : index
    %208 = tpu.strided_load %arg13[%c1092, %c0_146] {strides = array<i32: 2, 1>} : memref<1568x128xf32, #tpu.memory_space<vmem>>, vector<14x128xf32>
    %c1093 = arith.constant 1093 : index
    %c0_147 = arith.constant 0 : index
    %209 = tpu.strided_load %arg13[%c1093, %c0_147] {strides = array<i32: 2, 1>} : memref<1568x128xf32, #tpu.memory_space<vmem>>, vector<14x128xf32>
    %210 = arith.maximumf %208, %209 : vector<14x128xf32>
    %211 = arith.maximumf %207, %210 : vector<14x128xf32>
    %c304 = arith.constant 304 : index
    %c0_148 = arith.constant 0 : index
    %212 = vector.load %arg14[%c304, %c0_148] : memref<528x128xf32, #tpu.memory_space<vmem>>, vector<14x128xf32>
    tpu.vector_store %arg14[%c304, %c0_148], %211 {strides = array<i32>} : memref<528x128xf32, #tpu.memory_space<vmem>>, vector<14x128xf32>,
    %c1120_149 = arith.constant 1120 : index
    %c0_150 = arith.constant 0 : index
    %213 = tpu.strided_load %arg13[%c1120_149, %c0_150] {strides = array<i32: 2, 1>} : memref<1568x128xf32, #tpu.memory_space<vmem>>, vector<14x128xf32>
    %c1121 = arith.constant 1121 : index
    %c0_151 = arith.constant 0 : index
    %214 = tpu.strided_load %arg13[%c1121, %c0_151] {strides = array<i32: 2, 1>} : memref<1568x128xf32, #tpu.memory_space<vmem>>, vector<14x128xf32>
    %215 = arith.maximumf %213, %214 : vector<14x128xf32>
    %c1148 = arith.constant 1148 : index
    %c0_152 = arith.constant 0 : index
    %216 = tpu.strided_load %arg13[%c1148, %c0_152] {strides = array<i32: 2, 1>} : memref<1568x128xf32, #tpu.memory_space<vmem>>, vector<14x128xf32>
    %c1149 = arith.constant 1149 : index
    %c0_153 = arith.constant 0 : index
    %217 = tpu.strided_load %arg13[%c1149, %c0_153] {strides = array<i32: 2, 1>} : memref<1568x128xf32, #tpu.memory_space<vmem>>, vector<14x128xf32>
    %218 = arith.maximumf %216, %217 : vector<14x128xf32>
    %219 = arith.maximumf %215, %218 : vector<14x128xf32>
    %c320 = arith.constant 320 : index
    %c0_154 = arith.constant 0 : index
    %220 = vector.load %arg14[%c320, %c0_154] : memref<528x128xf32, #tpu.memory_space<vmem>>, vector<14x128xf32>
    tpu.vector_store %arg14[%c320, %c0_154], %219 {strides = array<i32>} : memref<528x128xf32, #tpu.memory_space<vmem>>, vector<14x128xf32>,
    %c1176 = arith.constant 1176 : index
    %c0_155 = arith.constant 0 : index
    %221 = tpu.strided_load %arg13[%c1176, %c0_155] {strides = array<i32: 2, 1>} : memref<1568x128xf32, #tpu.memory_space<vmem>>, vector<14x128xf32>
    %c1177 = arith.constant 1177 : index
    %c0_156 = arith.constant 0 : index
    %222 = tpu.strided_load %arg13[%c1177, %c0_156] {strides = array<i32: 2, 1>} : memref<1568x128xf32, #tpu.memory_space<vmem>>, vector<14x128xf32>
    %223 = arith.maximumf %221, %222 : vector<14x128xf32>
    %c1204 = arith.constant 1204 : index
    %c0_157 = arith.constant 0 : index
    %224 = tpu.strided_load %arg13[%c1204, %c0_157] {strides = array<i32: 2, 1>} : memref<1568x128xf32, #tpu.memory_space<vmem>>, vector<14x128xf32>
    %c1205 = arith.constant 1205 : index
    %c0_158 = arith.constant 0 : index
    %225 = tpu.strided_load %arg13[%c1205, %c0_158] {strides = array<i32: 2, 1>} : memref<1568x128xf32, #tpu.memory_space<vmem>>, vector<14x128xf32>
    %226 = arith.maximumf %224, %225 : vector<14x128xf32>
    %227 = arith.maximumf %223, %226 : vector<14x128xf32>
    %c336_159 = arith.constant 336 : index
    %c0_160 = arith.constant 0 : index
    %228 = vector.load %arg14[%c336_159, %c0_160] : memref<528x128xf32, #tpu.memory_space<vmem>>, vector<14x128xf32>
    tpu.vector_store %arg14[%c336_159, %c0_160], %227 {strides = array<i32>} : memref<528x128xf32, #tpu.memory_space<vmem>>, vector<14x128xf32>,
    %c1232 = arith.constant 1232 : index
    %c0_161 = arith.constant 0 : index
    %229 = tpu.strided_load %arg13[%c1232, %c0_161] {strides = array<i32: 2, 1>} : memref<1568x128xf32, #tpu.memory_space<vmem>>, vector<14x128xf32>
    %c1233 = arith.constant 1233 : index
    %c0_162 = arith.constant 0 : index
    %230 = tpu.strided_load %arg13[%c1233, %c0_162] {strides = array<i32: 2, 1>} : memref<1568x128xf32, #tpu.memory_space<vmem>>, vector<14x128xf32>
    %231 = arith.maximumf %229, %230 : vector<14x128xf32>
    %c1260 = arith.constant 1260 : index
    %c0_163 = arith.constant 0 : index
    %232 = tpu.strided_load %arg13[%c1260, %c0_163] {strides = array<i32: 2, 1>} : memref<1568x128xf32, #tpu.memory_space<vmem>>, vector<14x128xf32>
    %c1261 = arith.constant 1261 : index
    %c0_164 = arith.constant 0 : index
    %233 = tpu.strided_load %arg13[%c1261, %c0_164] {strides = array<i32: 2, 1>} : memref<1568x128xf32, #tpu.memory_space<vmem>>, vector<14x128xf32>
    %234 = arith.maximumf %232, %233 : vector<14x128xf32>
    %235 = arith.maximumf %231, %234 : vector<14x128xf32>
    %c352 = arith.constant 352 : index
    %c0_165 = arith.constant 0 : index
    %236 = vector.load %arg14[%c352, %c0_165] : memref<528x128xf32, #tpu.memory_space<vmem>>, vector<14x128xf32>
    tpu.vector_store %arg14[%c352, %c0_165], %235 {strides = array<i32>} : memref<528x128xf32, #tpu.memory_space<vmem>>, vector<14x128xf32>,
    %c1288 = arith.constant 1288 : index
    %c0_166 = arith.constant 0 : index
    %237 = tpu.strided_load %arg13[%c1288, %c0_166] {strides = array<i32: 2, 1>} : memref<1568x128xf32, #tpu.memory_space<vmem>>, vector<14x128xf32>
    %c1289 = arith.constant 1289 : index
    %c0_167 = arith.constant 0 : index
    %238 = tpu.strided_load %arg13[%c1289, %c0_167] {strides = array<i32: 2, 1>} : memref<1568x128xf32, #tpu.memory_space<vmem>>, vector<14x128xf32>
    %239 = arith.maximumf %237, %238 : vector<14x128xf32>
    %c1316 = arith.constant 1316 : index
    %c0_168 = arith.constant 0 : index
    %240 = tpu.strided_load %arg13[%c1316, %c0_168] {strides = array<i32: 2, 1>} : memref<1568x128xf32, #tpu.memory_space<vmem>>, vector<14x128xf32>
    %c1317 = arith.constant 1317 : index
    %c0_169 = arith.constant 0 : index
    %241 = tpu.strided_load %arg13[%c1317, %c0_169] {strides = array<i32: 2, 1>} : memref<1568x128xf32, #tpu.memory_space<vmem>>, vector<14x128xf32>
    %242 = arith.maximumf %240, %241 : vector<14x128xf32>
    %243 = arith.maximumf %239, %242 : vector<14x128xf32>
    %c368 = arith.constant 368 : index
    %c0_170 = arith.constant 0 : index
    %244 = vector.load %arg14[%c368, %c0_170] : memref<528x128xf32, #tpu.memory_space<vmem>>, vector<14x128xf32>
    tpu.vector_store %arg14[%c368, %c0_170], %243 {strides = array<i32>} : memref<528x128xf32, #tpu.memory_space<vmem>>, vector<14x128xf32>,
    %c1344_171 = arith.constant 1344 : index
    %c0_172 = arith.constant 0 : index
    %245 = tpu.strided_load %arg13[%c1344_171, %c0_172] {strides = array<i32: 2, 1>} : memref<1568x128xf32, #tpu.memory_space<vmem>>, vector<14x128xf32>
    %c1345 = arith.constant 1345 : index
    %c0_173 = arith.constant 0 : index
    %246 = tpu.strided_load %arg13[%c1345, %c0_173] {strides = array<i32: 2, 1>} : memref<1568x128xf32, #tpu.memory_space<vmem>>, vector<14x128xf32>
    %247 = arith.maximumf %245, %246 : vector<14x128xf32>
    %c1372 = arith.constant 1372 : index
    %c0_174 = arith.constant 0 : index
    %248 = tpu.strided_load %arg13[%c1372, %c0_174] {strides = array<i32: 2, 1>} : memref<1568x128xf32, #tpu.memory_space<vmem>>, vector<14x128xf32>
    %c1373 = arith.constant 1373 : index
    %c0_175 = arith.constant 0 : index
    %249 = tpu.strided_load %arg13[%c1373, %c0_175] {strides = array<i32: 2, 1>} : memref<1568x128xf32, #tpu.memory_space<vmem>>, vector<14x128xf32>
    %250 = arith.maximumf %248, %249 : vector<14x128xf32>
    %251 = arith.maximumf %247, %250 : vector<14x128xf32>
    %c384 = arith.constant 384 : index
    %c0_176 = arith.constant 0 : index
    %252 = vector.load %arg14[%c384, %c0_176] : memref<528x128xf32, #tpu.memory_space<vmem>>, vector<14x128xf32>
    tpu.vector_store %arg14[%c384, %c0_176], %251 {strides = array<i32>} : memref<528x128xf32, #tpu.memory_space<vmem>>, vector<14x128xf32>,
    %c1400 = arith.constant 1400 : index
    %c0_177 = arith.constant 0 : index
    %253 = tpu.strided_load %arg13[%c1400, %c0_177] {strides = array<i32: 2, 1>} : memref<1568x128xf32, #tpu.memory_space<vmem>>, vector<14x128xf32>
    %c1401 = arith.constant 1401 : index
    %c0_178 = arith.constant 0 : index
    %254 = tpu.strided_load %arg13[%c1401, %c0_178] {strides = array<i32: 2, 1>} : memref<1568x128xf32, #tpu.memory_space<vmem>>, vector<14x128xf32>
    %255 = arith.maximumf %253, %254 : vector<14x128xf32>
    %c1428 = arith.constant 1428 : index
    %c0_179 = arith.constant 0 : index
    %256 = tpu.strided_load %arg13[%c1428, %c0_179] {strides = array<i32: 2, 1>} : memref<1568x128xf32, #tpu.memory_space<vmem>>, vector<14x128xf32>
    %c1429 = arith.constant 1429 : index
    %c0_180 = arith.constant 0 : index
    %257 = tpu.strided_load %arg13[%c1429, %c0_180] {strides = array<i32: 2, 1>} : memref<1568x128xf32, #tpu.memory_space<vmem>>, vector<14x128xf32>
    %258 = arith.maximumf %256, %257 : vector<14x128xf32>
    %259 = arith.maximumf %255, %258 : vector<14x128xf32>
    %c400 = arith.constant 400 : index
    %c0_181 = arith.constant 0 : index
    %260 = vector.load %arg14[%c400, %c0_181] : memref<528x128xf32, #tpu.memory_space<vmem>>, vector<14x128xf32>
    tpu.vector_store %arg14[%c400, %c0_181], %259 {strides = array<i32>} : memref<528x128xf32, #tpu.memory_space<vmem>>, vector<14x128xf32>,
    %c1456 = arith.constant 1456 : index
    %c0_182 = arith.constant 0 : index
    %261 = tpu.strided_load %arg13[%c1456, %c0_182] {strides = array<i32: 2, 1>} : memref<1568x128xf32, #tpu.memory_space<vmem>>, vector<14x128xf32>
    %c1457 = arith.constant 1457 : index
    %c0_183 = arith.constant 0 : index
    %262 = tpu.strided_load %arg13[%c1457, %c0_183] {strides = array<i32: 2, 1>} : memref<1568x128xf32, #tpu.memory_space<vmem>>, vector<14x128xf32>
    %263 = arith.maximumf %261, %262 : vector<14x128xf32>
    %c1484 = arith.constant 1484 : index
    %c0_184 = arith.constant 0 : index
    %264 = tpu.strided_load %arg13[%c1484, %c0_184] {strides = array<i32: 2, 1>} : memref<1568x128xf32, #tpu.memory_space<vmem>>, vector<14x128xf32>
    %c1485 = arith.constant 1485 : index
    %c0_185 = arith.constant 0 : index
    %265 = tpu.strided_load %arg13[%c1485, %c0_185] {strides = array<i32: 2, 1>} : memref<1568x128xf32, #tpu.memory_space<vmem>>, vector<14x128xf32>
    %266 = arith.maximumf %264, %265 : vector<14x128xf32>
    %267 = arith.maximumf %263, %266 : vector<14x128xf32>
    %c416 = arith.constant 416 : index
    %c0_186 = arith.constant 0 : index
    %268 = vector.load %arg14[%c416, %c0_186] : memref<528x128xf32, #tpu.memory_space<vmem>>, vector<14x128xf32>
    tpu.vector_store %arg14[%c416, %c0_186], %267 {strides = array<i32>} : memref<528x128xf32, #tpu.memory_space<vmem>>, vector<14x128xf32>,
    %c1512 = arith.constant 1512 : index
    %c0_187 = arith.constant 0 : index
    %269 = tpu.strided_load %arg13[%c1512, %c0_187] {strides = array<i32: 2, 1>} : memref<1568x128xf32, #tpu.memory_space<vmem>>, vector<14x128xf32>
    %c1513 = arith.constant 1513 : index
    %c0_188 = arith.constant 0 : index
    %270 = tpu.strided_load %arg13[%c1513, %c0_188] {strides = array<i32: 2, 1>} : memref<1568x128xf32, #tpu.memory_space<vmem>>, vector<14x128xf32>
    %271 = arith.maximumf %269, %270 : vector<14x128xf32>
    %c1540 = arith.constant 1540 : index
    %c0_189 = arith.constant 0 : index
    %272 = tpu.strided_load %arg13[%c1540, %c0_189] {strides = array<i32: 2, 1>} : memref<1568x128xf32, #tpu.memory_space<vmem>>, vector<14x128xf32>
    %c1541 = arith.constant 1541 : index
    %c0_190 = arith.constant 0 : index
    %273 = tpu.strided_load %arg13[%c1541, %c0_190] {strides = array<i32: 2, 1>} : memref<1568x128xf32, #tpu.memory_space<vmem>>, vector<14x128xf32>
    %274 = arith.maximumf %272, %273 : vector<14x128xf32>
    %275 = arith.maximumf %271, %274 : vector<14x128xf32>
    %c432 = arith.constant 432 : index
    %c0_191 = arith.constant 0 : index
    %276 = vector.load %arg14[%c432, %c0_191] : memref<528x128xf32, #tpu.memory_space<vmem>>, vector<14x128xf32>
    tpu.vector_store %arg14[%c432, %c0_191], %275 {strides = array<i32>} : memref<528x128xf32, #tpu.memory_space<vmem>>, vector<14x128xf32>,
    %c0_192 = arith.constant 0 : index
    %c0_193 = arith.constant 0 : index
    %277 = vector.load %arg14[%c0_192, %c0_193] : memref<528x128xf32, #tpu.memory_space<vmem>>, vector<224x128xf32>
    %c1_194 = arith.constant 1 : index
    %c0_195 = arith.constant 0 : index
    %278 = vector.load %arg14[%c1_194, %c0_195] : memref<528x128xf32, #tpu.memory_space<vmem>>, vector<224x128xf32>
    %c6_i32 = arith.constant 6 : i32
    %279 = tpu.dynamic_rotate %278 by %c6_i32 dim 1 : vector<224x128xf32>, i32 -> vector<224x128xf32>
    %280 = arith.addf %277, %279 : vector<224x128xf32>
    %c2 = arith.constant 2 : index
    %c0_196 = arith.constant 0 : index
    %281 = vector.load %arg14[%c2, %c0_196] : memref<528x128xf32, #tpu.memory_space<vmem>>, vector<224x128xf32>
    %c12_i32 = arith.constant 12 : i32
    %282 = tpu.dynamic_rotate %281 by %c12_i32 dim 1 : vector<224x128xf32>, i32 -> vector<224x128xf32>
    %283 = arith.addf %280, %282 : vector<224x128xf32>
    %c3 = arith.constant 3 : index
    %c0_197 = arith.constant 0 : index
    %284 = vector.load %arg14[%c3, %c0_197] : memref<528x128xf32, #tpu.memory_space<vmem>>, vector<224x128xf32>
    %c18_i32 = arith.constant 18 : i32
    %285 = tpu.dynamic_rotate %284 by %c18_i32 dim 1 : vector<224x128xf32>, i32 -> vector<224x128xf32>
    %286 = arith.addf %283, %285 : vector<224x128xf32>
    %c4 = arith.constant 4 : index
    %c0_198 = arith.constant 0 : index
    %287 = vector.load %arg14[%c4, %c0_198] : memref<528x128xf32, #tpu.memory_space<vmem>>, vector<224x128xf32>
    %c24_i32 = arith.constant 24 : i32
    %288 = tpu.dynamic_rotate %287 by %c24_i32 dim 1 : vector<224x128xf32>, i32 -> vector<224x128xf32>
    %289 = arith.addf %286, %288 : vector<224x128xf32>
    %290 = arith.truncf %289 : vector<224x128xf32> to vector<224x128xbf16>
    %c0_199 = arith.constant 0 : index
    %c0_200 = arith.constant 0 : index
    %291 = vector.load %arg15[%c0_199, %c0_200] : memref<512x128xbf16, #tpu.memory_space<vmem>>, vector<224x128xbf16>
    tpu.vector_store %arg15[%c0_199, %c0_200], %290 {strides = array<i32>} : memref<512x128xbf16, #tpu.memory_space<vmem>>, vector<224x128xbf16>,
    %c224_201 = arith.constant 224 : index
    %c0_202 = arith.constant 0 : index
    %292 = vector.load %arg14[%c224_201, %c0_202] : memref<528x128xf32, #tpu.memory_space<vmem>>, vector<224x128xf32>
    %c225_203 = arith.constant 225 : index
    %c0_204 = arith.constant 0 : index
    %293 = vector.load %arg14[%c225_203, %c0_204] : memref<528x128xf32, #tpu.memory_space<vmem>>, vector<224x128xf32>
    %c6_i32_205 = arith.constant 6 : i32
    %294 = tpu.dynamic_rotate %293 by %c6_i32_205 dim 1 : vector<224x128xf32>, i32 -> vector<224x128xf32>
    %295 = arith.addf %292, %294 : vector<224x128xf32>
    %c226 = arith.constant 226 : index
    %c0_206 = arith.constant 0 : index
    %296 = vector.load %arg14[%c226, %c0_206] : memref<528x128xf32, #tpu.memory_space<vmem>>, vector<224x128xf32>
    %c12_i32_207 = arith.constant 12 : i32
    %297 = tpu.dynamic_rotate %296 by %c12_i32_207 dim 1 : vector<224x128xf32>, i32 -> vector<224x128xf32>
    %298 = arith.addf %295, %297 : vector<224x128xf32>
    %c227 = arith.constant 227 : index
    %c0_208 = arith.constant 0 : index
    %299 = vector.load %arg14[%c227, %c0_208] : memref<528x128xf32, #tpu.memory_space<vmem>>, vector<224x128xf32>
    %c18_i32_209 = arith.constant 18 : i32
    %300 = tpu.dynamic_rotate %299 by %c18_i32_209 dim 1 : vector<224x128xf32>, i32 -> vector<224x128xf32>
    %301 = arith.addf %298, %300 : vector<224x128xf32>
    %c228 = arith.constant 228 : index
    %c0_210 = arith.constant 0 : index
    %302 = vector.load %arg14[%c228, %c0_210] : memref<528x128xf32, #tpu.memory_space<vmem>>, vector<224x128xf32>
    %c24_i32_211 = arith.constant 24 : i32
    %303 = tpu.dynamic_rotate %302 by %c24_i32_211 dim 1 : vector<224x128xf32>, i32 -> vector<224x128xf32>
    %304 = arith.addf %301, %303 : vector<224x128xf32>
    %305 = arith.truncf %304 : vector<224x128xf32> to vector<224x128xbf16>
    %c224_212 = arith.constant 224 : index
    %c0_213 = arith.constant 0 : index
    %306 = vector.load %arg15[%c224_212, %c0_213] : memref<512x128xbf16, #tpu.memory_space<vmem>>, vector<224x128xbf16>
    tpu.vector_store %arg15[%c224_212, %c0_213], %305 {strides = array<i32>} : memref<512x128xbf16, #tpu.memory_space<vmem>>, vector<224x128xbf16>,
    %c448_214 = arith.constant 448 : index
    %c0_215 = arith.constant 0 : index
    %307 = vector.load %arg14[%c448_214, %c0_215] : memref<528x128xf32, #tpu.memory_space<vmem>>, vector<64x128xf32>
    %c449_216 = arith.constant 449 : index
    %c0_217 = arith.constant 0 : index
    %308 = vector.load %arg14[%c449_216, %c0_217] : memref<528x128xf32, #tpu.memory_space<vmem>>, vector<64x128xf32>
    %c6_i32_218 = arith.constant 6 : i32
    %309 = tpu.dynamic_rotate %308 by %c6_i32_218 dim 1 : vector<64x128xf32>, i32 -> vector<64x128xf32>
    %310 = arith.addf %307, %309 : vector<64x128xf32>
    %c450 = arith.constant 450 : index
    %c0_219 = arith.constant 0 : index
    %311 = vector.load %arg14[%c450, %c0_219] : memref<528x128xf32, #tpu.memory_space<vmem>>, vector<64x128xf32>
    %c12_i32_220 = arith.constant 12 : i32
    %312 = tpu.dynamic_rotate %311 by %c12_i32_220 dim 1 : vector<64x128xf32>, i32 -> vector<64x128xf32>
    %313 = arith.addf %310, %312 : vector<64x128xf32>
    %c451 = arith.constant 451 : index
    %c0_221 = arith.constant 0 : index
    %314 = vector.load %arg14[%c451, %c0_221] : memref<528x128xf32, #tpu.memory_space<vmem>>, vector<64x128xf32>
    %c18_i32_222 = arith.constant 18 : i32
    %315 = tpu.dynamic_rotate %314 by %c18_i32_222 dim 1 : vector<64x128xf32>, i32 -> vector<64x128xf32>
    %316 = arith.addf %313, %315 : vector<64x128xf32>
    %c452 = arith.constant 452 : index
    %c0_223 = arith.constant 0 : index
    %317 = vector.load %arg14[%c452, %c0_223] : memref<528x128xf32, #tpu.memory_space<vmem>>, vector<64x128xf32>
    %c24_i32_224 = arith.constant 24 : i32
    %318 = tpu.dynamic_rotate %317 by %c24_i32_224 dim 1 : vector<64x128xf32>, i32 -> vector<64x128xf32>
    %319 = arith.addf %316, %318 : vector<64x128xf32>
    %320 = arith.truncf %319 : vector<64x128xf32> to vector<64x128xbf16>
    %c448_225 = arith.constant 448 : index
    %c0_226 = arith.constant 0 : index
    %321 = vector.load %arg15[%c448_225, %c0_226] : memref<512x128xbf16, #tpu.memory_space<vmem>>, vector<64x128xbf16>
    tpu.vector_store %arg15[%c448_225, %c0_226], %320 {strides = array<i32>} : memref<512x128xbf16, #tpu.memory_space<vmem>>, vector<64x128xbf16>,
    %c0_227 = arith.constant 0 : index
    %c0_228 = arith.constant 0 : index
    %322 = vector.load %arg5[%c0_227, %c0_228] : memref<1x128xf32, #tpu.memory_space<vmem>>, vector<1x128xf32>
    %c0_229 = arith.constant 0 : index
    %c0_230 = arith.constant 0 : index
    %323 = vector.load %arg15[%c0_229, %c0_230] : memref<512x128xbf16, #tpu.memory_space<vmem>>, vector<224x128xbf16>
    %c0_231 = arith.constant 0 : index
    %c0_232 = arith.constant 0 : index
    %324 = vector.load %arg4[%c0_231, %c0_232] : memref<640x128xbf16, #tpu.memory_space<vmem>>, vector<128x128xbf16>
    %cst_233 = arith.constant dense<0.000000e+00> : vector<224x128xf32>
    %325 = tpu.matmul %323, %324, %cst_233 {dimension_numbers = #tpu.dot_dimension_numbers<[1], [0], [0], [1], [0, 0, 1, 1], [], []>} : vector<224x128xbf16>, vector<128x128xbf16>, vector<224x128xf32> -> vector<224x128xf32>
    %c16_234 = arith.constant 16 : index
    %c0_235 = arith.constant 0 : index
    %326 = vector.load %arg15[%c16_234, %c0_235] : memref<512x128xbf16, #tpu.memory_space<vmem>>, vector<224x128xbf16>
    %c128_236 = arith.constant 128 : index
    %c0_237 = arith.constant 0 : index
    %327 = vector.load %arg4[%c128_236, %c0_237] : memref<640x128xbf16, #tpu.memory_space<vmem>>, vector<128x128xbf16>
    %cst_238 = arith.constant dense<0.000000e+00> : vector<224x128xf32>
    %328 = tpu.matmul %326, %327, %cst_238 {dimension_numbers = #tpu.dot_dimension_numbers<[1], [0], [0], [1], [0, 0, 1, 1], [], []>} : vector<224x128xbf16>, vector<128x128xbf16>, vector<224x128xf32> -> vector<224x128xf32>
    %329 = arith.addf %325, %328 : vector<224x128xf32>
    %c32_239 = arith.constant 32 : index
    %c0_240 = arith.constant 0 : index
    %330 = vector.load %arg15[%c32_239, %c0_240] : memref<512x128xbf16, #tpu.memory_space<vmem>>, vector<224x128xbf16>
    %c256_241 = arith.constant 256 : index
    %c0_242 = arith.constant 0 : index
    %331 = vector.load %arg4[%c256_241, %c0_242] : memref<640x128xbf16, #tpu.memory_space<vmem>>, vector<128x128xbf16>
    %cst_243 = arith.constant dense<0.000000e+00> : vector<224x128xf32>
    %332 = tpu.matmul %330, %331, %cst_243 {dimension_numbers = #tpu.dot_dimension_numbers<[1], [0], [0], [1], [0, 0, 1, 1], [], []>} : vector<224x128xbf16>, vector<128x128xbf16>, vector<224x128xf32> -> vector<224x128xf32>
    %333 = arith.addf %329, %332 : vector<224x128xf32>
    %c48_244 = arith.constant 48 : index
    %c0_245 = arith.constant 0 : index
    %334 = vector.load %arg15[%c48_244, %c0_245] : memref<512x128xbf16, #tpu.memory_space<vmem>>, vector<224x128xbf16>
    %c384_246 = arith.constant 384 : index
    %c0_247 = arith.constant 0 : index
    %335 = vector.load %arg4[%c384_246, %c0_247] : memref<640x128xbf16, #tpu.memory_space<vmem>>, vector<128x128xbf16>
    %cst_248 = arith.constant dense<0.000000e+00> : vector<224x128xf32>
    %336 = tpu.matmul %334, %335, %cst_248 {dimension_numbers = #tpu.dot_dimension_numbers<[1], [0], [0], [1], [0, 0, 1, 1], [], []>} : vector<224x128xbf16>, vector<128x128xbf16>, vector<224x128xf32> -> vector<224x128xf32>
    %337 = arith.addf %333, %336 : vector<224x128xf32>
    %c64_249 = arith.constant 64 : index
    %c0_250 = arith.constant 0 : index
    %338 = vector.load %arg15[%c64_249, %c0_250] : memref<512x128xbf16, #tpu.memory_space<vmem>>, vector<224x128xbf16>
    %c512 = arith.constant 512 : index
    %c0_251 = arith.constant 0 : index
    %339 = vector.load %arg4[%c512, %c0_251] : memref<640x128xbf16, #tpu.memory_space<vmem>>, vector<128x128xbf16>
    %cst_252 = arith.constant dense<0.000000e+00> : vector<224x128xf32>
    %340 = tpu.matmul %338, %339, %cst_252 {dimension_numbers = #tpu.dot_dimension_numbers<[1], [0], [0], [1], [0, 0, 1, 1], [], []>} : vector<224x128xbf16>, vector<128x128xbf16>, vector<224x128xf32> -> vector<224x128xf32>
    %341 = arith.addf %337, %340 : vector<224x128xf32>
    %342 = vector.broadcast %322 : vector<1x128xf32> to vector<224x128xf32>
    %343 = arith.addf %341, %342 : vector<224x128xf32>
    %cst_253 = arith.constant 0.000000e+00 : f32
    %344 = vector.broadcast %cst_253 : f32 to vector<224x128xf32>
    %345 = arith.maximumf %343, %344 : vector<224x128xf32>
    %c0_254 = arith.constant 0 : index
    %c0_255 = arith.constant 0 : index
    %346 = vector.load %arg16[%c0_254, %c0_255] : memref<448x128xf32, #tpu.memory_space<vmem>>, vector<224x128xf32>
    tpu.vector_store %arg16[%c0_254, %c0_255], %345 {strides = array<i32>} : memref<448x128xf32, #tpu.memory_space<vmem>>, vector<224x128xf32>,
    %c224_256 = arith.constant 224 : index
    %c0_257 = arith.constant 0 : index
    %347 = vector.load %arg15[%c224_256, %c0_257] : memref<512x128xbf16, #tpu.memory_space<vmem>>, vector<224x128xbf16>
    %c0_258 = arith.constant 0 : index
    %c0_259 = arith.constant 0 : index
    %348 = vector.load %arg4[%c0_258, %c0_259] : memref<640x128xbf16, #tpu.memory_space<vmem>>, vector<128x128xbf16>
    %cst_260 = arith.constant dense<0.000000e+00> : vector<224x128xf32>
    %349 = tpu.matmul %347, %348, %cst_260 {dimension_numbers = #tpu.dot_dimension_numbers<[1], [0], [0], [1], [0, 0, 1, 1], [], []>} : vector<224x128xbf16>, vector<128x128xbf16>, vector<224x128xf32> -> vector<224x128xf32>
    %c240_261 = arith.constant 240 : index
    %c0_262 = arith.constant 0 : index
    %350 = vector.load %arg15[%c240_261, %c0_262] : memref<512x128xbf16, #tpu.memory_space<vmem>>, vector<224x128xbf16>
    %c128_263 = arith.constant 128 : index
    %c0_264 = arith.constant 0 : index
    %351 = vector.load %arg4[%c128_263, %c0_264] : memref<640x128xbf16, #tpu.memory_space<vmem>>, vector<128x128xbf16>
    %cst_265 = arith.constant dense<0.000000e+00> : vector<224x128xf32>
    %352 = tpu.matmul %350, %351, %cst_265 {dimension_numbers = #tpu.dot_dimension_numbers<[1], [0], [0], [1], [0, 0, 1, 1], [], []>} : vector<224x128xbf16>, vector<128x128xbf16>, vector<224x128xf32> -> vector<224x128xf32>
    %353 = arith.addf %349, %352 : vector<224x128xf32>
    %c256_266 = arith.constant 256 : index
    %c0_267 = arith.constant 0 : index
    %354 = vector.load %arg15[%c256_266, %c0_267] : memref<512x128xbf16, #tpu.memory_space<vmem>>, vector<224x128xbf16>
    %c256_268 = arith.constant 256 : index
    %c0_269 = arith.constant 0 : index
    %355 = vector.load %arg4[%c256_268, %c0_269] : memref<640x128xbf16, #tpu.memory_space<vmem>>, vector<128x128xbf16>
    %cst_270 = arith.constant dense<0.000000e+00> : vector<224x128xf32>
    %356 = tpu.matmul %354, %355, %cst_270 {dimension_numbers = #tpu.dot_dimension_numbers<[1], [0], [0], [1], [0, 0, 1, 1], [], []>} : vector<224x128xbf16>, vector<128x128xbf16>, vector<224x128xf32> -> vector<224x128xf32>
    %357 = arith.addf %353, %356 : vector<224x128xf32>
    %c272_271 = arith.constant 272 : index
    %c0_272 = arith.constant 0 : index
    %358 = vector.load %arg15[%c272_271, %c0_272] : memref<512x128xbf16, #tpu.memory_space<vmem>>, vector<224x128xbf16>
    %c384_273 = arith.constant 384 : index
    %c0_274 = arith.constant 0 : index
    %359 = vector.load %arg4[%c384_273, %c0_274] : memref<640x128xbf16, #tpu.memory_space<vmem>>, vector<128x128xbf16>
    %cst_275 = arith.constant dense<0.000000e+00> : vector<224x128xf32>
    %360 = tpu.matmul %358, %359, %cst_275 {dimension_numbers = #tpu.dot_dimension_numbers<[1], [0], [0], [1], [0, 0, 1, 1], [], []>} : vector<224x128xbf16>, vector<128x128xbf16>, vector<224x128xf32> -> vector<224x128xf32>
    %361 = arith.addf %357, %360 : vector<224x128xf32>
    %c288_276 = arith.constant 288 : index
    %c0_277 = arith.constant 0 : index
    %362 = vector.load %arg15[%c288_276, %c0_277] : memref<512x128xbf16, #tpu.memory_space<vmem>>, vector<224x128xbf16>
    %c512_278 = arith.constant 512 : index
    %c0_279 = arith.constant 0 : index
    %363 = vector.load %arg4[%c512_278, %c0_279] : memref<640x128xbf16, #tpu.memory_space<vmem>>, vector<128x128xbf16>
    %cst_280 = arith.constant dense<0.000000e+00> : vector<224x128xf32>
    %364 = tpu.matmul %362, %363, %cst_280 {dimension_numbers = #tpu.dot_dimension_numbers<[1], [0], [0], [1], [0, 0, 1, 1], [], []>} : vector<224x128xbf16>, vector<128x128xbf16>, vector<224x128xf32> -> vector<224x128xf32>
    %365 = arith.addf %361, %364 : vector<224x128xf32>
    %366 = vector.broadcast %322 : vector<1x128xf32> to vector<224x128xf32>
    %367 = arith.addf %365, %366 : vector<224x128xf32>
    %cst_281 = arith.constant 0.000000e+00 : f32
    %368 = vector.broadcast %cst_281 : f32 to vector<224x128xf32>
    %369 = arith.maximumf %367, %368 : vector<224x128xf32>
    %c224_282 = arith.constant 224 : index
    %c0_283 = arith.constant 0 : index
    %370 = vector.load %arg16[%c224_282, %c0_283] : memref<448x128xf32, #tpu.memory_space<vmem>>, vector<224x128xf32>
    tpu.vector_store %arg16[%c224_282, %c0_283], %369 {strides = array<i32>} : memref<448x128xf32, #tpu.memory_space<vmem>>, vector<224x128xf32>,
    %c0_284 = arith.constant 0 : index
    %c0_285 = arith.constant 0 : index
    %371 = tpu.strided_load %arg16[%c0_284, %c0_285] {strides = array<i32: 2, 1>} : memref<448x128xf32, #tpu.memory_space<vmem>>, vector<5x128xf32>
    %c1_286 = arith.constant 1 : index
    %c0_287 = arith.constant 0 : index
    %372 = tpu.strided_load %arg16[%c1_286, %c0_287] {strides = array<i32: 2, 1>} : memref<448x128xf32, #tpu.memory_space<vmem>>, vector<5x128xf32>
    %373 = arith.maximumf %371, %372 : vector<5x128xf32>
    %c16_288 = arith.constant 16 : index
    %c0_289 = arith.constant 0 : index
    %374 = tpu.strided_load %arg16[%c16_288, %c0_289] {strides = array<i32: 2, 1>} : memref<448x128xf32, #tpu.memory_space<vmem>>, vector<5x128xf32>
    %c17 = arith.constant 17 : index
    %c0_290 = arith.constant 0 : index
    %375 = tpu.strided_load %arg16[%c17, %c0_290] {strides = array<i32: 2, 1>} : memref<448x128xf32, #tpu.memory_space<vmem>>, vector<5x128xf32>
    %376 = arith.maximumf %374, %375 : vector<5x128xf32>
    %377 = arith.maximumf %373, %376 : vector<5x128xf32>
    %c0_291 = arith.constant 0 : index
    %c0_292 = arith.constant 0 : index
    %378 = vector.load %arg17[%c0_291, %c0_292] : memref<50x128xf32, #tpu.memory_space<vmem>>, vector<5x128xf32>
    tpu.vector_store %arg17[%c0_291, %c0_292], %377 {strides = array<i32>} : memref<50x128xf32, #tpu.memory_space<vmem>>, vector<5x128xf32>,
    %c32_293 = arith.constant 32 : index
    %c0_294 = arith.constant 0 : index
    %379 = tpu.strided_load %arg16[%c32_293, %c0_294] {strides = array<i32: 2, 1>} : memref<448x128xf32, #tpu.memory_space<vmem>>, vector<5x128xf32>
    %c33 = arith.constant 33 : index
    %c0_295 = arith.constant 0 : index
    %380 = tpu.strided_load %arg16[%c33, %c0_295] {strides = array<i32: 2, 1>} : memref<448x128xf32, #tpu.memory_space<vmem>>, vector<5x128xf32>
    %381 = arith.maximumf %379, %380 : vector<5x128xf32>
    %c48_296 = arith.constant 48 : index
    %c0_297 = arith.constant 0 : index
    %382 = tpu.strided_load %arg16[%c48_296, %c0_297] {strides = array<i32: 2, 1>} : memref<448x128xf32, #tpu.memory_space<vmem>>, vector<5x128xf32>
    %c49 = arith.constant 49 : index
    %c0_298 = arith.constant 0 : index
    %383 = tpu.strided_load %arg16[%c49, %c0_298] {strides = array<i32: 2, 1>} : memref<448x128xf32, #tpu.memory_space<vmem>>, vector<5x128xf32>
    %384 = arith.maximumf %382, %383 : vector<5x128xf32>
    %385 = arith.maximumf %381, %384 : vector<5x128xf32>
    %c5 = arith.constant 5 : index
    %c0_299 = arith.constant 0 : index
    %386 = vector.load %arg17[%c5, %c0_299] : memref<50x128xf32, #tpu.memory_space<vmem>>, vector<5x128xf32>
    tpu.vector_store %arg17[%c5, %c0_299], %385 {strides = array<i32>} : memref<50x128xf32, #tpu.memory_space<vmem>>, vector<5x128xf32>,
    %c64_300 = arith.constant 64 : index
    %c0_301 = arith.constant 0 : index
    %387 = tpu.strided_load %arg16[%c64_300, %c0_301] {strides = array<i32: 2, 1>} : memref<448x128xf32, #tpu.memory_space<vmem>>, vector<5x128xf32>
    %c65 = arith.constant 65 : index
    %c0_302 = arith.constant 0 : index
    %388 = tpu.strided_load %arg16[%c65, %c0_302] {strides = array<i32: 2, 1>} : memref<448x128xf32, #tpu.memory_space<vmem>>, vector<5x128xf32>
    %389 = arith.maximumf %387, %388 : vector<5x128xf32>
    %c80_303 = arith.constant 80 : index
    %c0_304 = arith.constant 0 : index
    %390 = tpu.strided_load %arg16[%c80_303, %c0_304] {strides = array<i32: 2, 1>} : memref<448x128xf32, #tpu.memory_space<vmem>>, vector<5x128xf32>
    %c81 = arith.constant 81 : index
    %c0_305 = arith.constant 0 : index
    %391 = tpu.strided_load %arg16[%c81, %c0_305] {strides = array<i32: 2, 1>} : memref<448x128xf32, #tpu.memory_space<vmem>>, vector<5x128xf32>
    %392 = arith.maximumf %390, %391 : vector<5x128xf32>
    %393 = arith.maximumf %389, %392 : vector<5x128xf32>
    %c10 = arith.constant 10 : index
    %c0_306 = arith.constant 0 : index
    %394 = vector.load %arg17[%c10, %c0_306] : memref<50x128xf32, #tpu.memory_space<vmem>>, vector<5x128xf32>
    tpu.vector_store %arg17[%c10, %c0_306], %393 {strides = array<i32>} : memref<50x128xf32, #tpu.memory_space<vmem>>, vector<5x128xf32>,
    %c96_307 = arith.constant 96 : index
    %c0_308 = arith.constant 0 : index
    %395 = tpu.strided_load %arg16[%c96_307, %c0_308] {strides = array<i32: 2, 1>} : memref<448x128xf32, #tpu.memory_space<vmem>>, vector<5x128xf32>
    %c97 = arith.constant 97 : index
    %c0_309 = arith.constant 0 : index
    %396 = tpu.strided_load %arg16[%c97, %c0_309] {strides = array<i32: 2, 1>} : memref<448x128xf32, #tpu.memory_space<vmem>>, vector<5x128xf32>
    %397 = arith.maximumf %395, %396 : vector<5x128xf32>
    %c112_310 = arith.constant 112 : index
    %c0_311 = arith.constant 0 : index
    %398 = tpu.strided_load %arg16[%c112_310, %c0_311] {strides = array<i32: 2, 1>} : memref<448x128xf32, #tpu.memory_space<vmem>>, vector<5x128xf32>
    %c113_312 = arith.constant 113 : index
    %c0_313 = arith.constant 0 : index
    %399 = tpu.strided_load %arg16[%c113_312, %c0_313] {strides = array<i32: 2, 1>} : memref<448x128xf32, #tpu.memory_space<vmem>>, vector<5x128xf32>
    %400 = arith.maximumf %398, %399 : vector<5x128xf32>
    %401 = arith.maximumf %397, %400 : vector<5x128xf32>
    %c15 = arith.constant 15 : index
    %c0_314 = arith.constant 0 : index
    %402 = vector.load %arg17[%c15, %c0_314] : memref<50x128xf32, #tpu.memory_space<vmem>>, vector<5x128xf32>
    tpu.vector_store %arg17[%c15, %c0_314], %401 {strides = array<i32>} : memref<50x128xf32, #tpu.memory_space<vmem>>, vector<5x128xf32>,
    %c128_315 = arith.constant 128 : index
    %c0_316 = arith.constant 0 : index
    %403 = tpu.strided_load %arg16[%c128_315, %c0_316] {strides = array<i32: 2, 1>} : memref<448x128xf32, #tpu.memory_space<vmem>>, vector<5x128xf32>
    %c129 = arith.constant 129 : index
    %c0_317 = arith.constant 0 : index
    %404 = tpu.strided_load %arg16[%c129, %c0_317] {strides = array<i32: 2, 1>} : memref<448x128xf32, #tpu.memory_space<vmem>>, vector<5x128xf32>
    %405 = arith.maximumf %403, %404 : vector<5x128xf32>
    %c144_318 = arith.constant 144 : index
    %c0_319 = arith.constant 0 : index
    %406 = tpu.strided_load %arg16[%c144_318, %c0_319] {strides = array<i32: 2, 1>} : memref<448x128xf32, #tpu.memory_space<vmem>>, vector<5x128xf32>
    %c145 = arith.constant 145 : index
    %c0_320 = arith.constant 0 : index
    %407 = tpu.strided_load %arg16[%c145, %c0_320] {strides = array<i32: 2, 1>} : memref<448x128xf32, #tpu.memory_space<vmem>>, vector<5x128xf32>
    %408 = arith.maximumf %406, %407 : vector<5x128xf32>
    %409 = arith.maximumf %405, %408 : vector<5x128xf32>
    %c20 = arith.constant 20 : index
    %c0_321 = arith.constant 0 : index
    %410 = vector.load %arg17[%c20, %c0_321] : memref<50x128xf32, #tpu.memory_space<vmem>>, vector<5x128xf32>
    tpu.vector_store %arg17[%c20, %c0_321], %409 {strides = array<i32>} : memref<50x128xf32, #tpu.memory_space<vmem>>, vector<5x128xf32>,
    %c224_322 = arith.constant 224 : index
    %c0_323 = arith.constant 0 : index
    %411 = tpu.strided_load %arg16[%c224_322, %c0_323] {strides = array<i32: 2, 1>} : memref<448x128xf32, #tpu.memory_space<vmem>>, vector<5x128xf32>
    %c225_324 = arith.constant 225 : index
    %c0_325 = arith.constant 0 : index
    %412 = tpu.strided_load %arg16[%c225_324, %c0_325] {strides = array<i32: 2, 1>} : memref<448x128xf32, #tpu.memory_space<vmem>>, vector<5x128xf32>
    %413 = arith.maximumf %411, %412 : vector<5x128xf32>
    %c240_326 = arith.constant 240 : index
    %c0_327 = arith.constant 0 : index
    %414 = tpu.strided_load %arg16[%c240_326, %c0_327] {strides = array<i32: 2, 1>} : memref<448x128xf32, #tpu.memory_space<vmem>>, vector<5x128xf32>
    %c241 = arith.constant 241 : index
    %c0_328 = arith.constant 0 : index
    %415 = tpu.strided_load %arg16[%c241, %c0_328] {strides = array<i32: 2, 1>} : memref<448x128xf32, #tpu.memory_space<vmem>>, vector<5x128xf32>
    %416 = arith.maximumf %414, %415 : vector<5x128xf32>
    %417 = arith.maximumf %413, %416 : vector<5x128xf32>
    %c25 = arith.constant 25 : index
    %c0_329 = arith.constant 0 : index
    %418 = vector.load %arg17[%c25, %c0_329] : memref<50x128xf32, #tpu.memory_space<vmem>>, vector<5x128xf32>
    tpu.vector_store %arg17[%c25, %c0_329], %417 {strides = array<i32>} : memref<50x128xf32, #tpu.memory_space<vmem>>, vector<5x128xf32>,
    %c256_330 = arith.constant 256 : index
    %c0_331 = arith.constant 0 : index
    %419 = tpu.strided_load %arg16[%c256_330, %c0_331] {strides = array<i32: 2, 1>} : memref<448x128xf32, #tpu.memory_space<vmem>>, vector<5x128xf32>
    %c257 = arith.constant 257 : index
    %c0_332 = arith.constant 0 : index
    %420 = tpu.strided_load %arg16[%c257, %c0_332] {strides = array<i32: 2, 1>} : memref<448x128xf32, #tpu.memory_space<vmem>>, vector<5x128xf32>
    %421 = arith.maximumf %419, %420 : vector<5x128xf32>
    %c272_333 = arith.constant 272 : index
    %c0_334 = arith.constant 0 : index
    %422 = tpu.strided_load %arg16[%c272_333, %c0_334] {strides = array<i32: 2, 1>} : memref<448x128xf32, #tpu.memory_space<vmem>>, vector<5x128xf32>
    %c273 = arith.constant 273 : index
    %c0_335 = arith.constant 0 : index
    %423 = tpu.strided_load %arg16[%c273, %c0_335] {strides = array<i32: 2, 1>} : memref<448x128xf32, #tpu.memory_space<vmem>>, vector<5x128xf32>
    %424 = arith.maximumf %422, %423 : vector<5x128xf32>
    %425 = arith.maximumf %421, %424 : vector<5x128xf32>
    %c30 = arith.constant 30 : index
    %c0_336 = arith.constant 0 : index
    %426 = vector.load %arg17[%c30, %c0_336] : memref<50x128xf32, #tpu.memory_space<vmem>>, vector<5x128xf32>
    tpu.vector_store %arg17[%c30, %c0_336], %425 {strides = array<i32>} : memref<50x128xf32, #tpu.memory_space<vmem>>, vector<5x128xf32>,
    %c288_337 = arith.constant 288 : index
    %c0_338 = arith.constant 0 : index
    %427 = tpu.strided_load %arg16[%c288_337, %c0_338] {strides = array<i32: 2, 1>} : memref<448x128xf32, #tpu.memory_space<vmem>>, vector<5x128xf32>
    %c289 = arith.constant 289 : index
    %c0_339 = arith.constant 0 : index
    %428 = tpu.strided_load %arg16[%c289, %c0_339] {strides = array<i32: 2, 1>} : memref<448x128xf32, #tpu.memory_space<vmem>>, vector<5x128xf32>
    %429 = arith.maximumf %427, %428 : vector<5x128xf32>
    %c304_340 = arith.constant 304 : index
    %c0_341 = arith.constant 0 : index
    %430 = tpu.strided_load %arg16[%c304_340, %c0_341] {strides = array<i32: 2, 1>} : memref<448x128xf32, #tpu.memory_space<vmem>>, vector<5x128xf32>
    %c305 = arith.constant 305 : index
    %c0_342 = arith.constant 0 : index
    %431 = tpu.strided_load %arg16[%c305, %c0_342] {strides = array<i32: 2, 1>} : memref<448x128xf32, #tpu.memory_space<vmem>>, vector<5x128xf32>
    %432 = arith.maximumf %430, %431 : vector<5x128xf32>
    %433 = arith.maximumf %429, %432 : vector<5x128xf32>
    %c35 = arith.constant 35 : index
    %c0_343 = arith.constant 0 : index
    %434 = vector.load %arg17[%c35, %c0_343] : memref<50x128xf32, #tpu.memory_space<vmem>>, vector<5x128xf32>
    tpu.vector_store %arg17[%c35, %c0_343], %433 {strides = array<i32>} : memref<50x128xf32, #tpu.memory_space<vmem>>, vector<5x128xf32>,
    %c320_344 = arith.constant 320 : index
    %c0_345 = arith.constant 0 : index
    %435 = tpu.strided_load %arg16[%c320_344, %c0_345] {strides = array<i32: 2, 1>} : memref<448x128xf32, #tpu.memory_space<vmem>>, vector<5x128xf32>
    %c321 = arith.constant 321 : index
    %c0_346 = arith.constant 0 : index
    %436 = tpu.strided_load %arg16[%c321, %c0_346] {strides = array<i32: 2, 1>} : memref<448x128xf32, #tpu.memory_space<vmem>>, vector<5x128xf32>
    %437 = arith.maximumf %435, %436 : vector<5x128xf32>
    %c336_347 = arith.constant 336 : index
    %c0_348 = arith.constant 0 : index
    %438 = tpu.strided_load %arg16[%c336_347, %c0_348] {strides = array<i32: 2, 1>} : memref<448x128xf32, #tpu.memory_space<vmem>>, vector<5x128xf32>
    %c337_349 = arith.constant 337 : index
    %c0_350 = arith.constant 0 : index
    %439 = tpu.strided_load %arg16[%c337_349, %c0_350] {strides = array<i32: 2, 1>} : memref<448x128xf32, #tpu.memory_space<vmem>>, vector<5x128xf32>
    %440 = arith.maximumf %438, %439 : vector<5x128xf32>
    %441 = arith.maximumf %437, %440 : vector<5x128xf32>
    %c40 = arith.constant 40 : index
    %c0_351 = arith.constant 0 : index
    %442 = vector.load %arg17[%c40, %c0_351] : memref<50x128xf32, #tpu.memory_space<vmem>>, vector<5x128xf32>
    tpu.vector_store %arg17[%c40, %c0_351], %441 {strides = array<i32>} : memref<50x128xf32, #tpu.memory_space<vmem>>, vector<5x128xf32>,
    %c352_352 = arith.constant 352 : index
    %c0_353 = arith.constant 0 : index
    %443 = tpu.strided_load %arg16[%c352_352, %c0_353] {strides = array<i32: 2, 1>} : memref<448x128xf32, #tpu.memory_space<vmem>>, vector<5x128xf32>
    %c353 = arith.constant 353 : index
    %c0_354 = arith.constant 0 : index
    %444 = tpu.strided_load %arg16[%c353, %c0_354] {strides = array<i32: 2, 1>} : memref<448x128xf32, #tpu.memory_space<vmem>>, vector<5x128xf32>
    %445 = arith.maximumf %443, %444 : vector<5x128xf32>
    %c368_355 = arith.constant 368 : index
    %c0_356 = arith.constant 0 : index
    %446 = tpu.strided_load %arg16[%c368_355, %c0_356] {strides = array<i32: 2, 1>} : memref<448x128xf32, #tpu.memory_space<vmem>>, vector<5x128xf32>
    %c369 = arith.constant 369 : index
    %c0_357 = arith.constant 0 : index
    %447 = tpu.strided_load %arg16[%c369, %c0_357] {strides = array<i32: 2, 1>} : memref<448x128xf32, #tpu.memory_space<vmem>>, vector<5x128xf32>
    %448 = arith.maximumf %446, %447 : vector<5x128xf32>
    %449 = arith.maximumf %445, %448 : vector<5x128xf32>
    %c45 = arith.constant 45 : index
    %c0_358 = arith.constant 0 : index
    %450 = vector.load %arg17[%c45, %c0_358] : memref<50x128xf32, #tpu.memory_space<vmem>>, vector<5x128xf32>
    tpu.vector_store %arg17[%c45, %c0_358], %449 {strides = array<i32>} : memref<50x128xf32, #tpu.memory_space<vmem>>, vector<5x128xf32>,
    %cst_359 = arith.constant 0.000000e+00 : f32
    %451 = vector.broadcast %cst_359 : f32 to vector<2x128xf32>
    %c0_360 = arith.constant 0 : index
    %c0_361 = arith.constant 0 : index
    %452 = vector.load %arg7[%c0_360, %c0_361] : memref<1x128xf32, #tpu.memory_space<vmem>>, vector<1x128xf32>
    %453 = vector.broadcast %452 : vector<1x128xf32> to vector<2x128xf32>
    %454 = arith.addf %451, %453 : vector<2x128xf32>
    %c0_362 = arith.constant 0 : index
    %c0_363 = arith.constant 0 : index
    %455 = tpu.strided_load %arg17[%c0_362, %c0_363] {strides = array<i32: 25, 1>} : memref<50x128xf32, #tpu.memory_space<vmem>>, vector<2x128xf32>
    %456 = arith.truncf %455 : vector<2x128xf32> to vector<2x128xbf16>
    %c0_364 = arith.constant 0 : index
    %c0_365 = arith.constant 0 : index
    %457 = vector.load %arg6[%c0_364, %c0_365] : memref<3200x128xbf16, #tpu.memory_space<vmem>>, vector<128x128xbf16>
    %cst_366 = arith.constant dense<0.000000e+00> : vector<2x128xf32>
    %458 = tpu.matmul %456, %457, %cst_366 {dimension_numbers = #tpu.dot_dimension_numbers<[1], [0], [0], [1], [0, 0, 1, 1], [], []>} : vector<2x128xbf16>, vector<128x128xbf16>, vector<2x128xf32> -> vector<2x128xf32>
    %459 = arith.addf %454, %458 : vector<2x128xf32>
    %c1_367 = arith.constant 1 : index
    %c0_368 = arith.constant 0 : index
    %460 = tpu.strided_load %arg17[%c1_367, %c0_368] {strides = array<i32: 25, 1>} : memref<50x128xf32, #tpu.memory_space<vmem>>, vector<2x128xf32>
    %461 = arith.truncf %460 : vector<2x128xf32> to vector<2x128xbf16>
    %c128_369 = arith.constant 128 : index
    %c0_370 = arith.constant 0 : index
    %462 = vector.load %arg6[%c128_369, %c0_370] : memref<3200x128xbf16, #tpu.memory_space<vmem>>, vector<128x128xbf16>
    %cst_371 = arith.constant dense<0.000000e+00> : vector<2x128xf32>
    %463 = tpu.matmul %461, %462, %cst_371 {dimension_numbers = #tpu.dot_dimension_numbers<[1], [0], [0], [1], [0, 0, 1, 1], [], []>} : vector<2x128xbf16>, vector<128x128xbf16>, vector<2x128xf32> -> vector<2x128xf32>
    %464 = arith.addf %459, %463 : vector<2x128xf32>
    %c2_372 = arith.constant 2 : index
    %c0_373 = arith.constant 0 : index
    %465 = tpu.strided_load %arg17[%c2_372, %c0_373] {strides = array<i32: 25, 1>} : memref<50x128xf32, #tpu.memory_space<vmem>>, vector<2x128xf32>
    %466 = arith.truncf %465 : vector<2x128xf32> to vector<2x128xbf16>
    %c256_374 = arith.constant 256 : index
    %c0_375 = arith.constant 0 : index
    %467 = vector.load %arg6[%c256_374, %c0_375] : memref<3200x128xbf16, #tpu.memory_space<vmem>>, vector<128x128xbf16>
    %cst_376 = arith.constant dense<0.000000e+00> : vector<2x128xf32>
    %468 = tpu.matmul %466, %467, %cst_376 {dimension_numbers = #tpu.dot_dimension_numbers<[1], [0], [0], [1], [0, 0, 1, 1], [], []>} : vector<2x128xbf16>, vector<128x128xbf16>, vector<2x128xf32> -> vector<2x128xf32>
    %469 = arith.addf %464, %468 : vector<2x128xf32>
    %c3_377 = arith.constant 3 : index
    %c0_378 = arith.constant 0 : index
    %470 = tpu.strided_load %arg17[%c3_377, %c0_378] {strides = array<i32: 25, 1>} : memref<50x128xf32, #tpu.memory_space<vmem>>, vector<2x128xf32>
    %471 = arith.truncf %470 : vector<2x128xf32> to vector<2x128xbf16>
    %c384_379 = arith.constant 384 : index
    %c0_380 = arith.constant 0 : index
    %472 = vector.load %arg6[%c384_379, %c0_380] : memref<3200x128xbf16, #tpu.memory_space<vmem>>, vector<128x128xbf16>
    %cst_381 = arith.constant dense<0.000000e+00> : vector<2x128xf32>
    %473 = tpu.matmul %471, %472, %cst_381 {dimension_numbers = #tpu.dot_dimension_numbers<[1], [0], [0], [1], [0, 0, 1, 1], [], []>} : vector<2x128xbf16>, vector<128x128xbf16>, vector<2x128xf32> -> vector<2x128xf32>
    %474 = arith.addf %469, %473 : vector<2x128xf32>
    %c4_382 = arith.constant 4 : index
    %c0_383 = arith.constant 0 : index
    %475 = tpu.strided_load %arg17[%c4_382, %c0_383] {strides = array<i32: 25, 1>} : memref<50x128xf32, #tpu.memory_space<vmem>>, vector<2x128xf32>
    %476 = arith.truncf %475 : vector<2x128xf32> to vector<2x128xbf16>
    %c512_384 = arith.constant 512 : index
    %c0_385 = arith.constant 0 : index
    %477 = vector.load %arg6[%c512_384, %c0_385] : memref<3200x128xbf16, #tpu.memory_space<vmem>>, vector<128x128xbf16>
    %cst_386 = arith.constant dense<0.000000e+00> : vector<2x128xf32>
    %478 = tpu.matmul %476, %477, %cst_386 {dimension_numbers = #tpu.dot_dimension_numbers<[1], [0], [0], [1], [0, 0, 1, 1], [], []>} : vector<2x128xbf16>, vector<128x128xbf16>, vector<2x128xf32> -> vector<2x128xf32>
    %479 = arith.addf %474, %478 : vector<2x128xf32>
    %c5_387 = arith.constant 5 : index
    %c0_388 = arith.constant 0 : index
    %480 = tpu.strided_load %arg17[%c5_387, %c0_388] {strides = array<i32: 25, 1>} : memref<50x128xf32, #tpu.memory_space<vmem>>, vector<2x128xf32>
    %481 = arith.truncf %480 : vector<2x128xf32> to vector<2x128xbf16>
    %c640 = arith.constant 640 : index
    %c0_389 = arith.constant 0 : index
    %482 = vector.load %arg6[%c640, %c0_389] : memref<3200x128xbf16, #tpu.memory_space<vmem>>, vector<128x128xbf16>
    %cst_390 = arith.constant dense<0.000000e+00> : vector<2x128xf32>
    %483 = tpu.matmul %481, %482, %cst_390 {dimension_numbers = #tpu.dot_dimension_numbers<[1], [0], [0], [1], [0, 0, 1, 1], [], []>} : vector<2x128xbf16>, vector<128x128xbf16>, vector<2x128xf32> -> vector<2x128xf32>
    %484 = arith.addf %479, %483 : vector<2x128xf32>
    %c6 = arith.constant 6 : index
    %c0_391 = arith.constant 0 : index
    %485 = tpu.strided_load %arg17[%c6, %c0_391] {strides = array<i32: 25, 1>} : memref<50x128xf32, #tpu.memory_space<vmem>>, vector<2x128xf32>
    %486 = arith.truncf %485 : vector<2x128xf32> to vector<2x128xbf16>
    %c768 = arith.constant 768 : index
    %c0_392 = arith.constant 0 : index
    %487 = vector.load %arg6[%c768, %c0_392] : memref<3200x128xbf16, #tpu.memory_space<vmem>>, vector<128x128xbf16>
    %cst_393 = arith.constant dense<0.000000e+00> : vector<2x128xf32>
    %488 = tpu.matmul %486, %487, %cst_393 {dimension_numbers = #tpu.dot_dimension_numbers<[1], [0], [0], [1], [0, 0, 1, 1], [], []>} : vector<2x128xbf16>, vector<128x128xbf16>, vector<2x128xf32> -> vector<2x128xf32>
    %489 = arith.addf %484, %488 : vector<2x128xf32>
    %c7 = arith.constant 7 : index
    %c0_394 = arith.constant 0 : index
    %490 = tpu.strided_load %arg17[%c7, %c0_394] {strides = array<i32: 25, 1>} : memref<50x128xf32, #tpu.memory_space<vmem>>, vector<2x128xf32>
    %491 = arith.truncf %490 : vector<2x128xf32> to vector<2x128xbf16>
    %c896_395 = arith.constant 896 : index
    %c0_396 = arith.constant 0 : index
    %492 = vector.load %arg6[%c896_395, %c0_396] : memref<3200x128xbf16, #tpu.memory_space<vmem>>, vector<128x128xbf16>
    %cst_397 = arith.constant dense<0.000000e+00> : vector<2x128xf32>
    %493 = tpu.matmul %491, %492, %cst_397 {dimension_numbers = #tpu.dot_dimension_numbers<[1], [0], [0], [1], [0, 0, 1, 1], [], []>} : vector<2x128xbf16>, vector<128x128xbf16>, vector<2x128xf32> -> vector<2x128xf32>
    %494 = arith.addf %489, %493 : vector<2x128xf32>
    %c8 = arith.constant 8 : index
    %c0_398 = arith.constant 0 : index
    %495 = tpu.strided_load %arg17[%c8, %c0_398] {strides = array<i32: 25, 1>} : memref<50x128xf32, #tpu.memory_space<vmem>>, vector<2x128xf32>
    %496 = arith.truncf %495 : vector<2x128xf32> to vector<2x128xbf16>
    %c1024 = arith.constant 1024 : index
    %c0_399 = arith.constant 0 : index
    %497 = vector.load %arg6[%c1024, %c0_399] : memref<3200x128xbf16, #tpu.memory_space<vmem>>, vector<128x128xbf16>
    %cst_400 = arith.constant dense<0.000000e+00> : vector<2x128xf32>
    %498 = tpu.matmul %496, %497, %cst_400 {dimension_numbers = #tpu.dot_dimension_numbers<[1], [0], [0], [1], [0, 0, 1, 1], [], []>} : vector<2x128xbf16>, vector<128x128xbf16>, vector<2x128xf32> -> vector<2x128xf32>
    %499 = arith.addf %494, %498 : vector<2x128xf32>
    %c9 = arith.constant 9 : index
    %c0_401 = arith.constant 0 : index
    %500 = tpu.strided_load %arg17[%c9, %c0_401] {strides = array<i32: 25, 1>} : memref<50x128xf32, #tpu.memory_space<vmem>>, vector<2x128xf32>
    %501 = arith.truncf %500 : vector<2x128xf32> to vector<2x128xbf16>
    %c1152 = arith.constant 1152 : index
    %c0_402 = arith.constant 0 : index
    %502 = vector.load %arg6[%c1152, %c0_402] : memref<3200x128xbf16, #tpu.memory_space<vmem>>, vector<128x128xbf16>
    %cst_403 = arith.constant dense<0.000000e+00> : vector<2x128xf32>
    %503 = tpu.matmul %501, %502, %cst_403 {dimension_numbers = #tpu.dot_dimension_numbers<[1], [0], [0], [1], [0, 0, 1, 1], [], []>} : vector<2x128xbf16>, vector<128x128xbf16>, vector<2x128xf32> -> vector<2x128xf32>
    %504 = arith.addf %499, %503 : vector<2x128xf32>
    %c10_404 = arith.constant 10 : index
    %c0_405 = arith.constant 0 : index
    %505 = tpu.strided_load %arg17[%c10_404, %c0_405] {strides = array<i32: 25, 1>} : memref<50x128xf32, #tpu.memory_space<vmem>>, vector<2x128xf32>
    %506 = arith.truncf %505 : vector<2x128xf32> to vector<2x128xbf16>
    %c1280 = arith.constant 1280 : index
    %c0_406 = arith.constant 0 : index
    %507 = vector.load %arg6[%c1280, %c0_406] : memref<3200x128xbf16, #tpu.memory_space<vmem>>, vector<128x128xbf16>
    %cst_407 = arith.constant dense<0.000000e+00> : vector<2x128xf32>
    %508 = tpu.matmul %506, %507, %cst_407 {dimension_numbers = #tpu.dot_dimension_numbers<[1], [0], [0], [1], [0, 0, 1, 1], [], []>} : vector<2x128xbf16>, vector<128x128xbf16>, vector<2x128xf32> -> vector<2x128xf32>
    %509 = arith.addf %504, %508 : vector<2x128xf32>
    %c11 = arith.constant 11 : index
    %c0_408 = arith.constant 0 : index
    %510 = tpu.strided_load %arg17[%c11, %c0_408] {strides = array<i32: 25, 1>} : memref<50x128xf32, #tpu.memory_space<vmem>>, vector<2x128xf32>
    %511 = arith.truncf %510 : vector<2x128xf32> to vector<2x128xbf16>
    %c1408 = arith.constant 1408 : index
    %c0_409 = arith.constant 0 : index
    %512 = vector.load %arg6[%c1408, %c0_409] : memref<3200x128xbf16, #tpu.memory_space<vmem>>, vector<128x128xbf16>
    %cst_410 = arith.constant dense<0.000000e+00> : vector<2x128xf32>
    %513 = tpu.matmul %511, %512, %cst_410 {dimension_numbers = #tpu.dot_dimension_numbers<[1], [0], [0], [1], [0, 0, 1, 1], [], []>} : vector<2x128xbf16>, vector<128x128xbf16>, vector<2x128xf32> -> vector<2x128xf32>
    %514 = arith.addf %509, %513 : vector<2x128xf32>
    %c12 = arith.constant 12 : index
    %c0_411 = arith.constant 0 : index
    %515 = tpu.strided_load %arg17[%c12, %c0_411] {strides = array<i32: 25, 1>} : memref<50x128xf32, #tpu.memory_space<vmem>>, vector<2x128xf32>
    %516 = arith.truncf %515 : vector<2x128xf32> to vector<2x128xbf16>
    %c1536 = arith.constant 1536 : index
    %c0_412 = arith.constant 0 : index
    %517 = vector.load %arg6[%c1536, %c0_412] : memref<3200x128xbf16, #tpu.memory_space<vmem>>, vector<128x128xbf16>
    %cst_413 = arith.constant dense<0.000000e+00> : vector<2x128xf32>
    %518 = tpu.matmul %516, %517, %cst_413 {dimension_numbers = #tpu.dot_dimension_numbers<[1], [0], [0], [1], [0, 0, 1, 1], [], []>} : vector<2x128xbf16>, vector<128x128xbf16>, vector<2x128xf32> -> vector<2x128xf32>
    %519 = arith.addf %514, %518 : vector<2x128xf32>
    %c13 = arith.constant 13 : index
    %c0_414 = arith.constant 0 : index
    %520 = tpu.strided_load %arg17[%c13, %c0_414] {strides = array<i32: 25, 1>} : memref<50x128xf32, #tpu.memory_space<vmem>>, vector<2x128xf32>
    %521 = arith.truncf %520 : vector<2x128xf32> to vector<2x128xbf16>
    %c1664 = arith.constant 1664 : index
    %c0_415 = arith.constant 0 : index
    %522 = vector.load %arg6[%c1664, %c0_415] : memref<3200x128xbf16, #tpu.memory_space<vmem>>, vector<128x128xbf16>
    %cst_416 = arith.constant dense<0.000000e+00> : vector<2x128xf32>
    %523 = tpu.matmul %521, %522, %cst_416 {dimension_numbers = #tpu.dot_dimension_numbers<[1], [0], [0], [1], [0, 0, 1, 1], [], []>} : vector<2x128xbf16>, vector<128x128xbf16>, vector<2x128xf32> -> vector<2x128xf32>
    %524 = arith.addf %519, %523 : vector<2x128xf32>
    %c14 = arith.constant 14 : index
    %c0_417 = arith.constant 0 : index
    %525 = tpu.strided_load %arg17[%c14, %c0_417] {strides = array<i32: 25, 1>} : memref<50x128xf32, #tpu.memory_space<vmem>>, vector<2x128xf32>
    %526 = arith.truncf %525 : vector<2x128xf32> to vector<2x128xbf16>
    %c1792 = arith.constant 1792 : index
    %c0_418 = arith.constant 0 : index
    %527 = vector.load %arg6[%c1792, %c0_418] : memref<3200x128xbf16, #tpu.memory_space<vmem>>, vector<128x128xbf16>
    %cst_419 = arith.constant dense<0.000000e+00> : vector<2x128xf32>
    %528 = tpu.matmul %526, %527, %cst_419 {dimension_numbers = #tpu.dot_dimension_numbers<[1], [0], [0], [1], [0, 0, 1, 1], [], []>} : vector<2x128xbf16>, vector<128x128xbf16>, vector<2x128xf32> -> vector<2x128xf32>
    %529 = arith.addf %524, %528 : vector<2x128xf32>
    %c15_420 = arith.constant 15 : index
    %c0_421 = arith.constant 0 : index
    %530 = tpu.strided_load %arg17[%c15_420, %c0_421] {strides = array<i32: 25, 1>} : memref<50x128xf32, #tpu.memory_space<vmem>>, vector<2x128xf32>
    %531 = arith.truncf %530 : vector<2x128xf32> to vector<2x128xbf16>
    %c1920 = arith.constant 1920 : index
    %c0_422 = arith.constant 0 : index
    %532 = vector.load %arg6[%c1920, %c0_422] : memref<3200x128xbf16, #tpu.memory_space<vmem>>, vector<128x128xbf16>
    %cst_423 = arith.constant dense<0.000000e+00> : vector<2x128xf32>
    %533 = tpu.matmul %531, %532, %cst_423 {dimension_numbers = #tpu.dot_dimension_numbers<[1], [0], [0], [1], [0, 0, 1, 1], [], []>} : vector<2x128xbf16>, vector<128x128xbf16>, vector<2x128xf32> -> vector<2x128xf32>
    %534 = arith.addf %529, %533 : vector<2x128xf32>
    %c16_424 = arith.constant 16 : index
    %c0_425 = arith.constant 0 : index
    %535 = tpu.strided_load %arg17[%c16_424, %c0_425] {strides = array<i32: 25, 1>} : memref<50x128xf32, #tpu.memory_space<vmem>>, vector<2x128xf32>
    %536 = arith.truncf %535 : vector<2x128xf32> to vector<2x128xbf16>
    %c2048 = arith.constant 2048 : index
    %c0_426 = arith.constant 0 : index
    %537 = vector.load %arg6[%c2048, %c0_426] : memref<3200x128xbf16, #tpu.memory_space<vmem>>, vector<128x128xbf16>
    %cst_427 = arith.constant dense<0.000000e+00> : vector<2x128xf32>
    %538 = tpu.matmul %536, %537, %cst_427 {dimension_numbers = #tpu.dot_dimension_numbers<[1], [0], [0], [1], [0, 0, 1, 1], [], []>} : vector<2x128xbf16>, vector<128x128xbf16>, vector<2x128xf32> -> vector<2x128xf32>
    %539 = arith.addf %534, %538 : vector<2x128xf32>
    %c17_428 = arith.constant 17 : index
    %c0_429 = arith.constant 0 : index
    %540 = tpu.strided_load %arg17[%c17_428, %c0_429] {strides = array<i32: 25, 1>} : memref<50x128xf32, #tpu.memory_space<vmem>>, vector<2x128xf32>
    %541 = arith.truncf %540 : vector<2x128xf32> to vector<2x128xbf16>
    %c2176 = arith.constant 2176 : index
    %c0_430 = arith.constant 0 : index
    %542 = vector.load %arg6[%c2176, %c0_430] : memref<3200x128xbf16, #tpu.memory_space<vmem>>, vector<128x128xbf16>
    %cst_431 = arith.constant dense<0.000000e+00> : vector<2x128xf32>
    %543 = tpu.matmul %541, %542, %cst_431 {dimension_numbers = #tpu.dot_dimension_numbers<[1], [0], [0], [1], [0, 0, 1, 1], [], []>} : vector<2x128xbf16>, vector<128x128xbf16>, vector<2x128xf32> -> vector<2x128xf32>
    %544 = arith.addf %539, %543 : vector<2x128xf32>
    %c18 = arith.constant 18 : index
    %c0_432 = arith.constant 0 : index
    %545 = tpu.strided_load %arg17[%c18, %c0_432] {strides = array<i32: 25, 1>} : memref<50x128xf32, #tpu.memory_space<vmem>>, vector<2x128xf32>
    %546 = arith.truncf %545 : vector<2x128xf32> to vector<2x128xbf16>
    %c2304 = arith.constant 2304 : index
    %c0_433 = arith.constant 0 : index
    %547 = vector.load %arg6[%c2304, %c0_433] : memref<3200x128xbf16, #tpu.memory_space<vmem>>, vector<128x128xbf16>
    %cst_434 = arith.constant dense<0.000000e+00> : vector<2x128xf32>
    %548 = tpu.matmul %546, %547, %cst_434 {dimension_numbers = #tpu.dot_dimension_numbers<[1], [0], [0], [1], [0, 0, 1, 1], [], []>} : vector<2x128xbf16>, vector<128x128xbf16>, vector<2x128xf32> -> vector<2x128xf32>
    %549 = arith.addf %544, %548 : vector<2x128xf32>
    %c19 = arith.constant 19 : index
    %c0_435 = arith.constant 0 : index
    %550 = tpu.strided_load %arg17[%c19, %c0_435] {strides = array<i32: 25, 1>} : memref<50x128xf32, #tpu.memory_space<vmem>>, vector<2x128xf32>
    %551 = arith.truncf %550 : vector<2x128xf32> to vector<2x128xbf16>
    %c2432 = arith.constant 2432 : index
    %c0_436 = arith.constant 0 : index
    %552 = vector.load %arg6[%c2432, %c0_436] : memref<3200x128xbf16, #tpu.memory_space<vmem>>, vector<128x128xbf16>
    %cst_437 = arith.constant dense<0.000000e+00> : vector<2x128xf32>
    %553 = tpu.matmul %551, %552, %cst_437 {dimension_numbers = #tpu.dot_dimension_numbers<[1], [0], [0], [1], [0, 0, 1, 1], [], []>} : vector<2x128xbf16>, vector<128x128xbf16>, vector<2x128xf32> -> vector<2x128xf32>
    %554 = arith.addf %549, %553 : vector<2x128xf32>
    %c20_438 = arith.constant 20 : index
    %c0_439 = arith.constant 0 : index
    %555 = tpu.strided_load %arg17[%c20_438, %c0_439] {strides = array<i32: 25, 1>} : memref<50x128xf32, #tpu.memory_space<vmem>>, vector<2x128xf32>
    %556 = arith.truncf %555 : vector<2x128xf32> to vector<2x128xbf16>
    %c2560 = arith.constant 2560 : index
    %c0_440 = arith.constant 0 : index
    %557 = vector.load %arg6[%c2560, %c0_440] : memref<3200x128xbf16, #tpu.memory_space<vmem>>, vector<128x128xbf16>
    %cst_441 = arith.constant dense<0.000000e+00> : vector<2x128xf32>
    %558 = tpu.matmul %556, %557, %cst_441 {dimension_numbers = #tpu.dot_dimension_numbers<[1], [0], [0], [1], [0, 0, 1, 1], [], []>} : vector<2x128xbf16>, vector<128x128xbf16>, vector<2x128xf32> -> vector<2x128xf32>
    %559 = arith.addf %554, %558 : vector<2x128xf32>
    %c21 = arith.constant 21 : index
    %c0_442 = arith.constant 0 : index
    %560 = tpu.strided_load %arg17[%c21, %c0_442] {strides = array<i32: 25, 1>} : memref<50x128xf32, #tpu.memory_space<vmem>>, vector<2x128xf32>
    %561 = arith.truncf %560 : vector<2x128xf32> to vector<2x128xbf16>
    %c2688 = arith.constant 2688 : index
    %c0_443 = arith.constant 0 : index
    %562 = vector.load %arg6[%c2688, %c0_443] : memref<3200x128xbf16, #tpu.memory_space<vmem>>, vector<128x128xbf16>
    %cst_444 = arith.constant dense<0.000000e+00> : vector<2x128xf32>
    %563 = tpu.matmul %561, %562, %cst_444 {dimension_numbers = #tpu.dot_dimension_numbers<[1], [0], [0], [1], [0, 0, 1, 1], [], []>} : vector<2x128xbf16>, vector<128x128xbf16>, vector<2x128xf32> -> vector<2x128xf32>
    %564 = arith.addf %559, %563 : vector<2x128xf32>
    %c22 = arith.constant 22 : index
    %c0_445 = arith.constant 0 : index
    %565 = tpu.strided_load %arg17[%c22, %c0_445] {strides = array<i32: 25, 1>} : memref<50x128xf32, #tpu.memory_space<vmem>>, vector<2x128xf32>
    %566 = arith.truncf %565 : vector<2x128xf32> to vector<2x128xbf16>
    %c2816 = arith.constant 2816 : index
    %c0_446 = arith.constant 0 : index
    %567 = vector.load %arg6[%c2816, %c0_446] : memref<3200x128xbf16, #tpu.memory_space<vmem>>, vector<128x128xbf16>
    %cst_447 = arith.constant dense<0.000000e+00> : vector<2x128xf32>
    %568 = tpu.matmul %566, %567, %cst_447 {dimension_numbers = #tpu.dot_dimension_numbers<[1], [0], [0], [1], [0, 0, 1, 1], [], []>} : vector<2x128xbf16>, vector<128x128xbf16>, vector<2x128xf32> -> vector<2x128xf32>
    %569 = arith.addf %564, %568 : vector<2x128xf32>
    %c23 = arith.constant 23 : index
    %c0_448 = arith.constant 0 : index
    %570 = tpu.strided_load %arg17[%c23, %c0_448] {strides = array<i32: 25, 1>} : memref<50x128xf32, #tpu.memory_space<vmem>>, vector<2x128xf32>
    %571 = arith.truncf %570 : vector<2x128xf32> to vector<2x128xbf16>
    %c2944 = arith.constant 2944 : index
    %c0_449 = arith.constant 0 : index
    %572 = vector.load %arg6[%c2944, %c0_449] : memref<3200x128xbf16, #tpu.memory_space<vmem>>, vector<128x128xbf16>
    %cst_450 = arith.constant dense<0.000000e+00> : vector<2x128xf32>
    %573 = tpu.matmul %571, %572, %cst_450 {dimension_numbers = #tpu.dot_dimension_numbers<[1], [0], [0], [1], [0, 0, 1, 1], [], []>} : vector<2x128xbf16>, vector<128x128xbf16>, vector<2x128xf32> -> vector<2x128xf32>
    %574 = arith.addf %569, %573 : vector<2x128xf32>
    %c24 = arith.constant 24 : index
    %c0_451 = arith.constant 0 : index
    %575 = tpu.strided_load %arg17[%c24, %c0_451] {strides = array<i32: 25, 1>} : memref<50x128xf32, #tpu.memory_space<vmem>>, vector<2x128xf32>
    %576 = arith.truncf %575 : vector<2x128xf32> to vector<2x128xbf16>
    %c3072 = arith.constant 3072 : index
    %c0_452 = arith.constant 0 : index
    %577 = vector.load %arg6[%c3072, %c0_452] : memref<3200x128xbf16, #tpu.memory_space<vmem>>, vector<128x128xbf16>
    %cst_453 = arith.constant dense<0.000000e+00> : vector<2x128xf32>
    %578 = tpu.matmul %576, %577, %cst_453 {dimension_numbers = #tpu.dot_dimension_numbers<[1], [0], [0], [1], [0, 0, 1, 1], [], []>} : vector<2x128xbf16>, vector<128x128xbf16>, vector<2x128xf32> -> vector<2x128xf32>
    %579 = arith.addf %574, %578 : vector<2x128xf32>
    %cst_454 = arith.constant 0.000000e+00 : f32
    %580 = vector.broadcast %cst_454 : f32 to vector<2x128xf32>
    %581 = arith.maximumf %579, %580 : vector<2x128xf32>
    %582 = arith.truncf %581 : vector<2x128xf32> to vector<2x128xbf16>
    %c0_455 = arith.constant 0 : index
    %c0_456 = arith.constant 0 : index
    %583 = vector.load %arg8[%c0_455, %c0_456] : memref<128x128xbf16, #tpu.memory_space<vmem>>, vector<128x128xbf16>
    %cst_457 = arith.constant dense<0.000000e+00> : vector<2x128xf32>
    %584 = tpu.matmul %582, %583, %cst_457 {dimension_numbers = #tpu.dot_dimension_numbers<[1], [0], [0], [1], [0, 0, 1, 1], [], []>} : vector<2x128xbf16>, vector<128x128xbf16>, vector<2x128xf32> -> vector<2x128xf32>
    %c0_458 = arith.constant 0 : index
    %c0_459 = arith.constant 0 : index
    %585 = vector.load %arg9[%c0_458, %c0_459] : memref<1x128xf32, #tpu.memory_space<vmem>>, vector<1x128xf32>
    %586 = vector.broadcast %585 : vector<1x128xf32> to vector<2x128xf32>
    %587 = arith.addf %584, %586 : vector<2x128xf32>
    %cst_460 = arith.constant 0.000000e+00 : f32
    %588 = vector.broadcast %cst_460 : f32 to vector<2x128xf32>
    %589 = arith.maximumf %587, %588 : vector<2x128xf32>
    %590 = arith.truncf %589 : vector<2x128xf32> to vector<2x128xbf16>
    %c0_461 = arith.constant 0 : index
    %c0_462 = arith.constant 0 : index
    %591 = vector.load %arg10[%c0_461, %c0_462] : memref<128x128xbf16, #tpu.memory_space<vmem>>, vector<128x128xbf16>
    %cst_463 = arith.constant dense<0.000000e+00> : vector<2x128xf32>
    %592 = tpu.matmul %590, %591, %cst_463 {dimension_numbers = #tpu.dot_dimension_numbers<[1], [0], [0], [1], [0, 0, 1, 1], [], []>} : vector<2x128xbf16>, vector<128x128xbf16>, vector<2x128xf32> -> vector<2x128xf32>
    %c0_464 = arith.constant 0 : index
    %c0_465 = arith.constant 0 : index
    %593 = vector.load %arg11[%c0_464, %c0_465] : memref<1x128xf32, #tpu.memory_space<vmem>>, vector<1x128xf32>
    %594 = vector.broadcast %593 : vector<1x128xf32> to vector<2x128xf32>
    %595 = arith.addf %592, %594 : vector<2x128xf32>
    %c0_466 = arith.constant 0 : index
    %c0_467 = arith.constant 0 : index
    %596 = vector.load %arg12[%c0_466, %c0_467] : memref<2x128xf32, #tpu.memory_space<vmem>>, vector<2x128xf32>
    tpu.vector_store %arg12[%c0_466, %c0_467], %595 {strides = array<i32>} : memref<2x128xf32, #tpu.memory_space<vmem>>, vector<2x128xf32>,
    return
  }
  func.func @transform_0(%arg0: i32) -> (i32, i32) {
    %c0_i32 = arith.constant 0 : i32
    %c0_i32_0 = arith.constant 0 : i32
    return %arg0, %c0_i32 : i32, i32
  }
  func.func @transform_1(%arg0: i32) -> (i32, i32) {
    %c0_i32 = arith.constant 0 : i32
    %c0_i32_0 = arith.constant 0 : i32
    %c0_i32_1 = arith.constant 0 : i32
    return %c0_i32, %c0_i32_0 : i32, i32
  }
  func.func @transform_2(%arg0: i32) -> (i32, i32) {
    %c0_i32 = arith.constant 0 : i32
    %c0_i32_0 = arith.constant 0 : i32
    %c0_i32_1 = arith.constant 0 : i32
    return %c0_i32, %c0_i32_0 : i32, i32
  }
  func.func @transform_3(%arg0: i32) -> (i32, i32) {
    %c0_i32 = arith.constant 0 : i32
    %c0_i32_0 = arith.constant 0 : i32
    %c0_i32_1 = arith.constant 0 : i32
    return %c0_i32, %c0_i32_0 : i32, i32
  }
  func.func @transform_4(%arg0: i32) -> (i32, i32) {
    %c0_i32 = arith.constant 0 : i32
    %c0_i32_0 = arith.constant 0 : i32
    %c0_i32_1 = arith.constant 0 : i32
    return %c0_i32, %c0_i32_0 : i32, i32
  }
  func.func @transform_5(%arg0: i32) -> (i32, i32) {
    %c0_i32 = arith.constant 0 : i32
    %c0_i32_0 = arith.constant 0 : i32
    %c0_i32_1 = arith.constant 0 : i32
    return %c0_i32, %c0_i32_0 : i32, i32
  }
  func.func @transform_6(%arg0: i32) -> (i32, i32) {
    %c0_i32 = arith.constant 0 : i32
    %c0_i32_0 = arith.constant 0 : i32
    %c0_i32_1 = arith.constant 0 : i32
    return %c0_i32, %c0_i32_0 : i32, i32
  }
  func.func @transform_7(%arg0: i32) -> (i32, i32) {
    %c0_i32 = arith.constant 0 : i32
    %c0_i32_0 = arith.constant 0 : i32
    %c0_i32_1 = arith.constant 0 : i32
    return %c0_i32, %c0_i32_0 : i32, i32
  }
  func.func @transform_8(%arg0: i32) -> (i32, i32) {
    %c0_i32 = arith.constant 0 : i32
    %c0_i32_0 = arith.constant 0 : i32
    %c0_i32_1 = arith.constant 0 : i32
    return %c0_i32, %c0_i32_0 : i32, i32
  }
  func.func @transform_9(%arg0: i32) -> (i32, i32) {
    %c0_i32 = arith.constant 0 : i32
    %c0_i32_0 = arith.constant 0 : i32
    %c0_i32_1 = arith.constant 0 : i32
    return %c0_i32, %c0_i32_0 : i32, i32
  }
  func.func @transform_10(%arg0: i32) -> (i32, i32) {
    %c0_i32 = arith.constant 0 : i32
    %c0_i32_0 = arith.constant 0 : i32
    %c0_i32_1 = arith.constant 0 : i32
    return %c0_i32, %c0_i32_0 : i32, i32
  }
  func.func @transform_11(%arg0: i32) -> (i32, i32) {
    %c0_i32 = arith.constant 0 : i32
    %c0_i32_0 = arith.constant 0 : i32
    return %arg0, %c0_i32 : i32, i32
  }
}

</mosaic_0001>

<llo_original>
// kernel: lenet_forward.1
$region0: #{lenet_forward.1}
  #allocation0 [shape = 'u32[]', space=smem, size = 0x4, offset = 0x4, fixed_abs, tag = 'smem constant byte address 0x4 - core index']
  #allocation1 [shape = 'u32[72,128]{1,0:T(1,128)}', space=vmem, size = 0x9000, scoped, tag = 'internal scratch']
  #allocation2 [shape = 'f32[1568,128]{1,0:T(8,128)}', space=vmem, size = 0xc4000, scoped, tag = 'scratch operand']
  #allocation3 [shape = 'f32[528,128]{1,0:T(8,128)}', space=vmem, size = 0x42000, scoped, tag = 'scratch operand']
  #allocation4 [shape = 'bf16[512,128]{1,0:T(8,128)(2,1)}', space=vmem, size = 0x20000, scoped, tag = 'scratch operand']
  #allocation5 [shape = 'f32[448,128]{1,0:T(8,128)}', space=vmem, size = 0x38000, scoped, tag = 'scratch operand']
  #allocation6 [shape = 'f32[50,128]{1,0:T(8,128)}', space=vmem, size = 0x7000, scoped, tag = 'scratch operand']
  %s0 = inlined_call_operand.vmem [shape: bf16[1568,128], index: 0, kind: input, shape index: {}]
  %s1 = inlined_call_operand.vmem [shape: bf16[128,128], index: 1, kind: input, shape index: {}]
  %s2 = inlined_call_operand.vmem [shape: f32[1,128], index: 2, kind: input, shape index: {}]
  %s3 = inlined_call_operand.vmem [shape: bf16[640,128], index: 3, kind: input, shape index: {}]
  %s4 = inlined_call_operand.vmem [shape: f32[1,128], index: 4, kind: input, shape index: {}]
  %s5 = inlined_call_operand.vmem [shape: bf16[3200,128], index: 5, kind: input, shape index: {}]
  %s6 = inlined_call_operand.vmem [shape: f32[1,128], index: 6, kind: input, shape index: {}]
  %s7 = inlined_call_operand.vmem [shape: bf16[128,128], index: 7, kind: input, shape index: {}]
  %s8 = inlined_call_operand.vmem [shape: f32[1,128], index: 8, kind: input, shape index: {}]
  %s9 = inlined_call_operand.vmem [shape: bf16[128,128], index: 9, kind: input, shape index: {}]
  %s10 = inlined_call_operand.vmem [shape: f32[1,128], index: 10, kind: input, shape index: {}]
  %s11 = inlined_call_operand.hbm [shape: f32[2,128], index: 11, kind: output, shape index: {}]
  %s12 = sld [smem:[#allocation0]]
  $region54: #{lenet_forward.1} parent=0
    _
  %s14 = ssub.s32 1, %s12
  %s15 = scalar_select 0, %s14, %s12
  $region1: #{lenet_forward.1} parent=0
    #allocation7 [shape = 'u8[1024]{0}', space=vmem, size = 0x400, scoped, tag = 'output window, operand 0, single buffered']
    #allocation8 [shape = 's32[1]{0}', space=sflag, size = 0x4, scoped, tag = 'scoped memory for lenet_forward.1']
    %16 = vsyncpa [#allocation8], 0
    // Predicated region
    $region2: #{lenet_forward.1} parent=1 // pred_check
      _
    $region3: #{lenet_forward.1} parent=1 // pred_check_branch
      %18 = sbr.rel (0) target = $region5
    $region4: #{lenet_forward.1} parent=1 // pred_region
      _
    $region5: #{lenet_forward.1} parent=1 // pred_fallthru
      _
    // Predicated region
    $region6: #{lenet_forward.1} parent=1 // pred_check
      _
    $region7: #{lenet_forward.1} parent=1 // pred_check_branch
      %20 = sbr.rel (0) target = $region9
    $region8: #{lenet_forward.1} parent=1 // pred_region
      _
    $region9: #{lenet_forward.1} parent=1 // pred_fallthru
      _
    // Predicated region
    $region10: #{lenet_forward.1} parent=1 // pred_check
      _
    $region11: #{lenet_forward.1} parent=1 // pred_check_branch
      %22 = sbr.rel (0) target = $region13
    $region12: #{lenet_forward.1} parent=1 // pred_region
      _
    $region13: #{lenet_forward.1} parent=1 // pred_fallthru
      _
    // Predicated region
    $region14: #{lenet_forward.1} parent=1 // pred_check
      _
    $region15: #{lenet_forward.1} parent=1 // pred_check_branch
      %24 = sbr.rel (0) target = $region17
    $region16: #{lenet_forward.1} parent=1 // pred_region
      _
    $region17: #{lenet_forward.1} parent=1 // pred_fallthru
      _
    // Predicated region
    $region18: #{lenet_forward.1} parent=1 // pred_check
      _
    $region19: #{lenet_forward.1} parent=1 // pred_check_branch
      %26 = sbr.rel (0) target = $region21
    $region20: #{lenet_forward.1} parent=1 // pred_region
      _
    $region21: #{lenet_forward.1} parent=1 // pred_fallthru
      _
    // Predicated region
    $region22: #{lenet_forward.1} parent=1 // pred_check
      _
    $region23: #{lenet_forward.1} parent=1 // pred_check_branch
      %28 = sbr.rel (0) target = $region25
    $region24: #{lenet_forward.1} parent=1 // pred_region
      _
    $region25: #{lenet_forward.1} parent=1 // pred_fallthru
      _
    // Predicated region
    $region26: #{lenet_forward.1} parent=1 // pred_check
      _
    $region27: #{lenet_forward.1} parent=1 // pred_check_branch
      %30 = sbr.rel (0) target = $region29
    $region28: #{lenet_forward.1} parent=1 // pred_region
      _
    $region29: #{lenet_forward.1} parent=1 // pred_fallthru
      _
    // Predicated region
    $region30: #{lenet_forward.1} parent=1 // pred_check
      _
    $region31: #{lenet_forward.1} parent=1 // pred_check_branch
      %32 = sbr.rel (0) target = $region33
    $region32: #{lenet_forward.1} parent=1 // pred_region
      _
    $region33: #{lenet_forward.1} parent=1 // pred_fallthru
      _
    // Predicated region
    $region34: #{lenet_forward.1} parent=1 // pred_check
      _
    $region35: #{lenet_forward.1} parent=1 // pred_check_branch
      %34 = sbr.rel (0) target = $region37
    $region36: #{lenet_forward.1} parent=1 // pred_region
      _
    $region37: #{lenet_forward.1} parent=1 // pred_fallthru
      _
    // Predicated region
    $region38: #{lenet_forward.1} parent=1 // pred_check
      _
    $region39: #{lenet_forward.1} parent=1 // pred_check_branch
      %36 = sbr.rel (0) target = $region41
    $region40: #{lenet_forward.1} parent=1 // pred_region
      _
    $region41: #{lenet_forward.1} parent=1 // pred_fallthru
      _
    // Predicated region
    $region42: #{lenet_forward.1} parent=1 // pred_check
      _
    $region43: #{lenet_forward.1} parent=1 // pred_check_branch
      %38 = sbr.rel (0) target = $region45
    $region44: #{lenet_forward.1} parent=1 // pred_region
      _
    $region45: #{lenet_forward.1} parent=1 // pred_fallthru
      _
    %v39 = vld [vmem:[%s1] sm:$0xf]
    %v40 = vld [vmem:[%s1 + $0x4] sm:$0xf]
    %v41 = vld [vmem:[%s1 + $0x8] sm:$0xf]
    %v42 = vld [vmem:[%s1 + $0xc] sm:$0xf]
    %v43 = vld [vmem:[%s1 + $0x10] sm:$0xf]
    %v44 = vld [vmem:[%s1 + $0x14] sm:$0xf]
    %v45 = vld [vmem:[%s1 + $0x18] sm:$0xf]
    %v46 = vld [vmem:[%s1 + $0x1c] sm:$0xf]
    %v47 = vld [vmem:[%s1 + $0x20] sm:$0xf]
    %v48 = vld [vmem:[%s1 + $0x24] sm:$0xf]
    %v49 = vld [vmem:[%s1 + $0x28] sm:$0xf]
    %v50 = vld [vmem:[%s1 + $0x2c] sm:$0xf]
    %v51 = vld [vmem:[%s1 + $0x30] sm:$0xf]
    %v52 = vld [vmem:[%s1 + $0x34] sm:$0xf]
    %v53 = vld [vmem:[%s1 + $0x38] sm:$0xf]
    %v54 = vld [vmem:[%s1 + $0x3c] sm:$0xf]
    %v55 = vld [vmem:[%s2] sm:$0x1]
    %v56 = vld [vmem:[%s0] sm:$0xf]
    %v57 = vld [vmem:[%s0 + $0x4] sm:$0xf]
    %v58 = vld [vmem:[%s0 + $0x8] sm:$0xf]
    %v59 = vld [vmem:[%s0 + $0xc] sm:$0xf]
    %v60 = vld [vmem:[%s0 + $0x10] sm:$0xf]
    %v61 = vld [vmem:[%s0 + $0x14] sm:$0xf]
    %v62 = vld [vmem:[%s0 + $0x18] sm:$0xf]
    %v63 = vld [vmem:[%s0 + $0x1c] sm:$0xf]
    %v64 = vld [vmem:[%s0 + $0x20] sm:$0xf]
    %v65 = vld [vmem:[%s0 + $0x24] sm:$0xf]
    %v66 = vld [vmem:[%s0 + $0x28] sm:$0xf]
    %v67 = vld [vmem:[%s0 + $0x2c] sm:$0xf]
    %v68 = vld [vmem:[%s0 + $0x30] sm:$0xf]
    %v69 = vld [vmem:[%s0 + $0x34] sm:$0xf]
    %v70 = vld [vmem:[%s0 + $0x38] sm:$0xf]
    %v71 = vld [vmem:[%s0 + $0x3c] sm:$0xf]
    %v72 = vld [vmem:[%s0 + $0x40] sm:$0xf]
    %v73 = vld [vmem:[%s0 + $0x44] sm:$0xf]
    %v74 = vld [vmem:[%s0 + $0x48] sm:$0xf]
    %v75 = vld [vmem:[%s0 + $0x4c] sm:$0xf]
    %v76 = vld [vmem:[%s0 + $0x50] sm:$0xf]
    %v77 = vld [vmem:[%s0 + $0x54] sm:$0xf]
    %v78 = vld [vmem:[%s0 + $0x58] sm:$0xf]
    %v79 = vld [vmem:[%s0 + $0x5c] sm:$0xf]
    %v80 = vld [vmem:[%s0 + $0x60] sm:$0xf]
    %v81 = vld [vmem:[%s0 + $0x64] sm:$0xf]
    %v82 = vld [vmem:[%s0 + $0x68] sm:$0xf]
    %v83 = vld [vmem:[%s0 + $0x6c] sm:$0xf]
    %v85 = vperm.slane %v55, 0
    %v115 = vunpack.c.l.b16 %v56
    %v116 = vunpack.c.l.b16 %v57
    %v117 = vunpack.c.l.b16 %v58
    %v118 = vunpack.c.l.b16 %v59
    %v119 = vunpack.c.l.b16 %v60
    %v120 = vunpack.c.l.b16 %v61
    %v121 = vunpack.c.l.b16 %v62
    %v122 = vunpack.c.l.b16 %v63
    %v123 = vunpack.c.l.b16 %v64
    %v124 = vunpack.c.l.b16 %v65
    %v125 = vunpack.c.l.b16 %v66
    %v126 = vunpack.c.l.b16 %v67
    %v127 = vunpack.c.l.b16 %v68
    %v128 = vunpack.c.l.b16 %v69
    %v129 = vunpack.c.l.b16 %v70
    %v130 = vunpack.c.l.b16 %v71
    %v131 = vunpack.c.l.b16 %v72
    %v132 = vunpack.c.l.b16 %v73
    %v133 = vunpack.c.l.b16 %v74
    %v134 = vunpack.c.l.b16 %v75
    %v135 = vunpack.c.l.b16 %v76
    %v136 = vunpack.c.l.b16 %v77
    %v137 = vunpack.c.l.b16 %v78
    %v138 = vunpack.c.l.b16 %v79
    %v139 = vunpack.c.l.b16 %v80
    %v140 = vunpack.c.l.b16 %v81
    %v141 = vunpack.c.l.b16 %v82
    %v142 = vunpack.c.l.b16 %v83
    %v143 = vpack.c.b16 %v116, %v115
    %v144 = vpack.c.b16 %v118, %v117
    %v145 = vpack.c.b16 %v120, %v119
    %v146 = vpack.c.b16 %v122, %v121
    %v147 = vpack.c.b16 %v124, %v123
    %v148 = vpack.c.b16 %v126, %v125
    %v149 = vpack.c.b16 %v128, %v127
    %v150 = vpack.c.b16 %v130, %v129
    %v151 = vpack.c.b16 %v132, %v131
    %v152 = vpack.c.b16 %v134, %v133
    %v153 = vpack.c.b16 %v136, %v135
    %v154 = vpack.c.b16 %v138, %v137
    %v155 = vpack.c.b16 %v140, %v139
    %v156 = vpack.c.b16 %v142, %v141
    %v187 = vunpack.c.l.b16 %v39
    %v188 = vunpack.c.l.b16 %v40
    %v189 = vunpack.c.l.b16 %v41
    %v190 = vunpack.c.l.b16 %v42
    %v191 = vunpack.c.l.b16 %v43
    %v192 = vunpack.c.l.b16 %v44
    %v193 = vunpack.c.l.b16 %v45
    %v194 = vunpack.c.l.b16 %v46
    %v195 = vunpack.c.l.b16 %v47
    %v196 = vunpack.c.l.b16 %v48
    %v197 = vunpack.c.l.b16 %v49
    %v198 = vunpack.c.l.b16 %v50
    %v199 = vunpack.c.l.b16 %v51
    %v200 = vunpack.c.l.b16 %v52
    %v201 = vunpack.c.l.b16 %v53
    %v202 = vunpack.c.l.b16 %v54
    %v203 = vpack.c.b16 %v188, %v187
    %v204 = vpack.c.b16 %v190, %v189
    %v205 = vpack.c.b16 %v192, %v191
    %v206 = vpack.c.b16 %v194, %v193
    %v207 = vpack.c.b16 %v196, %v195
    %v208 = vpack.c.b16 %v198, %v197
    %v209 = vpack.c.b16 %v200, %v199
    %v210 = vpack.c.b16 %v202, %v201
    %219 = vmatpush.bf16.msra.mxu0 %v210
    %220 = vmatpush.bf16.msra.mxu0 %v209
    %221 = vmatpush.bf16.msra.mxu0 %v208
    %222 = vmatpush.bf16.msra.mxu0 %v207
    %223 = vmatpush.bf16.msra.mxu0 %v206
    %224 = vmatpush.bf16.msra.mxu0 %v205
    %225 = vmatpush.bf16.msra.mxu0 %v204
    %226 = vmatpush.bf16.msra.mxu0 %v203
    %227 = vmatmul.bf16.gmra.mxu0 %v143
    %v228 = vpop.f32.mrf.mxu0
    %v229 = vadd.f32 %v85, %v228
    %v230 = vpop.f32.mrf.mxu0
    %v231 = vadd.f32 %v85, %v230
    %232 = vmatmul.bf16.gmra.mxu0 %v144
    %v233 = vpop.f32.mrf.mxu0
    %v234 = vadd.f32 %v85, %v233
    %v235 = vpop.f32.mrf.mxu0
    %v236 = vadd.f32 %v85, %v235
    %237 = vmatmul.bf16.gmra.mxu0 %v145
    %v238 = vpop.f32.mrf.mxu0
    %v239 = vadd.f32 %v85, %v238
    %v240 = vpop.f32.mrf.mxu0
    %v241 = vadd.f32 %v85, %v240
    %242 = vmatmul.bf16.gmra.mxu0 %v146
    %v243 = vpop.f32.mrf.mxu0
    %v244 = vadd.f32 %v85, %v243
    %v245 = vpop.f32.mrf.mxu0
    %v246 = vadd.f32 %v85, %v245
    %247 = vmatmul.bf16.gmra.mxu0 %v147
    %v248 = vpop.f32.mrf.mxu0
    %v249 = vadd.f32 %v85, %v248
    %v250 = vpop.f32.mrf.mxu0
    %v251 = vadd.f32 %v85, %v250
    %252 = vmatmul.bf16.gmra.mxu0 %v148
    %v253 = vpop.f32.mrf.mxu0
    %v254 = vadd.f32 %v85, %v253
    %v255 = vpop.f32.mrf.mxu0
    %v256 = vadd.f32 %v85, %v255
    %257 = vmatmul.bf16.gmra.mxu0 %v149
    %v258 = vpop.f32.mrf.mxu0
    %v259 = vadd.f32 %v85, %v258
    %v260 = vpop.f32.mrf.mxu0
    %v261 = vadd.f32 %v85, %v260
    %262 = vmatmul.bf16.gmra.mxu0 %v150
    %v263 = vpop.f32.mrf.mxu0
    %v264 = vadd.f32 %v85, %v263
    %v265 = vpop.f32.mrf.mxu0
    %v266 = vadd.f32 %v85, %v265
    %267 = vmatmul.bf16.gmra.mxu0 %v151
    %v268 = vpop.f32.mrf.mxu0
    %v269 = vadd.f32 %v85, %v268
    %v270 = vpop.f32.mrf.mxu0
    %v271 = vadd.f32 %v85, %v270
    %272 = vmatmul.bf16.gmra.mxu0 %v152
    %v273 = vpop.f32.mrf.mxu0
    %v274 = vadd.f32 %v85, %v273
    %v275 = vpop.f32.mrf.mxu0
    %v276 = vadd.f32 %v85, %v275
    %277 = vmatmul.bf16.gmra.mxu0 %v153
    %v278 = vpop.f32.mrf.mxu0
    %v279 = vadd.f32 %v85, %v278
    %v280 = vpop.f32.mrf.mxu0
    %v281 = vadd.f32 %v85, %v280
    %282 = vmatmul.bf16.gmra.mxu0 %v154
    %v283 = vpop.f32.mrf.mxu0
    %v284 = vadd.f32 %v85, %v283
    %v285 = vpop.f32.mrf.mxu0
    %v286 = vadd.f32 %v85, %v285
    %287 = vmatmul.bf16.gmra.mxu0 %v155
    %v288 = vpop.f32.mrf.mxu0
    %v289 = vadd.f32 %v85, %v288
    %v290 = vpop.f32.mrf.mxu0
    %v291 = vadd.f32 %v85, %v290
    %292 = vmatmul.bf16.gmra.mxu0 %v156
    %v293 = vpop.f32.mrf.mxu0
    %v294 = vadd.f32 %v85, %v293
    %v295 = vpop.f32.mrf.mxu0
    %v296 = vadd.f32 %v85, %v295
    %297 = vdwg.mxu0
    %v298 = vmax.f32 %v229, 0.0
    %v299 = vmax.f32 %v231, 0.0
    %v300 = vmax.f32 %v234, 0.0
    %v301 = vmax.f32 %v236, 0.0
    %v302 = vmax.f32 %v239, 0.0
    %v303 = vmax.f32 %v241, 0.0
    %v304 = vmax.f32 %v244, 0.0
    %v305 = vmax.f32 %v246, 0.0
    %v306 = vmax.f32 %v249, 0.0
    %v307 = vmax.f32 %v251, 0.0
    %v308 = vmax.f32 %v254, 0.0
    %v309 = vmax.f32 %v256, 0.0
    %v310 = vmax.f32 %v259, 0.0
    %v311 = vmax.f32 %v261, 0.0
    %v312 = vmax.f32 %v264, 0.0
    %v313 = vmax.f32 %v266, 0.0
    %v314 = vmax.f32 %v269, 0.0
    %v315 = vmax.f32 %v271, 0.0
    %v316 = vmax.f32 %v274, 0.0
    %v317 = vmax.f32 %v276, 0.0
    %v318 = vmax.f32 %v279, 0.0
    %v319 = vmax.f32 %v281, 0.0
    %v320 = vmax.f32 %v284, 0.0
    %v321 = vmax.f32 %v286, 0.0
    %v322 = vmax.f32 %v289, 0.0
    %v323 = vmax.f32 %v291, 0.0
    %v324 = vmax.f32 %v294, 0.0
    %v325 = vmax.f32 %v296, 0.0
    %326 = vst [vmem:[#allocation2] sm:$0xff] %v298
    %327 = vst [vmem:[#allocation2 + $0x8] sm:$0xff] %v299
    %328 = vst [vmem:[#allocation2 + $0x10] sm:$0xff] %v300
    %329 = vst [vmem:[#allocation2 + $0x18] sm:$0xff] %v301
    %330 = vst [vmem:[#allocation2 + $0x20] sm:$0xff] %v302
    %331 = vst [vmem:[#allocation2 + $0x28] sm:$0xff] %v303
    %332 = vst [vmem:[#allocation2 + $0x30] sm:$0xff] %v304
    %333 = vst [vmem:[#allocation2 + $0x38] sm:$0xff] %v305
    %334 = vst [vmem:[#allocation2 + $0x40] sm:$0xff] %v306
    %335 = vst [vmem:[#allocation2 + $0x48] sm:$0xff] %v307
    %336 = vst [vmem:[#allocation2 + $0x50] sm:$0xff] %v308
    %337 = vst [vmem:[#allocation2 + $0x58] sm:$0xff] %v309
    %338 = vst [vmem:[#allocation2 + $0x60] sm:$0xff] %v310
    %339 = vst [vmem:[#allocation2 + $0x68] sm:$0xff] %v311
    %340 = vst [vmem:[#allocation2 + $0x70] sm:$0xff] %v312
    %341 = vst [vmem:[#allocation2 + $0x78] sm:$0xff] %v313
    %342 = vst [vmem:[#allocation2 + $0x80] sm:$0xff] %v314
    %343 = vst [vmem:[#allocation2 + $0x88] sm:$0xff] %v315
    %344 = vst [vmem:[#allocation2 + $0x90] sm:$0xff] %v316
    %345 = vst [vmem:[#allocation2 + $0x98] sm:$0xff] %v317
    %346 = vst [vmem:[#allocation2 + $0xa0] sm:$0xff] %v318
    %347 = vst [vmem:[#allocation2 + $0xa8] sm:$0xff] %v319
    %348 = vst [vmem:[#allocation2 + $0xb0] sm:$0xff] %v320
    %349 = vst [vmem:[#allocation2 + $0xb8] sm:$0xff] %v321
    %350 = vst [vmem:[#allocation2 + $0xc0] sm:$0xff] %v322
    %351 = vst [vmem:[#allocation2 + $0xc8] sm:$0xff] %v323
    %352 = vst [vmem:[#allocation2 + $0xd0] sm:$0xff] %v324
    %353 = vst [vmem:[#allocation2 + $0xd8] sm:$0xff] %v325
    %v354 = vld [vmem:[%s0 + $0x70] sm:$0xf]
    %v355 = vld [vmem:[%s0 + $0x74] sm:$0xf]
    %v356 = vld [vmem:[%s0 + $0x78] sm:$0xf]
    %v357 = vld [vmem:[%s0 + $0x7c] sm:$0xf]
    %v358 = vld [vmem:[%s0 + $0x80] sm:$0xf]
    %v359 = vld [vmem:[%s0 + $0x84] sm:$0xf]
    %v360 = vld [vmem:[%s0 + $0x88] sm:$0xf]
    %v361 = vld [vmem:[%s0 + $0x8c] sm:$0xf]
    %v362 = vld [vmem:[%s0 + $0x90] sm:$0xf]
    %v363 = vld [vmem:[%s0 + $0x94] sm:$0xf]
    %v364 = vld [vmem:[%s0 + $0x98] sm:$0xf]
    %v365 = vld [vmem:[%s0 + $0x9c] sm:$0xf]
    %v366 = vld [vmem:[%s0 + $0xa0] sm:$0xf]
    %v367 = vld [vmem:[%s0 + $0xa4] sm:$0xf]
    %v368 = vld [vmem:[%s0 + $0xa8] sm:$0xf]
    %v369 = vld [vmem:[%s0 + $0xac] sm:$0xf]
    %v370 = vld [vmem:[%s0 + $0xb0] sm:$0xf]
    %v371 = vld [vmem:[%s0 + $0xb4] sm:$0xf]
    %v372 = vld [vmem:[%s0 + $0xb8] sm:$0xf]
    %v373 = vld [vmem:[%s0 + $0xbc] sm:$0xf]
    %v374 = vld [vmem:[%s0 + $0xc0] sm:$0xf]
    %v375 = vld [vmem:[%s0 + $0xc4] sm:$0xf]
    %v376 = vld [vmem:[%s0 + $0xc8] sm:$0xf]
    %v377 = vld [vmem:[%s0 + $0xcc] sm:$0xf]
    %v378 = vld [vmem:[%s0 + $0xd0] sm:$0xf]
    %v379 = vld [vmem:[%s0 + $0xd4] sm:$0xf]
    %v380 = vld [vmem:[%s0 + $0xd8] sm:$0xf]
    %v381 = vld [vmem:[%s0 + $0xdc] sm:$0xf]
    %v410 = vunpack.c.l.b16 %v354
    %v411 = vunpack.c.l.b16 %v355
    %v412 = vunpack.c.l.b16 %v356
    %v413 = vunpack.c.l.b16 %v357
    %v414 = vunpack.c.l.b16 %v358
    %v415 = vunpack.c.l.b16 %v359
    %v416 = vunpack.c.l.b16 %v360
    %v417 = vunpack.c.l.b16 %v361
    %v418 = vunpack.c.l.b16 %v362
    %v419 = vunpack.c.l.b16 %v363
    %v420 = vunpack.c.l.b16 %v364
    %v421 = vunpack.c.l.b16 %v365
    %v422 = vunpack.c.l.b16 %v366
    %v423 = vunpack.c.l.b16 %v367
    %v424 = vunpack.c.l.b16 %v368
    %v425 = vunpack.c.l.b16 %v369
    %v426 = vunpack.c.l.b16 %v370
    %v427 = vunpack.c.l.b16 %v371
    %v428 = vunpack.c.l.b16 %v372
    %v429 = vunpack.c.l.b16 %v373
    %v430 = vunpack.c.l.b16 %v374
    %v431 = vunpack.c.l.b16 %v375
    %v432 = vunpack.c.l.b16 %v376
    %v433 = vunpack.c.l.b16 %v377
    %v434 = vunpack.c.l.b16 %v378
    %v435 = vunpack.c.l.b16 %v379
    %v436 = vunpack.c.l.b16 %v380
    %v437 = vunpack.c.l.b16 %v381
    %v438 = vpack.c.b16 %v411, %v410
    %v439 = vpack.c.b16 %v413, %v412
    %v440 = vpack.c.b16 %v415, %v414
    %v441 = vpack.c.b16 %v417, %v416
    %v442 = vpack.c.b16 %v419, %v418
    %v443 = vpack.c.b16 %v421, %v420
    %v444 = vpack.c.b16 %v423, %v422
    %v445 = vpack.c.b16 %v425, %v424
    %v446 = vpack.c.b16 %v427, %v426
    %v447 = vpack.c.b16 %v429, %v428
    %v448 = vpack.c.b16 %v431, %v430
    %v449 = vpack.c.b16 %v433, %v432
    %v450 = vpack.c.b16 %v435, %v434
    %v451 = vpack.c.b16 %v437, %v436
    %466 = vmatpush.bf16.msra.mxu0 %v210
    %467 = vmatpush.bf16.msra.mxu0 %v209
    %468 = vmatpush.bf16.msra.mxu0 %v208
    %469 = vmatpush.bf16.msra.mxu0 %v207
    %470 = vmatpush.bf16.msra.mxu0 %v206
    %471 = vmatpush.bf16.msra.mxu0 %v205
    %472 = vmatpush.bf16.msra.mxu0 %v204
    %473 = vmatpush.bf16.msra.mxu0 %v203
    %474 = vmatmul.bf16.gmra.mxu0 %v438
    %v475 = vpop.f32.mrf.mxu0
    %v476 = vadd.f32 %v85, %v475
    %v477 = vpop.f32.mrf.mxu0
    %v478 = vadd.f32 %v85, %v477
    %479 = vmatmul.bf16.gmra.mxu0 %v439
    %v480 = vpop.f32.mrf.mxu0
    %v481 = vadd.f32 %v85, %v480
    %v482 = vpop.f32.mrf.mxu0
    %v483 = vadd.f32 %v85, %v482
    %484 = vmatmul.bf16.gmra.mxu0 %v440
    %v485 = vpop.f32.mrf.mxu0
    %v486 = vadd.f32 %v85, %v485
    %v487 = vpop.f32.mrf.mxu0
    %v488 = vadd.f32 %v85, %v487
    %489 = vmatmul.bf16.gmra.mxu0 %v441
    %v490 = vpop.f32.mrf.mxu0
    %v491 = vadd.f32 %v85, %v490
    %v492 = vpop.f32.mrf.mxu0
    %v493 = vadd.f32 %v85, %v492
    %494 = vmatmul.bf16.gmra.mxu0 %v442
    %v495 = vpop.f32.mrf.mxu0
    %v496 = vadd.f32 %v85, %v495
    %v497 = vpop.f32.mrf.mxu0
    %v498 = vadd.f32 %v85, %v497
    %499 = vmatmul.bf16.gmra.mxu0 %v443
    %v500 = vpop.f32.mrf.mxu0
    %v501 = vadd.f32 %v85, %v500
    %v502 = vpop.f32.mrf.mxu0
    %v503 = vadd.f32 %v85, %v502
    %504 = vmatmul.bf16.gmra.mxu0 %v444
    %v505 = vpop.f32.mrf.mxu0
    %v506 = vadd.f32 %v85, %v505
    %v507 = vpop.f32.mrf.mxu0
    %v508 = vadd.f32 %v85, %v507
    %509 = vmatmul.bf16.gmra.mxu0 %v445
    %v510 = vpop.f32.mrf.mxu0
    %v511 = vadd.f32 %v85, %v510
    %v512 = vpop.f32.mrf.mxu0
    %v513 = vadd.f32 %v85, %v512
    %514 = vmatmul.bf16.gmra.mxu0 %v446
    %v515 = vpop.f32.mrf.mxu0
    %v516 = vadd.f32 %v85, %v515
    %v517 = vpop.f32.mrf.mxu0
    %v518 = vadd.f32 %v85, %v517
    %519 = vmatmul.bf16.gmra.mxu0 %v447
    %v520 = vpop.f32.mrf.mxu0
    %v521 = vadd.f32 %v85, %v520
    %v522 = vpop.f32.mrf.mxu0
    %v523 = vadd.f32 %v85, %v522
    %524 = vmatmul.bf16.gmra.mxu0 %v448
    %v525 = vpop.f32.mrf.mxu0
    %v526 = vadd.f32 %v85, %v525
    %v527 = vpop.f32.mrf.mxu0
    %v528 = vadd.f32 %v85, %v527
    %529 = vmatmul.bf16.gmra.mxu0 %v449
    %v530 = vpop.f32.mrf.mxu0
    %v531 = vadd.f32 %v85, %v530
    %v532 = vpop.f32.mrf.mxu0
    %v533 = vadd.f32 %v85, %v532
    %534 = vmatmul.bf16.gmra.mxu0 %v450
    %v535 = vpop.f32.mrf.mxu0
    %v536 = vadd.f32 %v85, %v535
    %v537 = vpop.f32.mrf.mxu0
    %v538 = vadd.f32 %v85, %v537
    %539 = vmatmul.bf16.gmra.mxu0 %v451
    %v540 = vpop.f32.mrf.mxu0
    %v541 = vadd.f32 %v85, %v540
    %v542 = vpop.f32.mrf.mxu0
    %v543 = vadd.f32 %v85, %v542
    %544 = vdwg.mxu0
    %v545 = vmax.f32 %v476, 0.0
    %v546 = vmax.f32 %v478, 0.0
    %v547 = vmax.f32 %v481, 0.0
    %v548 = vmax.f32 %v483, 0.0
    %v549 = vmax.f32 %v486, 0.0
    %v550 = vmax.f32 %v488, 0.0
    %v551 = vmax.f32 %v491, 0.0
    %v552 = vmax.f32 %v493, 0.0
    %v553 = vmax.f32 %v496, 0.0
    %v554 = vmax.f32 %v498, 0.0
    %v555 = vmax.f32 %v501, 0.0
    %v556 = vmax.f32 %v503, 0.0
    %v557 = vmax.f32 %v506, 0.0
    %v558 = vmax.f32 %v508, 0.0
    %v559 = vmax.f32 %v511, 0.0
    %v560 = vmax.f32 %v513, 0.0
    %v561 = vmax.f32 %v516, 0.0
    %v562 = vmax.f32 %v518, 0.0
    %v563 = vmax.f32 %v521, 0.0
    %v564 = vmax.f32 %v523, 0.0
    %v565 = vmax.f32 %v526, 0.0
    %v566 = vmax.f32 %v528, 0.0
    %v567 = vmax.f32 %v531, 0.0
    %v568 = vmax.f32 %v533, 0.0
    %v569 = vmax.f32 %v536, 0.0
    %v570 = vmax.f32 %v538, 0.0
    %v571 = vmax.f32 %v541, 0.0
    %v572 = vmax.f32 %v543, 0.0
    %573 = vst [vmem:[#allocation2 + $0xe0] sm:$0xff] %v545
    %574 = vst [vmem:[#allocation2 + $0xe8] sm:$0xff] %v546
    %575 = vst [vmem:[#allocation2 + $0xf0] sm:$0xff] %v547
    %576 = vst [vmem:[#allocation2 + $0xf8] sm:$0xff] %v548
    %577 = vst [vmem:[#allocation2 + $0x100] sm:$0xff] %v549
    %578 = vst [vmem:[#allocation2 + $0x108] sm:$0xff] %v550
    %579 = vst [vmem:[#allocation2 + $0x110] sm:$0xff] %v551
    %580 = vst [vmem:[#allocation2 + $0x118] sm:$0xff] %v552
    %581 = vst [vmem:[#allocation2 + $0x120] sm:$0xff] %v553
    %582 = vst [vmem:[#allocation2 + $0x128] sm:$0xff] %v554
    %583 = vst [vmem:[#allocation2 + $0x130] sm:$0xff] %v555
    %584 = vst [vmem:[#allocation2 + $0x138] sm:$0xff] %v556
    %585 = vst [vmem:[#allocation2 + $0x140] sm:$0xff] %v557
    %586 = vst [vmem:[#allocation2 + $0x148] sm:$0xff] %v558
    %587 = vst [vmem:[#allocation2 + $0x150] sm:$0xff] %v559
    %588 = vst [vmem:[#allocation2 + $0x158] sm:$0xff] %v560
    %589 = vst [vmem:[#allocation2 + $0x160] sm:$0xff] %v561
    %590 = vst [vmem:[#allocation2 + $0x168] sm:$0xff] %v562
    %591 = vst [vmem:[#allocation2 + $0x170] sm:$0xff] %v563
    %592 = vst [vmem:[#allocation2 + $0x178] sm:$0xff] %v564
    %593 = vst [vmem:[#allocation2 + $0x180] sm:$0xff] %v565
    %594 = vst [vmem:[#allocation2 + $0x188] sm:$0xff] %v566
    %595 = vst [vmem:[#allocation2 + $0x190] sm:$0xff] %v567
    %596 = vst [vmem:[#allocation2 + $0x198] sm:$0xff] %v568
    %597 = vst [vmem:[#allocation2 + $0x1a0] sm:$0xff] %v569
    %598 = vst [vmem:[#allocation2 + $0x1a8] sm:$0xff] %v570
    %599 = vst [vmem:[#allocation2 + $0x1b0] sm:$0xff] %v571
    %600 = vst [vmem:[#allocation2 + $0x1b8] sm:$0xff] %v572
    %v601 = vld [vmem:[%s0 + $0xe0] sm:$0xf]
    %v602 = vld [vmem:[%s0 + $0xe4] sm:$0xf]
    %v603 = vld [vmem:[%s0 + $0xe8] sm:$0xf]
    %v604 = vld [vmem:[%s0 + $0xec] sm:$0xf]
    %v605 = vld [vmem:[%s0 + $0xf0] sm:$0xf]
    %v606 = vld [vmem:[%s0 + $0xf4] sm:$0xf]
    %v607 = vld [vmem:[%s0 + $0xf8] sm:$0xf]
    %v608 = vld [vmem:[%s0 + $0xfc] sm:$0xf]
    %v609 = vld [vmem:[%s0 + $0x100] sm:$0xf]
    %v610 = vld [vmem:[%s0 + $0x104] sm:$0xf]
    %v611 = vld [vmem:[%s0 + $0x108] sm:$0xf]
    %v612 = vld [vmem:[%s0 + $0x10c] sm:$0xf]
    %v613 = vld [vmem:[%s0 + $0x110] sm:$0xf]
    %v614 = vld [vmem:[%s0 + $0x114] sm:$0xf]
    %v615 = vld [vmem:[%s0 + $0x118] sm:$0xf]
    %v616 = vld [vmem:[%s0 + $0x11c] sm:$0xf]
    %v617 = vld [vmem:[%s0 + $0x120] sm:$0xf]
    %v618 = vld [vmem:[%s0 + $0x124] sm:$0xf]
    %v619 = vld [vmem:[%s0 + $0x128] sm:$0xf]
    %v620 = vld [vmem:[%s0 + $0x12c] sm:$0xf]
    %v621 = vld [vmem:[%s0 + $0x130] sm:$0xf]
    %v622 = vld [vmem:[%s0 + $0x134] sm:$0xf]
    %v623 = vld [vmem:[%s0 + $0x138] sm:$0xf]
    %v624 = vld [vmem:[%s0 + $0x13c] sm:$0xf]
    %v625 = vld [vmem:[%s0 + $0x140] sm:$0xf]
    %v626 = vld [vmem:[%s0 + $0x144] sm:$0xf]
    %v627 = vld [vmem:[%s0 + $0x148] sm:$0xf]
    %v628 = vld [vmem:[%s0 + $0x14c] sm:$0xf]
    %v657 = vunpack.c.l.b16 %v601
    %v658 = vunpack.c.l.b16 %v602
    %v659 = vunpack.c.l.b16 %v603
    %v660 = vunpack.c.l.b16 %v604
    %v661 = vunpack.c.l.b16 %v605
    %v662 = vunpack.c.l.b16 %v606
    %v663 = vunpack.c.l.b16 %v607
    %v664 = vunpack.c.l.b16 %v608
    %v665 = vunpack.c.l.b16 %v609
    %v666 = vunpack.c.l.b16 %v610
    %v667 = vunpack.c.l.b16 %v611
    %v668 = vunpack.c.l.b16 %v612
    %v669 = vunpack.c.l.b16 %v613
    %v670 = vunpack.c.l.b16 %v614
    %v671 = vunpack.c.l.b16 %v615
    %v672 = vunpack.c.l.b16 %v616
    %v673 = vunpack.c.l.b16 %v617
    %v674 = vunpack.c.l.b16 %v618
    %v675 = vunpack.c.l.b16 %v619
    %v676 = vunpack.c.l.b16 %v620
    %v677 = vunpack.c.l.b16 %v621
    %v678 = vunpack.c.l.b16 %v622
    %v679 = vunpack.c.l.b16 %v623
    %v680 = vunpack.c.l.b16 %v624
    %v681 = vunpack.c.l.b16 %v625
    %v682 = vunpack.c.l.b16 %v626
    %v683 = vunpack.c.l.b16 %v627
    %v684 = vunpack.c.l.b16 %v628
    %v685 = vpack.c.b16 %v658, %v657
    %v686 = vpack.c.b16 %v660, %v659
    %v687 = vpack.c.b16 %v662, %v661
    %v688 = vpack.c.b16 %v664, %v663
    %v689 = vpack.c.b16 %v666, %v665
    %v690 = vpack.c.b16 %v668, %v667
    %v691 = vpack.c.b16 %v670, %v669
    %v692 = vpack.c.b16 %v672, %v671
    %v693 = vpack.c.b16 %v674, %v673
    %v694 = vpack.c.b16 %v676, %v675
    %v695 = vpack.c.b16 %v678, %v677
    %v696 = vpack.c.b16 %v680, %v679
    %v697 = vpack.c.b16 %v682, %v681
    %v698 = vpack.c.b16 %v684, %v683
    %713 = vmatpush.bf16.msra.mxu0 %v210
    %714 = vmatpush.bf16.msra.mxu0 %v209
    %715 = vmatpush.bf16.msra.mxu0 %v208
    %716 = vmatpush.bf16.msra.mxu0 %v207
    %717 = vmatpush.bf16.msra.mxu0 %v206
    %718 = vmatpush.bf16.msra.mxu0 %v205
    %719 = vmatpush.bf16.msra.mxu0 %v204
    %720 = vmatpush.bf16.msra.mxu0 %v203
    %721 = vmatmul.bf16.gmra.mxu0 %v685
    %v722 = vpop.f32.mrf.mxu0
    %v723 = vadd.f32 %v85, %v722
    %v724 = vpop.f32.mrf.mxu0
    %v725 = vadd.f32 %v85, %v724
    %726 = vmatmul.bf16.gmra.mxu0 %v686
    %v727 = vpop.f32.mrf.mxu0
    %v728 = vadd.f32 %v85, %v727
    %v729 = vpop.f32.mrf.mxu0
    %v730 = vadd.f32 %v85, %v729
    %731 = vmatmul.bf16.gmra.mxu0 %v687
    %v732 = vpop.f32.mrf.mxu0
    %v733 = vadd.f32 %v85, %v732
    %v734 = vpop.f32.mrf.mxu0
    %v735 = vadd.f32 %v85, %v734
    %736 = vmatmul.bf16.gmra.mxu0 %v688
    %v737 = vpop.f32.mrf.mxu0
    %v738 = vadd.f32 %v85, %v737
    %v739 = vpop.f32.mrf.mxu0
    %v740 = vadd.f32 %v85, %v739
    %741 = vmatmul.bf16.gmra.mxu0 %v689
    %v742 = vpop.f32.mrf.mxu0
    %v743 = vadd.f32 %v85, %v742
    %v744 = vpop.f32.mrf.mxu0
    %v745 = vadd.f32 %v85, %v744
    %746 = vmatmul.bf16.gmra.mxu0 %v690
    %v747 = vpop.f32.mrf.mxu0
    %v748 = vadd.f32 %v85, %v747
    %v749 = vpop.f32.mrf.mxu0
    %v750 = vadd.f32 %v85, %v749
    %751 = vmatmul.bf16.gmra.mxu0 %v691
    %v752 = vpop.f32.mrf.mxu0
    %v753 = vadd.f32 %v85, %v752
    %v754 = vpop.f32.mrf.mxu0
    %v755 = vadd.f32 %v85, %v754
    %756 = vmatmul.bf16.gmra.mxu0 %v692
    %v757 = vpop.f32.mrf.mxu0
    %v758 = vadd.f32 %v85, %v757
    %v759 = vpop.f32.mrf.mxu0
    %v760 = vadd.f32 %v85, %v759
    %761 = vmatmul.bf16.gmra.mxu0 %v693
    %v762 = vpop.f32.mrf.mxu0
    %v763 = vadd.f32 %v85, %v762
    %v764 = vpop.f32.mrf.mxu0
    %v765 = vadd.f32 %v85, %v764
    %766 = vmatmul.bf16.gmra.mxu0 %v694
    %v767 = vpop.f32.mrf.mxu0
    %v768 = vadd.f32 %v85, %v767
    %v769 = vpop.f32.mrf.mxu0
    %v770 = vadd.f32 %v85, %v769
    %771 = vmatmul.bf16.gmra.mxu0 %v695
    %v772 = vpop.f32.mrf.mxu0
    %v773 = vadd.f32 %v85, %v772
    %v774 = vpop.f32.mrf.mxu0
    %v775 = vadd.f32 %v85, %v774
    %776 = vmatmul.bf16.gmra.mxu0 %v696
    %v777 = vpop.f32.mrf.mxu0
    %v778 = vadd.f32 %v85, %v777
    %v779 = vpop.f32.mrf.mxu0
    %v780 = vadd.f32 %v85, %v779
    %781 = vmatmul.bf16.gmra.mxu0 %v697
    %v782 = vpop.f32.mrf.mxu0
    %v783 = vadd.f32 %v85, %v782
    %v784 = vpop.f32.mrf.mxu0
    %v785 = vadd.f32 %v85, %v784
    %786 = vmatmul.bf16.gmra.mxu0 %v698
    %v787 = vpop.f32.mrf.mxu0
    %v788 = vadd.f32 %v85, %v787
    %v789 = vpop.f32.mrf.mxu0
    %v790 = vadd.f32 %v85, %v789
    %791 = vdwg.mxu0
    %v792 = vmax.f32 %v723, 0.0
    %v793 = vmax.f32 %v725, 0.0
    %v794 = vmax.f32 %v728, 0.0
    %v795 = vmax.f32 %v730, 0.0
    %v796 = vmax.f32 %v733, 0.0
    %v797 = vmax.f32 %v735, 0.0
    %v798 = vmax.f32 %v738, 0.0
    %v799 = vmax.f32 %v740, 0.0
    %v800 = vmax.f32 %v743, 0.0
    %v801 = vmax.f32 %v745, 0.0
    %v802 = vmax.f32 %v748, 0.0
    %v803 = vmax.f32 %v750, 0.0
    %v804 = vmax.f32 %v753, 0.0
    %v805 = vmax.f32 %v755, 0.0
    %v806 = vmax.f32 %v758, 0.0
    %v807 = vmax.f32 %v760, 0.0
    %v808 = vmax.f32 %v763, 0.0
    %v809 = vmax.f32 %v765, 0.0
    %v810 = vmax.f32 %v768, 0.0
    %v811 = vmax.f32 %v770, 0.0
    %v812 = vmax.f32 %v773, 0.0
    %v813 = vmax.f32 %v775, 0.0
    %v814 = vmax.f32 %v778, 0.0
    %v815 = vmax.f32 %v780, 0.0
    %v816 = vmax.f32 %v783, 0.0
    %v817 = vmax.f32 %v785, 0.0
    %v818 = vmax.f32 %v788, 0.0
    %v819 = vmax.f32 %v790, 0.0
    %820 = vst [vmem:[#allocation2 + $0x1c0] sm:$0xff] %v792
    %821 = vst [vmem:[#allocation2 + $0x1c8] sm:$0xff] %v793
    %822 = vst [vmem:[#allocation2 + $0x1d0] sm:$0xff] %v794
    %823 = vst [vmem:[#allocation2 + $0x1d8] sm:$0xff] %v795
    %824 = vst [vmem:[#allocation2 + $0x1e0] sm:$0xff] %v796
    %825 = vst [vmem:[#allocation2 + $0x1e8] sm:$0xff] %v797
    %826 = vst [vmem:[#allocation2 + $0x1f0] sm:$0xff] %v798
    %827 = vst [vmem:[#allocation2 + $0x1f8] sm:$0xff] %v799
    %828 = vst [vmem:[#allocation2 + $0x200] sm:$0xff] %v800
    %829 = vst [vmem:[#allocation2 + $0x208] sm:$0xff] %v801
    %830 = vst [vmem:[#allocation2 + $0x210] sm:$0xff] %v802
    %831 = vst [vmem:[#allocation2 + $0x218] sm:$0xff] %v803
    %832 = vst [vmem:[#allocation2 + $0x220] sm:$0xff] %v804
    %833 = vst [vmem:[#allocation2 + $0x228] sm:$0xff] %v805
    %834 = vst [vmem:[#allocation2 + $0x230] sm:$0xff] %v806
    %835 = vst [vmem:[#allocation2 + $0x238] sm:$0xff] %v807
    %836 = vst [vmem:[#allocation2 + $0x240] sm:$0xff] %v808
    %837 = vst [vmem:[#allocation2 + $0x248] sm:$0xff] %v809
    %838 = vst [vmem:[#allocation2 + $0x250] sm:$0xff] %v810
    %839 = vst [vmem:[#allocation2 + $0x258] sm:$0xff] %v811
    %840 = vst [vmem:[#allocation2 + $0x260] sm:$0xff] %v812
    %841 = vst [vmem:[#allocation2 + $0x268] sm:$0xff] %v813
    %842 = vst [vmem:[#allocation2 + $0x270] sm:$0xff] %v814
    %843 = vst [vmem:[#allocation2 + $0x278] sm:$0xff] %v815
    %844 = vst [vmem:[#allocation2 + $0x280] sm:$0xff] %v816
    %845 = vst [vmem:[#allocation2 + $0x288] sm:$0xff] %v817
    %846 = vst [vmem:[#allocation2 + $0x290] sm:$0xff] %v818
    %847 = vst [vmem:[#allocation2 + $0x298] sm:$0xff] %v819
    %v848 = vld [vmem:[%s0 + $0x150] sm:$0xf]
    %v849 = vld [vmem:[%s0 + $0x154] sm:$0xf]
    %v850 = vld [vmem:[%s0 + $0x158] sm:$0xf]
    %v851 = vld [vmem:[%s0 + $0x15c] sm:$0xf]
    %v852 = vld [vmem:[%s0 + $0x160] sm:$0xf]
    %v853 = vld [vmem:[%s0 + $0x164] sm:$0xf]
    %v854 = vld [vmem:[%s0 + $0x168] sm:$0xf]
    %v855 = vld [vmem:[%s0 + $0x16c] sm:$0xf]
    %v856 = vld [vmem:[%s0 + $0x170] sm:$0xf]
    %v857 = vld [vmem:[%s0 + $0x174] sm:$0xf]
    %v858 = vld [vmem:[%s0 + $0x178] sm:$0xf]
    %v859 = vld [vmem:[%s0 + $0x17c] sm:$0xf]
    %v860 = vld [vmem:[%s0 + $0x180] sm:$0xf]
    %v861 = vld [vmem:[%s0 + $0x184] sm:$0xf]
    %v862 = vld [vmem:[%s0 + $0x188] sm:$0xf]
    %v863 = vld [vmem:[%s0 + $0x18c] sm:$0xf]
    %v864 = vld [vmem:[%s0 + $0x190] sm:$0xf]
    %v865 = vld [vmem:[%s0 + $0x194] sm:$0xf]
    %v866 = vld [vmem:[%s0 + $0x198] sm:$0xf]
    %v867 = vld [vmem:[%s0 + $0x19c] sm:$0xf]
    %v868 = vld [vmem:[%s0 + $0x1a0] sm:$0xf]
    %v869 = vld [vmem:[%s0 + $0x1a4] sm:$0xf]
    %v870 = vld [vmem:[%s0 + $0x1a8] sm:$0xf]
    %v871 = vld [vmem:[%s0 + $0x1ac] sm:$0xf]
    %v872 = vld [vmem:[%s0 + $0x1b0] sm:$0xf]
    %v873 = vld [vmem:[%s0 + $0x1b4] sm:$0xf]
    %v874 = vld [vmem:[%s0 + $0x1b8] sm:$0xf]
    %v875 = vld [vmem:[%s0 + $0x1bc] sm:$0xf]
    %v904 = vunpack.c.l.b16 %v848
    %v905 = vunpack.c.l.b16 %v849
    %v906 = vunpack.c.l.b16 %v850
    %v907 = vunpack.c.l.b16 %v851
    %v908 = vunpack.c.l.b16 %v852
    %v909 = vunpack.c.l.b16 %v853
    %v910 = vunpack.c.l.b16 %v854
    %v911 = vunpack.c.l.b16 %v855
    %v912 = vunpack.c.l.b16 %v856
    %v913 = vunpack.c.l.b16 %v857
    %v914 = vunpack.c.l.b16 %v858
    %v915 = vunpack.c.l.b16 %v859
    %v916 = vunpack.c.l.b16 %v860
    %v917 = vunpack.c.l.b16 %v861
    %v918 = vunpack.c.l.b16 %v862
    %v919 = vunpack.c.l.b16 %v863
    %v920 = vunpack.c.l.b16 %v864
    %v921 = vunpack.c.l.b16 %v865
    %v922 = vunpack.c.l.b16 %v866
    %v923 = vunpack.c.l.b16 %v867
    %v924 = vunpack.c.l.b16 %v868
    %v925 = vunpack.c.l.b16 %v869
    %v926 = vunpack.c.l.b16 %v870
    %v927 = vunpack.c.l.b16 %v871
    %v928 = vunpack.c.l.b16 %v872
    %v929 = vunpack.c.l.b16 %v873
    %v930 = vunpack.c.l.b16 %v874
    %v931 = vunpack.c.l.b16 %v875
    %v932 = vpack.c.b16 %v905, %v904
    %v933 = vpack.c.b16 %v907, %v906
    %v934 = vpack.c.b16 %v909, %v908
    %v935 = vpack.c.b16 %v911, %v910
    %v936 = vpack.c.b16 %v913, %v912
    %v937 = vpack.c.b16 %v915, %v914
    %v938 = vpack.c.b16 %v917, %v916
    %v939 = vpack.c.b16 %v919, %v918
    %v940 = vpack.c.b16 %v921, %v920
    %v941 = vpack.c.b16 %v923, %v922
    %v942 = vpack.c.b16 %v925, %v924
    %v943 = vpack.c.b16 %v927, %v926
    %v944 = vpack.c.b16 %v929, %v928
    %v945 = vpack.c.b16 %v931, %v930
    %960 = vmatpush.bf16.msra.mxu0 %v210
    %961 = vmatpush.bf16.msra.mxu0 %v209
    %962 = vmatpush.bf16.msra.mxu0 %v208
    %963 = vmatpush.bf16.msra.mxu0 %v207
    %964 = vmatpush.bf16.msra.mxu0 %v206
    %965 = vmatpush.bf16.msra.mxu0 %v205
    %966 = vmatpush.bf16.msra.mxu0 %v204
    %967 = vmatpush.bf16.msra.mxu0 %v203
    %968 = vmatmul.bf16.gmra.mxu0 %v932
    %v969 = vpop.f32.mrf.mxu0
    %v970 = vadd.f32 %v85, %v969
    %v971 = vpop.f32.mrf.mxu0
    %v972 = vadd.f32 %v85, %v971
    %973 = vmatmul.bf16.gmra.mxu0 %v933
    %v974 = vpop.f32.mrf.mxu0
    %v975 = vadd.f32 %v85, %v974
    %v976 = vpop.f32.mrf.mxu0
    %v977 = vadd.f32 %v85, %v976
    %978 = vmatmul.bf16.gmra.mxu0 %v934
    %v979 = vpop.f32.mrf.mxu0
    %v980 = vadd.f32 %v85, %v979
    %v981 = vpop.f32.mrf.mxu0
    %v982 = vadd.f32 %v85, %v981
    %983 = vmatmul.bf16.gmra.mxu0 %v935
    %v984 = vpop.f32.mrf.mxu0
    %v985 = vadd.f32 %v85, %v984
    %v986 = vpop.f32.mrf.mxu0
    %v987 = vadd.f32 %v85, %v986
    %988 = vmatmul.bf16.gmra.mxu0 %v936
    %v989 = vpop.f32.mrf.mxu0
    %v990 = vadd.f32 %v85, %v989
    %v991 = vpop.f32.mrf.mxu0
    %v992 = vadd.f32 %v85, %v991
    %993 = vmatmul.bf16.gmra.mxu0 %v937
    %v994 = vpop.f32.mrf.mxu0
    %v995 = vadd.f32 %v85, %v994
    %v996 = vpop.f32.mrf.mxu0
    %v997 = vadd.f32 %v85, %v996
    %998 = vmatmul.bf16.gmra.mxu0 %v938
    %v999 = vpop.f32.mrf.mxu0
    %v1000 = vadd.f32 %v85, %v999
    %v1001 = vpop.f32.mrf.mxu0
    %v1002 = vadd.f32 %v85, %v1001
    %1003 = vmatmul.bf16.gmra.mxu0 %v939
    %v1004 = vpop.f32.mrf.mxu0
    %v1005 = vadd.f32 %v85, %v1004
    %v1006 = vpop.f32.mrf.mxu0
    %v1007 = vadd.f32 %v85, %v1006
    %1008 = vmatmul.bf16.gmra.mxu0 %v940
    %v1009 = vpop.f32.mrf.mxu0
    %v1010 = vadd.f32 %v85, %v1009
    %v1011 = vpop.f32.mrf.mxu0
    %v1012 = vadd.f32 %v85, %v1011
    %1013 = vmatmul.bf16.gmra.mxu0 %v941
    %v1014 = vpop.f32.mrf.mxu0
    %v1015 = vadd.f32 %v85, %v1014
    %v1016 = vpop.f32.mrf.mxu0
    %v1017 = vadd.f32 %v85, %v1016
    %1018 = vmatmul.bf16.gmra.mxu0 %v942
    %v1019 = vpop.f32.mrf.mxu0
    %v1020 = vadd.f32 %v85, %v1019
    %v1021 = vpop.f32.mrf.mxu0
    %v1022 = vadd.f32 %v85, %v1021
    %1023 = vmatmul.bf16.gmra.mxu0 %v943
    %v1024 = vpop.f32.mrf.mxu0
    %v1025 = vadd.f32 %v85, %v1024
    %v1026 = vpop.f32.mrf.mxu0
    %v1027 = vadd.f32 %v85, %v1026
    %1028 = vmatmul.bf16.gmra.mxu0 %v944
    %v1029 = vpop.f32.mrf.mxu0
    %v1030 = vadd.f32 %v85, %v1029
    %v1031 = vpop.f32.mrf.mxu0
    %v1032 = vadd.f32 %v85, %v1031
    %1033 = vmatmul.bf16.gmra.mxu0 %v945
    %v1034 = vpop.f32.mrf.mxu0
    %v1035 = vadd.f32 %v85, %v1034
    %v1036 = vpop.f32.mrf.mxu0
    %v1037 = vadd.f32 %v85, %v1036
    %1038 = vdwg.mxu0
    %v1039 = vmax.f32 %v970, 0.0
    %v1040 = vmax.f32 %v972, 0.0
    %v1041 = vmax.f32 %v975, 0.0
    %v1042 = vmax.f32 %v977, 0.0
    %v1043 = vmax.f32 %v980, 0.0
    %v1044 = vmax.f32 %v982, 0.0
    %v1045 = vmax.f32 %v985, 0.0
    %v1046 = vmax.f32 %v987, 0.0
    %v1047 = vmax.f32 %v990, 0.0
    %v1048 = vmax.f32 %v992, 0.0
    %v1049 = vmax.f32 %v995, 0.0
    %v1050 = vmax.f32 %v997, 0.0
    %v1051 = vmax.f32 %v1000, 0.0
    %v1052 = vmax.f32 %v1002, 0.0
    %v1053 = vmax.f32 %v1005, 0.0
    %v1054 = vmax.f32 %v1007, 0.0
    %v1055 = vmax.f32 %v1010, 0.0
    %v1056 = vmax.f32 %v1012, 0.0
    %v1057 = vmax.f32 %v1015, 0.0
    %v1058 = vmax.f32 %v1017, 0.0
    %v1059 = vmax.f32 %v1020, 0.0
    %v1060 = vmax.f32 %v1022, 0.0
    %v1061 = vmax.f32 %v1025, 0.0
    %v1062 = vmax.f32 %v1027, 0.0
    %v1063 = vmax.f32 %v1030, 0.0
    %v1064 = vmax.f32 %v1032, 0.0
    %v1065 = vmax.f32 %v1035, 0.0
    %v1066 = vmax.f32 %v1037, 0.0
    %1067 = vst [vmem:[#allocation2 + $0x2a0] sm:$0xff] %v1039
    %1068 = vst [vmem:[#allocation2 + $0x2a8] sm:$0xff] %v1040
    %1069 = vst [vmem:[#allocation2 + $0x2b0] sm:$0xff] %v1041
    %1070 = vst [vmem:[#allocation2 + $0x2b8] sm:$0xff] %v1042
    %1071 = vst [vmem:[#allocation2 + $0x2c0] sm:$0xff] %v1043
    %1072 = vst [vmem:[#allocation2 + $0x2c8] sm:$0xff] %v1044
    %1073 = vst [vmem:[#allocation2 + $0x2d0] sm:$0xff] %v1045
    %1074 = vst [vmem:[#allocation2 + $0x2d8] sm:$0xff] %v1046
    %1075 = vst [vmem:[#allocation2 + $0x2e0] sm:$0xff] %v1047
    %1076 = vst [vmem:[#allocation2 + $0x2e8] sm:$0xff] %v1048
    %1077 = vst [vmem:[#allocation2 + $0x2f0] sm:$0xff] %v1049
    %1078 = vst [vmem:[#allocation2 + $0x2f8] sm:$0xff] %v1050
    %1079 = vst [vmem:[#allocation2 + $0x300] sm:$0xff] %v1051
    %1080 = vst [vmem:[#allocation2 + $0x308] sm:$0xff] %v1052
    %1081 = vst [vmem:[#allocation2 + $0x310] sm:$0xff] %v1053
    %1082 = vst [vmem:[#allocation2 + $0x318] sm:$0xff] %v1054
    %1083 = vst [vmem:[#allocation2 + $0x320] sm:$0xff] %v1055
    %1084 = vst [vmem:[#allocation2 + $0x328] sm:$0xff] %v1056
    %1085 = vst [vmem:[#allocation2 + $0x330] sm:$0xff] %v1057
    %1086 = vst [vmem:[#allocation2 + $0x338] sm:$0xff] %v1058
    %1087 = vst [vmem:[#allocation2 + $0x340] sm:$0xff] %v1059
    %1088 = vst [vmem:[#allocation2 + $0x348] sm:$0xff] %v1060
    %1089 = vst [vmem:[#allocation2 + $0x350] sm:$0xff] %v1061
    %1090 = vst [vmem:[#allocation2 + $0x358] sm:$0xff] %v1062
    %1091 = vst [vmem:[#allocation2 + $0x360] sm:$0xff] %v1063
    %1092 = vst [vmem:[#allocation2 + $0x368] sm:$0xff] %v1064
    %1093 = vst [vmem:[#allocation2 + $0x370] sm:$0xff] %v1065
    %1094 = vst [vmem:[#allocation2 + $0x378] sm:$0xff] %v1066
    %v1095 = vld [vmem:[%s0 + $0x1c0] sm:$0xf]
    %v1096 = vld [vmem:[%s0 + $0x1c4] sm:$0xf]
    %v1097 = vld [vmem:[%s0 + $0x1c8] sm:$0xf]
    %v1098 = vld [vmem:[%s0 + $0x1cc] sm:$0xf]
    %v1099 = vld [vmem:[%s0 + $0x1d0] sm:$0xf]
    %v1100 = vld [vmem:[%s0 + $0x1d4] sm:$0xf]
    %v1101 = vld [vmem:[%s0 + $0x1d8] sm:$0xf]
    %v1102 = vld [vmem:[%s0 + $0x1dc] sm:$0xf]
    %v1103 = vld [vmem:[%s0 + $0x1e0] sm:$0xf]
    %v1104 = vld [vmem:[%s0 + $0x1e4] sm:$0xf]
    %v1105 = vld [vmem:[%s0 + $0x1e8] sm:$0xf]
    %v1106 = vld [vmem:[%s0 + $0x1ec] sm:$0xf]
    %v1107 = vld [vmem:[%s0 + $0x1f0] sm:$0xf]
    %v1108 = vld [vmem:[%s0 + $0x1f4] sm:$0xf]
    %v1109 = vld [vmem:[%s0 + $0x1f8] sm:$0xf]
    %v1110 = vld [vmem:[%s0 + $0x1fc] sm:$0xf]
    %v1111 = vld [vmem:[%s0 + $0x200] sm:$0xf]
    %v1112 = vld [vmem:[%s0 + $0x204] sm:$0xf]
    %v1113 = vld [vmem:[%s0 + $0x208] sm:$0xf]
    %v1114 = vld [vmem:[%s0 + $0x20c] sm:$0xf]
    %v1115 = vld [vmem:[%s0 + $0x210] sm:$0xf]
    %v1116 = vld [vmem:[%s0 + $0x214] sm:$0xf]
    %v1117 = vld [vmem:[%s0 + $0x218] sm:$0xf]
    %v1118 = vld [vmem:[%s0 + $0x21c] sm:$0xf]
    %v1119 = vld [vmem:[%s0 + $0x220] sm:$0xf]
    %v1120 = vld [vmem:[%s0 + $0x224] sm:$0xf]
    %v1121 = vld [vmem:[%s0 + $0x228] sm:$0xf]
    %v1122 = vld [vmem:[%s0 + $0x22c] sm:$0xf]
    %v1151 = vunpack.c.l.b16 %v1095
    %v1152 = vunpack.c.l.b16 %v1096
    %v1153 = vunpack.c.l.b16 %v1097
    %v1154 = vunpack.c.l.b16 %v1098
    %v1155 = vunpack.c.l.b16 %v1099
    %v1156 = vunpack.c.l.b16 %v1100
    %v1157 = vunpack.c.l.b16 %v1101
    %v1158 = vunpack.c.l.b16 %v1102
    %v1159 = vunpack.c.l.b16 %v1103
    %v1160 = vunpack.c.l.b16 %v1104
    %v1161 = vunpack.c.l.b16 %v1105
    %v1162 = vunpack.c.l.b16 %v1106
    %v1163 = vunpack.c.l.b16 %v1107
    %v1164 = vunpack.c.l.b16 %v1108
    %v1165 = vunpack.c.l.b16 %v1109
    %v1166 = vunpack.c.l.b16 %v1110
    %v1167 = vunpack.c.l.b16 %v1111
    %v1168 = vunpack.c.l.b16 %v1112
    %v1169 = vunpack.c.l.b16 %v1113
    %v1170 = vunpack.c.l.b16 %v1114
    %v1171 = vunpack.c.l.b16 %v1115
    %v1172 = vunpack.c.l.b16 %v1116
    %v1173 = vunpack.c.l.b16 %v1117
    %v1174 = vunpack.c.l.b16 %v1118
    %v1175 = vunpack.c.l.b16 %v1119
    %v1176 = vunpack.c.l.b16 %v1120
    %v1177 = vunpack.c.l.b16 %v1121
    %v1178 = vunpack.c.l.b16 %v1122
    %v1179 = vpack.c.b16 %v1152, %v1151
    %v1180 = vpack.c.b16 %v1154, %v1153
    %v1181 = vpack.c.b16 %v1156, %v1155
    %v1182 = vpack.c.b16 %v1158, %v1157
    %v1183 = vpack.c.b16 %v1160, %v1159
    %v1184 = vpack.c.b16 %v1162, %v1161
    %v1185 = vpack.c.b16 %v1164, %v1163
    %v1186 = vpack.c.b16 %v1166, %v1165
    %v1187 = vpack.c.b16 %v1168, %v1167
    %v1188 = vpack.c.b16 %v1170, %v1169
    %v1189 = vpack.c.b16 %v1172, %v1171
    %v1190 = vpack.c.b16 %v1174, %v1173
    %v1191 = vpack.c.b16 %v1176, %v1175
    %v1192 = vpack.c.b16 %v1178, %v1177
    %1207 = vmatpush.bf16.msra.mxu0 %v210
    %1208 = vmatpush.bf16.msra.mxu0 %v209
    %1209 = vmatpush.bf16.msra.mxu0 %v208
    %1210 = vmatpush.bf16.msra.mxu0 %v207
    %1211 = vmatpush.bf16.msra.mxu0 %v206
    %1212 = vmatpush.bf16.msra.mxu0 %v205
    %1213 = vmatpush.bf16.msra.mxu0 %v204
    %1214 = vmatpush.bf16.msra.mxu0 %v203
    %1215 = vmatmul.bf16.gmra.mxu0 %v1179
    %v1216 = vpop.f32.mrf.mxu0
    %v1217 = vadd.f32 %v85, %v1216
    %v1218 = vpop.f32.mrf.mxu0
    %v1219 = vadd.f32 %v85, %v1218
    %1220 = vmatmul.bf16.gmra.mxu0 %v1180
    %v1221 = vpop.f32.mrf.mxu0
    %v1222 = vadd.f32 %v85, %v1221
    %v1223 = vpop.f32.mrf.mxu0
    %v1224 = vadd.f32 %v85, %v1223
    %1225 = vmatmul.bf16.gmra.mxu0 %v1181
    %v1226 = vpop.f32.mrf.mxu0
    %v1227 = vadd.f32 %v85, %v1226
    %v1228 = vpop.f32.mrf.mxu0
    %v1229 = vadd.f32 %v85, %v1228
    %1230 = vmatmul.bf16.gmra.mxu0 %v1182
    %v1231 = vpop.f32.mrf.mxu0
    %v1232 = vadd.f32 %v85, %v1231
    %v1233 = vpop.f32.mrf.mxu0
    %v1234 = vadd.f32 %v85, %v1233
    %1235 = vmatmul.bf16.gmra.mxu0 %v1183
    %v1236 = vpop.f32.mrf.mxu0
    %v1237 = vadd.f32 %v85, %v1236
    %v1238 = vpop.f32.mrf.mxu0
    %v1239 = vadd.f32 %v85, %v1238
    %1240 = vmatmul.bf16.gmra.mxu0 %v1184
    %v1241 = vpop.f32.mrf.mxu0
    %v1242 = vadd.f32 %v85, %v1241
    %v1243 = vpop.f32.mrf.mxu0
    %v1244 = vadd.f32 %v85, %v1243
    %1245 = vmatmul.bf16.gmra.mxu0 %v1185
    %v1246 = vpop.f32.mrf.mxu0
    %v1247 = vadd.f32 %v85, %v1246
    %v1248 = vpop.f32.mrf.mxu0
    %v1249 = vadd.f32 %v85, %v1248
    %1250 = vmatmul.bf16.gmra.mxu0 %v1186
    %v1251 = vpop.f32.mrf.mxu0
    %v1252 = vadd.f32 %v85, %v1251
    %v1253 = vpop.f32.mrf.mxu0
    %v1254 = vadd.f32 %v85, %v1253
    %1255 = vmatmul.bf16.gmra.mxu0 %v1187
    %v1256 = vpop.f32.mrf.mxu0
    %v1257 = vadd.f32 %v85, %v1256
    %v1258 = vpop.f32.mrf.mxu0
    %v1259 = vadd.f32 %v85, %v1258
    %1260 = vmatmul.bf16.gmra.mxu0 %v1188
    %v1261 = vpop.f32.mrf.mxu0
    %v1262 = vadd.f32 %v85, %v1261
    %v1263 = vpop.f32.mrf.mxu0
    %v1264 = vadd.f32 %v85, %v1263
    %1265 = vmatmul.bf16.gmra.mxu0 %v1189
    %v1266 = vpop.f32.mrf.mxu0
    %v1267 = vadd.f32 %v85, %v1266
    %v1268 = vpop.f32.mrf.mxu0
    %v1269 = vadd.f32 %v85, %v1268
    %1270 = vmatmul.bf16.gmra.mxu0 %v1190
    %v1271 = vpop.f32.mrf.mxu0
    %v1272 = vadd.f32 %v85, %v1271
    %v1273 = vpop.f32.mrf.mxu0
    %v1274 = vadd.f32 %v85, %v1273
    %1275 = vmatmul.bf16.gmra.mxu0 %v1191
    %v1276 = vpop.f32.mrf.mxu0
    %v1277 = vadd.f32 %v85, %v1276
    %v1278 = vpop.f32.mrf.mxu0
    %v1279 = vadd.f32 %v85, %v1278
    %1280 = vmatmul.bf16.gmra.mxu0 %v1192
    %v1281 = vpop.f32.mrf.mxu0
    %v1282 = vadd.f32 %v85, %v1281
    %v1283 = vpop.f32.mrf.mxu0
    %v1284 = vadd.f32 %v85, %v1283
    %1285 = vdwg.mxu0
    %v1286 = vmax.f32 %v1217, 0.0
    %v1287 = vmax.f32 %v1219, 0.0
    %v1288 = vmax.f32 %v1222, 0.0
    %v1289 = vmax.f32 %v1224, 0.0
    %v1290 = vmax.f32 %v1227, 0.0
    %v1291 = vmax.f32 %v1229, 0.0
    %v1292 = vmax.f32 %v1232, 0.0
    %v1293 = vmax.f32 %v1234, 0.0
    %v1294 = vmax.f32 %v1237, 0.0
    %v1295 = vmax.f32 %v1239, 0.0
    %v1296 = vmax.f32 %v1242, 0.0
    %v1297 = vmax.f32 %v1244, 0.0
    %v1298 = vmax.f32 %v1247, 0.0
    %v1299 = vmax.f32 %v1249, 0.0
    %v1300 = vmax.f32 %v1252, 0.0
    %v1301 = vmax.f32 %v1254, 0.0
    %v1302 = vmax.f32 %v1257, 0.0
    %v1303 = vmax.f32 %v1259, 0.0
    %v1304 = vmax.f32 %v1262, 0.0
    %v1305 = vmax.f32 %v1264, 0.0
    %v1306 = vmax.f32 %v1267, 0.0
    %v1307 = vmax.f32 %v1269, 0.0
    %v1308 = vmax.f32 %v1272, 0.0
    %v1309 = vmax.f32 %v1274, 0.0
    %v1310 = vmax.f32 %v1277, 0.0
    %v1311 = vmax.f32 %v1279, 0.0
    %v1312 = vmax.f32 %v1282, 0.0
    %v1313 = vmax.f32 %v1284, 0.0
    %1314 = vst [vmem:[#allocation2 + $0x380] sm:$0xff] %v1286
    %1315 = vst [vmem:[#allocation2 + $0x388] sm:$0xff] %v1287
    %1316 = vst [vmem:[#allocation2 + $0x390] sm:$0xff] %v1288
    %1317 = vst [vmem:[#allocation2 + $0x398] sm:$0xff] %v1289
    %1318 = vst [vmem:[#allocation2 + $0x3a0] sm:$0xff] %v1290
    %1319 = vst [vmem:[#allocation2 + $0x3a8] sm:$0xff] %v1291
    %1320 = vst [vmem:[#allocation2 + $0x3b0] sm:$0xff] %v1292
    %1321 = vst [vmem:[#allocation2 + $0x3b8] sm:$0xff] %v1293
    %1322 = vst [vmem:[#allocation2 + $0x3c0] sm:$0xff] %v1294
    %1323 = vst [vmem:[#allocation2 + $0x3c8] sm:$0xff] %v1295
    %1324 = vst [vmem:[#allocation2 + $0x3d0] sm:$0xff] %v1296
    %1325 = vst [vmem:[#allocation2 + $0x3d8] sm:$0xff] %v1297
    %1326 = vst [vmem:[#allocation2 + $0x3e0] sm:$0xff] %v1298
    %1327 = vst [vmem:[#allocation2 + $0x3e8] sm:$0xff] %v1299
    %1328 = vst [vmem:[#allocation2 + $0x3f0] sm:$0xff] %v1300
    %1329 = vst [vmem:[#allocation2 + $0x3f8] sm:$0xff] %v1301
    %1330 = vst [vmem:[#allocation2 + $0x400] sm:$0xff] %v1302
    %1331 = vst [vmem:[#allocation2 + $0x408] sm:$0xff] %v1303
    %1332 = vst [vmem:[#allocation2 + $0x410] sm:$0xff] %v1304
    %1333 = vst [vmem:[#allocation2 + $0x418] sm:$0xff] %v1305
    %1334 = vst [vmem:[#allocation2 + $0x420] sm:$0xff] %v1306
    %1335 = vst [vmem:[#allocation2 + $0x428] sm:$0xff] %v1307
    %1336 = vst [vmem:[#allocation2 + $0x430] sm:$0xff] %v1308
    %1337 = vst [vmem:[#allocation2 + $0x438] sm:$0xff] %v1309
    %1338 = vst [vmem:[#allocation2 + $0x440] sm:$0xff] %v1310
    %1339 = vst [vmem:[#allocation2 + $0x448] sm:$0xff] %v1311
    %1340 = vst [vmem:[#allocation2 + $0x450] sm:$0xff] %v1312
    %1341 = vst [vmem:[#allocation2 + $0x458] sm:$0xff] %v1313
    %v1342 = vld [vmem:[%s0 + $0x230] sm:$0xf]
    %v1343 = vld [vmem:[%s0 + $0x234] sm:$0xf]
    %v1344 = vld [vmem:[%s0 + $0x238] sm:$0xf]
    %v1345 = vld [vmem:[%s0 + $0x23c] sm:$0xf]
    %v1346 = vld [vmem:[%s0 + $0x240] sm:$0xf]
    %v1347 = vld [vmem:[%s0 + $0x244] sm:$0xf]
    %v1348 = vld [vmem:[%s0 + $0x248] sm:$0xf]
    %v1349 = vld [vmem:[%s0 + $0x24c] sm:$0xf]
    %v1350 = vld [vmem:[%s0 + $0x250] sm:$0xf]
    %v1351 = vld [vmem:[%s0 + $0x254] sm:$0xf]
    %v1352 = vld [vmem:[%s0 + $0x258] sm:$0xf]
    %v1353 = vld [vmem:[%s0 + $0x25c] sm:$0xf]
    %v1354 = vld [vmem:[%s0 + $0x260] sm:$0xf]
    %v1355 = vld [vmem:[%s0 + $0x264] sm:$0xf]
    %v1356 = vld [vmem:[%s0 + $0x268] sm:$0xf]
    %v1357 = vld [vmem:[%s0 + $0x26c] sm:$0xf]
    %v1358 = vld [vmem:[%s0 + $0x270] sm:$0xf]
    %v1359 = vld [vmem:[%s0 + $0x274] sm:$0xf]
    %v1360 = vld [vmem:[%s0 + $0x278] sm:$0xf]
    %v1361 = vld [vmem:[%s0 + $0x27c] sm:$0xf]
    %v1362 = vld [vmem:[%s0 + $0x280] sm:$0xf]
    %v1363 = vld [vmem:[%s0 + $0x284] sm:$0xf]
    %v1364 = vld [vmem:[%s0 + $0x288] sm:$0xf]
    %v1365 = vld [vmem:[%s0 + $0x28c] sm:$0xf]
    %v1366 = vld [vmem:[%s0 + $0x290] sm:$0xf]
    %v1367 = vld [vmem:[%s0 + $0x294] sm:$0xf]
    %v1368 = vld [vmem:[%s0 + $0x298] sm:$0xf]
    %v1369 = vld [vmem:[%s0 + $0x29c] sm:$0xf]
    %v1398 = vunpack.c.l.b16 %v1342
    %v1399 = vunpack.c.l.b16 %v1343
    %v1400 = vunpack.c.l.b16 %v1344
    %v1401 = vunpack.c.l.b16 %v1345
    %v1402 = vunpack.c.l.b16 %v1346
    %v1403 = vunpack.c.l.b16 %v1347
    %v1404 = vunpack.c.l.b16 %v1348
    %v1405 = vunpack.c.l.b16 %v1349
    %v1406 = vunpack.c.l.b16 %v1350
    %v1407 = vunpack.c.l.b16 %v1351
    %v1408 = vunpack.c.l.b16 %v1352
    %v1409 = vunpack.c.l.b16 %v1353
    %v1410 = vunpack.c.l.b16 %v1354
    %v1411 = vunpack.c.l.b16 %v1355
    %v1412 = vunpack.c.l.b16 %v1356
    %v1413 = vunpack.c.l.b16 %v1357
    %v1414 = vunpack.c.l.b16 %v1358
    %v1415 = vunpack.c.l.b16 %v1359
    %v1416 = vunpack.c.l.b16 %v1360
    %v1417 = vunpack.c.l.b16 %v1361
    %v1418 = vunpack.c.l.b16 %v1362
    %v1419 = vunpack.c.l.b16 %v1363
    %v1420 = vunpack.c.l.b16 %v1364
    %v1421 = vunpack.c.l.b16 %v1365
    %v1422 = vunpack.c.l.b16 %v1366
    %v1423 = vunpack.c.l.b16 %v1367
    %v1424 = vunpack.c.l.b16 %v1368
    %v1425 = vunpack.c.l.b16 %v1369
    %v1426 = vpack.c.b16 %v1399, %v1398
    %v1427 = vpack.c.b16 %v1401, %v1400
    %v1428 = vpack.c.b16 %v1403, %v1402
    %v1429 = vpack.c.b16 %v1405, %v1404
    %v1430 = vpack.c.b16 %v1407, %v1406
    %v1431 = vpack.c.b16 %v1409, %v1408
    %v1432 = vpack.c.b16 %v1411, %v1410
    %v1433 = vpack.c.b16 %v1413, %v1412
    %v1434 = vpack.c.b16 %v1415, %v1414
    %v1435 = vpack.c.b16 %v1417, %v1416
    %v1436 = vpack.c.b16 %v1419, %v1418
    %v1437 = vpack.c.b16 %v1421, %v1420
    %v1438 = vpack.c.b16 %v1423, %v1422
    %v1439 = vpack.c.b16 %v1425, %v1424
    %1454 = vmatpush.bf16.msra.mxu0 %v210
    %1455 = vmatpush.bf16.msra.mxu0 %v209
    %1456 = vmatpush.bf16.msra.mxu0 %v208
    %1457 = vmatpush.bf16.msra.mxu0 %v207
    %1458 = vmatpush.bf16.msra.mxu0 %v206
    %1459 = vmatpush.bf16.msra.mxu0 %v205
    %1460 = vmatpush.bf16.msra.mxu0 %v204
    %1461 = vmatpush.bf16.msra.mxu0 %v203
    %1462 = vmatmul.bf16.gmra.mxu0 %v1426
    %v1463 = vpop.f32.mrf.mxu0
    %v1464 = vadd.f32 %v85, %v1463
    %v1465 = vpop.f32.mrf.mxu0
    %v1466 = vadd.f32 %v85, %v1465
    %1467 = vmatmul.bf16.gmra.mxu0 %v1427
    %v1468 = vpop.f32.mrf.mxu0
    %v1469 = vadd.f32 %v85, %v1468
    %v1470 = vpop.f32.mrf.mxu0
    %v1471 = vadd.f32 %v85, %v1470
    %1472 = vmatmul.bf16.gmra.mxu0 %v1428
    %v1473 = vpop.f32.mrf.mxu0
    %v1474 = vadd.f32 %v85, %v1473
    %v1475 = vpop.f32.mrf.mxu0
    %v1476 = vadd.f32 %v85, %v1475
    %1477 = vmatmul.bf16.gmra.mxu0 %v1429
    %v1478 = vpop.f32.mrf.mxu0
    %v1479 = vadd.f32 %v85, %v1478
    %v1480 = vpop.f32.mrf.mxu0
    %v1481 = vadd.f32 %v85, %v1480
    %1482 = vmatmul.bf16.gmra.mxu0 %v1430
    %v1483 = vpop.f32.mrf.mxu0
    %v1484 = vadd.f32 %v85, %v1483
    %v1485 = vpop.f32.mrf.mxu0
    %v1486 = vadd.f32 %v85, %v1485
    %1487 = vmatmul.bf16.gmra.mxu0 %v1431
    %v1488 = vpop.f32.mrf.mxu0
    %v1489 = vadd.f32 %v85, %v1488
    %v1490 = vpop.f32.mrf.mxu0
    %v1491 = vadd.f32 %v85, %v1490
    %1492 = vmatmul.bf16.gmra.mxu0 %v1432
    %v1493 = vpop.f32.mrf.mxu0
    %v1494 = vadd.f32 %v85, %v1493
    %v1495 = vpop.f32.mrf.mxu0
    %v1496 = vadd.f32 %v85, %v1495
    %1497 = vmatmul.bf16.gmra.mxu0 %v1433
    %v1498 = vpop.f32.mrf.mxu0
    %v1499 = vadd.f32 %v85, %v1498
    %v1500 = vpop.f32.mrf.mxu0
    %v1501 = vadd.f32 %v85, %v1500
    %1502 = vmatmul.bf16.gmra.mxu0 %v1434
    %v1503 = vpop.f32.mrf.mxu0
    %v1504 = vadd.f32 %v85, %v1503
    %v1505 = vpop.f32.mrf.mxu0
    %v1506 = vadd.f32 %v85, %v1505
    %1507 = vmatmul.bf16.gmra.mxu0 %v1435
    %v1508 = vpop.f32.mrf.mxu0
    %v1509 = vadd.f32 %v85, %v1508
    %v1510 = vpop.f32.mrf.mxu0
    %v1511 = vadd.f32 %v85, %v1510
    %1512 = vmatmul.bf16.gmra.mxu0 %v1436
    %v1513 = vpop.f32.mrf.mxu0
    %v1514 = vadd.f32 %v85, %v1513
    %v1515 = vpop.f32.mrf.mxu0
    %v1516 = vadd.f32 %v85, %v1515
    %1517 = vmatmul.bf16.gmra.mxu0 %v1437
    %v1518 = vpop.f32.mrf.mxu0
    %v1519 = vadd.f32 %v85, %v1518
    %v1520 = vpop.f32.mrf.mxu0
    %v1521 = vadd.f32 %v85, %v1520
    %1522 = vmatmul.bf16.gmra.mxu0 %v1438
    %v1523 = vpop.f32.mrf.mxu0
    %v1524 = vadd.f32 %v85, %v1523
    %v1525 = vpop.f32.mrf.mxu0
    %v1526 = vadd.f32 %v85, %v1525
    %1527 = vmatmul.bf16.gmra.mxu0 %v1439
    %v1528 = vpop.f32.mrf.mxu0
    %v1529 = vadd.f32 %v85, %v1528
    %v1530 = vpop.f32.mrf.mxu0
    %v1531 = vadd.f32 %v85, %v1530
    %1532 = vdwg.mxu0
    %v1533 = vmax.f32 %v1464, 0.0
    %v1534 = vmax.f32 %v1466, 0.0
    %v1535 = vmax.f32 %v1469, 0.0
    %v1536 = vmax.f32 %v1471, 0.0
    %v1537 = vmax.f32 %v1474, 0.0
    %v1538 = vmax.f32 %v1476, 0.0
    %v1539 = vmax.f32 %v1479, 0.0
    %v1540 = vmax.f32 %v1481, 0.0
    %v1541 = vmax.f32 %v1484, 0.0
    %v1542 = vmax.f32 %v1486, 0.0
    %v1543 = vmax.f32 %v1489, 0.0
    %v1544 = vmax.f32 %v1491, 0.0
    %v1545 = vmax.f32 %v1494, 0.0
    %v1546 = vmax.f32 %v1496, 0.0
    %v1547 = vmax.f32 %v1499, 0.0
    %v1548 = vmax.f32 %v1501, 0.0
    %v1549 = vmax.f32 %v1504, 0.0
    %v1550 = vmax.f32 %v1506, 0.0
    %v1551 = vmax.f32 %v1509, 0.0
    %v1552 = vmax.f32 %v1511, 0.0
    %v1553 = vmax.f32 %v1514, 0.0
    %v1554 = vmax.f32 %v1516, 0.0
    %v1555 = vmax.f32 %v1519, 0.0
    %v1556 = vmax.f32 %v1521, 0.0
    %v1557 = vmax.f32 %v1524, 0.0
    %v1558 = vmax.f32 %v1526, 0.0
    %v1559 = vmax.f32 %v1529, 0.0
    %v1560 = vmax.f32 %v1531, 0.0
    %1561 = vst [vmem:[#allocation2 + $0x460] sm:$0xff] %v1533
    %1562 = vst [vmem:[#allocation2 + $0x468] sm:$0xff] %v1534
    %1563 = vst [vmem:[#allocation2 + $0x470] sm:$0xff] %v1535
    %1564 = vst [vmem:[#allocation2 + $0x478] sm:$0xff] %v1536
    %1565 = vst [vmem:[#allocation2 + $0x480] sm:$0xff] %v1537
    %1566 = vst [vmem:[#allocation2 + $0x488] sm:$0xff] %v1538
    %1567 = vst [vmem:[#allocation2 + $0x490] sm:$0xff] %v1539
    %1568 = vst [vmem:[#allocation2 + $0x498] sm:$0xff] %v1540
    %1569 = vst [vmem:[#allocation2 + $0x4a0] sm:$0xff] %v1541
    %1570 = vst [vmem:[#allocation2 + $0x4a8] sm:$0xff] %v1542
    %1571 = vst [vmem:[#allocation2 + $0x4b0] sm:$0xff] %v1543
    %1572 = vst [vmem:[#allocation2 + $0x4b8] sm:$0xff] %v1544
    %1573 = vst [vmem:[#allocation2 + $0x4c0] sm:$0xff] %v1545
    %1574 = vst [vmem:[#allocation2 + $0x4c8] sm:$0xff] %v1546
    %1575 = vst [vmem:[#allocation2 + $0x4d0] sm:$0xff] %v1547
    %1576 = vst [vmem:[#allocation2 + $0x4d8] sm:$0xff] %v1548
    %1577 = vst [vmem:[#allocation2 + $0x4e0] sm:$0xff] %v1549
    %1578 = vst [vmem:[#allocation2 + $0x4e8] sm:$0xff] %v1550
    %1579 = vst [vmem:[#allocation2 + $0x4f0] sm:$0xff] %v1551
    %1580 = vst [vmem:[#allocation2 + $0x4f8] sm:$0xff] %v1552
    %1581 = vst [vmem:[#allocation2 + $0x500] sm:$0xff] %v1553
    %1582 = vst [vmem:[#allocation2 + $0x508] sm:$0xff] %v1554
    %1583 = vst [vmem:[#allocation2 + $0x510] sm:$0xff] %v1555
    %1584 = vst [vmem:[#allocation2 + $0x518] sm:$0xff] %v1556
    %1585 = vst [vmem:[#allocation2 + $0x520] sm:$0xff] %v1557
    %1586 = vst [vmem:[#allocation2 + $0x528] sm:$0xff] %v1558
    %1587 = vst [vmem:[#allocation2 + $0x530] sm:$0xff] %v1559
    %1588 = vst [vmem:[#allocation2 + $0x538] sm:$0xff] %v1560
    %v1589 = vld [vmem:[%s0 + $0x2a0] sm:$0xf]
    %v1590 = vld [vmem:[%s0 + $0x2a4] sm:$0xf]
    %v1591 = vld [vmem:[%s0 + $0x2a8] sm:$0xf]
    %v1592 = vld [vmem:[%s0 + $0x2ac] sm:$0xf]
    %v1593 = vld [vmem:[%s0 + $0x2b0] sm:$0xf]
    %v1594 = vld [vmem:[%s0 + $0x2b4] sm:$0xf]
    %v1595 = vld [vmem:[%s0 + $0x2b8] sm:$0xf]
    %v1596 = vld [vmem:[%s0 + $0x2bc] sm:$0xf]
    %v1597 = vld [vmem:[%s0 + $0x2c0] sm:$0xf]
    %v1598 = vld [vmem:[%s0 + $0x2c4] sm:$0xf]
    %v1599 = vld [vmem:[%s0 + $0x2c8] sm:$0xf]
    %v1600 = vld [vmem:[%s0 + $0x2cc] sm:$0xf]
    %v1601 = vld [vmem:[%s0 + $0x2d0] sm:$0xf]
    %v1602 = vld [vmem:[%s0 + $0x2d4] sm:$0xf]
    %v1603 = vld [vmem:[%s0 + $0x2d8] sm:$0xf]
    %v1604 = vld [vmem:[%s0 + $0x2dc] sm:$0xf]
    %v1605 = vld [vmem:[%s0 + $0x2e0] sm:$0xf]
    %v1606 = vld [vmem:[%s0 + $0x2e4] sm:$0xf]
    %v1607 = vld [vmem:[%s0 + $0x2e8] sm:$0xf]
    %v1608 = vld [vmem:[%s0 + $0x2ec] sm:$0xf]
    %v1609 = vld [vmem:[%s0 + $0x2f0] sm:$0xf]
    %v1610 = vld [vmem:[%s0 + $0x2f4] sm:$0xf]
    %v1611 = vld [vmem:[%s0 + $0x2f8] sm:$0xf]
    %v1612 = vld [vmem:[%s0 + $0x2fc] sm:$0xf]
    %v1613 = vld [vmem:[%s0 + $0x300] sm:$0xf]
    %v1614 = vld [vmem:[%s0 + $0x304] sm:$0xf]
    %v1615 = vld [vmem:[%s0 + $0x308] sm:$0xf]
    %v1616 = vld [vmem:[%s0 + $0x30c] sm:$0xf]
    %v1645 = vunpack.c.l.b16 %v1589
    %v1646 = vunpack.c.l.b16 %v1590
    %v1647 = vunpack.c.l.b16 %v1591
    %v1648 = vunpack.c.l.b16 %v1592
    %v1649 = vunpack.c.l.b16 %v1593
    %v1650 = vunpack.c.l.b16 %v1594
    %v1651 = vunpack.c.l.b16 %v1595
    %v1652 = vunpack.c.l.b16 %v1596
    %v1653 = vunpack.c.l.b16 %v1597
    %v1654 = vunpack.c.l.b16 %v1598
    %v1655 = vunpack.c.l.b16 %v1599
    %v1656 = vunpack.c.l.b16 %v1600
    %v1657 = vunpack.c.l.b16 %v1601
    %v1658 = vunpack.c.l.b16 %v1602
    %v1659 = vunpack.c.l.b16 %v1603
    %v1660 = vunpack.c.l.b16 %v1604
    %v1661 = vunpack.c.l.b16 %v1605
    %v1662 = vunpack.c.l.b16 %v1606
    %v1663 = vunpack.c.l.b16 %v1607
    %v1664 = vunpack.c.l.b16 %v1608
    %v1665 = vunpack.c.l.b16 %v1609
    %v1666 = vunpack.c.l.b16 %v1610
    %v1667 = vunpack.c.l.b16 %v1611
    %v1668 = vunpack.c.l.b16 %v1612
    %v1669 = vunpack.c.l.b16 %v1613
    %v1670 = vunpack.c.l.b16 %v1614
    %v1671 = vunpack.c.l.b16 %v1615
    %v1672 = vunpack.c.l.b16 %v1616
    %v1673 = vpack.c.b16 %v1646, %v1645
    %v1674 = vpack.c.b16 %v1648, %v1647
    %v1675 = vpack.c.b16 %v1650, %v1649
    %v1676 = vpack.c.b16 %v1652, %v1651
    %v1677 = vpack.c.b16 %v1654, %v1653
    %v1678 = vpack.c.b16 %v1656, %v1655
    %v1679 = vpack.c.b16 %v1658, %v1657
    %v1680 = vpack.c.b16 %v1660, %v1659
    %v1681 = vpack.c.b16 %v1662, %v1661
    %v1682 = vpack.c.b16 %v1664, %v1663
    %v1683 = vpack.c.b16 %v1666, %v1665
    %v1684 = vpack.c.b16 %v1668, %v1667
    %v1685 = vpack.c.b16 %v1670, %v1669
    %v1686 = vpack.c.b16 %v1672, %v1671
    %1701 = vmatpush.bf16.msra.mxu0 %v210
    %1702 = vmatpush.bf16.msra.mxu0 %v209
    %1703 = vmatpush.bf16.msra.mxu0 %v208
    %1704 = vmatpush.bf16.msra.mxu0 %v207
    %1705 = vmatpush.bf16.msra.mxu0 %v206
    %1706 = vmatpush.bf16.msra.mxu0 %v205
    %1707 = vmatpush.bf16.msra.mxu0 %v204
    %1708 = vmatpush.bf16.msra.mxu0 %v203
    %1709 = vmatmul.bf16.gmra.mxu0 %v1673
    %v1710 = vpop.f32.mrf.mxu0
    %v1711 = vadd.f32 %v85, %v1710
    %v1712 = vpop.f32.mrf.mxu0
    %v1713 = vadd.f32 %v85, %v1712
    %1714 = vmatmul.bf16.gmra.mxu0 %v1674
    %v1715 = vpop.f32.mrf.mxu0
    %v1716 = vadd.f32 %v85, %v1715
    %v1717 = vpop.f32.mrf.mxu0
    %v1718 = vadd.f32 %v85, %v1717
    %1719 = vmatmul.bf16.gmra.mxu0 %v1675
    %v1720 = vpop.f32.mrf.mxu0
    %v1721 = vadd.f32 %v85, %v1720
    %v1722 = vpop.f32.mrf.mxu0
    %v1723 = vadd.f32 %v85, %v1722
    %1724 = vmatmul.bf16.gmra.mxu0 %v1676
    %v1725 = vpop.f32.mrf.mxu0
    %v1726 = vadd.f32 %v85, %v1725
    %v1727 = vpop.f32.mrf.mxu0
    %v1728 = vadd.f32 %v85, %v1727
    %1729 = vmatmul.bf16.gmra.mxu0 %v1677
    %v1730 = vpop.f32.mrf.mxu0
    %v1731 = vadd.f32 %v85, %v1730
    %v1732 = vpop.f32.mrf.mxu0
    %v1733 = vadd.f32 %v85, %v1732
    %1734 = vmatmul.bf16.gmra.mxu0 %v1678
    %v1735 = vpop.f32.mrf.mxu0
    %v1736 = vadd.f32 %v85, %v1735
    %v1737 = vpop.f32.mrf.mxu0
    %v1738 = vadd.f32 %v85, %v1737
    %1739 = vmatmul.bf16.gmra.mxu0 %v1679
    %v1740 = vpop.f32.mrf.mxu0
    %v1741 = vadd.f32 %v85, %v1740
    %v1742 = vpop.f32.mrf.mxu0
    %v1743 = vadd.f32 %v85, %v1742
    %1744 = vmatmul.bf16.gmra.mxu0 %v1680
    %v1745 = vpop.f32.mrf.mxu0
    %v1746 = vadd.f32 %v85, %v1745
    %v1747 = vpop.f32.mrf.mxu0
    %v1748 = vadd.f32 %v85, %v1747
    %1749 = vmatmul.bf16.gmra.mxu0 %v1681
    %v1750 = vpop.f32.mrf.mxu0
    %v1751 = vadd.f32 %v85, %v1750
    %v1752 = vpop.f32.mrf.mxu0
    %v1753 = vadd.f32 %v85, %v1752
    %1754 = vmatmul.bf16.gmra.mxu0 %v1682
    %v1755 = vpop.f32.mrf.mxu0
    %v1756 = vadd.f32 %v85, %v1755
    %v1757 = vpop.f32.mrf.mxu0
    %v1758 = vadd.f32 %v85, %v1757
    %1759 = vmatmul.bf16.gmra.mxu0 %v1683
    %v1760 = vpop.f32.mrf.mxu0
    %v1761 = vadd.f32 %v85, %v1760
    %v1762 = vpop.f32.mrf.mxu0
    %v1763 = vadd.f32 %v85, %v1762
    %1764 = vmatmul.bf16.gmra.mxu0 %v1684
    %v1765 = vpop.f32.mrf.mxu0
    %v1766 = vadd.f32 %v85, %v1765
    %v1767 = vpop.f32.mrf.mxu0
    %v1768 = vadd.f32 %v85, %v1767
    %1769 = vmatmul.bf16.gmra.mxu0 %v1685
    %v1770 = vpop.f32.mrf.mxu0
    %v1771 = vadd.f32 %v85, %v1770
    %v1772 = vpop.f32.mrf.mxu0
    %v1773 = vadd.f32 %v85, %v1772
    %1774 = vmatmul.bf16.gmra.mxu0 %v1686
    %v1775 = vpop.f32.mrf.mxu0
    %v1776 = vadd.f32 %v85, %v1775
    %v1777 = vpop.f32.mrf.mxu0
    %v1778 = vadd.f32 %v85, %v1777
    %1779 = vdwg.mxu0
    %v1780 = vmax.f32 %v1711, 0.0
    %v1781 = vmax.f32 %v1713, 0.0
    %v1782 = vmax.f32 %v1716, 0.0
    %v1783 = vmax.f32 %v1718, 0.0
    %v1784 = vmax.f32 %v1721, 0.0
    %v1785 = vmax.f32 %v1723, 0.0
    %v1786 = vmax.f32 %v1726, 0.0
    %v1787 = vmax.f32 %v1728, 0.0
    %v1788 = vmax.f32 %v1731, 0.0
    %v1789 = vmax.f32 %v1733, 0.0
    %v1790 = vmax.f32 %v1736, 0.0
    %v1791 = vmax.f32 %v1738, 0.0
    %v1792 = vmax.f32 %v1741, 0.0
    %v1793 = vmax.f32 %v1743, 0.0
    %v1794 = vmax.f32 %v1746, 0.0
    %v1795 = vmax.f32 %v1748, 0.0
    %v1796 = vmax.f32 %v1751, 0.0
    %v1797 = vmax.f32 %v1753, 0.0
    %v1798 = vmax.f32 %v1756, 0.0
    %v1799 = vmax.f32 %v1758, 0.0
    %v1800 = vmax.f32 %v1761, 0.0
    %v1801 = vmax.f32 %v1763, 0.0
    %v1802 = vmax.f32 %v1766, 0.0
    %v1803 = vmax.f32 %v1768, 0.0
    %v1804 = vmax.f32 %v1771, 0.0
    %v1805 = vmax.f32 %v1773, 0.0
    %v1806 = vmax.f32 %v1776, 0.0
    %v1807 = vmax.f32 %v1778, 0.0
    %1808 = vst [vmem:[#allocation2 + $0x540] sm:$0xff] %v1780
    %1809 = vst [vmem:[#allocation2 + $0x548] sm:$0xff] %v1781
    %1810 = vst [vmem:[#allocation2 + $0x550] sm:$0xff] %v1782
    %1811 = vst [vmem:[#allocation2 + $0x558] sm:$0xff] %v1783
    %1812 = vst [vmem:[#allocation2 + $0x560] sm:$0xff] %v1784
    %1813 = vst [vmem:[#allocation2 + $0x568] sm:$0xff] %v1785
    %1814 = vst [vmem:[#allocation2 + $0x570] sm:$0xff] %v1786
    %1815 = vst [vmem:[#allocation2 + $0x578] sm:$0xff] %v1787
    %1816 = vst [vmem:[#allocation2 + $0x580] sm:$0xff] %v1788
    %1817 = vst [vmem:[#allocation2 + $0x588] sm:$0xff] %v1789
    %1818 = vst [vmem:[#allocation2 + $0x590] sm:$0xff] %v1790
    %1819 = vst [vmem:[#allocation2 + $0x598] sm:$0xff] %v1791
    %1820 = vst [vmem:[#allocation2 + $0x5a0] sm:$0xff] %v1792
    %1821 = vst [vmem:[#allocation2 + $0x5a8] sm:$0xff] %v1793
    %1822 = vst [vmem:[#allocation2 + $0x5b0] sm:$0xff] %v1794
    %1823 = vst [vmem:[#allocation2 + $0x5b8] sm:$0xff] %v1795
    %1824 = vst [vmem:[#allocation2 + $0x5c0] sm:$0xff] %v1796
    %1825 = vst [vmem:[#allocation2 + $0x5c8] sm:$0xff] %v1797
    %1826 = vst [vmem:[#allocation2 + $0x5d0] sm:$0xff] %v1798
    %1827 = vst [vmem:[#allocation2 + $0x5d8] sm:$0xff] %v1799
    %1828 = vst [vmem:[#allocation2 + $0x5e0] sm:$0xff] %v1800
    %1829 = vst [vmem:[#allocation2 + $0x5e8] sm:$0xff] %v1801
    %1830 = vst [vmem:[#allocation2 + $0x5f0] sm:$0xff] %v1802
    %1831 = vst [vmem:[#allocation2 + $0x5f8] sm:$0xff] %v1803
    %1832 = vst [vmem:[#allocation2 + $0x600] sm:$0xff] %v1804
    %1833 = vst [vmem:[#allocation2 + $0x608] sm:$0xff] %v1805
    %1834 = vst [vmem:[#allocation2 + $0x610] sm:$0xff] %v1806
    %1835 = vst [vmem:[#allocation2 + $0x618] sm:$0xff] %v1807
    %1836 = vst [vmem:[#allocation3] sm:$0xff] 0.0
    %1837 = vst [vmem:[#allocation3 + $0x8] sm:$0xff] 0.0
    %1838 = vst [vmem:[#allocation3 + $0x10] sm:$0xff] 0.0
    %1839 = vst [vmem:[#allocation3 + $0x18] sm:$0xff] 0.0
    %1840 = vst [vmem:[#allocation3 + $0x20] sm:$0xff] 0.0
    %1841 = vst [vmem:[#allocation3 + $0x28] sm:$0xff] 0.0
    %1842 = vst [vmem:[#allocation3 + $0x30] sm:$0xff] 0.0
    %1843 = vst [vmem:[#allocation3 + $0x38] sm:$0xff] 0.0
    %1844 = vst [vmem:[#allocation3 + $0x40] sm:$0xff] 0.0
    %1845 = vst [vmem:[#allocation3 + $0x48] sm:$0xff] 0.0
    %1846 = vst [vmem:[#allocation3 + $0x50] sm:$0xff] 0.0
    %1847 = vst [vmem:[#allocation3 + $0x58] sm:$0xff] 0.0
    %1848 = vst [vmem:[#allocation3 + $0x60] sm:$0xff] 0.0
    %1849 = vst [vmem:[#allocation3 + $0x68] sm:$0xff] 0.0
    %1850 = vst [vmem:[#allocation3 + $0x70] sm:$0xff] 0.0
    %1851 = vst [vmem:[#allocation3 + $0x78] sm:$0xff] 0.0
    %1852 = vst [vmem:[#allocation3 + $0x80] sm:$0xff] 0.0
    %1853 = vst [vmem:[#allocation3 + $0x88] sm:$0xff] 0.0
    %1854 = vst [vmem:[#allocation3 + $0x90] sm:$0xff] 0.0
    %1855 = vst [vmem:[#allocation3 + $0x98] sm:$0xff] 0.0
    %1856 = vst [vmem:[#allocation3 + $0xa0] sm:$0xff] 0.0
    %1857 = vst [vmem:[#allocation3 + $0xa8] sm:$0xff] 0.0
    %1858 = vst [vmem:[#allocation3 + $0xb0] sm:$0xff] 0.0
    %1859 = vst [vmem:[#allocation3 + $0xb8] sm:$0xff] 0.0
    %1860 = vst [vmem:[#allocation3 + $0xc0] sm:$0xff] 0.0
    %1861 = vst [vmem:[#allocation3 + $0xc8] sm:$0xff] 0.0
    %1862 = vst [vmem:[#allocation3 + $0xd0] sm:$0xff] 0.0
    %1863 = vst [vmem:[#allocation3 + $0xd8] sm:$0xff] 0.0
    %1864 = vst [vmem:[#allocation3 + $0xe0] sm:$0xff] 0.0
    %1865 = vst [vmem:[#allocation3 + $0xe8] sm:$0xff] 0.0
    %1866 = vst [vmem:[#allocation3 + $0xf0] sm:$0xff] 0.0
    %1867 = vst [vmem:[#allocation3 + $0xf8] sm:$0xff] 0.0
    %1868 = vst [vmem:[#allocation3 + $0x100] sm:$0xff] 0.0
    %1869 = vst [vmem:[#allocation3 + $0x108] sm:$0xff] 0.0
    %1870 = vst [vmem:[#allocation3 + $0x110] sm:$0xff] 0.0
    %1871 = vst [vmem:[#allocation3 + $0x118] sm:$0xff] 0.0
    %1872 = vst [vmem:[#allocation3 + $0x120] sm:$0xff] 0.0
    %1873 = vst [vmem:[#allocation3 + $0x128] sm:$0xff] 0.0
    %1874 = vst [vmem:[#allocation3 + $0x130] sm:$0xff] 0.0
    %1875 = vst [vmem:[#allocation3 + $0x138] sm:$0xff] 0.0
    %1876 = vst [vmem:[#allocation3 + $0x140] sm:$0xff] 0.0
    %1877 = vst [vmem:[#allocation3 + $0x148] sm:$0xff] 0.0
    %1878 = vst [vmem:[#allocation3 + $0x150] sm:$0xff] 0.0
    %1879 = vst [vmem:[#allocation3 + $0x158] sm:$0xff] 0.0
    %1880 = vst [vmem:[#allocation3 + $0x160] sm:$0xff] 0.0
    %1881 = vst [vmem:[#allocation3 + $0x168] sm:$0xff] 0.0
    %1882 = vst [vmem:[#allocation3 + $0x170] sm:$0xff] 0.0
    %1883 = vst [vmem:[#allocation3 + $0x178] sm:$0xff] 0.0
    %1884 = vst [vmem:[#allocation3 + $0x180] sm:$0xff] 0.0
    %1885 = vst [vmem:[#allocation3 + $0x188] sm:$0xff] 0.0
    %1886 = vst [vmem:[#allocation3 + $0x190] sm:$0xff] 0.0
    %1887 = vst [vmem:[#allocation3 + $0x198] sm:$0xff] 0.0
    %1888 = vst [vmem:[#allocation3 + $0x1a0] sm:$0xff] 0.0
    %1889 = vst [vmem:[#allocation3 + $0x1a8] sm:$0xff] 0.0
    %1890 = vst [vmem:[#allocation3 + $0x1b0] sm:$0xff] 0.0
    %1891 = vst [vmem:[#allocation3 + $0x1b8] sm:$0xff] 0.0
    %1892 = vst [vmem:[#allocation3 + $0x1c0] sm:$0xff] 0.0
    %1893 = vst [vmem:[#allocation3 + $0x1c8] sm:$0xff] 0.0
    %1894 = vst [vmem:[#allocation3 + $0x1d0] sm:$0xff] 0.0
    %1895 = vst [vmem:[#allocation3 + $0x1d8] sm:$0xff] 0.0
    %1896 = vst [vmem:[#allocation3 + $0x1e0] sm:$0xff] 0.0
    %1897 = vst [vmem:[#allocation3 + $0x1e8] sm:$0xff] 0.0
    %1898 = vst [vmem:[#allocation3 + $0x1f0] sm:$0xff] 0.0
    %1899 = vst [vmem:[#allocation3 + $0x1f8] sm:$0xff] 0.0
    %1900 = vst [vmem:[#allocation3 + $0x200] sm:$0xff] 0.0
    %1901 = vst [vmem:[#allocation3 + $0x208] sm:$0xff] 0.0
    %v1902 = vld [vmem:[#allocation2] ss:$2 sm:$0xff]
    %s1903 = scalar_lea.vmem [#allocation2], 16
    %v1904 = vld [vmem:[%s1903] ss:$2 sm:$0x3f]
    %s1905 = scalar_lea.vmem [#allocation2], 1
    %v1906 = vld [vmem:[%s1905] ss:$2 sm:$0xff]
    %s1907 = scalar_lea.vmem [#allocation2], 17
    %v1908 = vld [vmem:[%s1907] ss:$2 sm:$0x3f]
    %v1909 = vmax.f32 %v1902, %v1906
    %v1910 = vmax.f32 %v1904, %v1908
    %s1911 = scalar_lea.vmem [#allocation2], 28
    %v1912 = vld [vmem:[%s1911] ss:$2 sm:$0xff]
    %s1913 = scalar_lea.vmem [#allocation2], 44
    %v1914 = vld [vmem:[%s1913] ss:$2 sm:$0x3f]
    %s1915 = scalar_lea.vmem [#allocation2], 29
    %v1916 = vld [vmem:[%s1915] ss:$2 sm:$0xff]
    %s1917 = scalar_lea.vmem [#allocation2], 45
    %v1918 = vld [vmem:[%s1917] ss:$2 sm:$0x3f]
    %v1919 = vmax.f32 %v1912, %v1916
    %v1920 = vmax.f32 %v1914, %v1918
    %v1921 = vmax.f32 %v1909, %v1919
    %v1922 = vmax.f32 %v1910, %v1920
    %1923 = vst [vmem:[#allocation3] sm:$0xff] %v1921
    %1924 = vst [vmem:[#allocation3 + $0x8] sm:$0x3f] %v1922
    %s1925 = scalar_lea.vmem [#allocation2], 56
    %v1926 = vld [vmem:[%s1925] ss:$2 sm:$0xff]
    %s1927 = scalar_lea.vmem [#allocation2], 72
    %v1928 = vld [vmem:[%s1927] ss:$2 sm:$0x3f]
    %s1929 = scalar_lea.vmem [#allocation2], 57
    %v1930 = vld [vmem:[%s1929] ss:$2 sm:$0xff]
    %s1931 = scalar_lea.vmem [#allocation2], 73
    %v1932 = vld [vmem:[%s1931] ss:$2 sm:$0x3f]
    %v1933 = vmax.f32 %v1926, %v1930
    %v1934 = vmax.f32 %v1928, %v1932
    %s1935 = scalar_lea.vmem [#allocation2], 84
    %v1936 = vld [vmem:[%s1935] ss:$2 sm:$0xff]
    %s1937 = scalar_lea.vmem [#allocation2], 100
    %v1938 = vld [vmem:[%s1937] ss:$2 sm:$0x3f]
    %s1939 = scalar_lea.vmem [#allocation2], 85
    %v1940 = vld [vmem:[%s1939] ss:$2 sm:$0xff]
    %s1941 = scalar_lea.vmem [#allocation2], 101
    %v1942 = vld [vmem:[%s1941] ss:$2 sm:$0x3f]
    %v1943 = vmax.f32 %v1936, %v1940
    %v1944 = vmax.f32 %v1938, %v1942
    %v1945 = vmax.f32 %v1933, %v1943
    %v1946 = vmax.f32 %v1934, %v1944
    %1947 = vst [vmem:[#allocation3 + $0x10] sm:$0xff] %v1945
    %1948 = vst [vmem:[#allocation3 + $0x18] sm:$0x3f] %v1946
    %s1949 = scalar_lea.vmem [#allocation2], 112
    %v1950 = vld [vmem:[%s1949] ss:$2 sm:$0xff]
    %s1951 = scalar_lea.vmem [#allocation2], 128
    %v1952 = vld [vmem:[%s1951] ss:$2 sm:$0x3f]
    %s1953 = scalar_lea.vmem [#allocation2], 113
    %v1954 = vld [vmem:[%s1953] ss:$2 sm:$0xff]
    %s1955 = scalar_lea.vmem [#allocation2], 129
    %v1956 = vld [vmem:[%s1955] ss:$2 sm:$0x3f]
    %v1957 = vmax.f32 %v1950, %v1954
    %v1958 = vmax.f32 %v1952, %v1956
    %s1959 = scalar_lea.vmem [#allocation2], 140
    %v1960 = vld [vmem:[%s1959] ss:$2 sm:$0xff]
    %s1961 = scalar_lea.vmem [#allocation2], 156
    %v1962 = vld [vmem:[%s1961] ss:$2 sm:$0x3f]
    %s1963 = scalar_lea.vmem [#allocation2], 141
    %v1964 = vld [vmem:[%s1963] ss:$2 sm:$0xff]
    %s1965 = scalar_lea.vmem [#allocation2], 157
    %v1966 = vld [vmem:[%s1965] ss:$2 sm:$0x3f]
    %v1967 = vmax.f32 %v1960, %v1964
    %v1968 = vmax.f32 %v1962, %v1966
    %v1969 = vmax.f32 %v1957, %v1967
    %v1970 = vmax.f32 %v1958, %v1968
    %1971 = vst [vmem:[#allocation3 + $0x20] sm:$0xff] %v1969
    %1972 = vst [vmem:[#allocation3 + $0x28] sm:$0x3f] %v1970
    %s1973 = scalar_lea.vmem [#allocation2], 168
    %v1974 = vld [vmem:[%s1973] ss:$2 sm:$0xff]
    %s1975 = scalar_lea.vmem [#allocation2], 184
    %v1976 = vld [vmem:[%s1975] ss:$2 sm:$0x3f]
    %s1977 = scalar_lea.vmem [#allocation2], 169
    %v1978 = vld [vmem:[%s1977] ss:$2 sm:$0xff]
    %s1979 = scalar_lea.vmem [#allocation2], 185
    %v1980 = vld [vmem:[%s1979] ss:$2 sm:$0x3f]
    %v1981 = vmax.f32 %v1974, %v1978
    %v1982 = vmax.f32 %v1976, %v1980
    %s1983 = scalar_lea.vmem [#allocation2], 196
    %v1984 = vld [vmem:[%s1983] ss:$2 sm:$0xff]
    %s1985 = scalar_lea.vmem [#allocation2], 212
    %v1986 = vld [vmem:[%s1985] ss:$2 sm:$0x3f]
    %s1987 = scalar_lea.vmem [#allocation2], 197
    %v1988 = vld [vmem:[%s1987] ss:$2 sm:$0xff]
    %s1989 = scalar_lea.vmem [#allocation2], 213
    %v1990 = vld [vmem:[%s1989] ss:$2 sm:$0x3f]
    %v1991 = vmax.f32 %v1984, %v1988
    %v1992 = vmax.f32 %v1986, %v1990
    %v1993 = vmax.f32 %v1981, %v1991
    %v1994 = vmax.f32 %v1982, %v1992
    %1995 = vst [vmem:[#allocation3 + $0x30] sm:$0xff] %v1993
    %1996 = vst [vmem:[#allocation3 + $0x38] sm:$0x3f] %v1994
    %s1997 = scalar_lea.vmem [#allocation2], 224
    %v1998 = vld [vmem:[%s1997] ss:$2 sm:$0xff]
    %s1999 = scalar_lea.vmem [#allocation2], 240
    %v2000 = vld [vmem:[%s1999] ss:$2 sm:$0x3f]
    %s2001 = scalar_lea.vmem [#allocation2], 225
    %v2002 = vld [vmem:[%s2001] ss:$2 sm:$0xff]
    %s2003 = scalar_lea.vmem [#allocation2], 241
    %v2004 = vld [vmem:[%s2003] ss:$2 sm:$0x3f]
    %v2005 = vmax.f32 %v1998, %v2002
    %v2006 = vmax.f32 %v2000, %v2004
    %s2007 = scalar_lea.vmem [#allocation2], 252
    %v2008 = vld [vmem:[%s2007] ss:$2 sm:$0xff]
    %s2009 = scalar_lea.vmem [#allocation2], 268
    %v2010 = vld [vmem:[%s2009] ss:$2 sm:$0x3f]
    %s2011 = scalar_lea.vmem [#allocation2], 253
    %v2012 = vld [vmem:[%s2011] ss:$2 sm:$0xff]
    %s2013 = scalar_lea.vmem [#allocation2], 269
    %v2014 = vld [vmem:[%s2013] ss:$2 sm:$0x3f]
    %v2015 = vmax.f32 %v2008, %v2012
    %v2016 = vmax.f32 %v2010, %v2014
    %v2017 = vmax.f32 %v2005, %v2015
    %v2018 = vmax.f32 %v2006, %v2016
    %2019 = vst [vmem:[#allocation3 + $0x40] sm:$0xff] %v2017
    %2020 = vst [vmem:[#allocation3 + $0x48] sm:$0x3f] %v2018
    %s2021 = scalar_lea.vmem [#allocation2], 280
    %v2022 = vld [vmem:[%s2021] ss:$2 sm:$0xff]
    %s2023 = scalar_lea.vmem [#allocation2], 296
    %v2024 = vld [vmem:[%s2023] ss:$2 sm:$0x3f]
    %s2025 = scalar_lea.vmem [#allocation2], 281
    %v2026 = vld [vmem:[%s2025] ss:$2 sm:$0xff]
    %s2027 = scalar_lea.vmem [#allocation2], 297
    %v2028 = vld [vmem:[%s2027] ss:$2 sm:$0x3f]
    %v2029 = vmax.f32 %v2022, %v2026
    %v2030 = vmax.f32 %v2024, %v2028
    %s2031 = scalar_lea.vmem [#allocation2], 308
    %v2032 = vld [vmem:[%s2031] ss:$2 sm:$0xff]
    %s2033 = scalar_lea.vmem [#allocation2], 324
    %v2034 = vld [vmem:[%s2033] ss:$2 sm:$0x3f]
    %s2035 = scalar_lea.vmem [#allocation2], 309
    %v2036 = vld [vmem:[%s2035] ss:$2 sm:$0xff]
    %s2037 = scalar_lea.vmem [#allocation2], 325
    %v2038 = vld [vmem:[%s2037] ss:$2 sm:$0x3f]
    %v2039 = vmax.f32 %v2032, %v2036
    %v2040 = vmax.f32 %v2034, %v2038
    %v2041 = vmax.f32 %v2029, %v2039
    %v2042 = vmax.f32 %v2030, %v2040
    %2043 = vst [vmem:[#allocation3 + $0x50] sm:$0xff] %v2041
    %2044 = vst [vmem:[#allocation3 + $0x58] sm:$0x3f] %v2042
    %s2045 = scalar_lea.vmem [#allocation2], 336
    %v2046 = vld [vmem:[%s2045] ss:$2 sm:$0xff]
    %s2047 = scalar_lea.vmem [#allocation2], 352
    %v2048 = vld [vmem:[%s2047] ss:$2 sm:$0x3f]
    %s2049 = scalar_lea.vmem [#allocation2], 337
    %v2050 = vld [vmem:[%s2049] ss:$2 sm:$0xff]
    %s2051 = scalar_lea.vmem [#allocation2], 353
    %v2052 = vld [vmem:[%s2051] ss:$2 sm:$0x3f]
    %v2053 = vmax.f32 %v2046, %v2050
    %v2054 = vmax.f32 %v2048, %v2052
    %s2055 = scalar_lea.vmem [#allocation2], 364
    %v2056 = vld [vmem:[%s2055] ss:$2 sm:$0xff]
    %s2057 = scalar_lea.vmem [#allocation2], 380
    %v2058 = vld [vmem:[%s2057] ss:$2 sm:$0x3f]
    %s2059 = scalar_lea.vmem [#allocation2], 365
    %v2060 = vld [vmem:[%s2059] ss:$2 sm:$0xff]
    %s2061 = scalar_lea.vmem [#allocation2], 381
    %v2062 = vld [vmem:[%s2061] ss:$2 sm:$0x3f]
    %v2063 = vmax.f32 %v2056, %v2060
    %v2064 = vmax.f32 %v2058, %v2062
    %v2065 = vmax.f32 %v2053, %v2063
    %v2066 = vmax.f32 %v2054, %v2064
    %2067 = vst [vmem:[#allocation3 + $0x60] sm:$0xff] %v2065
    %2068 = vst [vmem:[#allocation3 + $0x68] sm:$0x3f] %v2066
    %s2069 = scalar_lea.vmem [#allocation2], 392
    %v2070 = vld [vmem:[%s2069] ss:$2 sm:$0xff]
    %s2071 = scalar_lea.vmem [#allocation2], 408
    %v2072 = vld [vmem:[%s2071] ss:$2 sm:$0x3f]
    %s2073 = scalar_lea.vmem [#allocation2], 393
    %v2074 = vld [vmem:[%s2073] ss:$2 sm:$0xff]
    %s2075 = scalar_lea.vmem [#allocation2], 409
    %v2076 = vld [vmem:[%s2075] ss:$2 sm:$0x3f]
    %v2077 = vmax.f32 %v2070, %v2074
    %v2078 = vmax.f32 %v2072, %v2076
    %s2079 = scalar_lea.vmem [#allocation2], 420
    %v2080 = vld [vmem:[%s2079] ss:$2 sm:$0xff]
    %s2081 = scalar_lea.vmem [#allocation2], 436
    %v2082 = vld [vmem:[%s2081] ss:$2 sm:$0x3f]
    %s2083 = scalar_lea.vmem [#allocation2], 421
    %v2084 = vld [vmem:[%s2083] ss:$2 sm:$0xff]
    %s2085 = scalar_lea.vmem [#allocation2], 437
    %v2086 = vld [vmem:[%s2085] ss:$2 sm:$0x3f]
    %v2087 = vmax.f32 %v2080, %v2084
    %v2088 = vmax.f32 %v2082, %v2086
    %v2089 = vmax.f32 %v2077, %v2087
    %v2090 = vmax.f32 %v2078, %v2088
    %2091 = vst [vmem:[#allocation3 + $0x70] sm:$0xff] %v2089
    %2092 = vst [vmem:[#allocation3 + $0x78] sm:$0x3f] %v2090
    %s2093 = scalar_lea.vmem [#allocation2], 448
    %v2094 = vld [vmem:[%s2093] ss:$2 sm:$0xff]
    %s2095 = scalar_lea.vmem [#allocation2], 464
    %v2096 = vld [vmem:[%s2095] ss:$2 sm:$0x3f]
    %s2097 = scalar_lea.vmem [#allocation2], 449
    %v2098 = vld [vmem:[%s2097] ss:$2 sm:$0xff]
    %s2099 = scalar_lea.vmem [#allocation2], 465
    %v2100 = vld [vmem:[%s2099] ss:$2 sm:$0x3f]
    %v2101 = vmax.f32 %v2094, %v2098
    %v2102 = vmax.f32 %v2096, %v2100
    %s2103 = scalar_lea.vmem [#allocation2], 476
    %v2104 = vld [vmem:[%s2103] ss:$2 sm:$0xff]
    %s2105 = scalar_lea.vmem [#allocation2], 492
    %v2106 = vld [vmem:[%s2105] ss:$2 sm:$0x3f]
    %s2107 = scalar_lea.vmem [#allocation2], 477
    %v2108 = vld [vmem:[%s2107] ss:$2 sm:$0xff]
    %s2109 = scalar_lea.vmem [#allocation2], 493
    %v2110 = vld [vmem:[%s2109] ss:$2 sm:$0x3f]
    %v2111 = vmax.f32 %v2104, %v2108
    %v2112 = vmax.f32 %v2106, %v2110
    %v2113 = vmax.f32 %v2101, %v2111
    %v2114 = vmax.f32 %v2102, %v2112
    %2115 = vst [vmem:[#allocation3 + $0x80] sm:$0xff] %v2113
    %2116 = vst [vmem:[#allocation3 + $0x88] sm:$0x3f] %v2114
    %s2117 = scalar_lea.vmem [#allocation2], 504
    %v2118 = vld [vmem:[%s2117] ss:$2 sm:$0xff]
    %s2119 = scalar_lea.vmem [#allocation2], 520
    %v2120 = vld [vmem:[%s2119] ss:$2 sm:$0x3f]
    %s2121 = scalar_lea.vmem [#allocation2], 505
    %v2122 = vld [vmem:[%s2121] ss:$2 sm:$0xff]
    %s2123 = scalar_lea.vmem [#allocation2], 521
    %v2124 = vld [vmem:[%s2123] ss:$2 sm:$0x3f]
    %v2125 = vmax.f32 %v2118, %v2122
    %v2126 = vmax.f32 %v2120, %v2124
    %s2127 = scalar_lea.vmem [#allocation2], 532
    %v2128 = vld [vmem:[%s2127] ss:$2 sm:$0xff]
    %s2129 = scalar_lea.vmem [#allocation2], 548
    %v2130 = vld [vmem:[%s2129] ss:$2 sm:$0x3f]
    %s2131 = scalar_lea.vmem [#allocation2], 533
    %v2132 = vld [vmem:[%s2131] ss:$2 sm:$0xff]
    %s2133 = scalar_lea.vmem [#allocation2], 549
    %v2134 = vld [vmem:[%s2133] ss:$2 sm:$0x3f]
    %v2135 = vmax.f32 %v2128, %v2132
    %v2136 = vmax.f32 %v2130, %v2134
    %v2137 = vmax.f32 %v2125, %v2135
    %v2138 = vmax.f32 %v2126, %v2136
    %2139 = vst [vmem:[#allocation3 + $0x90] sm:$0xff] %v2137
    %2140 = vst [vmem:[#allocation3 + $0x98] sm:$0x3f] %v2138
    %s2141 = scalar_lea.vmem [#allocation2], 560
    %v2142 = vld [vmem:[%s2141] ss:$2 sm:$0xff]
    %s2143 = scalar_lea.vmem [#allocation2], 576
    %v2144 = vld [vmem:[%s2143] ss:$2 sm:$0x3f]
    %s2145 = scalar_lea.vmem [#allocation2], 561
    %v2146 = vld [vmem:[%s2145] ss:$2 sm:$0xff]
    %s2147 = scalar_lea.vmem [#allocation2], 577
    %v2148 = vld [vmem:[%s2147] ss:$2 sm:$0x3f]
    %v2149 = vmax.f32 %v2142, %v2146
    %v2150 = vmax.f32 %v2144, %v2148
    %s2151 = scalar_lea.vmem [#allocation2], 588
    %v2152 = vld [vmem:[%s2151] ss:$2 sm:$0xff]
    %s2153 = scalar_lea.vmem [#allocation2], 604
    %v2154 = vld [vmem:[%s2153] ss:$2 sm:$0x3f]
    %s2155 = scalar_lea.vmem [#allocation2], 589
    %v2156 = vld [vmem:[%s2155] ss:$2 sm:$0xff]
    %s2157 = scalar_lea.vmem [#allocation2], 605
    %v2158 = vld [vmem:[%s2157] ss:$2 sm:$0x3f]
    %v2159 = vmax.f32 %v2152, %v2156
    %v2160 = vmax.f32 %v2154, %v2158
    %v2161 = vmax.f32 %v2149, %v2159
    %v2162 = vmax.f32 %v2150, %v2160
    %2163 = vst [vmem:[#allocation3 + $0xa0] sm:$0xff] %v2161
    %2164 = vst [vmem:[#allocation3 + $0xa8] sm:$0x3f] %v2162
    %s2165 = scalar_lea.vmem [#allocation2], 616
    %v2166 = vld [vmem:[%s2165] ss:$2 sm:$0xff]
    %s2167 = scalar_lea.vmem [#allocation2], 632
    %v2168 = vld [vmem:[%s2167] ss:$2 sm:$0x3f]
    %s2169 = scalar_lea.vmem [#allocation2], 617
    %v2170 = vld [vmem:[%s2169] ss:$2 sm:$0xff]
    %s2171 = scalar_lea.vmem [#allocation2], 633
    %v2172 = vld [vmem:[%s2171] ss:$2 sm:$0x3f]
    %v2173 = vmax.f32 %v2166, %v2170
    %v2174 = vmax.f32 %v2168, %v2172
    %s2175 = scalar_lea.vmem [#allocation2], 644
    %v2176 = vld [vmem:[%s2175] ss:$2 sm:$0xff]
    %s2177 = scalar_lea.vmem [#allocation2], 660
    %v2178 = vld [vmem:[%s2177] ss:$2 sm:$0x3f]
    %s2179 = scalar_lea.vmem [#allocation2], 645
    %v2180 = vld [vmem:[%s2179] ss:$2 sm:$0xff]
    %s2181 = scalar_lea.vmem [#allocation2], 661
    %v2182 = vld [vmem:[%s2181] ss:$2 sm:$0x3f]
    %v2183 = vmax.f32 %v2176, %v2180
    %v2184 = vmax.f32 %v2178, %v2182
    %v2185 = vmax.f32 %v2173, %v2183
    %v2186 = vmax.f32 %v2174, %v2184
    %2187 = vst [vmem:[#allocation3 + $0xb0] sm:$0xff] %v2185
    %2188 = vst [vmem:[#allocation3 + $0xb8] sm:$0x3f] %v2186
    %s2189 = scalar_lea.vmem [#allocation2], 672
    %v2190 = vld [vmem:[%s2189] ss:$2 sm:$0xff]
    %s2191 = scalar_lea.vmem [#allocation2], 688
    %v2192 = vld [vmem:[%s2191] ss:$2 sm:$0x3f]
    %s2193 = scalar_lea.vmem [#allocation2], 673
    %v2194 = vld [vmem:[%s2193] ss:$2 sm:$0xff]
    %s2195 = scalar_lea.vmem [#allocation2], 689
    %v2196 = vld [vmem:[%s2195] ss:$2 sm:$0x3f]
    %v2197 = vmax.f32 %v2190, %v2194
    %v2198 = vmax.f32 %v2192, %v2196
    %s2199 = scalar_lea.vmem [#allocation2], 700
    %v2200 = vld [vmem:[%s2199] ss:$2 sm:$0xff]
    %s2201 = scalar_lea.vmem [#allocation2], 716
    %v2202 = vld [vmem:[%s2201] ss:$2 sm:$0x3f]
    %s2203 = scalar_lea.vmem [#allocation2], 701
    %v2204 = vld [vmem:[%s2203] ss:$2 sm:$0xff]
    %s2205 = scalar_lea.vmem [#allocation2], 717
    %v2206 = vld [vmem:[%s2205] ss:$2 sm:$0x3f]
    %v2207 = vmax.f32 %v2200, %v2204
    %v2208 = vmax.f32 %v2202, %v2206
    %v2209 = vmax.f32 %v2197, %v2207
    %v2210 = vmax.f32 %v2198, %v2208
    %2211 = vst [vmem:[#allocation3 + $0xc0] sm:$0xff] %v2209
    %2212 = vst [vmem:[#allocation3 + $0xc8] sm:$0x3f] %v2210
    %s2213 = scalar_lea.vmem [#allocation2], 728
    %v2214 = vld [vmem:[%s2213] ss:$2 sm:$0xff]
    %s2215 = scalar_lea.vmem [#allocation2], 744
    %v2216 = vld [vmem:[%s2215] ss:$2 sm:$0x3f]
    %s2217 = scalar_lea.vmem [#allocation2], 729
    %v2218 = vld [vmem:[%s2217] ss:$2 sm:$0xff]
    %s2219 = scalar_lea.vmem [#allocation2], 745
    %v2220 = vld [vmem:[%s2219] ss:$2 sm:$0x3f]
    %v2221 = vmax.f32 %v2214, %v2218
    %v2222 = vmax.f32 %v2216, %v2220
    %s2223 = scalar_lea.vmem [#allocation2], 756
    %v2224 = vld [vmem:[%s2223] ss:$2 sm:$0xff]
    %s2225 = scalar_lea.vmem [#allocation2], 772
    %v2226 = vld [vmem:[%s2225] ss:$2 sm:$0x3f]
    %s2227 = scalar_lea.vmem [#allocation2], 757
    %v2228 = vld [vmem:[%s2227] ss:$2 sm:$0xff]
    %s2229 = scalar_lea.vmem [#allocation2], 773
    %v2230 = vld [vmem:[%s2229] ss:$2 sm:$0x3f]
    %v2231 = vmax.f32 %v2224, %v2228
    %v2232 = vmax.f32 %v2226, %v2230
    %v2233 = vmax.f32 %v2221, %v2231
    %v2234 = vmax.f32 %v2222, %v2232
    %2235 = vst [vmem:[#allocation3 + $0xd0] sm:$0xff] %v2233
    %2236 = vst [vmem:[#allocation3 + $0xd8] sm:$0x3f] %v2234
    %s2237 = scalar_lea.vmem [#allocation2], 784
    %v2238 = vld [vmem:[%s2237] ss:$2 sm:$0xff]
    %s2239 = scalar_lea.vmem [#allocation2], 800
    %v2240 = vld [vmem:[%s2239] ss:$2 sm:$0x3f]
    %s2241 = scalar_lea.vmem [#allocation2], 785
    %v2242 = vld [vmem:[%s2241] ss:$2 sm:$0xff]
    %s2243 = scalar_lea.vmem [#allocation2], 801
    %v2244 = vld [vmem:[%s2243] ss:$2 sm:$0x3f]
    %v2245 = vmax.f32 %v2238, %v2242
    %v2246 = vmax.f32 %v2240, %v2244
    %s2247 = scalar_lea.vmem [#allocation2], 812
    %v2248 = vld [vmem:[%s2247] ss:$2 sm:$0xff]
    %s2249 = scalar_lea.vmem [#allocation2], 828
    %v2250 = vld [vmem:[%s2249] ss:$2 sm:$0x3f]
    %s2251 = scalar_lea.vmem [#allocation2], 813
    %v2252 = vld [vmem:[%s2251] ss:$2 sm:$0xff]
    %s2253 = scalar_lea.vmem [#allocation2], 829
    %v2254 = vld [vmem:[%s2253] ss:$2 sm:$0x3f]
    %v2255 = vmax.f32 %v2248, %v2252
    %v2256 = vmax.f32 %v2250, %v2254
    %v2257 = vmax.f32 %v2245, %v2255
    %v2258 = vmax.f32 %v2246, %v2256
    %2259 = vst [vmem:[#allocation3 + $0xe0] sm:$0xff] %v2257
    %2260 = vst [vmem:[#allocation3 + $0xe8] sm:$0x3f] %v2258
    %s2261 = scalar_lea.vmem [#allocation2], 840
    %v2262 = vld [vmem:[%s2261] ss:$2 sm:$0xff]
    %s2263 = scalar_lea.vmem [#allocation2], 856
    %v2264 = vld [vmem:[%s2263] ss:$2 sm:$0x3f]
    %s2265 = scalar_lea.vmem [#allocation2], 841
    %v2266 = vld [vmem:[%s2265] ss:$2 sm:$0xff]
    %s2267 = scalar_lea.vmem [#allocation2], 857
    %v2268 = vld [vmem:[%s2267] ss:$2 sm:$0x3f]
    %v2269 = vmax.f32 %v2262, %v2266
    %v2270 = vmax.f32 %v2264, %v2268
    %s2271 = scalar_lea.vmem [#allocation2], 868
    %v2272 = vld [vmem:[%s2271] ss:$2 sm:$0xff]
    %s2273 = scalar_lea.vmem [#allocation2], 884
    %v2274 = vld [vmem:[%s2273] ss:$2 sm:$0x3f]
    %s2275 = scalar_lea.vmem [#allocation2], 869
    %v2276 = vld [vmem:[%s2275] ss:$2 sm:$0xff]
    %s2277 = scalar_lea.vmem [#allocation2], 885
    %v2278 = vld [vmem:[%s2277] ss:$2 sm:$0x3f]
    %v2279 = vmax.f32 %v2272, %v2276
    %v2280 = vmax.f32 %v2274, %v2278
    %v2281 = vmax.f32 %v2269, %v2279
    %v2282 = vmax.f32 %v2270, %v2280
    %2283 = vst [vmem:[#allocation3 + $0xf0] sm:$0xff] %v2281
    %2284 = vst [vmem:[#allocation3 + $0xf8] sm:$0x3f] %v2282
    %s2285 = scalar_lea.vmem [#allocation2], 896
    %v2286 = vld [vmem:[%s2285] ss:$2 sm:$0xff]
    %s2287 = scalar_lea.vmem [#allocation2], 912
    %v2288 = vld [vmem:[%s2287] ss:$2 sm:$0x3f]
    %s2289 = scalar_lea.vmem [#allocation2], 897
    %v2290 = vld [vmem:[%s2289] ss:$2 sm:$0xff]
    %s2291 = scalar_lea.vmem [#allocation2], 913
    %v2292 = vld [vmem:[%s2291] ss:$2 sm:$0x3f]
    %v2293 = vmax.f32 %v2286, %v2290
    %v2294 = vmax.f32 %v2288, %v2292
    %s2295 = scalar_lea.vmem [#allocation2], 924
    %v2296 = vld [vmem:[%s2295] ss:$2 sm:$0xff]
    %s2297 = scalar_lea.vmem [#allocation2], 940
    %v2298 = vld [vmem:[%s2297] ss:$2 sm:$0x3f]
    %s2299 = scalar_lea.vmem [#allocation2], 925
    %v2300 = vld [vmem:[%s2299] ss:$2 sm:$0xff]
    %s2301 = scalar_lea.vmem [#allocation2], 941
    %v2302 = vld [vmem:[%s2301] ss:$2 sm:$0x3f]
    %v2303 = vmax.f32 %v2296, %v2300
    %v2304 = vmax.f32 %v2298, %v2302
    %v2305 = vmax.f32 %v2293, %v2303
    %v2306 = vmax.f32 %v2294, %v2304
    %2307 = vst [vmem:[#allocation3 + $0x100] sm:$0xff] %v2305
    %2308 = vst [vmem:[#allocation3 + $0x108] sm:$0x3f] %v2306
    %s2309 = scalar_lea.vmem [#allocation2], 952
    %v2310 = vld [vmem:[%s2309] ss:$2 sm:$0xff]
    %s2311 = scalar_lea.vmem [#allocation2], 968
    %v2312 = vld [vmem:[%s2311] ss:$2 sm:$0x3f]
    %s2313 = scalar_lea.vmem [#allocation2], 953
    %v2314 = vld [vmem:[%s2313] ss:$2 sm:$0xff]
    %s2315 = scalar_lea.vmem [#allocation2], 969
    %v2316 = vld [vmem:[%s2315] ss:$2 sm:$0x3f]
    %v2317 = vmax.f32 %v2310, %v2314
    %v2318 = vmax.f32 %v2312, %v2316
    %s2319 = scalar_lea.vmem [#allocation2], 980
    %v2320 = vld [vmem:[%s2319] ss:$2 sm:$0xff]
    %s2321 = scalar_lea.vmem [#allocation2], 996
    %v2322 = vld [vmem:[%s2321] ss:$2 sm:$0x3f]
    %s2323 = scalar_lea.vmem [#allocation2], 981
    %v2324 = vld [vmem:[%s2323] ss:$2 sm:$0xff]
    %s2325 = scalar_lea.vmem [#allocation2], 997
    %v2326 = vld [vmem:[%s2325] ss:$2 sm:$0x3f]
    %v2327 = vmax.f32 %v2320, %v2324
    %v2328 = vmax.f32 %v2322, %v2326
    %v2329 = vmax.f32 %v2317, %v2327
    %v2330 = vmax.f32 %v2318, %v2328
    %2331 = vst [vmem:[#allocation3 + $0x110] sm:$0xff] %v2329
    %2332 = vst [vmem:[#allocation3 + $0x118] sm:$0x3f] %v2330
    %s2333 = scalar_lea.vmem [#allocation2], 1008
    %v2334 = vld [vmem:[%s2333] ss:$2 sm:$0xff]
    %s2335 = scalar_lea.vmem [#allocation2], 1024
    %v2336 = vld [vmem:[%s2335] ss:$2 sm:$0x3f]
    %s2337 = scalar_lea.vmem [#allocation2], 1009
    %v2338 = vld [vmem:[%s2337] ss:$2 sm:$0xff]
    %s2339 = scalar_lea.vmem [#allocation2], 1025
    %v2340 = vld [vmem:[%s2339] ss:$2 sm:$0x3f]
    %v2341 = vmax.f32 %v2334, %v2338
    %v2342 = vmax.f32 %v2336, %v2340
    %s2343 = scalar_lea.vmem [#allocation2], 1036
    %v2344 = vld [vmem:[%s2343] ss:$2 sm:$0xff]
    %s2345 = scalar_lea.vmem [#allocation2], 1052
    %v2346 = vld [vmem:[%s2345] ss:$2 sm:$0x3f]
    %s2347 = scalar_lea.vmem [#allocation2], 1037
    %v2348 = vld [vmem:[%s2347] ss:$2 sm:$0xff]
    %s2349 = scalar_lea.vmem [#allocation2], 1053
    %v2350 = vld [vmem:[%s2349] ss:$2 sm:$0x3f]
    %v2351 = vmax.f32 %v2344, %v2348
    %v2352 = vmax.f32 %v2346, %v2350
    %v2353 = vmax.f32 %v2341, %v2351
    %v2354 = vmax.f32 %v2342, %v2352
    %2355 = vst [vmem:[#allocation3 + $0x120] sm:$0xff] %v2353
    %2356 = vst [vmem:[#allocation3 + $0x128] sm:$0x3f] %v2354
    %s2357 = scalar_lea.vmem [#allocation2], 1064
    %v2358 = vld [vmem:[%s2357] ss:$2 sm:$0xff]
    %s2359 = scalar_lea.vmem [#allocation2], 1080
    %v2360 = vld [vmem:[%s2359] ss:$2 sm:$0x3f]
    %s2361 = scalar_lea.vmem [#allocation2], 1065
    %v2362 = vld [vmem:[%s2361] ss:$2 sm:$0xff]
    %s2363 = scalar_lea.vmem [#allocation2], 1081
    %v2364 = vld [vmem:[%s2363] ss:$2 sm:$0x3f]
    %v2365 = vmax.f32 %v2358, %v2362
    %v2366 = vmax.f32 %v2360, %v2364
    %s2367 = scalar_lea.vmem [#allocation2], 1092
    %v2368 = vld [vmem:[%s2367] ss:$2 sm:$0xff]
    %s2369 = scalar_lea.vmem [#allocation2], 1108
    %v2370 = vld [vmem:[%s2369] ss:$2 sm:$0x3f]
    %s2371 = scalar_lea.vmem [#allocation2], 1093
    %v2372 = vld [vmem:[%s2371] ss:$2 sm:$0xff]
    %s2373 = scalar_lea.vmem [#allocation2], 1109
    %v2374 = vld [vmem:[%s2373] ss:$2 sm:$0x3f]
    %v2375 = vmax.f32 %v2368, %v2372
    %v2376 = vmax.f32 %v2370, %v2374
    %v2377 = vmax.f32 %v2365, %v2375
    %v2378 = vmax.f32 %v2366, %v2376
    %2379 = vst [vmem:[#allocation3 + $0x130] sm:$0xff] %v2377
    %2380 = vst [vmem:[#allocation3 + $0x138] sm:$0x3f] %v2378
    %s2381 = scalar_lea.vmem [#allocation2], 1120
    %v2382 = vld [vmem:[%s2381] ss:$2 sm:$0xff]
    %s2383 = scalar_lea.vmem [#allocation2], 1136
    %v2384 = vld [vmem:[%s2383] ss:$2 sm:$0x3f]
    %s2385 = scalar_lea.vmem [#allocation2], 1121
    %v2386 = vld [vmem:[%s2385] ss:$2 sm:$0xff]
    %s2387 = scalar_lea.vmem [#allocation2], 1137
    %v2388 = vld [vmem:[%s2387] ss:$2 sm:$0x3f]
    %v2389 = vmax.f32 %v2382, %v2386
    %v2390 = vmax.f32 %v2384, %v2388
    %s2391 = scalar_lea.vmem [#allocation2], 1148
    %v2392 = vld [vmem:[%s2391] ss:$2 sm:$0xff]
    %s2393 = scalar_lea.vmem [#allocation2], 1164
    %v2394 = vld [vmem:[%s2393] ss:$2 sm:$0x3f]
    %s2395 = scalar_lea.vmem [#allocation2], 1149
    %v2396 = vld [vmem:[%s2395] ss:$2 sm:$0xff]
    %s2397 = scalar_lea.vmem [#allocation2], 1165
    %v2398 = vld [vmem:[%s2397] ss:$2 sm:$0x3f]
    %v2399 = vmax.f32 %v2392, %v2396
    %v2400 = vmax.f32 %v2394, %v2398
    %v2401 = vmax.f32 %v2389, %v2399
    %v2402 = vmax.f32 %v2390, %v2400
    %2403 = vst [vmem:[#allocation3 + $0x140] sm:$0xff] %v2401
    %2404 = vst [vmem:[#allocation3 + $0x148] sm:$0x3f] %v2402
    %s2405 = scalar_lea.vmem [#allocation2], 1176
    %v2406 = vld [vmem:[%s2405] ss:$2 sm:$0xff]
    %s2407 = scalar_lea.vmem [#allocation2], 1192
    %v2408 = vld [vmem:[%s2407] ss:$2 sm:$0x3f]
    %s2409 = scalar_lea.vmem [#allocation2], 1177
    %v2410 = vld [vmem:[%s2409] ss:$2 sm:$0xff]
    %s2411 = scalar_lea.vmem [#allocation2], 1193
    %v2412 = vld [vmem:[%s2411] ss:$2 sm:$0x3f]
    %v2413 = vmax.f32 %v2406, %v2410
    %v2414 = vmax.f32 %v2408, %v2412
    %s2415 = scalar_lea.vmem [#allocation2], 1204
    %v2416 = vld [vmem:[%s2415] ss:$2 sm:$0xff]
    %s2417 = scalar_lea.vmem [#allocation2], 1220
    %v2418 = vld [vmem:[%s2417] ss:$2 sm:$0x3f]
    %s2419 = scalar_lea.vmem [#allocation2], 1205
    %v2420 = vld [vmem:[%s2419] ss:$2 sm:$0xff]
    %s2421 = scalar_lea.vmem [#allocation2], 1221
    %v2422 = vld [vmem:[%s2421] ss:$2 sm:$0x3f]
    %v2423 = vmax.f32 %v2416, %v2420
    %v2424 = vmax.f32 %v2418, %v2422
    %v2425 = vmax.f32 %v2413, %v2423
    %v2426 = vmax.f32 %v2414, %v2424
    %2427 = vst [vmem:[#allocation3 + $0x150] sm:$0xff] %v2425
    %2428 = vst [vmem:[#allocation3 + $0x158] sm:$0x3f] %v2426
    %s2429 = scalar_lea.vmem [#allocation2], 1232
    %v2430 = vld [vmem:[%s2429] ss:$2 sm:$0xff]
    %s2431 = scalar_lea.vmem [#allocation2], 1248
    %v2432 = vld [vmem:[%s2431] ss:$2 sm:$0x3f]
    %s2433 = scalar_lea.vmem [#allocation2], 1233
    %v2434 = vld [vmem:[%s2433] ss:$2 sm:$0xff]
    %s2435 = scalar_lea.vmem [#allocation2], 1249
    %v2436 = vld [vmem:[%s2435] ss:$2 sm:$0x3f]
    %v2437 = vmax.f32 %v2430, %v2434
    %v2438 = vmax.f32 %v2432, %v2436
    %s2439 = scalar_lea.vmem [#allocation2], 1260
    %v2440 = vld [vmem:[%s2439] ss:$2 sm:$0xff]
    %s2441 = scalar_lea.vmem [#allocation2], 1276
    %v2442 = vld [vmem:[%s2441] ss:$2 sm:$0x3f]
    %s2443 = scalar_lea.vmem [#allocation2], 1261
    %v2444 = vld [vmem:[%s2443] ss:$2 sm:$0xff]
    %s2445 = scalar_lea.vmem [#allocation2], 1277
    %v2446 = vld [vmem:[%s2445] ss:$2 sm:$0x3f]
    %v2447 = vmax.f32 %v2440, %v2444
    %v2448 = vmax.f32 %v2442, %v2446
    %v2449 = vmax.f32 %v2437, %v2447
    %v2450 = vmax.f32 %v2438, %v2448
    %2451 = vst [vmem:[#allocation3 + $0x160] sm:$0xff] %v2449
    %2452 = vst [vmem:[#allocation3 + $0x168] sm:$0x3f] %v2450
    %s2453 = scalar_lea.vmem [#allocation2], 1288
    %v2454 = vld [vmem:[%s2453] ss:$2 sm:$0xff]
    %s2455 = scalar_lea.vmem [#allocation2], 1304
    %v2456 = vld [vmem:[%s2455] ss:$2 sm:$0x3f]
    %s2457 = scalar_lea.vmem [#allocation2], 1289
    %v2458 = vld [vmem:[%s2457] ss:$2 sm:$0xff]
    %s2459 = scalar_lea.vmem [#allocation2], 1305
    %v2460 = vld [vmem:[%s2459] ss:$2 sm:$0x3f]
    %v2461 = vmax.f32 %v2454, %v2458
    %v2462 = vmax.f32 %v2456, %v2460
    %s2463 = scalar_lea.vmem [#allocation2], 1316
    %v2464 = vld [vmem:[%s2463] ss:$2 sm:$0xff]
    %s2465 = scalar_lea.vmem [#allocation2], 1332
    %v2466 = vld [vmem:[%s2465] ss:$2 sm:$0x3f]
    %s2467 = scalar_lea.vmem [#allocation2], 1317
    %v2468 = vld [vmem:[%s2467] ss:$2 sm:$0xff]
    %s2469 = scalar_lea.vmem [#allocation2], 1333
    %v2470 = vld [vmem:[%s2469] ss:$2 sm:$0x3f]
    %v2471 = vmax.f32 %v2464, %v2468
    %v2472 = vmax.f32 %v2466, %v2470
    %v2473 = vmax.f32 %v2461, %v2471
    %v2474 = vmax.f32 %v2462, %v2472
    %2475 = vst [vmem:[#allocation3 + $0x170] sm:$0xff] %v2473
    %2476 = vst [vmem:[#allocation3 + $0x178] sm:$0x3f] %v2474
    %s2477 = scalar_lea.vmem [#allocation2], 1344
    %v2478 = vld [vmem:[%s2477] ss:$2 sm:$0xff]
    %s2479 = scalar_lea.vmem [#allocation2], 1360
    %v2480 = vld [vmem:[%s2479] ss:$2 sm:$0x3f]
    %s2481 = scalar_lea.vmem [#allocation2], 1345
    %v2482 = vld [vmem:[%s2481] ss:$2 sm:$0xff]
    %s2483 = scalar_lea.vmem [#allocation2], 1361
    %v2484 = vld [vmem:[%s2483] ss:$2 sm:$0x3f]
    %v2485 = vmax.f32 %v2478, %v2482
    %v2486 = vmax.f32 %v2480, %v2484
    %s2487 = scalar_lea.vmem [#allocation2], 1372
    %v2488 = vld [vmem:[%s2487] ss:$2 sm:$0xff]
    %s2489 = scalar_lea.vmem [#allocation2], 1388
    %v2490 = vld [vmem:[%s2489] ss:$2 sm:$0x3f]
    %s2491 = scalar_lea.vmem [#allocation2], 1373
    %v2492 = vld [vmem:[%s2491] ss:$2 sm:$0xff]
    %s2493 = scalar_lea.vmem [#allocation2], 1389
    %v2494 = vld [vmem:[%s2493] ss:$2 sm:$0x3f]
    %v2495 = vmax.f32 %v2488, %v2492
    %v2496 = vmax.f32 %v2490, %v2494
    %v2497 = vmax.f32 %v2485, %v2495
    %v2498 = vmax.f32 %v2486, %v2496
    %2499 = vst [vmem:[#allocation3 + $0x180] sm:$0xff] %v2497
    %2500 = vst [vmem:[#allocation3 + $0x188] sm:$0x3f] %v2498
    %s2501 = scalar_lea.vmem [#allocation2], 1400
    %v2502 = vld [vmem:[%s2501] ss:$2 sm:$0xff]
    %s2503 = scalar_lea.vmem [#allocation2], 1416
    %v2504 = vld [vmem:[%s2503] ss:$2 sm:$0x3f]
    %s2505 = scalar_lea.vmem [#allocation2], 1401
    %v2506 = vld [vmem:[%s2505] ss:$2 sm:$0xff]
    %s2507 = scalar_lea.vmem [#allocation2], 1417
    %v2508 = vld [vmem:[%s2507] ss:$2 sm:$0x3f]
    %v2509 = vmax.f32 %v2502, %v2506
    %v2510 = vmax.f32 %v2504, %v2508
    %s2511 = scalar_lea.vmem [#allocation2], 1428
    %v2512 = vld [vmem:[%s2511] ss:$2 sm:$0xff]
    %s2513 = scalar_lea.vmem [#allocation2], 1444
    %v2514 = vld [vmem:[%s2513] ss:$2 sm:$0x3f]
    %s2515 = scalar_lea.vmem [#allocation2], 1429
    %v2516 = vld [vmem:[%s2515] ss:$2 sm:$0xff]
    %s2517 = scalar_lea.vmem [#allocation2], 1445
    %v2518 = vld [vmem:[%s2517] ss:$2 sm:$0x3f]
    %v2519 = vmax.f32 %v2512, %v2516
    %v2520 = vmax.f32 %v2514, %v2518
    %v2521 = vmax.f32 %v2509, %v2519
    %v2522 = vmax.f32 %v2510, %v2520
    %2523 = vst [vmem:[#allocation3 + $0x190] sm:$0xff] %v2521
    %2524 = vst [vmem:[#allocation3 + $0x198] sm:$0x3f] %v2522
    %s2525 = scalar_lea.vmem [#allocation2], 1456
    %v2526 = vld [vmem:[%s2525] ss:$2 sm:$0xff]
    %s2527 = scalar_lea.vmem [#allocation2], 1472
    %v2528 = vld [vmem:[%s2527] ss:$2 sm:$0x3f]
    %s2529 = scalar_lea.vmem [#allocation2], 1457
    %v2530 = vld [vmem:[%s2529] ss:$2 sm:$0xff]
    %s2531 = scalar_lea.vmem [#allocation2], 1473
    %v2532 = vld [vmem:[%s2531] ss:$2 sm:$0x3f]
    %v2533 = vmax.f32 %v2526, %v2530
    %v2534 = vmax.f32 %v2528, %v2532
    %s2535 = scalar_lea.vmem [#allocation2], 1484
    %v2536 = vld [vmem:[%s2535] ss:$2 sm:$0xff]
    %s2537 = scalar_lea.vmem [#allocation2], 1500
    %v2538 = vld [vmem:[%s2537] ss:$2 sm:$0x3f]
    %s2539 = scalar_lea.vmem [#allocation2], 1485
    %v2540 = vld [vmem:[%s2539] ss:$2 sm:$0xff]
    %s2541 = scalar_lea.vmem [#allocation2], 1501
    %v2542 = vld [vmem:[%s2541] ss:$2 sm:$0x3f]
    %v2543 = vmax.f32 %v2536, %v2540
    %v2544 = vmax.f32 %v2538, %v2542
    %v2545 = vmax.f32 %v2533, %v2543
    %v2546 = vmax.f32 %v2534, %v2544
    %2547 = vst [vmem:[#allocation3 + $0x1a0] sm:$0xff] %v2545
    %2548 = vst [vmem:[#allocation3 + $0x1a8] sm:$0x3f] %v2546
    %s2549 = scalar_lea.vmem [#allocation2], 1512
    %v2550 = vld [vmem:[%s2549] ss:$2 sm:$0xff]
    %s2551 = scalar_lea.vmem [#allocation2], 1528
    %v2552 = vld [vmem:[%s2551] ss:$2 sm:$0x3f]
    %s2553 = scalar_lea.vmem [#allocation2], 1513
    %v2554 = vld [vmem:[%s2553] ss:$2 sm:$0xff]
    %s2555 = scalar_lea.vmem [#allocation2], 1529
    %v2556 = vld [vmem:[%s2555] ss:$2 sm:$0x3f]
    %v2557 = vmax.f32 %v2550, %v2554
    %v2558 = vmax.f32 %v2552, %v2556
    %s2559 = scalar_lea.vmem [#allocation2], 1540
    %v2560 = vld [vmem:[%s2559] ss:$2 sm:$0xff]
    %s2561 = scalar_lea.vmem [#allocation2], 1556
    %v2562 = vld [vmem:[%s2561] ss:$2 sm:$0x3f]
    %s2563 = scalar_lea.vmem [#allocation2], 1541
    %v2564 = vld [vmem:[%s2563] ss:$2 sm:$0xff]
    %s2565 = scalar_lea.vmem [#allocation2], 1557
    %v2566 = vld [vmem:[%s2565] ss:$2 sm:$0x3f]
    %v2567 = vmax.f32 %v2560, %v2564
    %v2568 = vmax.f32 %v2562, %v2566
    %v2569 = vmax.f32 %v2557, %v2567
    %v2570 = vmax.f32 %v2558, %v2568
    %2571 = vst [vmem:[#allocation3 + $0x1b0] sm:$0xff] %v2569
    %2572 = vst [vmem:[#allocation3 + $0x1b8] sm:$0x3f] %v2570
    %v2573 = vld [vmem:[#allocation3] sm:$0xff]
    %v2574 = vld [vmem:[#allocation3 + $0x8] sm:$0xff]
    %v2575 = vld [vmem:[#allocation3 + $0x10] sm:$0xff]
    %v2576 = vld [vmem:[#allocation3 + $0x18] sm:$0xff]
    %v2577 = vld [vmem:[#allocation3 + $0x20] sm:$0xff]
    %v2578 = vld [vmem:[#allocation3 + $0x28] sm:$0xff]
    %v2579 = vld [vmem:[#allocation3 + $0x30] sm:$0xff]
    %v2580 = vld [vmem:[#allocation3 + $0x38] sm:$0xff]
    %v2581 = vld [vmem:[#allocation3 + $0x40] sm:$0xff]
    %v2582 = vld [vmem:[#allocation3 + $0x48] sm:$0xff]
    %v2583 = vld [vmem:[#allocation3 + $0x50] sm:$0xff]
    %v2584 = vld [vmem:[#allocation3 + $0x58] sm:$0xff]
    %v2585 = vld [vmem:[#allocation3 + $0x60] sm:$0xff]
    %v2586 = vld [vmem:[#allocation3 + $0x68] sm:$0xff]
    %v2587 = vld [vmem:[#allocation3 + $0x70] sm:$0xff]
    %v2588 = vld [vmem:[#allocation3 + $0x78] sm:$0xff]
    %v2589 = vld [vmem:[#allocation3 + $0x80] sm:$0xff]
    %v2590 = vld [vmem:[#allocation3 + $0x88] sm:$0xff]
    %v2591 = vld [vmem:[#allocation3 + $0x90] sm:$0xff]
    %v2592 = vld [vmem:[#allocation3 + $0x98] sm:$0xff]
    %v2593 = vld [vmem:[#allocation3 + $0xa0] sm:$0xff]
    %v2594 = vld [vmem:[#allocation3 + $0xa8] sm:$0xff]
    %v2595 = vld [vmem:[#allocation3 + $0xb0] sm:$0xff]
    %v2596 = vld [vmem:[#allocation3 + $0xb8] sm:$0xff]
    %v2597 = vld [vmem:[#allocation3 + $0xc0] sm:$0xff]
    %v2598 = vld [vmem:[#allocation3 + $0xc8] sm:$0xff]
    %v2599 = vld [vmem:[#allocation3 + $0xd0] sm:$0xff]
    %v2600 = vld [vmem:[#allocation3 + $0xd8] sm:$0xff]
    %v2601 = vld [vmem:[#allocation3 + $0x1] sm:$0xff]
    %v2602 = vld [vmem:[#allocation3 + $0x9] sm:$0xff]
    %v2603 = vld [vmem:[#allocation3 + $0x11] sm:$0xff]
    %v2604 = vld [vmem:[#allocation3 + $0x19] sm:$0xff]
    %v2605 = vld [vmem:[#allocation3 + $0x21] sm:$0xff]
    %v2606 = vld [vmem:[#allocation3 + $0x29] sm:$0xff]
    %v2607 = vld [vmem:[#allocation3 + $0x31] sm:$0xff]
    %v2608 = vld [vmem:[#allocation3 + $0x39] sm:$0xff]
    %v2609 = vld [vmem:[#allocation3 + $0x41] sm:$0xff]
    %v2610 = vld [vmem:[#allocation3 + $0x49] sm:$0xff]
    %v2611 = vld [vmem:[#allocation3 + $0x51] sm:$0xff]
    %v2612 = vld [vmem:[#allocation3 + $0x59] sm:$0xff]
    %v2613 = vld [vmem:[#allocation3 + $0x61] sm:$0xff]
    %v2614 = vld [vmem:[#allocation3 + $0x69] sm:$0xff]
    %v2615 = vld [vmem:[#allocation3 + $0x71] sm:$0xff]
    %v2616 = vld [vmem:[#allocation3 + $0x79] sm:$0xff]
    %v2617 = vld [vmem:[#allocation3 + $0x81] sm:$0xff]
    %v2618 = vld [vmem:[#allocation3 + $0x89] sm:$0xff]
    %v2619 = vld [vmem:[#allocation3 + $0x91] sm:$0xff]
    %v2620 = vld [vmem:[#allocation3 + $0x99] sm:$0xff]
    %v2621 = vld [vmem:[#allocation3 + $0xa1] sm:$0xff]
    %v2622 = vld [vmem:[#allocation3 + $0xa9] sm:$0xff]
    %v2623 = vld [vmem:[#allocation3 + $0xb1] sm:$0xff]
    %v2624 = vld [vmem:[#allocation3 + $0xb9] sm:$0xff]
    %v2625 = vld [vmem:[#allocation3 + $0xc1] sm:$0xff]
    %v2626 = vld [vmem:[#allocation3 + $0xc9] sm:$0xff]
    %v2627 = vld [vmem:[#allocation3 + $0xd1] sm:$0xff]
    %v2628 = vld [vmem:[#allocation3 + $0xd9] sm:$0xff]
    %2629 = vrot.lane.b32.xlu0 %v2601, 6
    %v2630 = vpop.permute.xlu0 %2629
    %2631 = vrot.lane.b32.xlu0 %v2602, 6
    %v2632 = vpop.permute.xlu0 %2631
    %2633 = vrot.lane.b32.xlu0 %v2603, 6
    %v2634 = vpop.permute.xlu0 %2633
    %2635 = vrot.lane.b32.xlu0 %v2604, 6
    %v2636 = vpop.permute.xlu0 %2635
    %2637 = vrot.lane.b32.xlu0 %v2605, 6
    %v2638 = vpop.permute.xlu0 %2637
    %2639 = vrot.lane.b32.xlu0 %v2606, 6
    %v2640 = vpop.permute.xlu0 %2639
    %2641 = vrot.lane.b32.xlu0 %v2607, 6
    %v2642 = vpop.permute.xlu0 %2641
    %2643 = vrot.lane.b32.xlu0 %v2608, 6
    %v2644 = vpop.permute.xlu0 %2643
    %2645 = vrot.lane.b32.xlu0 %v2609, 6
    %v2646 = vpop.permute.xlu0 %2645
    %2647 = vrot.lane.b32.xlu0 %v2610, 6
    %v2648 = vpop.permute.xlu0 %2647
    %2649 = vrot.lane.b32.xlu0 %v2611, 6
    %v2650 = vpop.permute.xlu0 %2649
    %2651 = vrot.lane.b32.xlu0 %v2612, 6
    %v2652 = vpop.permute.xlu0 %2651
    %2653 = vrot.lane.b32.xlu0 %v2613, 6
    %v2654 = vpop.permute.xlu0 %2653
    %2655 = vrot.lane.b32.xlu0 %v2614, 6
    %v2656 = vpop.permute.xlu0 %2655
    %2657 = vrot.lane.b32.xlu0 %v2615, 6
    %v2658 = vpop.permute.xlu0 %2657
    %2659 = vrot.lane.b32.xlu0 %v2616, 6
    %v2660 = vpop.permute.xlu0 %2659
    %2661 = vrot.lane.b32.xlu0 %v2617, 6
    %v2662 = vpop.permute.xlu0 %2661
    %2663 = vrot.lane.b32.xlu0 %v2618, 6
    %v2664 = vpop.permute.xlu0 %2663
    %2665 = vrot.lane.b32.xlu0 %v2619, 6
    %v2666 = vpop.permute.xlu0 %2665
    %2667 = vrot.lane.b32.xlu0 %v2620, 6
    %v2668 = vpop.permute.xlu0 %2667
    %2669 = vrot.lane.b32.xlu0 %v2621, 6
    %v2670 = vpop.permute.xlu0 %2669
    %2671 = vrot.lane.b32.xlu0 %v2622, 6
    %v2672 = vpop.permute.xlu0 %2671
    %2673 = vrot.lane.b32.xlu0 %v2623, 6
    %v2674 = vpop.permute.xlu0 %2673
    %2675 = vrot.lane.b32.xlu0 %v2624, 6
    %v2676 = vpop.permute.xlu0 %2675
    %2677 = vrot.lane.b32.xlu0 %v2625, 6
    %v2678 = vpop.permute.xlu0 %2677
    %2679 = vrot.lane.b32.xlu0 %v2626, 6
    %v2680 = vpop.permute.xlu0 %2679
    %2681 = vrot.lane.b32.xlu0 %v2627, 6
    %v2682 = vpop.permute.xlu0 %2681
    %2683 = vrot.lane.b32.xlu0 %v2628, 6
    %v2684 = vpop.permute.xlu0 %2683
    %v2685 = vadd.f32 %v2573, %v2630
    %v2686 = vadd.f32 %v2574, %v2632
    %v2687 = vadd.f32 %v2575, %v2634
    %v2688 = vadd.f32 %v2576, %v2636
    %v2689 = vadd.f32 %v2577, %v2638
    %v2690 = vadd.f32 %v2578, %v2640
    %v2691 = vadd.f32 %v2579, %v2642
    %v2692 = vadd.f32 %v2580, %v2644
    %v2693 = vadd.f32 %v2581, %v2646
    %v2694 = vadd.f32 %v2582, %v2648
    %v2695 = vadd.f32 %v2583, %v2650
    %v2696 = vadd.f32 %v2584, %v2652
    %v2697 = vadd.f32 %v2585, %v2654
    %v2698 = vadd.f32 %v2586, %v2656
    %v2699 = vadd.f32 %v2587, %v2658
    %v2700 = vadd.f32 %v2588, %v2660
    %v2701 = vadd.f32 %v2589, %v2662
    %v2702 = vadd.f32 %v2590, %v2664
    %v2703 = vadd.f32 %v2591, %v2666
    %v2704 = vadd.f32 %v2592, %v2668
    %v2705 = vadd.f32 %v2593, %v2670
    %v2706 = vadd.f32 %v2594, %v2672
    %v2707 = vadd.f32 %v2595, %v2674
    %v2708 = vadd.f32 %v2596, %v2676
    %v2709 = vadd.f32 %v2597, %v2678
    %v2710 = vadd.f32 %v2598, %v2680
    %v2711 = vadd.f32 %v2599, %v2682
    %v2712 = vadd.f32 %v2600, %v2684
    %v2713 = vld [vmem:[#allocation3 + $0x2] sm:$0xff]
    %v2714 = vld [vmem:[#allocation3 + $0xa] sm:$0xff]
    %v2715 = vld [vmem:[#allocation3 + $0x12] sm:$0xff]
    %v2716 = vld [vmem:[#allocation3 + $0x1a] sm:$0xff]
    %v2717 = vld [vmem:[#allocation3 + $0x22] sm:$0xff]
    %v2718 = vld [vmem:[#allocation3 + $0x2a] sm:$0xff]
    %v2719 = vld [vmem:[#allocation3 + $0x32] sm:$0xff]
    %v2720 = vld [vmem:[#allocation3 + $0x3a] sm:$0xff]
    %v2721 = vld [vmem:[#allocation3 + $0x42] sm:$0xff]
    %v2722 = vld [vmem:[#allocation3 + $0x4a] sm:$0xff]
    %v2723 = vld [vmem:[#allocation3 + $0x52] sm:$0xff]
    %v2724 = vld [vmem:[#allocation3 + $0x5a] sm:$0xff]
    %v2725 = vld [vmem:[#allocation3 + $0x62] sm:$0xff]
    %v2726 = vld [vmem:[#allocation3 + $0x6a] sm:$0xff]
    %v2727 = vld [vmem:[#allocation3 + $0x72] sm:$0xff]
    %v2728 = vld [vmem:[#allocation3 + $0x7a] sm:$0xff]
    %v2729 = vld [vmem:[#allocation3 + $0x82] sm:$0xff]
    %v2730 = vld [vmem:[#allocation3 + $0x8a] sm:$0xff]
    %v2731 = vld [vmem:[#allocation3 + $0x92] sm:$0xff]
    %v2732 = vld [vmem:[#allocation3 + $0x9a] sm:$0xff]
    %v2733 = vld [vmem:[#allocation3 + $0xa2] sm:$0xff]
    %v2734 = vld [vmem:[#allocation3 + $0xaa] sm:$0xff]
    %v2735 = vld [vmem:[#allocation3 + $0xb2] sm:$0xff]
    %v2736 = vld [vmem:[#allocation3 + $0xba] sm:$0xff]
    %v2737 = vld [vmem:[#allocation3 + $0xc2] sm:$0xff]
    %v2738 = vld [vmem:[#allocation3 + $0xca] sm:$0xff]
    %v2739 = vld [vmem:[#allocation3 + $0xd2] sm:$0xff]
    %v2740 = vld [vmem:[#allocation3 + $0xda] sm:$0xff]
    %2741 = vrot.lane.b32.xlu0 %v2713, 12
    %v2742 = vpop.permute.xlu0 %2741
    %2743 = vrot.lane.b32.xlu0 %v2714, 12
    %v2744 = vpop.permute.xlu0 %2743
    %2745 = vrot.lane.b32.xlu0 %v2715, 12
    %v2746 = vpop.permute.xlu0 %2745
    %2747 = vrot.lane.b32.xlu0 %v2716, 12
    %v2748 = vpop.permute.xlu0 %2747
    %2749 = vrot.lane.b32.xlu0 %v2717, 12
    %v2750 = vpop.permute.xlu0 %2749
    %2751 = vrot.lane.b32.xlu0 %v2718, 12
    %v2752 = vpop.permute.xlu0 %2751
    %2753 = vrot.lane.b32.xlu0 %v2719, 12
    %v2754 = vpop.permute.xlu0 %2753
    %2755 = vrot.lane.b32.xlu0 %v2720, 12
    %v2756 = vpop.permute.xlu0 %2755
    %2757 = vrot.lane.b32.xlu0 %v2721, 12
    %v2758 = vpop.permute.xlu0 %2757
    %2759 = vrot.lane.b32.xlu0 %v2722, 12
    %v2760 = vpop.permute.xlu0 %2759
    %2761 = vrot.lane.b32.xlu0 %v2723, 12
    %v2762 = vpop.permute.xlu0 %2761
    %2763 = vrot.lane.b32.xlu0 %v2724, 12
    %v2764 = vpop.permute.xlu0 %2763
    %2765 = vrot.lane.b32.xlu0 %v2725, 12
    %v2766 = vpop.permute.xlu0 %2765
    %2767 = vrot.lane.b32.xlu0 %v2726, 12
    %v2768 = vpop.permute.xlu0 %2767
    %2769 = vrot.lane.b32.xlu0 %v2727, 12
    %v2770 = vpop.permute.xlu0 %2769
    %2771 = vrot.lane.b32.xlu0 %v2728, 12
    %v2772 = vpop.permute.xlu0 %2771
    %2773 = vrot.lane.b32.xlu0 %v2729, 12
    %v2774 = vpop.permute.xlu0 %2773
    %2775 = vrot.lane.b32.xlu0 %v2730, 12
    %v2776 = vpop.permute.xlu0 %2775
    %2777 = vrot.lane.b32.xlu0 %v2731, 12
    %v2778 = vpop.permute.xlu0 %2777
    %2779 = vrot.lane.b32.xlu0 %v2732, 12
    %v2780 = vpop.permute.xlu0 %2779
    %2781 = vrot.lane.b32.xlu0 %v2733, 12
    %v2782 = vpop.permute.xlu0 %2781
    %2783 = vrot.lane.b32.xlu0 %v2734, 12
    %v2784 = vpop.permute.xlu0 %2783
    %2785 = vrot.lane.b32.xlu0 %v2735, 12
    %v2786 = vpop.permute.xlu0 %2785
    %2787 = vrot.lane.b32.xlu0 %v2736, 12
    %v2788 = vpop.permute.xlu0 %2787
    %2789 = vrot.lane.b32.xlu0 %v2737, 12
    %v2790 = vpop.permute.xlu0 %2789
    %2791 = vrot.lane.b32.xlu0 %v2738, 12
    %v2792 = vpop.permute.xlu0 %2791
    %2793 = vrot.lane.b32.xlu0 %v2739, 12
    %v2794 = vpop.permute.xlu0 %2793
    %2795 = vrot.lane.b32.xlu0 %v2740, 12
    %v2796 = vpop.permute.xlu0 %2795
    %v2797 = vadd.f32 %v2685, %v2742
    %v2798 = vadd.f32 %v2686, %v2744
    %v2799 = vadd.f32 %v2687, %v2746
    %v2800 = vadd.f32 %v2688, %v2748
    %v2801 = vadd.f32 %v2689, %v2750
    %v2802 = vadd.f32 %v2690, %v2752
    %v2803 = vadd.f32 %v2691, %v2754
    %v2804 = vadd.f32 %v2692, %v2756
    %v2805 = vadd.f32 %v2693, %v2758
    %v2806 = vadd.f32 %v2694, %v2760
    %v2807 = vadd.f32 %v2695, %v2762
    %v2808 = vadd.f32 %v2696, %v2764
    %v2809 = vadd.f32 %v2697, %v2766
    %v2810 = vadd.f32 %v2698, %v2768
    %v2811 = vadd.f32 %v2699, %v2770
    %v2812 = vadd.f32 %v2700, %v2772
    %v2813 = vadd.f32 %v2701, %v2774
    %v2814 = vadd.f32 %v2702, %v2776
    %v2815 = vadd.f32 %v2703, %v2778
    %v2816 = vadd.f32 %v2704, %v2780
    %v2817 = vadd.f32 %v2705, %v2782
    %v2818 = vadd.f32 %v2706, %v2784
    %v2819 = vadd.f32 %v2707, %v2786
    %v2820 = vadd.f32 %v2708, %v2788
    %v2821 = vadd.f32 %v2709, %v2790
    %v2822 = vadd.f32 %v2710, %v2792
    %v2823 = vadd.f32 %v2711, %v2794
    %v2824 = vadd.f32 %v2712, %v2796
    %v2825 = vld [vmem:[#allocation3 + $0x3] sm:$0xff]
    %v2826 = vld [vmem:[#allocation3 + $0xb] sm:$0xff]
    %v2827 = vld [vmem:[#allocation3 + $0x13] sm:$0xff]
    %v2828 = vld [vmem:[#allocation3 + $0x1b] sm:$0xff]
    %v2829 = vld [vmem:[#allocation3 + $0x23] sm:$0xff]
    %v2830 = vld [vmem:[#allocation3 + $0x2b] sm:$0xff]
    %v2831 = vld [vmem:[#allocation3 + $0x33] sm:$0xff]
    %v2832 = vld [vmem:[#allocation3 + $0x3b] sm:$0xff]
    %v2833 = vld [vmem:[#allocation3 + $0x43] sm:$0xff]
    %v2834 = vld [vmem:[#allocation3 + $0x4b] sm:$0xff]
    %v2835 = vld [vmem:[#allocation3 + $0x53] sm:$0xff]
    %v2836 = vld [vmem:[#allocation3 + $0x5b] sm:$0xff]
    %v2837 = vld [vmem:[#allocation3 + $0x63] sm:$0xff]
    %v2838 = vld [vmem:[#allocation3 + $0x6b] sm:$0xff]
    %v2839 = vld [vmem:[#allocation3 + $0x73] sm:$0xff]
    %v2840 = vld [vmem:[#allocation3 + $0x7b] sm:$0xff]
    %v2841 = vld [vmem:[#allocation3 + $0x83] sm:$0xff]
    %v2842 = vld [vmem:[#allocation3 + $0x8b] sm:$0xff]
    %v2843 = vld [vmem:[#allocation3 + $0x93] sm:$0xff]
    %v2844 = vld [vmem:[#allocation3 + $0x9b] sm:$0xff]
    %v2845 = vld [vmem:[#allocation3 + $0xa3] sm:$0xff]
    %v2846 = vld [vmem:[#allocation3 + $0xab] sm:$0xff]
    %v2847 = vld [vmem:[#allocation3 + $0xb3] sm:$0xff]
    %v2848 = vld [vmem:[#allocation3 + $0xbb] sm:$0xff]
    %v2849 = vld [vmem:[#allocation3 + $0xc3] sm:$0xff]
    %v2850 = vld [vmem:[#allocation3 + $0xcb] sm:$0xff]
    %v2851 = vld [vmem:[#allocation3 + $0xd3] sm:$0xff]
    %v2852 = vld [vmem:[#allocation3 + $0xdb] sm:$0xff]
    %2853 = vrot.lane.b32.xlu0 %v2825, 18
    %v2854 = vpop.permute.xlu0 %2853
    %2855 = vrot.lane.b32.xlu0 %v2826, 18
    %v2856 = vpop.permute.xlu0 %2855
    %2857 = vrot.lane.b32.xlu0 %v2827, 18
    %v2858 = vpop.permute.xlu0 %2857
    %2859 = vrot.lane.b32.xlu0 %v2828, 18
    %v2860 = vpop.permute.xlu0 %2859
    %2861 = vrot.lane.b32.xlu0 %v2829, 18
    %v2862 = vpop.permute.xlu0 %2861
    %2863 = vrot.lane.b32.xlu0 %v2830, 18
    %v2864 = vpop.permute.xlu0 %2863
    %2865 = vrot.lane.b32.xlu0 %v2831, 18
    %v2866 = vpop.permute.xlu0 %2865
    %2867 = vrot.lane.b32.xlu0 %v2832, 18
    %v2868 = vpop.permute.xlu0 %2867
    %2869 = vrot.lane.b32.xlu0 %v2833, 18
    %v2870 = vpop.permute.xlu0 %2869
    %2871 = vrot.lane.b32.xlu0 %v2834, 18
    %v2872 = vpop.permute.xlu0 %2871
    %2873 = vrot.lane.b32.xlu0 %v2835, 18
    %v2874 = vpop.permute.xlu0 %2873
    %2875 = vrot.lane.b32.xlu0 %v2836, 18
    %v2876 = vpop.permute.xlu0 %2875
    %2877 = vrot.lane.b32.xlu0 %v2837, 18
    %v2878 = vpop.permute.xlu0 %2877
    %2879 = vrot.lane.b32.xlu0 %v2838, 18
    %v2880 = vpop.permute.xlu0 %2879
    %2881 = vrot.lane.b32.xlu0 %v2839, 18
    %v2882 = vpop.permute.xlu0 %2881
    %2883 = vrot.lane.b32.xlu0 %v2840, 18
    %v2884 = vpop.permute.xlu0 %2883
    %2885 = vrot.lane.b32.xlu0 %v2841, 18
    %v2886 = vpop.permute.xlu0 %2885
    %2887 = vrot.lane.b32.xlu0 %v2842, 18
    %v2888 = vpop.permute.xlu0 %2887
    %2889 = vrot.lane.b32.xlu0 %v2843, 18
    %v2890 = vpop.permute.xlu0 %2889
    %2891 = vrot.lane.b32.xlu0 %v2844, 18
    %v2892 = vpop.permute.xlu0 %2891
    %2893 = vrot.lane.b32.xlu0 %v2845, 18
    %v2894 = vpop.permute.xlu0 %2893
    %2895 = vrot.lane.b32.xlu0 %v2846, 18
    %v2896 = vpop.permute.xlu0 %2895
    %2897 = vrot.lane.b32.xlu0 %v2847, 18
    %v2898 = vpop.permute.xlu0 %2897
    %2899 = vrot.lane.b32.xlu0 %v2848, 18
    %v2900 = vpop.permute.xlu0 %2899
    %2901 = vrot.lane.b32.xlu0 %v2849, 18
    %v2902 = vpop.permute.xlu0 %2901
    %2903 = vrot.lane.b32.xlu0 %v2850, 18
    %v2904 = vpop.permute.xlu0 %2903
    %2905 = vrot.lane.b32.xlu0 %v2851, 18
    %v2906 = vpop.permute.xlu0 %2905
    %2907 = vrot.lane.b32.xlu0 %v2852, 18
    %v2908 = vpop.permute.xlu0 %2907
    %v2909 = vadd.f32 %v2797, %v2854
    %v2910 = vadd.f32 %v2798, %v2856
    %v2911 = vadd.f32 %v2799, %v2858
    %v2912 = vadd.f32 %v2800, %v2860
    %v2913 = vadd.f32 %v2801, %v2862
    %v2914 = vadd.f32 %v2802, %v2864
    %v2915 = vadd.f32 %v2803, %v2866
    %v2916 = vadd.f32 %v2804, %v2868
    %v2917 = vadd.f32 %v2805, %v2870
    %v2918 = vadd.f32 %v2806, %v2872
    %v2919 = vadd.f32 %v2807, %v2874
    %v2920 = vadd.f32 %v2808, %v2876
    %v2921 = vadd.f32 %v2809, %v2878
    %v2922 = vadd.f32 %v2810, %v2880
    %v2923 = vadd.f32 %v2811, %v2882
    %v2924 = vadd.f32 %v2812, %v2884
    %v2925 = vadd.f32 %v2813, %v2886
    %v2926 = vadd.f32 %v2814, %v2888
    %v2927 = vadd.f32 %v2815, %v2890
    %v2928 = vadd.f32 %v2816, %v2892
    %v2929 = vadd.f32 %v2817, %v2894
    %v2930 = vadd.f32 %v2818, %v2896
    %v2931 = vadd.f32 %v2819, %v2898
    %v2932 = vadd.f32 %v2820, %v2900
    %v2933 = vadd.f32 %v2821, %v2902
    %v2934 = vadd.f32 %v2822, %v2904
    %v2935 = vadd.f32 %v2823, %v2906
    %v2936 = vadd.f32 %v2824, %v2908
    %v2937 = vld [vmem:[#allocation3 + $0x4] sm:$0xff]
    %v2938 = vld [vmem:[#allocation3 + $0xc] sm:$0xff]
    %v2939 = vld [vmem:[#allocation3 + $0x14] sm:$0xff]
    %v2940 = vld [vmem:[#allocation3 + $0x1c] sm:$0xff]
    %v2941 = vld [vmem:[#allocation3 + $0x24] sm:$0xff]
    %v2942 = vld [vmem:[#allocation3 + $0x2c] sm:$0xff]
    %v2943 = vld [vmem:[#allocation3 + $0x34] sm:$0xff]
    %v2944 = vld [vmem:[#allocation3 + $0x3c] sm:$0xff]
    %v2945 = vld [vmem:[#allocation3 + $0x44] sm:$0xff]
    %v2946 = vld [vmem:[#allocation3 + $0x4c] sm:$0xff]
    %v2947 = vld [vmem:[#allocation3 + $0x54] sm:$0xff]
    %v2948 = vld [vmem:[#allocation3 + $0x5c] sm:$0xff]
    %v2949 = vld [vmem:[#allocation3 + $0x64] sm:$0xff]
    %v2950 = vld [vmem:[#allocation3 + $0x6c] sm:$0xff]
    %v2951 = vld [vmem:[#allocation3 + $0x74] sm:$0xff]
    %v2952 = vld [vmem:[#allocation3 + $0x7c] sm:$0xff]
    %v2953 = vld [vmem:[#allocation3 + $0x84] sm:$0xff]
    %v2954 = vld [vmem:[#allocation3 + $0x8c] sm:$0xff]
    %v2955 = vld [vmem:[#allocation3 + $0x94] sm:$0xff]
    %v2956 = vld [vmem:[#allocation3 + $0x9c] sm:$0xff]
    %v2957 = vld [vmem:[#allocation3 + $0xa4] sm:$0xff]
    %v2958 = vld [vmem:[#allocation3 + $0xac] sm:$0xff]
    %v2959 = vld [vmem:[#allocation3 + $0xb4] sm:$0xff]
    %v2960 = vld [vmem:[#allocation3 + $0xbc] sm:$0xff]
    %v2961 = vld [vmem:[#allocation3 + $0xc4] sm:$0xff]
    %v2962 = vld [vmem:[#allocation3 + $0xcc] sm:$0xff]
    %v2963 = vld [vmem:[#allocation3 + $0xd4] sm:$0xff]
    %v2964 = vld [vmem:[#allocation3 + $0xdc] sm:$0xff]
    %2965 = vrot.lane.b32.xlu0 %v2937, 24
    %v2966 = vpop.permute.xlu0 %2965
    %2967 = vrot.lane.b32.xlu0 %v2938, 24
    %v2968 = vpop.permute.xlu0 %2967
    %2969 = vrot.lane.b32.xlu0 %v2939, 24
    %v2970 = vpop.permute.xlu0 %2969
    %2971 = vrot.lane.b32.xlu0 %v2940, 24
    %v2972 = vpop.permute.xlu0 %2971
    %2973 = vrot.lane.b32.xlu0 %v2941, 24
    %v2974 = vpop.permute.xlu0 %2973
    %2975 = vrot.lane.b32.xlu0 %v2942, 24
    %v2976 = vpop.permute.xlu0 %2975
    %2977 = vrot.lane.b32.xlu0 %v2943, 24
    %v2978 = vpop.permute.xlu0 %2977
    %2979 = vrot.lane.b32.xlu0 %v2944, 24
    %v2980 = vpop.permute.xlu0 %2979
    %2981 = vrot.lane.b32.xlu0 %v2945, 24
    %v2982 = vpop.permute.xlu0 %2981
    %2983 = vrot.lane.b32.xlu0 %v2946, 24
    %v2984 = vpop.permute.xlu0 %2983
    %2985 = vrot.lane.b32.xlu0 %v2947, 24
    %v2986 = vpop.permute.xlu0 %2985
    %2987 = vrot.lane.b32.xlu0 %v2948, 24
    %v2988 = vpop.permute.xlu0 %2987
    %2989 = vrot.lane.b32.xlu0 %v2949, 24
    %v2990 = vpop.permute.xlu0 %2989
    %2991 = vrot.lane.b32.xlu0 %v2950, 24
    %v2992 = vpop.permute.xlu0 %2991
    %2993 = vrot.lane.b32.xlu0 %v2951, 24
    %v2994 = vpop.permute.xlu0 %2993
    %2995 = vrot.lane.b32.xlu0 %v2952, 24
    %v2996 = vpop.permute.xlu0 %2995
    %2997 = vrot.lane.b32.xlu0 %v2953, 24
    %v2998 = vpop.permute.xlu0 %2997
    %2999 = vrot.lane.b32.xlu0 %v2954, 24
    %v3000 = vpop.permute.xlu0 %2999
    %3001 = vrot.lane.b32.xlu0 %v2955, 24
    %v3002 = vpop.permute.xlu0 %3001
    %3003 = vrot.lane.b32.xlu0 %v2956, 24
    %v3004 = vpop.permute.xlu0 %3003
    %3005 = vrot.lane.b32.xlu0 %v2957, 24
    %v3006 = vpop.permute.xlu0 %3005
    %3007 = vrot.lane.b32.xlu0 %v2958, 24
    %v3008 = vpop.permute.xlu0 %3007
    %3009 = vrot.lane.b32.xlu0 %v2959, 24
    %v3010 = vpop.permute.xlu0 %3009
    %3011 = vrot.lane.b32.xlu0 %v2960, 24
    %v3012 = vpop.permute.xlu0 %3011
    %3013 = vrot.lane.b32.xlu0 %v2961, 24
    %v3014 = vpop.permute.xlu0 %3013
    %3015 = vrot.lane.b32.xlu0 %v2962, 24
    %v3016 = vpop.permute.xlu0 %3015
    %3017 = vrot.lane.b32.xlu0 %v2963, 24
    %v3018 = vpop.permute.xlu0 %3017
    %3019 = vrot.lane.b32.xlu0 %v2964, 24
    %v3020 = vpop.permute.xlu0 %3019
    %v3021 = vadd.f32 %v2909, %v2966
    %v3022 = vadd.f32 %v2910, %v2968
    %v3023 = vadd.f32 %v2911, %v2970
    %v3024 = vadd.f32 %v2912, %v2972
    %v3025 = vadd.f32 %v2913, %v2974
    %v3026 = vadd.f32 %v2914, %v2976
    %v3027 = vadd.f32 %v2915, %v2978
    %v3028 = vadd.f32 %v2916, %v2980
    %v3029 = vadd.f32 %v2917, %v2982
    %v3030 = vadd.f32 %v2918, %v2984
    %v3031 = vadd.f32 %v2919, %v2986
    %v3032 = vadd.f32 %v2920, %v2988
    %v3033 = vadd.f32 %v2921, %v2990
    %v3034 = vadd.f32 %v2922, %v2992
    %v3035 = vadd.f32 %v2923, %v2994
    %v3036 = vadd.f32 %v2924, %v2996
    %v3037 = vadd.f32 %v2925, %v2998
    %v3038 = vadd.f32 %v2926, %v3000
    %v3039 = vadd.f32 %v2927, %v3002
    %v3040 = vadd.f32 %v2928, %v3004
    %v3041 = vadd.f32 %v2929, %v3006
    %v3042 = vadd.f32 %v2930, %v3008
    %v3043 = vadd.f32 %v2931, %v3010
    %v3044 = vadd.f32 %v2932, %v3012
    %v3045 = vadd.f32 %v2933, %v3014
    %v3046 = vadd.f32 %v2934, %v3016
    %v3047 = vadd.f32 %v2935, %v3018
    %v3048 = vadd.f32 %v2936, %v3020
    %v3049 = vpack.c.bf16 %v3021, %v3021
    %v3050 = vpack.c.bf16 %v3022, %v3022
    %v3051 = vpack.c.bf16 %v3023, %v3023
    %v3052 = vpack.c.bf16 %v3024, %v3024
    %v3053 = vpack.c.bf16 %v3025, %v3025
    %v3054 = vpack.c.bf16 %v3026, %v3026
    %v3055 = vpack.c.bf16 %v3027, %v3027
    %v3056 = vpack.c.bf16 %v3028, %v3028
    %v3057 = vpack.c.bf16 %v3029, %v3029
    %v3058 = vpack.c.bf16 %v3030, %v3030
    %v3059 = vpack.c.bf16 %v3031, %v3031
    %v3060 = vpack.c.bf16 %v3032, %v3032
    %v3061 = vpack.c.bf16 %v3033, %v3033
    %v3062 = vpack.c.bf16 %v3034, %v3034
    %v3063 = vpack.c.bf16 %v3035, %v3035
    %v3064 = vpack.c.bf16 %v3036, %v3036
    %v3065 = vpack.c.bf16 %v3037, %v3037
    %v3066 = vpack.c.bf16 %v3038, %v3038
    %v3067 = vpack.c.bf16 %v3039, %v3039
    %v3068 = vpack.c.bf16 %v3040, %v3040
    %v3069 = vpack.c.bf16 %v3041, %v3041
    %v3070 = vpack.c.bf16 %v3042, %v3042
    %v3071 = vpack.c.bf16 %v3043, %v3043
    %v3072 = vpack.c.bf16 %v3044, %v3044
    %v3073 = vpack.c.bf16 %v3045, %v3045
    %v3074 = vpack.c.bf16 %v3046, %v3046
    %v3075 = vpack.c.bf16 %v3047, %v3047
    %v3076 = vpack.c.bf16 %v3048, %v3048
    %3077 = vst [vmem:[#allocation4] sm:$0xf] %v3049
    %3078 = vst [vmem:[#allocation4 + $0x4] sm:$0xf] %v3050
    %3079 = vst [vmem:[#allocation4 + $0x8] sm:$0xf] %v3051
    %3080 = vst [vmem:[#allocation4 + $0xc] sm:$0xf] %v3052
    %3081 = vst [vmem:[#allocation4 + $0x10] sm:$0xf] %v3053
    %3082 = vst [vmem:[#allocation4 + $0x14] sm:$0xf] %v3054
    %3083 = vst [vmem:[#allocation4 + $0x18] sm:$0xf] %v3055
    %3084 = vst [vmem:[#allocation4 + $0x1c] sm:$0xf] %v3056
    %3085 = vst [vmem:[#allocation4 + $0x20] sm:$0xf] %v3057
    %3086 = vst [vmem:[#allocation4 + $0x24] sm:$0xf] %v3058
    %3087 = vst [vmem:[#allocation4 + $0x28] sm:$0xf] %v3059
    %3088 = vst [vmem:[#allocation4 + $0x2c] sm:$0xf] %v3060
    %3089 = vst [vmem:[#allocation4 + $0x30] sm:$0xf] %v3061
    %3090 = vst [vmem:[#allocation4 + $0x34] sm:$0xf] %v3062
    %3091 = vst [vmem:[#allocation4 + $0x38] sm:$0xf] %v3063
    %3092 = vst [vmem:[#allocation4 + $0x3c] sm:$0xf] %v3064
    %3093 = vst [vmem:[#allocation4 + $0x40] sm:$0xf] %v3065
    %3094 = vst [vmem:[#allocation4 + $0x44] sm:$0xf] %v3066
    %3095 = vst [vmem:[#allocation4 + $0x48] sm:$0xf] %v3067
    %3096 = vst [vmem:[#allocation4 + $0x4c] sm:$0xf] %v3068
    %3097 = vst [vmem:[#allocation4 + $0x50] sm:$0xf] %v3069
    %3098 = vst [vmem:[#allocation4 + $0x54] sm:$0xf] %v3070
    %3099 = vst [vmem:[#allocation4 + $0x58] sm:$0xf] %v3071
    %3100 = vst [vmem:[#allocation4 + $0x5c] sm:$0xf] %v3072
    %3101 = vst [vmem:[#allocation4 + $0x60] sm:$0xf] %v3073
    %3102 = vst [vmem:[#allocation4 + $0x64] sm:$0xf] %v3074
    %3103 = vst [vmem:[#allocation4 + $0x68] sm:$0xf] %v3075
    %3104 = vst [vmem:[#allocation4 + $0x6c] sm:$0xf] %v3076
    %v3105 = vld [vmem:[#allocation3 + $0xe0] sm:$0xff]
    %v3106 = vld [vmem:[#allocation3 + $0xe8] sm:$0xff]
    %v3107 = vld [vmem:[#allocation3 + $0xf0] sm:$0xff]
    %v3108 = vld [vmem:[#allocation3 + $0xf8] sm:$0xff]
    %v3109 = vld [vmem:[#allocation3 + $0x100] sm:$0xff]
    %v3110 = vld [vmem:[#allocation3 + $0x108] sm:$0xff]
    %v3111 = vld [vmem:[#allocation3 + $0x110] sm:$0xff]
    %v3112 = vld [vmem:[#allocation3 + $0x118] sm:$0xff]
    %v3113 = vld [vmem:[#allocation3 + $0x120] sm:$0xff]
    %v3114 = vld [vmem:[#allocation3 + $0x128] sm:$0xff]
    %v3115 = vld [vmem:[#allocation3 + $0x130] sm:$0xff]
    %v3116 = vld [vmem:[#allocation3 + $0x138] sm:$0xff]
    %v3117 = vld [vmem:[#allocation3 + $0x140] sm:$0xff]
    %v3118 = vld [vmem:[#allocation3 + $0x148] sm:$0xff]
    %v3119 = vld [vmem:[#allocation3 + $0x150] sm:$0xff]
    %v3120 = vld [vmem:[#allocation3 + $0x158] sm:$0xff]
    %v3121 = vld [vmem:[#allocation3 + $0x160] sm:$0xff]
    %v3122 = vld [vmem:[#allocation3 + $0x168] sm:$0xff]
    %v3123 = vld [vmem:[#allocation3 + $0x170] sm:$0xff]
    %v3124 = vld [vmem:[#allocation3 + $0x178] sm:$0xff]
    %v3125 = vld [vmem:[#allocation3 + $0x180] sm:$0xff]
    %v3126 = vld [vmem:[#allocation3 + $0x188] sm:$0xff]
    %v3127 = vld [vmem:[#allocation3 + $0x190] sm:$0xff]
    %v3128 = vld [vmem:[#allocation3 + $0x198] sm:$0xff]
    %v3129 = vld [vmem:[#allocation3 + $0x1a0] sm:$0xff]
    %v3130 = vld [vmem:[#allocation3 + $0x1a8] sm:$0xff]
    %v3131 = vld [vmem:[#allocation3 + $0x1b0] sm:$0xff]
    %v3132 = vld [vmem:[#allocation3 + $0x1b8] sm:$0xff]
    %v3133 = vld [vmem:[#allocation3 + $0xe1] sm:$0xff]
    %v3134 = vld [vmem:[#allocation3 + $0xe9] sm:$0xff]
    %v3135 = vld [vmem:[#allocation3 + $0xf1] sm:$0xff]
    %v3136 = vld [vmem:[#allocation3 + $0xf9] sm:$0xff]
    %v3137 = vld [vmem:[#allocation3 + $0x101] sm:$0xff]
    %v3138 = vld [vmem:[#allocation3 + $0x109] sm:$0xff]
    %v3139 = vld [vmem:[#allocation3 + $0x111] sm:$0xff]
    %v3140 = vld [vmem:[#allocation3 + $0x119] sm:$0xff]
    %v3141 = vld [vmem:[#allocation3 + $0x121] sm:$0xff]
    %v3142 = vld [vmem:[#allocation3 + $0x129] sm:$0xff]
    %v3143 = vld [vmem:[#allocation3 + $0x131] sm:$0xff]
    %v3144 = vld [vmem:[#allocation3 + $0x139] sm:$0xff]
    %v3145 = vld [vmem:[#allocation3 + $0x141] sm:$0xff]
    %v3146 = vld [vmem:[#allocation3 + $0x149] sm:$0xff]
    %v3147 = vld [vmem:[#allocation3 + $0x151] sm:$0xff]
    %v3148 = vld [vmem:[#allocation3 + $0x159] sm:$0xff]
    %v3149 = vld [vmem:[#allocation3 + $0x161] sm:$0xff]
    %v3150 = vld [vmem:[#allocation3 + $0x169] sm:$0xff]
    %v3151 = vld [vmem:[#allocation3 + $0x171] sm:$0xff]
    %v3152 = vld [vmem:[#allocation3 + $0x179] sm:$0xff]
    %v3153 = vld [vmem:[#allocation3 + $0x181] sm:$0xff]
    %v3154 = vld [vmem:[#allocation3 + $0x189] sm:$0xff]
    %v3155 = vld [vmem:[#allocation3 + $0x191] sm:$0xff]
    %v3156 = vld [vmem:[#allocation3 + $0x199] sm:$0xff]
    %v3157 = vld [vmem:[#allocation3 + $0x1a1] sm:$0xff]
    %v3158 = vld [vmem:[#allocation3 + $0x1a9] sm:$0xff]
    %v3159 = vld [vmem:[#allocation3 + $0x1b1] sm:$0xff]
    %v3160 = vld [vmem:[#allocation3 + $0x1b9] sm:$0xff]
    %3161 = vrot.lane.b32.xlu0 %v3133, 6
    %v3162 = vpop.permute.xlu0 %3161
    %3163 = vrot.lane.b32.xlu0 %v3134, 6
    %v3164 = vpop.permute.xlu0 %3163
    %3165 = vrot.lane.b32.xlu0 %v3135, 6
    %v3166 = vpop.permute.xlu0 %3165
    %3167 = vrot.lane.b32.xlu0 %v3136, 6
    %v3168 = vpop.permute.xlu0 %3167
    %3169 = vrot.lane.b32.xlu0 %v3137, 6
    %v3170 = vpop.permute.xlu0 %3169
    %3171 = vrot.lane.b32.xlu0 %v3138, 6
    %v3172 = vpop.permute.xlu0 %3171
    %3173 = vrot.lane.b32.xlu0 %v3139, 6
    %v3174 = vpop.permute.xlu0 %3173
    %3175 = vrot.lane.b32.xlu0 %v3140, 6
    %v3176 = vpop.permute.xlu0 %3175
    %3177 = vrot.lane.b32.xlu0 %v3141, 6
    %v3178 = vpop.permute.xlu0 %3177
    %3179 = vrot.lane.b32.xlu0 %v3142, 6
    %v3180 = vpop.permute.xlu0 %3179
    %3181 = vrot.lane.b32.xlu0 %v3143, 6
    %v3182 = vpop.permute.xlu0 %3181
    %3183 = vrot.lane.b32.xlu0 %v3144, 6
    %v3184 = vpop.permute.xlu0 %3183
    %3185 = vrot.lane.b32.xlu0 %v3145, 6
    %v3186 = vpop.permute.xlu0 %3185
    %3187 = vrot.lane.b32.xlu0 %v3146, 6
    %v3188 = vpop.permute.xlu0 %3187
    %3189 = vrot.lane.b32.xlu0 %v3147, 6
    %v3190 = vpop.permute.xlu0 %3189
    %3191 = vrot.lane.b32.xlu0 %v3148, 6
    %v3192 = vpop.permute.xlu0 %3191
    %3193 = vrot.lane.b32.xlu0 %v3149, 6
    %v3194 = vpop.permute.xlu0 %3193
    %3195 = vrot.lane.b32.xlu0 %v3150, 6
    %v3196 = vpop.permute.xlu0 %3195
    %3197 = vrot.lane.b32.xlu0 %v3151, 6
    %v3198 = vpop.permute.xlu0 %3197
    %3199 = vrot.lane.b32.xlu0 %v3152, 6
    %v3200 = vpop.permute.xlu0 %3199
    %3201 = vrot.lane.b32.xlu0 %v3153, 6
    %v3202 = vpop.permute.xlu0 %3201
    %3203 = vrot.lane.b32.xlu0 %v3154, 6
    %v3204 = vpop.permute.xlu0 %3203
    %3205 = vrot.lane.b32.xlu0 %v3155, 6
    %v3206 = vpop.permute.xlu0 %3205
    %3207 = vrot.lane.b32.xlu0 %v3156, 6
    %v3208 = vpop.permute.xlu0 %3207
    %3209 = vrot.lane.b32.xlu0 %v3157, 6
    %v3210 = vpop.permute.xlu0 %3209
    %3211 = vrot.lane.b32.xlu0 %v3158, 6
    %v3212 = vpop.permute.xlu0 %3211
    %3213 = vrot.lane.b32.xlu0 %v3159, 6
    %v3214 = vpop.permute.xlu0 %3213
    %3215 = vrot.lane.b32.xlu0 %v3160, 6
    %v3216 = vpop.permute.xlu0 %3215
    %v3217 = vadd.f32 %v3105, %v3162
    %v3218 = vadd.f32 %v3106, %v3164
    %v3219 = vadd.f32 %v3107, %v3166
    %v3220 = vadd.f32 %v3108, %v3168
    %v3221 = vadd.f32 %v3109, %v3170
    %v3222 = vadd.f32 %v3110, %v3172
    %v3223 = vadd.f32 %v3111, %v3174
    %v3224 = vadd.f32 %v3112, %v3176
    %v3225 = vadd.f32 %v3113, %v3178
    %v3226 = vadd.f32 %v3114, %v3180
    %v3227 = vadd.f32 %v3115, %v3182
    %v3228 = vadd.f32 %v3116, %v3184
    %v3229 = vadd.f32 %v3117, %v3186
    %v3230 = vadd.f32 %v3118, %v3188
    %v3231 = vadd.f32 %v3119, %v3190
    %v3232 = vadd.f32 %v3120, %v3192
    %v3233 = vadd.f32 %v3121, %v3194
    %v3234 = vadd.f32 %v3122, %v3196
    %v3235 = vadd.f32 %v3123, %v3198
    %v3236 = vadd.f32 %v3124, %v3200
    %v3237 = vadd.f32 %v3125, %v3202
    %v3238 = vadd.f32 %v3126, %v3204
    %v3239 = vadd.f32 %v3127, %v3206
    %v3240 = vadd.f32 %v3128, %v3208
    %v3241 = vadd.f32 %v3129, %v3210
    %v3242 = vadd.f32 %v3130, %v3212
    %v3243 = vadd.f32 %v3131, %v3214
    %v3244 = vadd.f32 %v3132, %v3216
    %v3245 = vld [vmem:[#allocation3 + $0xe2] sm:$0xff]
    %v3246 = vld [vmem:[#allocation3 + $0xea] sm:$0xff]
    %v3247 = vld [vmem:[#allocation3 + $0xf2] sm:$0xff]
    %v3248 = vld [vmem:[#allocation3 + $0xfa] sm:$0xff]
    %v3249 = vld [vmem:[#allocation3 + $0x102] sm:$0xff]
    %v3250 = vld [vmem:[#allocation3 + $0x10a] sm:$0xff]
    %v3251 = vld [vmem:[#allocation3 + $0x112] sm:$0xff]
    %v3252 = vld [vmem:[#allocation3 + $0x11a] sm:$0xff]
    %v3253 = vld [vmem:[#allocation3 + $0x122] sm:$0xff]
    %v3254 = vld [vmem:[#allocation3 + $0x12a] sm:$0xff]
    %v3255 = vld [vmem:[#allocation3 + $0x132] sm:$0xff]
    %v3256 = vld [vmem:[#allocation3 + $0x13a] sm:$0xff]
    %v3257 = vld [vmem:[#allocation3 + $0x142] sm:$0xff]
    %v3258 = vld [vmem:[#allocation3 + $0x14a] sm:$0xff]
    %v3259 = vld [vmem:[#allocation3 + $0x152] sm:$0xff]
    %v3260 = vld [vmem:[#allocation3 + $0x15a] sm:$0xff]
    %v3261 = vld [vmem:[#allocation3 + $0x162] sm:$0xff]
    %v3262 = vld [vmem:[#allocation3 + $0x16a] sm:$0xff]
    %v3263 = vld [vmem:[#allocation3 + $0x172] sm:$0xff]
    %v3264 = vld [vmem:[#allocation3 + $0x17a] sm:$0xff]
    %v3265 = vld [vmem:[#allocation3 + $0x182] sm:$0xff]
    %v3266 = vld [vmem:[#allocation3 + $0x18a] sm:$0xff]
    %v3267 = vld [vmem:[#allocation3 + $0x192] sm:$0xff]
    %v3268 = vld [vmem:[#allocation3 + $0x19a] sm:$0xff]
    %v3269 = vld [vmem:[#allocation3 + $0x1a2] sm:$0xff]
    %v3270 = vld [vmem:[#allocation3 + $0x1aa] sm:$0xff]
    %v3271 = vld [vmem:[#allocation3 + $0x1b2] sm:$0xff]
    %v3272 = vld [vmem:[#allocation3 + $0x1ba] sm:$0xff]
    %3273 = vrot.lane.b32.xlu0 %v3245, 12
    %v3274 = vpop.permute.xlu0 %3273
    %3275 = vrot.lane.b32.xlu0 %v3246, 12
    %v3276 = vpop.permute.xlu0 %3275
    %3277 = vrot.lane.b32.xlu0 %v3247, 12
    %v3278 = vpop.permute.xlu0 %3277
    %3279 = vrot.lane.b32.xlu0 %v3248, 12
    %v3280 = vpop.permute.xlu0 %3279
    %3281 = vrot.lane.b32.xlu0 %v3249, 12
    %v3282 = vpop.permute.xlu0 %3281
    %3283 = vrot.lane.b32.xlu0 %v3250, 12
    %v3284 = vpop.permute.xlu0 %3283
    %3285 = vrot.lane.b32.xlu0 %v3251, 12
    %v3286 = vpop.permute.xlu0 %3285
    %3287 = vrot.lane.b32.xlu0 %v3252, 12
    %v3288 = vpop.permute.xlu0 %3287
    %3289 = vrot.lane.b32.xlu0 %v3253, 12
    %v3290 = vpop.permute.xlu0 %3289
    %3291 = vrot.lane.b32.xlu0 %v3254, 12
    %v3292 = vpop.permute.xlu0 %3291
    %3293 = vrot.lane.b32.xlu0 %v3255, 12
    %v3294 = vpop.permute.xlu0 %3293
    %3295 = vrot.lane.b32.xlu0 %v3256, 12
    %v3296 = vpop.permute.xlu0 %3295
    %3297 = vrot.lane.b32.xlu0 %v3257, 12
    %v3298 = vpop.permute.xlu0 %3297
    %3299 = vrot.lane.b32.xlu0 %v3258, 12
    %v3300 = vpop.permute.xlu0 %3299
    %3301 = vrot.lane.b32.xlu0 %v3259, 12
    %v3302 = vpop.permute.xlu0 %3301
    %3303 = vrot.lane.b32.xlu0 %v3260, 12
    %v3304 = vpop.permute.xlu0 %3303
    %3305 = vrot.lane.b32.xlu0 %v3261, 12
    %v3306 = vpop.permute.xlu0 %3305
    %3307 = vrot.lane.b32.xlu0 %v3262, 12
    %v3308 = vpop.permute.xlu0 %3307
    %3309 = vrot.lane.b32.xlu0 %v3263, 12
    %v3310 = vpop.permute.xlu0 %3309
    %3311 = vrot.lane.b32.xlu0 %v3264, 12
    %v3312 = vpop.permute.xlu0 %3311
    %3313 = vrot.lane.b32.xlu0 %v3265, 12
    %v3314 = vpop.permute.xlu0 %3313
    %3315 = vrot.lane.b32.xlu0 %v3266, 12
    %v3316 = vpop.permute.xlu0 %3315
    %3317 = vrot.lane.b32.xlu0 %v3267, 12
    %v3318 = vpop.permute.xlu0 %3317
    %3319 = vrot.lane.b32.xlu0 %v3268, 12
    %v3320 = vpop.permute.xlu0 %3319
    %3321 = vrot.lane.b32.xlu0 %v3269, 12
    %v3322 = vpop.permute.xlu0 %3321
    %3323 = vrot.lane.b32.xlu0 %v3270, 12
    %v3324 = vpop.permute.xlu0 %3323
    %3325 = vrot.lane.b32.xlu0 %v3271, 12
    %v3326 = vpop.permute.xlu0 %3325
    %3327 = vrot.lane.b32.xlu0 %v3272, 12
    %v3328 = vpop.permute.xlu0 %3327
    %v3329 = vadd.f32 %v3217, %v3274
    %v3330 = vadd.f32 %v3218, %v3276
    %v3331 = vadd.f32 %v3219, %v3278
    %v3332 = vadd.f32 %v3220, %v3280
    %v3333 = vadd.f32 %v3221, %v3282
    %v3334 = vadd.f32 %v3222, %v3284
    %v3335 = vadd.f32 %v3223, %v3286
    %v3336 = vadd.f32 %v3224, %v3288
    %v3337 = vadd.f32 %v3225, %v3290
    %v3338 = vadd.f32 %v3226, %v3292
    %v3339 = vadd.f32 %v3227, %v3294
    %v3340 = vadd.f32 %v3228, %v3296
    %v3341 = vadd.f32 %v3229, %v3298
    %v3342 = vadd.f32 %v3230, %v3300
    %v3343 = vadd.f32 %v3231, %v3302
    %v3344 = vadd.f32 %v3232, %v3304
    %v3345 = vadd.f32 %v3233, %v3306
    %v3346 = vadd.f32 %v3234, %v3308
    %v3347 = vadd.f32 %v3235, %v3310
    %v3348 = vadd.f32 %v3236, %v3312
    %v3349 = vadd.f32 %v3237, %v3314
    %v3350 = vadd.f32 %v3238, %v3316
    %v3351 = vadd.f32 %v3239, %v3318
    %v3352 = vadd.f32 %v3240, %v3320
    %v3353 = vadd.f32 %v3241, %v3322
    %v3354 = vadd.f32 %v3242, %v3324
    %v3355 = vadd.f32 %v3243, %v3326
    %v3356 = vadd.f32 %v3244, %v3328
    %v3357 = vld [vmem:[#allocation3 + $0xe3] sm:$0xff]
    %v3358 = vld [vmem:[#allocation3 + $0xeb] sm:$0xff]
    %v3359 = vld [vmem:[#allocation3 + $0xf3] sm:$0xff]
    %v3360 = vld [vmem:[#allocation3 + $0xfb] sm:$0xff]
    %v3361 = vld [vmem:[#allocation3 + $0x103] sm:$0xff]
    %v3362 = vld [vmem:[#allocation3 + $0x10b] sm:$0xff]
    %v3363 = vld [vmem:[#allocation3 + $0x113] sm:$0xff]
    %v3364 = vld [vmem:[#allocation3 + $0x11b] sm:$0xff]
    %v3365 = vld [vmem:[#allocation3 + $0x123] sm:$0xff]
    %v3366 = vld [vmem:[#allocation3 + $0x12b] sm:$0xff]
    %v3367 = vld [vmem:[#allocation3 + $0x133] sm:$0xff]
    %v3368 = vld [vmem:[#allocation3 + $0x13b] sm:$0xff]
    %v3369 = vld [vmem:[#allocation3 + $0x143] sm:$0xff]
    %v3370 = vld [vmem:[#allocation3 + $0x14b] sm:$0xff]
    %v3371 = vld [vmem:[#allocation3 + $0x153] sm:$0xff]
    %v3372 = vld [vmem:[#allocation3 + $0x15b] sm:$0xff]
    %v3373 = vld [vmem:[#allocation3 + $0x163] sm:$0xff]
    %v3374 = vld [vmem:[#allocation3 + $0x16b] sm:$0xff]
    %v3375 = vld [vmem:[#allocation3 + $0x173] sm:$0xff]
    %v3376 = vld [vmem:[#allocation3 + $0x17b] sm:$0xff]
    %v3377 = vld [vmem:[#allocation3 + $0x183] sm:$0xff]
    %v3378 = vld [vmem:[#allocation3 + $0x18b] sm:$0xff]
    %v3379 = vld [vmem:[#allocation3 + $0x193] sm:$0xff]
    %v3380 = vld [vmem:[#allocation3 + $0x19b] sm:$0xff]
    %v3381 = vld [vmem:[#allocation3 + $0x1a3] sm:$0xff]
    %v3382 = vld [vmem:[#allocation3 + $0x1ab] sm:$0xff]
    %v3383 = vld [vmem:[#allocation3 + $0x1b3] sm:$0xff]
    %v3384 = vld [vmem:[#allocation3 + $0x1bb] sm:$0xff]
    %3385 = vrot.lane.b32.xlu0 %v3357, 18
    %v3386 = vpop.permute.xlu0 %3385
    %3387 = vrot.lane.b32.xlu0 %v3358, 18
    %v3388 = vpop.permute.xlu0 %3387
    %3389 = vrot.lane.b32.xlu0 %v3359, 18
    %v3390 = vpop.permute.xlu0 %3389
    %3391 = vrot.lane.b32.xlu0 %v3360, 18
    %v3392 = vpop.permute.xlu0 %3391
    %3393 = vrot.lane.b32.xlu0 %v3361, 18
    %v3394 = vpop.permute.xlu0 %3393
    %3395 = vrot.lane.b32.xlu0 %v3362, 18
    %v3396 = vpop.permute.xlu0 %3395
    %3397 = vrot.lane.b32.xlu0 %v3363, 18
    %v3398 = vpop.permute.xlu0 %3397
    %3399 = vrot.lane.b32.xlu0 %v3364, 18
    %v3400 = vpop.permute.xlu0 %3399
    %3401 = vrot.lane.b32.xlu0 %v3365, 18
    %v3402 = vpop.permute.xlu0 %3401
    %3403 = vrot.lane.b32.xlu0 %v3366, 18
    %v3404 = vpop.permute.xlu0 %3403
    %3405 = vrot.lane.b32.xlu0 %v3367, 18
    %v3406 = vpop.permute.xlu0 %3405
    %3407 = vrot.lane.b32.xlu0 %v3368, 18
    %v3408 = vpop.permute.xlu0 %3407
    %3409 = vrot.lane.b32.xlu0 %v3369, 18
    %v3410 = vpop.permute.xlu0 %3409
    %3411 = vrot.lane.b32.xlu0 %v3370, 18
    %v3412 = vpop.permute.xlu0 %3411
    %3413 = vrot.lane.b32.xlu0 %v3371, 18
    %v3414 = vpop.permute.xlu0 %3413
    %3415 = vrot.lane.b32.xlu0 %v3372, 18
    %v3416 = vpop.permute.xlu0 %3415
    %3417 = vrot.lane.b32.xlu0 %v3373, 18
    %v3418 = vpop.permute.xlu0 %3417
    %3419 = vrot.lane.b32.xlu0 %v3374, 18
    %v3420 = vpop.permute.xlu0 %3419
    %3421 = vrot.lane.b32.xlu0 %v3375, 18
    %v3422 = vpop.permute.xlu0 %3421
    %3423 = vrot.lane.b32.xlu0 %v3376, 18
    %v3424 = vpop.permute.xlu0 %3423
    %3425 = vrot.lane.b32.xlu0 %v3377, 18
    %v3426 = vpop.permute.xlu0 %3425
    %3427 = vrot.lane.b32.xlu0 %v3378, 18
    %v3428 = vpop.permute.xlu0 %3427
    %3429 = vrot.lane.b32.xlu0 %v3379, 18
    %v3430 = vpop.permute.xlu0 %3429
    %3431 = vrot.lane.b32.xlu0 %v3380, 18
    %v3432 = vpop.permute.xlu0 %3431
    %3433 = vrot.lane.b32.xlu0 %v3381, 18
    %v3434 = vpop.permute.xlu0 %3433
    %3435 = vrot.lane.b32.xlu0 %v3382, 18
    %v3436 = vpop.permute.xlu0 %3435
    %3437 = vrot.lane.b32.xlu0 %v3383, 18
    %v3438 = vpop.permute.xlu0 %3437
    %3439 = vrot.lane.b32.xlu0 %v3384, 18
    %v3440 = vpop.permute.xlu0 %3439
    %v3441 = vadd.f32 %v3329, %v3386
    %v3442 = vadd.f32 %v3330, %v3388
    %v3443 = vadd.f32 %v3331, %v3390
    %v3444 = vadd.f32 %v3332, %v3392
    %v3445 = vadd.f32 %v3333, %v3394
    %v3446 = vadd.f32 %v3334, %v3396
    %v3447 = vadd.f32 %v3335, %v3398
    %v3448 = vadd.f32 %v3336, %v3400
    %v3449 = vadd.f32 %v3337, %v3402
    %v3450 = vadd.f32 %v3338, %v3404
    %v3451 = vadd.f32 %v3339, %v3406
    %v3452 = vadd.f32 %v3340, %v3408
    %v3453 = vadd.f32 %v3341, %v3410
    %v3454 = vadd.f32 %v3342, %v3412
    %v3455 = vadd.f32 %v3343, %v3414
    %v3456 = vadd.f32 %v3344, %v3416
    %v3457 = vadd.f32 %v3345, %v3418
    %v3458 = vadd.f32 %v3346, %v3420
    %v3459 = vadd.f32 %v3347, %v3422
    %v3460 = vadd.f32 %v3348, %v3424
    %v3461 = vadd.f32 %v3349, %v3426
    %v3462 = vadd.f32 %v3350, %v3428
    %v3463 = vadd.f32 %v3351, %v3430
    %v3464 = vadd.f32 %v3352, %v3432
    %v3465 = vadd.f32 %v3353, %v3434
    %v3466 = vadd.f32 %v3354, %v3436
    %v3467 = vadd.f32 %v3355, %v3438
    %v3468 = vadd.f32 %v3356, %v3440
    %v3469 = vld [vmem:[#allocation3 + $0xe4] sm:$0xff]
    %v3470 = vld [vmem:[#allocation3 + $0xec] sm:$0xff]
    %v3471 = vld [vmem:[#allocation3 + $0xf4] sm:$0xff]
    %v3472 = vld [vmem:[#allocation3 + $0xfc] sm:$0xff]
    %v3473 = vld [vmem:[#allocation3 + $0x104] sm:$0xff]
    %v3474 = vld [vmem:[#allocation3 + $0x10c] sm:$0xff]
    %v3475 = vld [vmem:[#allocation3 + $0x114] sm:$0xff]
    %v3476 = vld [vmem:[#allocation3 + $0x11c] sm:$0xff]
    %v3477 = vld [vmem:[#allocation3 + $0x124] sm:$0xff]
    %v3478 = vld [vmem:[#allocation3 + $0x12c] sm:$0xff]
    %v3479 = vld [vmem:[#allocation3 + $0x134] sm:$0xff]
    %v3480 = vld [vmem:[#allocation3 + $0x13c] sm:$0xff]
    %v3481 = vld [vmem:[#allocation3 + $0x144] sm:$0xff]
    %v3482 = vld [vmem:[#allocation3 + $0x14c] sm:$0xff]
    %v3483 = vld [vmem:[#allocation3 + $0x154] sm:$0xff]
    %v3484 = vld [vmem:[#allocation3 + $0x15c] sm:$0xff]
    %v3485 = vld [vmem:[#allocation3 + $0x164] sm:$0xff]
    %v3486 = vld [vmem:[#allocation3 + $0x16c] sm:$0xff]
    %v3487 = vld [vmem:[#allocation3 + $0x174] sm:$0xff]
    %v3488 = vld [vmem:[#allocation3 + $0x17c] sm:$0xff]
    %v3489 = vld [vmem:[#allocation3 + $0x184] sm:$0xff]
    %v3490 = vld [vmem:[#allocation3 + $0x18c] sm:$0xff]
    %v3491 = vld [vmem:[#allocation3 + $0x194] sm:$0xff]
    %v3492 = vld [vmem:[#allocation3 + $0x19c] sm:$0xff]
    %v3493 = vld [vmem:[#allocation3 + $0x1a4] sm:$0xff]
    %v3494 = vld [vmem:[#allocation3 + $0x1ac] sm:$0xff]
    %v3495 = vld [vmem:[#allocation3 + $0x1b4] sm:$0xff]
    %v3496 = vld [vmem:[#allocation3 + $0x1bc] sm:$0xff]
    %3497 = vrot.lane.b32.xlu0 %v3469, 24
    %v3498 = vpop.permute.xlu0 %3497
    %3499 = vrot.lane.b32.xlu0 %v3470, 24
    %v3500 = vpop.permute.xlu0 %3499
    %3501 = vrot.lane.b32.xlu0 %v3471, 24
    %v3502 = vpop.permute.xlu0 %3501
    %3503 = vrot.lane.b32.xlu0 %v3472, 24
    %v3504 = vpop.permute.xlu0 %3503
    %3505 = vrot.lane.b32.xlu0 %v3473, 24
    %v3506 = vpop.permute.xlu0 %3505
    %3507 = vrot.lane.b32.xlu0 %v3474, 24
    %v3508 = vpop.permute.xlu0 %3507
    %3509 = vrot.lane.b32.xlu0 %v3475, 24
    %v3510 = vpop.permute.xlu0 %3509
    %3511 = vrot.lane.b32.xlu0 %v3476, 24
    %v3512 = vpop.permute.xlu0 %3511
    %3513 = vrot.lane.b32.xlu0 %v3477, 24
    %v3514 = vpop.permute.xlu0 %3513
    %3515 = vrot.lane.b32.xlu0 %v3478, 24
    %v3516 = vpop.permute.xlu0 %3515
    %3517 = vrot.lane.b32.xlu0 %v3479, 24
    %v3518 = vpop.permute.xlu0 %3517
    %3519 = vrot.lane.b32.xlu0 %v3480, 24
    %v3520 = vpop.permute.xlu0 %3519
    %3521 = vrot.lane.b32.xlu0 %v3481, 24
    %v3522 = vpop.permute.xlu0 %3521
    %3523 = vrot.lane.b32.xlu0 %v3482, 24
    %v3524 = vpop.permute.xlu0 %3523
    %3525 = vrot.lane.b32.xlu0 %v3483, 24
    %v3526 = vpop.permute.xlu0 %3525
    %3527 = vrot.lane.b32.xlu0 %v3484, 24
    %v3528 = vpop.permute.xlu0 %3527
    %3529 = vrot.lane.b32.xlu0 %v3485, 24
    %v3530 = vpop.permute.xlu0 %3529
    %3531 = vrot.lane.b32.xlu0 %v3486, 24
    %v3532 = vpop.permute.xlu0 %3531
    %3533 = vrot.lane.b32.xlu0 %v3487, 24
    %v3534 = vpop.permute.xlu0 %3533
    %3535 = vrot.lane.b32.xlu0 %v3488, 24
    %v3536 = vpop.permute.xlu0 %3535
    %3537 = vrot.lane.b32.xlu0 %v3489, 24
    %v3538 = vpop.permute.xlu0 %3537
    %3539 = vrot.lane.b32.xlu0 %v3490, 24
    %v3540 = vpop.permute.xlu0 %3539
    %3541 = vrot.lane.b32.xlu0 %v3491, 24
    %v3542 = vpop.permute.xlu0 %3541
    %3543 = vrot.lane.b32.xlu0 %v3492, 24
    %v3544 = vpop.permute.xlu0 %3543
    %3545 = vrot.lane.b32.xlu0 %v3493, 24
    %v3546 = vpop.permute.xlu0 %3545
    %3547 = vrot.lane.b32.xlu0 %v3494, 24
    %v3548 = vpop.permute.xlu0 %3547
    %3549 = vrot.lane.b32.xlu0 %v3495, 24
    %v3550 = vpop.permute.xlu0 %3549
    %3551 = vrot.lane.b32.xlu0 %v3496, 24
    %v3552 = vpop.permute.xlu0 %3551
    %v3553 = vadd.f32 %v3441, %v3498
    %v3554 = vadd.f32 %v3442, %v3500
    %v3555 = vadd.f32 %v3443, %v3502
    %v3556 = vadd.f32 %v3444, %v3504
    %v3557 = vadd.f32 %v3445, %v3506
    %v3558 = vadd.f32 %v3446, %v3508
    %v3559 = vadd.f32 %v3447, %v3510
    %v3560 = vadd.f32 %v3448, %v3512
    %v3561 = vadd.f32 %v3449, %v3514
    %v3562 = vadd.f32 %v3450, %v3516
    %v3563 = vadd.f32 %v3451, %v3518
    %v3564 = vadd.f32 %v3452, %v3520
    %v3565 = vadd.f32 %v3453, %v3522
    %v3566 = vadd.f32 %v3454, %v3524
    %v3567 = vadd.f32 %v3455, %v3526
    %v3568 = vadd.f32 %v3456, %v3528
    %v3569 = vadd.f32 %v3457, %v3530
    %v3570 = vadd.f32 %v3458, %v3532
    %v3571 = vadd.f32 %v3459, %v3534
    %v3572 = vadd.f32 %v3460, %v3536
    %v3573 = vadd.f32 %v3461, %v3538
    %v3574 = vadd.f32 %v3462, %v3540
    %v3575 = vadd.f32 %v3463, %v3542
    %v3576 = vadd.f32 %v3464, %v3544
    %v3577 = vadd.f32 %v3465, %v3546
    %v3578 = vadd.f32 %v3466, %v3548
    %v3579 = vadd.f32 %v3467, %v3550
    %v3580 = vadd.f32 %v3468, %v3552
    %v3581 = vpack.c.bf16 %v3553, %v3553
    %v3582 = vpack.c.bf16 %v3554, %v3554
    %v3583 = vpack.c.bf16 %v3555, %v3555
    %v3584 = vpack.c.bf16 %v3556, %v3556
    %v3585 = vpack.c.bf16 %v3557, %v3557
    %v3586 = vpack.c.bf16 %v3558, %v3558
    %v3587 = vpack.c.bf16 %v3559, %v3559
    %v3588 = vpack.c.bf16 %v3560, %v3560
    %v3589 = vpack.c.bf16 %v3561, %v3561
    %v3590 = vpack.c.bf16 %v3562, %v3562
    %v3591 = vpack.c.bf16 %v3563, %v3563
    %v3592 = vpack.c.bf16 %v3564, %v3564
    %v3593 = vpack.c.bf16 %v3565, %v3565
    %v3594 = vpack.c.bf16 %v3566, %v3566
    %v3595 = vpack.c.bf16 %v3567, %v3567
    %v3596 = vpack.c.bf16 %v3568, %v3568
    %v3597 = vpack.c.bf16 %v3569, %v3569
    %v3598 = vpack.c.bf16 %v3570, %v3570
    %v3599 = vpack.c.bf16 %v3571, %v3571
    %v3600 = vpack.c.bf16 %v3572, %v3572
    %v3601 = vpack.c.bf16 %v3573, %v3573
    %v3602 = vpack.c.bf16 %v3574, %v3574
    %v3603 = vpack.c.bf16 %v3575, %v3575
    %v3604 = vpack.c.bf16 %v3576, %v3576
    %v3605 = vpack.c.bf16 %v3577, %v3577
    %v3606 = vpack.c.bf16 %v3578, %v3578
    %v3607 = vpack.c.bf16 %v3579, %v3579
    %v3608 = vpack.c.bf16 %v3580, %v3580
    %3609 = vst [vmem:[#allocation4 + $0x70] sm:$0xf] %v3581
    %3610 = vst [vmem:[#allocation4 + $0x74] sm:$0xf] %v3582
    %3611 = vst [vmem:[#allocation4 + $0x78] sm:$0xf] %v3583
    %3612 = vst [vmem:[#allocation4 + $0x7c] sm:$0xf] %v3584
    %3613 = vst [vmem:[#allocation4 + $0x80] sm:$0xf] %v3585
    %3614 = vst [vmem:[#allocation4 + $0x84] sm:$0xf] %v3586
    %3615 = vst [vmem:[#allocation4 + $0x88] sm:$0xf] %v3587
    %3616 = vst [vmem:[#allocation4 + $0x8c] sm:$0xf] %v3588
    %3617 = vst [vmem:[#allocation4 + $0x90] sm:$0xf] %v3589
    %3618 = vst [vmem:[#allocation4 + $0x94] sm:$0xf] %v3590
    %3619 = vst [vmem:[#allocation4 + $0x98] sm:$0xf] %v3591
    %3620 = vst [vmem:[#allocation4 + $0x9c] sm:$0xf] %v3592
    %3621 = vst [vmem:[#allocation4 + $0xa0] sm:$0xf] %v3593
    %3622 = vst [vmem:[#allocation4 + $0xa4] sm:$0xf] %v3594
    %3623 = vst [vmem:[#allocation4 + $0xa8] sm:$0xf] %v3595
    %3624 = vst [vmem:[#allocation4 + $0xac] sm:$0xf] %v3596
    %3625 = vst [vmem:[#allocation4 + $0xb0] sm:$0xf] %v3597
    %3626 = vst [vmem:[#allocation4 + $0xb4] sm:$0xf] %v3598
    %3627 = vst [vmem:[#allocation4 + $0xb8] sm:$0xf] %v3599
    %3628 = vst [vmem:[#allocation4 + $0xbc] sm:$0xf] %v3600
    %3629 = vst [vmem:[#allocation4 + $0xc0] sm:$0xf] %v3601
    %3630 = vst [vmem:[#allocation4 + $0xc4] sm:$0xf] %v3602
    %3631 = vst [vmem:[#allocation4 + $0xc8] sm:$0xf] %v3603
    %3632 = vst [vmem:[#allocation4 + $0xcc] sm:$0xf] %v3604
    %3633 = vst [vmem:[#allocation4 + $0xd0] sm:$0xf] %v3605
    %3634 = vst [vmem:[#allocation4 + $0xd4] sm:$0xf] %v3606
    %3635 = vst [vmem:[#allocation4 + $0xd8] sm:$0xf] %v3607
    %3636 = vst [vmem:[#allocation4 + $0xdc] sm:$0xf] %v3608
    %v3637 = vld [vmem:[#allocation3 + $0x1c0] sm:$0xff]
    %v3638 = vld [vmem:[#allocation3 + $0x1c8] sm:$0xff]
    %v3639 = vld [vmem:[#allocation3 + $0x1d0] sm:$0xff]
    %v3640 = vld [vmem:[#allocation3 + $0x1d8] sm:$0xff]
    %v3641 = vld [vmem:[#allocation3 + $0x1e0] sm:$0xff]
    %v3642 = vld [vmem:[#allocation3 + $0x1e8] sm:$0xff]
    %v3643 = vld [vmem:[#allocation3 + $0x1f0] sm:$0xff]
    %v3644 = vld [vmem:[#allocation3 + $0x1f8] sm:$0xff]
    %v3645 = vld [vmem:[#allocation3 + $0x1c1] sm:$0xff]
    %v3646 = vld [vmem:[#allocation3 + $0x1c9] sm:$0xff]
    %v3647 = vld [vmem:[#allocation3 + $0x1d1] sm:$0xff]
    %v3648 = vld [vmem:[#allocation3 + $0x1d9] sm:$0xff]
    %v3649 = vld [vmem:[#allocation3 + $0x1e1] sm:$0xff]
    %v3650 = vld [vmem:[#allocation3 + $0x1e9] sm:$0xff]
    %v3651 = vld [vmem:[#allocation3 + $0x1f1] sm:$0xff]
    %v3652 = vld [vmem:[#allocation3 + $0x1f9] sm:$0xff]
    %3653 = vrot.lane.b32.xlu0 %v3645, 6
    %v3654 = vpop.permute.xlu0 %3653
    %3655 = vrot.lane.b32.xlu0 %v3646, 6
    %v3656 = vpop.permute.xlu0 %3655
    %3657 = vrot.lane.b32.xlu0 %v3647, 6
    %v3658 = vpop.permute.xlu0 %3657
    %3659 = vrot.lane.b32.xlu0 %v3648, 6
    %v3660 = vpop.permute.xlu0 %3659
    %3661 = vrot.lane.b32.xlu0 %v3649, 6
    %v3662 = vpop.permute.xlu0 %3661
    %3663 = vrot.lane.b32.xlu0 %v3650, 6
    %v3664 = vpop.permute.xlu0 %3663
    %3665 = vrot.lane.b32.xlu0 %v3651, 6
    %v3666 = vpop.permute.xlu0 %3665
    %3667 = vrot.lane.b32.xlu0 %v3652, 6
    %v3668 = vpop.permute.xlu0 %3667
    %v3669 = vadd.f32 %v3637, %v3654
    %v3670 = vadd.f32 %v3638, %v3656
    %v3671 = vadd.f32 %v3639, %v3658
    %v3672 = vadd.f32 %v3640, %v3660
    %v3673 = vadd.f32 %v3641, %v3662
    %v3674 = vadd.f32 %v3642, %v3664
    %v3675 = vadd.f32 %v3643, %v3666
    %v3676 = vadd.f32 %v3644, %v3668
    %v3677 = vld [vmem:[#allocation3 + $0x1c2] sm:$0xff]
    %v3678 = vld [vmem:[#allocation3 + $0x1ca] sm:$0xff]
    %v3679 = vld [vmem:[#allocation3 + $0x1d2] sm:$0xff]
    %v3680 = vld [vmem:[#allocation3 + $0x1da] sm:$0xff]
    %v3681 = vld [vmem:[#allocation3 + $0x1e2] sm:$0xff]
    %v3682 = vld [vmem:[#allocation3 + $0x1ea] sm:$0xff]
    %v3683 = vld [vmem:[#allocation3 + $0x1f2] sm:$0xff]
    %v3684 = vld [vmem:[#allocation3 + $0x1fa] sm:$0xff]
    %3685 = vrot.lane.b32.xlu0 %v3677, 12
    %v3686 = vpop.permute.xlu0 %3685
    %3687 = vrot.lane.b32.xlu0 %v3678, 12
    %v3688 = vpop.permute.xlu0 %3687
    %3689 = vrot.lane.b32.xlu0 %v3679, 12
    %v3690 = vpop.permute.xlu0 %3689
    %3691 = vrot.lane.b32.xlu0 %v3680, 12
    %v3692 = vpop.permute.xlu0 %3691
    %3693 = vrot.lane.b32.xlu0 %v3681, 12
    %v3694 = vpop.permute.xlu0 %3693
    %3695 = vrot.lane.b32.xlu0 %v3682, 12
    %v3696 = vpop.permute.xlu0 %3695
    %3697 = vrot.lane.b32.xlu0 %v3683, 12
    %v3698 = vpop.permute.xlu0 %3697
    %3699 = vrot.lane.b32.xlu0 %v3684, 12
    %v3700 = vpop.permute.xlu0 %3699
    %v3701 = vadd.f32 %v3669, %v3686
    %v3702 = vadd.f32 %v3670, %v3688
    %v3703 = vadd.f32 %v3671, %v3690
    %v3704 = vadd.f32 %v3672, %v3692
    %v3705 = vadd.f32 %v3673, %v3694
    %v3706 = vadd.f32 %v3674, %v3696
    %v3707 = vadd.f32 %v3675, %v3698
    %v3708 = vadd.f32 %v3676, %v3700
    %v3709 = vld [vmem:[#allocation3 + $0x1c3] sm:$0xff]
    %v3710 = vld [vmem:[#allocation3 + $0x1cb] sm:$0xff]
    %v3711 = vld [vmem:[#allocation3 + $0x1d3] sm:$0xff]
    %v3712 = vld [vmem:[#allocation3 + $0x1db] sm:$0xff]
    %v3713 = vld [vmem:[#allocation3 + $0x1e3] sm:$0xff]
    %v3714 = vld [vmem:[#allocation3 + $0x1eb] sm:$0xff]
    %v3715 = vld [vmem:[#allocation3 + $0x1f3] sm:$0xff]
    %v3716 = vld [vmem:[#allocation3 + $0x1fb] sm:$0xff]
    %3717 = vrot.lane.b32.xlu0 %v3709, 18
    %v3718 = vpop.permute.xlu0 %3717
    %3719 = vrot.lane.b32.xlu0 %v3710, 18
    %v3720 = vpop.permute.xlu0 %3719
    %3721 = vrot.lane.b32.xlu0 %v3711, 18
    %v3722 = vpop.permute.xlu0 %3721
    %3723 = vrot.lane.b32.xlu0 %v3712, 18
    %v3724 = vpop.permute.xlu0 %3723
    %3725 = vrot.lane.b32.xlu0 %v3713, 18
    %v3726 = vpop.permute.xlu0 %3725
    %3727 = vrot.lane.b32.xlu0 %v3714, 18
    %v3728 = vpop.permute.xlu0 %3727
    %3729 = vrot.lane.b32.xlu0 %v3715, 18
    %v3730 = vpop.permute.xlu0 %3729
    %3731 = vrot.lane.b32.xlu0 %v3716, 18
    %v3732 = vpop.permute.xlu0 %3731
    %v3733 = vadd.f32 %v3701, %v3718
    %v3734 = vadd.f32 %v3702, %v3720
    %v3735 = vadd.f32 %v3703, %v3722
    %v3736 = vadd.f32 %v3704, %v3724
    %v3737 = vadd.f32 %v3705, %v3726
    %v3738 = vadd.f32 %v3706, %v3728
    %v3739 = vadd.f32 %v3707, %v3730
    %v3740 = vadd.f32 %v3708, %v3732
    %v3741 = vld [vmem:[#allocation3 + $0x1c4] sm:$0xff]
    %v3742 = vld [vmem:[#allocation3 + $0x1cc] sm:$0xff]
    %v3743 = vld [vmem:[#allocation3 + $0x1d4] sm:$0xff]
    %v3744 = vld [vmem:[#allocation3 + $0x1dc] sm:$0xff]
    %v3745 = vld [vmem:[#allocation3 + $0x1e4] sm:$0xff]
    %v3746 = vld [vmem:[#allocation3 + $0x1ec] sm:$0xff]
    %v3747 = vld [vmem:[#allocation3 + $0x1f4] sm:$0xff]
    %v3748 = vld [vmem:[#allocation3 + $0x1fc] sm:$0xff]
    %3749 = vrot.lane.b32.xlu0 %v3741, 24
    %v3750 = vpop.permute.xlu0 %3749
    %3751 = vrot.lane.b32.xlu0 %v3742, 24
    %v3752 = vpop.permute.xlu0 %3751
    %3753 = vrot.lane.b32.xlu0 %v3743, 24
    %v3754 = vpop.permute.xlu0 %3753
    %3755 = vrot.lane.b32.xlu0 %v3744, 24
    %v3756 = vpop.permute.xlu0 %3755
    %3757 = vrot.lane.b32.xlu0 %v3745, 24
    %v3758 = vpop.permute.xlu0 %3757
    %3759 = vrot.lane.b32.xlu0 %v3746, 24
    %v3760 = vpop.permute.xlu0 %3759
    %3761 = vrot.lane.b32.xlu0 %v3747, 24
    %v3762 = vpop.permute.xlu0 %3761
    %3763 = vrot.lane.b32.xlu0 %v3748, 24
    %v3764 = vpop.permute.xlu0 %3763
    %v3765 = vadd.f32 %v3733, %v3750
    %v3766 = vadd.f32 %v3734, %v3752
    %v3767 = vadd.f32 %v3735, %v3754
    %v3768 = vadd.f32 %v3736, %v3756
    %v3769 = vadd.f32 %v3737, %v3758
    %v3770 = vadd.f32 %v3738, %v3760
    %v3771 = vadd.f32 %v3739, %v3762
    %v3772 = vadd.f32 %v3740, %v3764
    %v3773 = vpack.c.bf16 %v3765, %v3765
    %v3774 = vpack.c.bf16 %v3766, %v3766
    %v3775 = vpack.c.bf16 %v3767, %v3767
    %v3776 = vpack.c.bf16 %v3768, %v3768
    %v3777 = vpack.c.bf16 %v3769, %v3769
    %v3778 = vpack.c.bf16 %v3770, %v3770
    %v3779 = vpack.c.bf16 %v3771, %v3771
    %v3780 = vpack.c.bf16 %v3772, %v3772
    %3781 = vst [vmem:[#allocation4 + $0xe0] sm:$0xf] %v3773
    %3782 = vst [vmem:[#allocation4 + $0xe4] sm:$0xf] %v3774
    %3783 = vst [vmem:[#allocation4 + $0xe8] sm:$0xf] %v3775
    %3784 = vst [vmem:[#allocation4 + $0xec] sm:$0xf] %v3776
    %3785 = vst [vmem:[#allocation4 + $0xf0] sm:$0xf] %v3777
    %3786 = vst [vmem:[#allocation4 + $0xf4] sm:$0xf] %v3778
    %3787 = vst [vmem:[#allocation4 + $0xf8] sm:$0xf] %v3779
    %3788 = vst [vmem:[#allocation4 + $0xfc] sm:$0xf] %v3780
    %v3789 = vld [vmem:[%s4] sm:$0x1]
    %v3790 = vld [vmem:[#allocation4] sm:$0xf]
    %v3791 = vld [vmem:[#allocation4 + $0x4] sm:$0xf]
    %v3792 = vld [vmem:[#allocation4 + $0x8] sm:$0xf]
    %v3793 = vld [vmem:[#allocation4 + $0xc] sm:$0xf]
    %v3794 = vld [vmem:[#allocation4 + $0x10] sm:$0xf]
    %v3795 = vld [vmem:[#allocation4 + $0x14] sm:$0xf]
    %v3796 = vld [vmem:[#allocation4 + $0x18] sm:$0xf]
    %v3797 = vld [vmem:[#allocation4 + $0x1c] sm:$0xf]
    %v3798 = vld [vmem:[#allocation4 + $0x20] sm:$0xf]
    %v3799 = vld [vmem:[#allocation4 + $0x24] sm:$0xf]
    %v3800 = vld [vmem:[#allocation4 + $0x28] sm:$0xf]
    %v3801 = vld [vmem:[#allocation4 + $0x2c] sm:$0xf]
    %v3802 = vld [vmem:[#allocation4 + $0x30] sm:$0xf]
    %v3803 = vld [vmem:[#allocation4 + $0x34] sm:$0xf]
    %v3804 = vld [vmem:[#allocation4 + $0x38] sm:$0xf]
    %v3805 = vld [vmem:[#allocation4 + $0x3c] sm:$0xf]
    %v3806 = vld [vmem:[#allocation4 + $0x40] sm:$0xf]
    %v3807 = vld [vmem:[#allocation4 + $0x44] sm:$0xf]
    %v3808 = vld [vmem:[#allocation4 + $0x48] sm:$0xf]
    %v3809 = vld [vmem:[#allocation4 + $0x4c] sm:$0xf]
    %v3810 = vld [vmem:[#allocation4 + $0x50] sm:$0xf]
    %v3811 = vld [vmem:[#allocation4 + $0x54] sm:$0xf]
    %v3812 = vld [vmem:[#allocation4 + $0x58] sm:$0xf]
    %v3813 = vld [vmem:[#allocation4 + $0x5c] sm:$0xf]
    %v3814 = vld [vmem:[#allocation4 + $0x60] sm:$0xf]
    %v3815 = vld [vmem:[#allocation4 + $0x64] sm:$0xf]
    %v3816 = vld [vmem:[#allocation4 + $0x68] sm:$0xf]
    %v3817 = vld [vmem:[#allocation4 + $0x6c] sm:$0xf]
    %v3818 = vld [vmem:[%s3] sm:$0xf]
    %v3819 = vld [vmem:[%s3 + $0x4] sm:$0xf]
    %v3820 = vld [vmem:[%s3 + $0x8] sm:$0xf]
    %v3821 = vld [vmem:[%s3 + $0xc] sm:$0xf]
    %v3822 = vld [vmem:[%s3 + $0x10] sm:$0xf]
    %v3823 = vld [vmem:[%s3 + $0x14] sm:$0xf]
    %v3824 = vld [vmem:[%s3 + $0x18] sm:$0xf]
    %v3825 = vld [vmem:[%s3 + $0x1c] sm:$0xf]
    %v3826 = vld [vmem:[%s3 + $0x20] sm:$0xf]
    %v3827 = vld [vmem:[%s3 + $0x24] sm:$0xf]
    %v3828 = vld [vmem:[%s3 + $0x28] sm:$0xf]
    %v3829 = vld [vmem:[%s3 + $0x2c] sm:$0xf]
    %v3830 = vld [vmem:[%s3 + $0x30] sm:$0xf]
    %v3831 = vld [vmem:[%s3 + $0x34] sm:$0xf]
    %v3832 = vld [vmem:[%s3 + $0x38] sm:$0xf]
    %v3833 = vld [vmem:[%s3 + $0x3c] sm:$0xf]
    %v3834 = vld [vmem:[#allocation4 + $0x70] sm:$0xf]
    %v3835 = vld [vmem:[#allocation4 + $0x74] sm:$0xf]
    %v3836 = vld [vmem:[%s3 + $0x40] sm:$0xf]
    %v3837 = vld [vmem:[%s3 + $0x44] sm:$0xf]
    %v3838 = vld [vmem:[%s3 + $0x48] sm:$0xf]
    %v3839 = vld [vmem:[%s3 + $0x4c] sm:$0xf]
    %v3840 = vld [vmem:[%s3 + $0x50] sm:$0xf]
    %v3841 = vld [vmem:[%s3 + $0x54] sm:$0xf]
    %v3842 = vld [vmem:[%s3 + $0x58] sm:$0xf]
    %v3843 = vld [vmem:[%s3 + $0x5c] sm:$0xf]
    %v3844 = vld [vmem:[%s3 + $0x60] sm:$0xf]
    %v3845 = vld [vmem:[%s3 + $0x64] sm:$0xf]
    %v3846 = vld [vmem:[%s3 + $0x68] sm:$0xf]
    %v3847 = vld [vmem:[%s3 + $0x6c] sm:$0xf]
    %v3848 = vld [vmem:[%s3 + $0x70] sm:$0xf]
    %v3849 = vld [vmem:[%s3 + $0x74] sm:$0xf]
    %v3850 = vld [vmem:[%s3 + $0x78] sm:$0xf]
    %v3851 = vld [vmem:[%s3 + $0x7c] sm:$0xf]
    %v3880 = vunpack.c.l.b16 %v3792
    %v3881 = vunpack.c.l.b16 %v3793
    %v3882 = vunpack.c.l.b16 %v3794
    %v3883 = vunpack.c.l.b16 %v3795
    %v3884 = vunpack.c.l.b16 %v3796
    %v3885 = vunpack.c.l.b16 %v3797
    %v3886 = vunpack.c.l.b16 %v3798
    %v3887 = vunpack.c.l.b16 %v3799
    %v3888 = vunpack.c.l.b16 %v3800
    %v3889 = vunpack.c.l.b16 %v3801
    %v3890 = vunpack.c.l.b16 %v3802
    %v3891 = vunpack.c.l.b16 %v3803
    %v3892 = vunpack.c.l.b16 %v3804
    %v3893 = vunpack.c.l.b16 %v3805
    %v3894 = vunpack.c.l.b16 %v3806
    %v3895 = vunpack.c.l.b16 %v3807
    %v3896 = vunpack.c.l.b16 %v3808
    %v3897 = vunpack.c.l.b16 %v3809
    %v3898 = vunpack.c.l.b16 %v3810
    %v3899 = vunpack.c.l.b16 %v3811
    %v3900 = vunpack.c.l.b16 %v3812
    %v3901 = vunpack.c.l.b16 %v3813
    %v3902 = vunpack.c.l.b16 %v3814
    %v3903 = vunpack.c.l.b16 %v3815
    %v3904 = vunpack.c.l.b16 %v3816
    %v3905 = vunpack.c.l.b16 %v3817
    %v3906 = vunpack.c.l.b16 %v3834
    %v3907 = vunpack.c.l.b16 %v3835
    %v3908 = vpack.c.b16 %v3881, %v3880
    %v3909 = vpack.c.b16 %v3883, %v3882
    %v3910 = vpack.c.b16 %v3885, %v3884
    %v3911 = vpack.c.b16 %v3887, %v3886
    %v3912 = vpack.c.b16 %v3889, %v3888
    %v3913 = vpack.c.b16 %v3891, %v3890
    %v3914 = vpack.c.b16 %v3893, %v3892
    %v3915 = vpack.c.b16 %v3895, %v3894
    %v3916 = vpack.c.b16 %v3897, %v3896
    %v3917 = vpack.c.b16 %v3899, %v3898
    %v3918 = vpack.c.b16 %v3901, %v3900
    %v3919 = vpack.c.b16 %v3903, %v3902
    %v3920 = vpack.c.b16 %v3905, %v3904
    %v3921 = vpack.c.b16 %v3907, %v3906
    %v3952 = vunpack.c.l.b16 %v3836
    %v3953 = vunpack.c.l.b16 %v3837
    %v3954 = vunpack.c.l.b16 %v3838
    %v3955 = vunpack.c.l.b16 %v3839
    %v3956 = vunpack.c.l.b16 %v3840
    %v3957 = vunpack.c.l.b16 %v3841
    %v3958 = vunpack.c.l.b16 %v3842
    %v3959 = vunpack.c.l.b16 %v3843
    %v3960 = vunpack.c.l.b16 %v3844
    %v3961 = vunpack.c.l.b16 %v3845
    %v3962 = vunpack.c.l.b16 %v3846
    %v3963 = vunpack.c.l.b16 %v3847
    %v3964 = vunpack.c.l.b16 %v3848
    %v3965 = vunpack.c.l.b16 %v3849
    %v3966 = vunpack.c.l.b16 %v3850
    %v3967 = vunpack.c.l.b16 %v3851
    %v3968 = vpack.c.b16 %v3953, %v3952
    %v3969 = vpack.c.b16 %v3955, %v3954
    %v3970 = vpack.c.b16 %v3957, %v3956
    %v3971 = vpack.c.b16 %v3959, %v3958
    %v3972 = vpack.c.b16 %v3961, %v3960
    %v3973 = vpack.c.b16 %v3963, %v3962
    %v3974 = vpack.c.b16 %v3965, %v3964
    %v3975 = vpack.c.b16 %v3967, %v3966
    %3984 = vmatpush.bf16.msra.mxu0 %v3975
    %3985 = vmatpush.bf16.msra.mxu0 %v3974
    %3986 = vmatpush.bf16.msra.mxu0 %v3973
    %3987 = vmatpush.bf16.msra.mxu0 %v3972
    %3988 = vmatpush.bf16.msra.mxu0 %v3971
    %3989 = vmatpush.bf16.msra.mxu0 %v3970
    %3990 = vmatpush.bf16.msra.mxu0 %v3969
    %3991 = vmatpush.bf16.msra.mxu0 %v3968
    %3992 = vmatmul.bf16.gmra.mxu0 %v3908
    %v3993 = vpop.f32.mrf.mxu0
    %v3994 = vadd.f32 0.0, %v3993
    %v3995 = vpop.f32.mrf.mxu0
    %v3996 = vadd.f32 0.0, %v3995
    %3997 = vmatmul.bf16.gmra.mxu0 %v3909
    %v3998 = vpop.f32.mrf.mxu0
    %v3999 = vadd.f32 0.0, %v3998
    %v4000 = vpop.f32.mrf.mxu0
    %v4001 = vadd.f32 0.0, %v4000
    %4002 = vmatmul.bf16.gmra.mxu0 %v3910
    %v4003 = vpop.f32.mrf.mxu0
    %v4004 = vadd.f32 0.0, %v4003
    %v4005 = vpop.f32.mrf.mxu0
    %v4006 = vadd.f32 0.0, %v4005
    %4007 = vmatmul.bf16.gmra.mxu0 %v3911
    %v4008 = vpop.f32.mrf.mxu0
    %v4009 = vadd.f32 0.0, %v4008
    %v4010 = vpop.f32.mrf.mxu0
    %v4011 = vadd.f32 0.0, %v4010
    %4012 = vmatmul.bf16.gmra.mxu0 %v3912
    %v4013 = vpop.f32.mrf.mxu0
    %v4014 = vadd.f32 0.0, %v4013
    %v4015 = vpop.f32.mrf.mxu0
    %v4016 = vadd.f32 0.0, %v4015
    %4017 = vmatmul.bf16.gmra.mxu0 %v3913
    %v4018 = vpop.f32.mrf.mxu0
    %v4019 = vadd.f32 0.0, %v4018
    %v4020 = vpop.f32.mrf.mxu0
    %v4021 = vadd.f32 0.0, %v4020
    %4022 = vmatmul.bf16.gmra.mxu0 %v3914
    %v4023 = vpop.f32.mrf.mxu0
    %v4024 = vadd.f32 0.0, %v4023
    %v4025 = vpop.f32.mrf.mxu0
    %v4026 = vadd.f32 0.0, %v4025
    %4027 = vmatmul.bf16.gmra.mxu0 %v3915
    %v4028 = vpop.f32.mrf.mxu0
    %v4029 = vadd.f32 0.0, %v4028
    %v4030 = vpop.f32.mrf.mxu0
    %v4031 = vadd.f32 0.0, %v4030
    %4032 = vmatmul.bf16.gmra.mxu0 %v3916
    %v4033 = vpop.f32.mrf.mxu0
    %v4034 = vadd.f32 0.0, %v4033
    %v4035 = vpop.f32.mrf.mxu0
    %v4036 = vadd.f32 0.0, %v4035
    %4037 = vmatmul.bf16.gmra.mxu0 %v3917
    %v4038 = vpop.f32.mrf.mxu0
    %v4039 = vadd.f32 0.0, %v4038
    %v4040 = vpop.f32.mrf.mxu0
    %v4041 = vadd.f32 0.0, %v4040
    %4042 = vmatmul.bf16.gmra.mxu0 %v3918
    %v4043 = vpop.f32.mrf.mxu0
    %v4044 = vadd.f32 0.0, %v4043
    %v4045 = vpop.f32.mrf.mxu0
    %v4046 = vadd.f32 0.0, %v4045
    %4047 = vmatmul.bf16.gmra.mxu0 %v3919
    %v4048 = vpop.f32.mrf.mxu0
    %v4049 = vadd.f32 0.0, %v4048
    %v4050 = vpop.f32.mrf.mxu0
    %v4051 = vadd.f32 0.0, %v4050
    %4052 = vmatmul.bf16.gmra.mxu0 %v3920
    %v4053 = vpop.f32.mrf.mxu0
    %v4054 = vadd.f32 0.0, %v4053
    %v4055 = vpop.f32.mrf.mxu0
    %v4056 = vadd.f32 0.0, %v4055
    %4057 = vmatmul.bf16.gmra.mxu0 %v3921
    %v4058 = vpop.f32.mrf.mxu0
    %v4059 = vadd.f32 0.0, %v4058
    %v4060 = vpop.f32.mrf.mxu0
    %v4061 = vadd.f32 0.0, %v4060
    %4062 = vdwg.mxu0
    %v4065 = vunpack.c.l.b16 %v3790
    %v4066 = vunpack.c.l.b16 %v3791
    %v4067 = vpack.c.b16 %v4066, %v4065
    %v4085 = vunpack.c.l.b16 %v3818
    %v4086 = vunpack.c.l.b16 %v3819
    %v4087 = vunpack.c.l.b16 %v3820
    %v4088 = vunpack.c.l.b16 %v3821
    %v4089 = vunpack.c.l.b16 %v3822
    %v4090 = vunpack.c.l.b16 %v3823
    %v4091 = vunpack.c.l.b16 %v3824
    %v4092 = vunpack.c.l.b16 %v3825
    %v4093 = vunpack.c.l.b16 %v3826
    %v4094 = vunpack.c.l.b16 %v3827
    %v4095 = vunpack.c.l.b16 %v3828
    %v4096 = vunpack.c.l.b16 %v3829
    %v4097 = vunpack.c.l.b16 %v3830
    %v4098 = vunpack.c.l.b16 %v3831
    %v4099 = vunpack.c.l.b16 %v3832
    %v4100 = vunpack.c.l.b16 %v3833
    %v4101 = vpack.c.b16 %v4086, %v4085
    %v4102 = vpack.c.b16 %v4088, %v4087
    %v4103 = vpack.c.b16 %v4090, %v4089
    %v4104 = vpack.c.b16 %v4092, %v4091
    %v4105 = vpack.c.b16 %v4094, %v4093
    %v4106 = vpack.c.b16 %v4096, %v4095
    %v4107 = vpack.c.b16 %v4098, %v4097
    %v4108 = vpack.c.b16 %v4100, %v4099
    %4117 = vmatpush.bf16.msra.mxu0 %v4108
    %4118 = vmatpush.bf16.msra.mxu0 %v4107
    %4119 = vmatpush.bf16.msra.mxu0 %v4106
    %4120 = vmatpush.bf16.msra.mxu0 %v4105
    %4121 = vmatpush.bf16.msra.mxu0 %v4104
    %4122 = vmatpush.bf16.msra.mxu0 %v4103
    %4123 = vmatpush.bf16.msra.mxu0 %v4102
    %4124 = vmatpush.bf16.msra.mxu0 %v4101
    %4125 = vmatmul.bf16.gmra.mxu0 %v4067
    %v4126 = vpop.f32.mrf.mxu0
    %v4127 = vadd.f32 %v3994, %v4126
    %v4128 = vpop.f32.mrf.mxu0
    %v4129 = vadd.f32 %v3996, %v4128
    %4130 = vmatmul.bf16.gmra.mxu0 %v3908
    %v4131 = vpop.f32.mrf.mxu0
    %v4132 = vadd.f32 %v3999, %v4131
    %v4133 = vpop.f32.mrf.mxu0
    %v4134 = vadd.f32 %v4001, %v4133
    %4135 = vmatmul.bf16.gmra.mxu0 %v3909
    %v4136 = vpop.f32.mrf.mxu0
    %v4137 = vadd.f32 %v4004, %v4136
    %v4138 = vpop.f32.mrf.mxu0
    %v4139 = vadd.f32 %v4006, %v4138
    %4140 = vmatmul.bf16.gmra.mxu0 %v3910
    %v4141 = vpop.f32.mrf.mxu0
    %v4142 = vadd.f32 %v4009, %v4141
    %v4143 = vpop.f32.mrf.mxu0
    %v4144 = vadd.f32 %v4011, %v4143
    %4145 = vmatmul.bf16.gmra.mxu0 %v3911
    %v4146 = vpop.f32.mrf.mxu0
    %v4147 = vadd.f32 %v4014, %v4146
    %v4148 = vpop.f32.mrf.mxu0
    %v4149 = vadd.f32 %v4016, %v4148
    %4150 = vmatmul.bf16.gmra.mxu0 %v3912
    %v4151 = vpop.f32.mrf.mxu0
    %v4152 = vadd.f32 %v4019, %v4151
    %v4153 = vpop.f32.mrf.mxu0
    %v4154 = vadd.f32 %v4021, %v4153
    %4155 = vmatmul.bf16.gmra.mxu0 %v3913
    %v4156 = vpop.f32.mrf.mxu0
    %v4157 = vadd.f32 %v4024, %v4156
    %v4158 = vpop.f32.mrf.mxu0
    %v4159 = vadd.f32 %v4026, %v4158
    %4160 = vmatmul.bf16.gmra.mxu0 %v3914
    %v4161 = vpop.f32.mrf.mxu0
    %v4162 = vadd.f32 %v4029, %v4161
    %v4163 = vpop.f32.mrf.mxu0
    %v4164 = vadd.f32 %v4031, %v4163
    %4165 = vmatmul.bf16.gmra.mxu0 %v3915
    %v4166 = vpop.f32.mrf.mxu0
    %v4167 = vadd.f32 %v4034, %v4166
    %v4168 = vpop.f32.mrf.mxu0
    %v4169 = vadd.f32 %v4036, %v4168
    %4170 = vmatmul.bf16.gmra.mxu0 %v3916
    %v4171 = vpop.f32.mrf.mxu0
    %v4172 = vadd.f32 %v4039, %v4171
    %v4173 = vpop.f32.mrf.mxu0
    %v4174 = vadd.f32 %v4041, %v4173
    %4175 = vmatmul.bf16.gmra.mxu0 %v3917
    %v4176 = vpop.f32.mrf.mxu0
    %v4177 = vadd.f32 %v4044, %v4176
    %v4178 = vpop.f32.mrf.mxu0
    %v4179 = vadd.f32 %v4046, %v4178
    %4180 = vmatmul.bf16.gmra.mxu0 %v3918
    %v4181 = vpop.f32.mrf.mxu0
    %v4182 = vadd.f32 %v4049, %v4181
    %v4183 = vpop.f32.mrf.mxu0
    %v4184 = vadd.f32 %v4051, %v4183
    %4185 = vmatmul.bf16.gmra.mxu0 %v3919
    %v4186 = vpop.f32.mrf.mxu0
    %v4187 = vadd.f32 %v4054, %v4186
    %v4188 = vpop.f32.mrf.mxu0
    %v4189 = vadd.f32 %v4056, %v4188
    %4190 = vmatmul.bf16.gmra.mxu0 %v3920
    %v4191 = vpop.f32.mrf.mxu0
    %v4192 = vadd.f32 %v4059, %v4191
    %v4193 = vpop.f32.mrf.mxu0
    %v4194 = vadd.f32 %v4061, %v4193
    %4195 = vdwg.mxu0
    %v4196 = vld [vmem:[#allocation4 + $0x10] sm:$0xf]
    %v4197 = vld [vmem:[#allocation4 + $0x14] sm:$0xf]
    %v4198 = vld [vmem:[#allocation4 + $0x18] sm:$0xf]
    %v4199 = vld [vmem:[#allocation4 + $0x1c] sm:$0xf]
    %v4200 = vld [vmem:[#allocation4 + $0x20] sm:$0xf]
    %v4201 = vld [vmem:[#allocation4 + $0x24] sm:$0xf]
    %v4202 = vld [vmem:[#allocation4 + $0x28] sm:$0xf]
    %v4203 = vld [vmem:[#allocation4 + $0x2c] sm:$0xf]
    %v4204 = vld [vmem:[#allocation4 + $0x30] sm:$0xf]
    %v4205 = vld [vmem:[#allocation4 + $0x34] sm:$0xf]
    %v4206 = vld [vmem:[#allocation4 + $0x38] sm:$0xf]
    %v4207 = vld [vmem:[#allocation4 + $0x3c] sm:$0xf]
    %v4208 = vld [vmem:[#allocation4 + $0x40] sm:$0xf]
    %v4209 = vld [vmem:[#allocation4 + $0x44] sm:$0xf]
    %v4210 = vld [vmem:[#allocation4 + $0x48] sm:$0xf]
    %v4211 = vld [vmem:[#allocation4 + $0x4c] sm:$0xf]
    %v4212 = vld [vmem:[#allocation4 + $0x50] sm:$0xf]
    %v4213 = vld [vmem:[#allocation4 + $0x54] sm:$0xf]
    %v4214 = vld [vmem:[#allocation4 + $0x58] sm:$0xf]
    %v4215 = vld [vmem:[#allocation4 + $0x5c] sm:$0xf]
    %v4216 = vld [vmem:[#allocation4 + $0x60] sm:$0xf]
    %v4217 = vld [vmem:[#allocation4 + $0x64] sm:$0xf]
    %v4218 = vld [vmem:[#allocation4 + $0x68] sm:$0xf]
    %v4219 = vld [vmem:[#allocation4 + $0x6c] sm:$0xf]
    %v4220 = vld [vmem:[#allocation4 + $0x70] sm:$0xf]
    %v4221 = vld [vmem:[#allocation4 + $0x74] sm:$0xf]
    %v4222 = vld [vmem:[#allocation4 + $0x78] sm:$0xf]
    %v4223 = vld [vmem:[#allocation4 + $0x7c] sm:$0xf]
    %v4224 = vld [vmem:[%s3 + $0x80] sm:$0xf]
    %v4225 = vld [vmem:[%s3 + $0x84] sm:$0xf]
    %v4226 = vld [vmem:[%s3 + $0x88] sm:$0xf]
    %v4227 = vld [vmem:[%s3 + $0x8c] sm:$0xf]
    %v4228 = vld [vmem:[%s3 + $0x90] sm:$0xf]
    %v4229 = vld [vmem:[%s3 + $0x94] sm:$0xf]
    %v4230 = vld [vmem:[%s3 + $0x98] sm:$0xf]
    %v4231 = vld [vmem:[%s3 + $0x9c] sm:$0xf]
    %v4232 = vld [vmem:[%s3 + $0xa0] sm:$0xf]
    %v4233 = vld [vmem:[%s3 + $0xa4] sm:$0xf]
    %v4234 = vld [vmem:[%s3 + $0xa8] sm:$0xf]
    %v4235 = vld [vmem:[%s3 + $0xac] sm:$0xf]
    %v4236 = vld [vmem:[%s3 + $0xb0] sm:$0xf]
    %v4237 = vld [vmem:[%s3 + $0xb4] sm:$0xf]
    %v4238 = vld [vmem:[%s3 + $0xb8] sm:$0xf]
    %v4239 = vld [vmem:[%s3 + $0xbc] sm:$0xf]
    %v4268 = vunpack.c.l.b16 %v4196
    %v4269 = vunpack.c.l.b16 %v4197
    %v4270 = vunpack.c.l.b16 %v4198
    %v4271 = vunpack.c.l.b16 %v4199
    %v4272 = vunpack.c.l.b16 %v4200
    %v4273 = vunpack.c.l.b16 %v4201
    %v4274 = vunpack.c.l.b16 %v4202
    %v4275 = vunpack.c.l.b16 %v4203
    %v4276 = vunpack.c.l.b16 %v4204
    %v4277 = vunpack.c.l.b16 %v4205
    %v4278 = vunpack.c.l.b16 %v4206
    %v4279 = vunpack.c.l.b16 %v4207
    %v4280 = vunpack.c.l.b16 %v4208
    %v4281 = vunpack.c.l.b16 %v4209
    %v4282 = vunpack.c.l.b16 %v4210
    %v4283 = vunpack.c.l.b16 %v4211
    %v4284 = vunpack.c.l.b16 %v4212
    %v4285 = vunpack.c.l.b16 %v4213
    %v4286 = vunpack.c.l.b16 %v4214
    %v4287 = vunpack.c.l.b16 %v4215
    %v4288 = vunpack.c.l.b16 %v4216
    %v4289 = vunpack.c.l.b16 %v4217
    %v4290 = vunpack.c.l.b16 %v4218
    %v4291 = vunpack.c.l.b16 %v4219
    %v4292 = vunpack.c.l.b16 %v4220
    %v4293 = vunpack.c.l.b16 %v4221
    %v4294 = vunpack.c.l.b16 %v4222
    %v4295 = vunpack.c.l.b16 %v4223
    %v4296 = vpack.c.b16 %v4269, %v4268
    %v4297 = vpack.c.b16 %v4271, %v4270
    %v4298 = vpack.c.b16 %v4273, %v4272
    %v4299 = vpack.c.b16 %v4275, %v4274
    %v4300 = vpack.c.b16 %v4277, %v4276
    %v4301 = vpack.c.b16 %v4279, %v4278
    %v4302 = vpack.c.b16 %v4281, %v4280
    %v4303 = vpack.c.b16 %v4283, %v4282
    %v4304 = vpack.c.b16 %v4285, %v4284
    %v4305 = vpack.c.b16 %v4287, %v4286
    %v4306 = vpack.c.b16 %v4289, %v4288
    %v4307 = vpack.c.b16 %v4291, %v4290
    %v4308 = vpack.c.b16 %v4293, %v4292
    %v4309 = vpack.c.b16 %v4295, %v4294
    %v4340 = vunpack.c.l.b16 %v4224
    %v4341 = vunpack.c.l.b16 %v4225
    %v4342 = vunpack.c.l.b16 %v4226
    %v4343 = vunpack.c.l.b16 %v4227
    %v4344 = vunpack.c.l.b16 %v4228
    %v4345 = vunpack.c.l.b16 %v4229
    %v4346 = vunpack.c.l.b16 %v4230
    %v4347 = vunpack.c.l.b16 %v4231
    %v4348 = vunpack.c.l.b16 %v4232
    %v4349 = vunpack.c.l.b16 %v4233
    %v4350 = vunpack.c.l.b16 %v4234
    %v4351 = vunpack.c.l.b16 %v4235
    %v4352 = vunpack.c.l.b16 %v4236
    %v4353 = vunpack.c.l.b16 %v4237
    %v4354 = vunpack.c.l.b16 %v4238
    %v4355 = vunpack.c.l.b16 %v4239
    %v4356 = vpack.c.b16 %v4341, %v4340
    %v4357 = vpack.c.b16 %v4343, %v4342
    %v4358 = vpack.c.b16 %v4345, %v4344
    %v4359 = vpack.c.b16 %v4347, %v4346
    %v4360 = vpack.c.b16 %v4349, %v4348
    %v4361 = vpack.c.b16 %v4351, %v4350
    %v4362 = vpack.c.b16 %v4353, %v4352
    %v4363 = vpack.c.b16 %v4355, %v4354
    %4372 = vmatpush.bf16.msra.mxu0 %v4363
    %4373 = vmatpush.bf16.msra.mxu0 %v4362
    %4374 = vmatpush.bf16.msra.mxu0 %v4361
    %4375 = vmatpush.bf16.msra.mxu0 %v4360
    %4376 = vmatpush.bf16.msra.mxu0 %v4359
    %4377 = vmatpush.bf16.msra.mxu0 %v4358
    %4378 = vmatpush.bf16.msra.mxu0 %v4357
    %4379 = vmatpush.bf16.msra.mxu0 %v4356
    %4380 = vmatmul.bf16.gmra.mxu0 %v4296
    %v4381 = vpop.f32.mrf.mxu0
    %v4382 = vadd.f32 0.0, %v4381
    %v4383 = vpop.f32.mrf.mxu0
    %v4384 = vadd.f32 0.0, %v4383
    %4385 = vmatmul.bf16.gmra.mxu0 %v4297
    %v4386 = vpop.f32.mrf.mxu0
    %v4387 = vadd.f32 0.0, %v4386
    %v4388 = vpop.f32.mrf.mxu0
    %v4389 = vadd.f32 0.0, %v4388
    %4390 = vmatmul.bf16.gmra.mxu0 %v4298
    %v4391 = vpop.f32.mrf.mxu0
    %v4392 = vadd.f32 0.0, %v4391
    %v4393 = vpop.f32.mrf.mxu0
    %v4394 = vadd.f32 0.0, %v4393
    %4395 = vmatmul.bf16.gmra.mxu0 %v4299
    %v4396 = vpop.f32.mrf.mxu0
    %v4397 = vadd.f32 0.0, %v4396
    %v4398 = vpop.f32.mrf.mxu0
    %v4399 = vadd.f32 0.0, %v4398
    %4400 = vmatmul.bf16.gmra.mxu0 %v4300
    %v4401 = vpop.f32.mrf.mxu0
    %v4402 = vadd.f32 0.0, %v4401
    %v4403 = vpop.f32.mrf.mxu0
    %v4404 = vadd.f32 0.0, %v4403
    %4405 = vmatmul.bf16.gmra.mxu0 %v4301
    %v4406 = vpop.f32.mrf.mxu0
    %v4407 = vadd.f32 0.0, %v4406
    %v4408 = vpop.f32.mrf.mxu0
    %v4409 = vadd.f32 0.0, %v4408
    %4410 = vmatmul.bf16.gmra.mxu0 %v4302
    %v4411 = vpop.f32.mrf.mxu0
    %v4412 = vadd.f32 0.0, %v4411
    %v4413 = vpop.f32.mrf.mxu0
    %v4414 = vadd.f32 0.0, %v4413
    %4415 = vmatmul.bf16.gmra.mxu0 %v4303
    %v4416 = vpop.f32.mrf.mxu0
    %v4417 = vadd.f32 0.0, %v4416
    %v4418 = vpop.f32.mrf.mxu0
    %v4419 = vadd.f32 0.0, %v4418
    %4420 = vmatmul.bf16.gmra.mxu0 %v4304
    %v4421 = vpop.f32.mrf.mxu0
    %v4422 = vadd.f32 0.0, %v4421
    %v4423 = vpop.f32.mrf.mxu0
    %v4424 = vadd.f32 0.0, %v4423
    %4425 = vmatmul.bf16.gmra.mxu0 %v4305
    %v4426 = vpop.f32.mrf.mxu0
    %v4427 = vadd.f32 0.0, %v4426
    %v4428 = vpop.f32.mrf.mxu0
    %v4429 = vadd.f32 0.0, %v4428
    %4430 = vmatmul.bf16.gmra.mxu0 %v4306
    %v4431 = vpop.f32.mrf.mxu0
    %v4432 = vadd.f32 0.0, %v4431
    %v4433 = vpop.f32.mrf.mxu0
    %v4434 = vadd.f32 0.0, %v4433
    %4435 = vmatmul.bf16.gmra.mxu0 %v4307
    %v4436 = vpop.f32.mrf.mxu0
    %v4437 = vadd.f32 0.0, %v4436
    %v4438 = vpop.f32.mrf.mxu0
    %v4439 = vadd.f32 0.0, %v4438
    %4440 = vmatmul.bf16.gmra.mxu0 %v4308
    %v4441 = vpop.f32.mrf.mxu0
    %v4442 = vadd.f32 0.0, %v4441
    %v4443 = vpop.f32.mrf.mxu0
    %v4444 = vadd.f32 0.0, %v4443
    %4445 = vmatmul.bf16.gmra.mxu0 %v4309
    %v4446 = vpop.f32.mrf.mxu0
    %v4447 = vadd.f32 0.0, %v4446
    %v4448 = vpop.f32.mrf.mxu0
    %v4449 = vadd.f32 0.0, %v4448
    %4450 = vdwg.mxu0
    %v4451 = vadd.f32 %v4127, %v4382
    %v4452 = vadd.f32 %v4129, %v4384
    %v4453 = vadd.f32 %v4132, %v4387
    %v4454 = vadd.f32 %v4134, %v4389
    %v4455 = vadd.f32 %v4137, %v4392
    %v4456 = vadd.f32 %v4139, %v4394
    %v4457 = vadd.f32 %v4142, %v4397
    %v4458 = vadd.f32 %v4144, %v4399
    %v4459 = vadd.f32 %v4147, %v4402
    %v4460 = vadd.f32 %v4149, %v4404
    %v4461 = vadd.f32 %v4152, %v4407
    %v4462 = vadd.f32 %v4154, %v4409
    %v4463 = vadd.f32 %v4157, %v4412
    %v4464 = vadd.f32 %v4159, %v4414
    %v4465 = vadd.f32 %v4162, %v4417
    %v4466 = vadd.f32 %v4164, %v4419
    %v4467 = vadd.f32 %v4167, %v4422
    %v4468 = vadd.f32 %v4169, %v4424
    %v4469 = vadd.f32 %v4172, %v4427
    %v4470 = vadd.f32 %v4174, %v4429
    %v4471 = vadd.f32 %v4177, %v4432
    %v4472 = vadd.f32 %v4179, %v4434
    %v4473 = vadd.f32 %v4182, %v4437
    %v4474 = vadd.f32 %v4184, %v4439
    %v4475 = vadd.f32 %v4187, %v4442
    %v4476 = vadd.f32 %v4189, %v4444
    %v4477 = vadd.f32 %v4192, %v4447
    %v4478 = vadd.f32 %v4194, %v4449
    %v4479 = vld [vmem:[#allocation4 + $0x18] sm:$0xf]
    %v4480 = vld [vmem:[#allocation4 + $0x1c] sm:$0xf]
    %v4481 = vld [vmem:[#allocation4 + $0x20] sm:$0xf]
    %v4482 = vld [vmem:[#allocation4 + $0x24] sm:$0xf]
    %v4483 = vld [vmem:[#allocation4 + $0x28] sm:$0xf]
    %v4484 = vld [vmem:[#allocation4 + $0x2c] sm:$0xf]
    %v4485 = vld [vmem:[#allocation4 + $0x30] sm:$0xf]
    %v4486 = vld [vmem:[#allocation4 + $0x34] sm:$0xf]
    %v4487 = vld [vmem:[#allocation4 + $0x38] sm:$0xf]
    %v4488 = vld [vmem:[#allocation4 + $0x3c] sm:$0xf]
    %v4489 = vld [vmem:[#allocation4 + $0x40] sm:$0xf]
    %v4490 = vld [vmem:[#allocation4 + $0x44] sm:$0xf]
    %v4491 = vld [vmem:[#allocation4 + $0x48] sm:$0xf]
    %v4492 = vld [vmem:[#allocation4 + $0x4c] sm:$0xf]
    %v4493 = vld [vmem:[#allocation4 + $0x50] sm:$0xf]
    %v4494 = vld [vmem:[#allocation4 + $0x54] sm:$0xf]
    %v4495 = vld [vmem:[#allocation4 + $0x58] sm:$0xf]
    %v4496 = vld [vmem:[#allocation4 + $0x5c] sm:$0xf]
    %v4497 = vld [vmem:[#allocation4 + $0x60] sm:$0xf]
    %v4498 = vld [vmem:[#allocation4 + $0x64] sm:$0xf]
    %v4499 = vld [vmem:[#allocation4 + $0x68] sm:$0xf]
    %v4500 = vld [vmem:[#allocation4 + $0x6c] sm:$0xf]
    %v4501 = vld [vmem:[#allocation4 + $0x70] sm:$0xf]
    %v4502 = vld [vmem:[#allocation4 + $0x74] sm:$0xf]
    %v4503 = vld [vmem:[#allocation4 + $0x78] sm:$0xf]
    %v4504 = vld [vmem:[#allocation4 + $0x7c] sm:$0xf]
    %v4505 = vld [vmem:[#allocation4 + $0x80] sm:$0xf]
    %v4506 = vld [vmem:[#allocation4 + $0x84] sm:$0xf]
    %v4507 = vld [vmem:[%s3 + $0xc0] sm:$0xf]
    %v4508 = vld [vmem:[%s3 + $0xc4] sm:$0xf]
    %v4509 = vld [vmem:[%s3 + $0xc8] sm:$0xf]
    %v4510 = vld [vmem:[%s3 + $0xcc] sm:$0xf]
    %v4511 = vld [vmem:[%s3 + $0xd0] sm:$0xf]
    %v4512 = vld [vmem:[%s3 + $0xd4] sm:$0xf]
    %v4513 = vld [vmem:[%s3 + $0xd8] sm:$0xf]
    %v4514 = vld [vmem:[%s3 + $0xdc] sm:$0xf]
    %v4515 = vld [vmem:[%s3 + $0xe0] sm:$0xf]
    %v4516 = vld [vmem:[%s3 + $0xe4] sm:$0xf]
    %v4517 = vld [vmem:[%s3 + $0xe8] sm:$0xf]
    %v4518 = vld [vmem:[%s3 + $0xec] sm:$0xf]
    %v4519 = vld [vmem:[%s3 + $0xf0] sm:$0xf]
    %v4520 = vld [vmem:[%s3 + $0xf4] sm:$0xf]
    %v4521 = vld [vmem:[%s3 + $0xf8] sm:$0xf]
    %v4522 = vld [vmem:[%s3 + $0xfc] sm:$0xf]
    %v4551 = vunpack.c.l.b16 %v4479
    %v4552 = vunpack.c.l.b16 %v4480
    %v4553 = vunpack.c.l.b16 %v4481
    %v4554 = vunpack.c.l.b16 %v4482
    %v4555 = vunpack.c.l.b16 %v4483
    %v4556 = vunpack.c.l.b16 %v4484
    %v4557 = vunpack.c.l.b16 %v4485
    %v4558 = vunpack.c.l.b16 %v4486
    %v4559 = vunpack.c.l.b16 %v4487
    %v4560 = vunpack.c.l.b16 %v4488
    %v4561 = vunpack.c.l.b16 %v4489
    %v4562 = vunpack.c.l.b16 %v4490
    %v4563 = vunpack.c.l.b16 %v4491
    %v4564 = vunpack.c.l.b16 %v4492
    %v4565 = vunpack.c.l.b16 %v4493
    %v4566 = vunpack.c.l.b16 %v4494
    %v4567 = vunpack.c.l.b16 %v4495
    %v4568 = vunpack.c.l.b16 %v4496
    %v4569 = vunpack.c.l.b16 %v4497
    %v4570 = vunpack.c.l.b16 %v4498
    %v4571 = vunpack.c.l.b16 %v4499
    %v4572 = vunpack.c.l.b16 %v4500
    %v4573 = vunpack.c.l.b16 %v4501
    %v4574 = vunpack.c.l.b16 %v4502
    %v4575 = vunpack.c.l.b16 %v4503
    %v4576 = vunpack.c.l.b16 %v4504
    %v4577 = vunpack.c.l.b16 %v4505
    %v4578 = vunpack.c.l.b16 %v4506
    %v4579 = vpack.c.b16 %v4552, %v4551
    %v4580 = vpack.c.b16 %v4554, %v4553
    %v4581 = vpack.c.b16 %v4556, %v4555
    %v4582 = vpack.c.b16 %v4558, %v4557
    %v4583 = vpack.c.b16 %v4560, %v4559
    %v4584 = vpack.c.b16 %v4562, %v4561
    %v4585 = vpack.c.b16 %v4564, %v4563
    %v4586 = vpack.c.b16 %v4566, %v4565
    %v4587 = vpack.c.b16 %v4568, %v4567
    %v4588 = vpack.c.b16 %v4570, %v4569
    %v4589 = vpack.c.b16 %v4572, %v4571
    %v4590 = vpack.c.b16 %v4574, %v4573
    %v4591 = vpack.c.b16 %v4576, %v4575
    %v4592 = vpack.c.b16 %v4578, %v4577
    %v4623 = vunpack.c.l.b16 %v4507
    %v4624 = vunpack.c.l.b16 %v4508
    %v4625 = vunpack.c.l.b16 %v4509
    %v4626 = vunpack.c.l.b16 %v4510
    %v4627 = vunpack.c.l.b16 %v4511
    %v4628 = vunpack.c.l.b16 %v4512
    %v4629 = vunpack.c.l.b16 %v4513
    %v4630 = vunpack.c.l.b16 %v4514
    %v4631 = vunpack.c.l.b16 %v4515
    %v4632 = vunpack.c.l.b16 %v4516
    %v4633 = vunpack.c.l.b16 %v4517
    %v4634 = vunpack.c.l.b16 %v4518
    %v4635 = vunpack.c.l.b16 %v4519
    %v4636 = vunpack.c.l.b16 %v4520
    %v4637 = vunpack.c.l.b16 %v4521
    %v4638 = vunpack.c.l.b16 %v4522
    %v4639 = vpack.c.b16 %v4624, %v4623
    %v4640 = vpack.c.b16 %v4626, %v4625
    %v4641 = vpack.c.b16 %v4628, %v4627
    %v4642 = vpack.c.b16 %v4630, %v4629
    %v4643 = vpack.c.b16 %v4632, %v4631
    %v4644 = vpack.c.b16 %v4634, %v4633
    %v4645 = vpack.c.b16 %v4636, %v4635
    %v4646 = vpack.c.b16 %v4638, %v4637
    %4655 = vmatpush.bf16.msra.mxu0 %v4646
    %4656 = vmatpush.bf16.msra.mxu0 %v4645
    %4657 = vmatpush.bf16.msra.mxu0 %v4644
    %4658 = vmatpush.bf16.msra.mxu0 %v4643
    %4659 = vmatpush.bf16.msra.mxu0 %v4642
    %4660 = vmatpush.bf16.msra.mxu0 %v4641
    %4661 = vmatpush.bf16.msra.mxu0 %v4640
    %4662 = vmatpush.bf16.msra.mxu0 %v4639
    %4663 = vmatmul.bf16.gmra.mxu0 %v4579
    %v4664 = vpop.f32.mrf.mxu0
    %v4665 = vadd.f32 0.0, %v4664
    %v4666 = vpop.f32.mrf.mxu0
    %v4667 = vadd.f32 0.0, %v4666
    %4668 = vmatmul.bf16.gmra.mxu0 %v4580
    %v4669 = vpop.f32.mrf.mxu0
    %v4670 = vadd.f32 0.0, %v4669
    %v4671 = vpop.f32.mrf.mxu0
    %v4672 = vadd.f32 0.0, %v4671
    %4673 = vmatmul.bf16.gmra.mxu0 %v4581
    %v4674 = vpop.f32.mrf.mxu0
    %v4675 = vadd.f32 0.0, %v4674
    %v4676 = vpop.f32.mrf.mxu0
    %v4677 = vadd.f32 0.0, %v4676
    %4678 = vmatmul.bf16.gmra.mxu0 %v4582
    %v4679 = vpop.f32.mrf.mxu0
    %v4680 = vadd.f32 0.0, %v4679
    %v4681 = vpop.f32.mrf.mxu0
    %v4682 = vadd.f32 0.0, %v4681
    %4683 = vmatmul.bf16.gmra.mxu0 %v4583
    %v4684 = vpop.f32.mrf.mxu0
    %v4685 = vadd.f32 0.0, %v4684
    %v4686 = vpop.f32.mrf.mxu0
    %v4687 = vadd.f32 0.0, %v4686
    %4688 = vmatmul.bf16.gmra.mxu0 %v4584
    %v4689 = vpop.f32.mrf.mxu0
    %v4690 = vadd.f32 0.0, %v4689
    %v4691 = vpop.f32.mrf.mxu0
    %v4692 = vadd.f32 0.0, %v4691
    %4693 = vmatmul.bf16.gmra.mxu0 %v4585
    %v4694 = vpop.f32.mrf.mxu0
    %v4695 = vadd.f32 0.0, %v4694
    %v4696 = vpop.f32.mrf.mxu0
    %v4697 = vadd.f32 0.0, %v4696
    %4698 = vmatmul.bf16.gmra.mxu0 %v4586
    %v4699 = vpop.f32.mrf.mxu0
    %v4700 = vadd.f32 0.0, %v4699
    %v4701 = vpop.f32.mrf.mxu0
    %v4702 = vadd.f32 0.0, %v4701
    %4703 = vmatmul.bf16.gmra.mxu0 %v4587
    %v4704 = vpop.f32.mrf.mxu0
    %v4705 = vadd.f32 0.0, %v4704
    %v4706 = vpop.f32.mrf.mxu0
    %v4707 = vadd.f32 0.0, %v4706
    %4708 = vmatmul.bf16.gmra.mxu0 %v4588
    %v4709 = vpop.f32.mrf.mxu0
    %v4710 = vadd.f32 0.0, %v4709
    %v4711 = vpop.f32.mrf.mxu0
    %v4712 = vadd.f32 0.0, %v4711
    %4713 = vmatmul.bf16.gmra.mxu0 %v4589
    %v4714 = vpop.f32.mrf.mxu0
    %v4715 = vadd.f32 0.0, %v4714
    %v4716 = vpop.f32.mrf.mxu0
    %v4717 = vadd.f32 0.0, %v4716
    %4718 = vmatmul.bf16.gmra.mxu0 %v4590
    %v4719 = vpop.f32.mrf.mxu0
    %v4720 = vadd.f32 0.0, %v4719
    %v4721 = vpop.f32.mrf.mxu0
    %v4722 = vadd.f32 0.0, %v4721
    %4723 = vmatmul.bf16.gmra.mxu0 %v4591
    %v4724 = vpop.f32.mrf.mxu0
    %v4725 = vadd.f32 0.0, %v4724
    %v4726 = vpop.f32.mrf.mxu0
    %v4727 = vadd.f32 0.0, %v4726
    %4728 = vmatmul.bf16.gmra.mxu0 %v4592
    %v4729 = vpop.f32.mrf.mxu0
    %v4730 = vadd.f32 0.0, %v4729
    %v4731 = vpop.f32.mrf.mxu0
    %v4732 = vadd.f32 0.0, %v4731
    %4733 = vdwg.mxu0
    %v4734 = vadd.f32 %v4451, %v4665
    %v4735 = vadd.f32 %v4452, %v4667
    %v4736 = vadd.f32 %v4453, %v4670
    %v4737 = vadd.f32 %v4454, %v4672
    %v4738 = vadd.f32 %v4455, %v4675
    %v4739 = vadd.f32 %v4456, %v4677
    %v4740 = vadd.f32 %v4457, %v4680
    %v4741 = vadd.f32 %v4458, %v4682
    %v4742 = vadd.f32 %v4459, %v4685
    %v4743 = vadd.f32 %v4460, %v4687
    %v4744 = vadd.f32 %v4461, %v4690
    %v4745 = vadd.f32 %v4462, %v4692
    %v4746 = vadd.f32 %v4463, %v4695
    %v4747 = vadd.f32 %v4464, %v4697
    %v4748 = vadd.f32 %v4465, %v4700
    %v4749 = vadd.f32 %v4466, %v4702
    %v4750 = vadd.f32 %v4467, %v4705
    %v4751 = vadd.f32 %v4468, %v4707
    %v4752 = vadd.f32 %v4469, %v4710
    %v4753 = vadd.f32 %v4470, %v4712
    %v4754 = vadd.f32 %v4471, %v4715
    %v4755 = vadd.f32 %v4472, %v4717
    %v4756 = vadd.f32 %v4473, %v4720
    %v4757 = vadd.f32 %v4474, %v4722
    %v4758 = vadd.f32 %v4475, %v4725
    %v4759 = vadd.f32 %v4476, %v4727
    %v4760 = vadd.f32 %v4477, %v4730
    %v4761 = vadd.f32 %v4478, %v4732
    %v4762 = vld [vmem:[#allocation4 + $0x20] sm:$0xf]
    %v4763 = vld [vmem:[#allocation4 + $0x24] sm:$0xf]
    %v4764 = vld [vmem:[#allocation4 + $0x28] sm:$0xf]
    %v4765 = vld [vmem:[#allocation4 + $0x2c] sm:$0xf]
    %v4766 = vld [vmem:[#allocation4 + $0x30] sm:$0xf]
    %v4767 = vld [vmem:[#allocation4 + $0x34] sm:$0xf]
    %v4768 = vld [vmem:[#allocation4 + $0x38] sm:$0xf]
    %v4769 = vld [vmem:[#allocation4 + $0x3c] sm:$0xf]
    %v4770 = vld [vmem:[#allocation4 + $0x40] sm:$0xf]
    %v4771 = vld [vmem:[#allocation4 + $0x44] sm:$0xf]
    %v4772 = vld [vmem:[#allocation4 + $0x48] sm:$0xf]
    %v4773 = vld [vmem:[#allocation4 + $0x4c] sm:$0xf]
    %v4774 = vld [vmem:[#allocation4 + $0x50] sm:$0xf]
    %v4775 = vld [vmem:[#allocation4 + $0x54] sm:$0xf]
    %v4776 = vld [vmem:[#allocation4 + $0x58] sm:$0xf]
    %v4777 = vld [vmem:[#allocation4 + $0x5c] sm:$0xf]
    %v4778 = vld [vmem:[#allocation4 + $0x60] sm:$0xf]
    %v4779 = vld [vmem:[#allocation4 + $0x64] sm:$0xf]
    %v4780 = vld [vmem:[#allocation4 + $0x68] sm:$0xf]
    %v4781 = vld [vmem:[#allocation4 + $0x6c] sm:$0xf]
    %v4782 = vld [vmem:[#allocation4 + $0x70] sm:$0xf]
    %v4783 = vld [vmem:[#allocation4 + $0x74] sm:$0xf]
    %v4784 = vld [vmem:[#allocation4 + $0x78] sm:$0xf]
    %v4785 = vld [vmem:[#allocation4 + $0x7c] sm:$0xf]
    %v4786 = vld [vmem:[#allocation4 + $0x80] sm:$0xf]
    %v4787 = vld [vmem:[#allocation4 + $0x84] sm:$0xf]
    %v4788 = vld [vmem:[#allocation4 + $0x88] sm:$0xf]
    %v4789 = vld [vmem:[#allocation4 + $0x8c] sm:$0xf]
    %v4790 = vld [vmem:[%s3 + $0x100] sm:$0xf]
    %v4791 = vld [vmem:[%s3 + $0x104] sm:$0xf]
    %v4792 = vld [vmem:[%s3 + $0x108] sm:$0xf]
    %v4793 = vld [vmem:[%s3 + $0x10c] sm:$0xf]
    %v4794 = vld [vmem:[%s3 + $0x110] sm:$0xf]
    %v4795 = vld [vmem:[%s3 + $0x114] sm:$0xf]
    %v4796 = vld [vmem:[%s3 + $0x118] sm:$0xf]
    %v4797 = vld [vmem:[%s3 + $0x11c] sm:$0xf]
    %v4798 = vld [vmem:[%s3 + $0x120] sm:$0xf]
    %v4799 = vld [vmem:[%s3 + $0x124] sm:$0xf]
    %v4800 = vld [vmem:[%s3 + $0x128] sm:$0xf]
    %v4801 = vld [vmem:[%s3 + $0x12c] sm:$0xf]
    %v4802 = vld [vmem:[%s3 + $0x130] sm:$0xf]
    %v4803 = vld [vmem:[%s3 + $0x134] sm:$0xf]
    %v4804 = vld [vmem:[%s3 + $0x138] sm:$0xf]
    %v4805 = vld [vmem:[%s3 + $0x13c] sm:$0xf]
    %v4834 = vunpack.c.l.b16 %v4762
    %v4835 = vunpack.c.l.b16 %v4763
    %v4836 = vunpack.c.l.b16 %v4764
    %v4837 = vunpack.c.l.b16 %v4765
    %v4838 = vunpack.c.l.b16 %v4766
    %v4839 = vunpack.c.l.b16 %v4767
    %v4840 = vunpack.c.l.b16 %v4768
    %v4841 = vunpack.c.l.b16 %v4769
    %v4842 = vunpack.c.l.b16 %v4770
    %v4843 = vunpack.c.l.b16 %v4771
    %v4844 = vunpack.c.l.b16 %v4772
    %v4845 = vunpack.c.l.b16 %v4773
    %v4846 = vunpack.c.l.b16 %v4774
    %v4847 = vunpack.c.l.b16 %v4775
    %v4848 = vunpack.c.l.b16 %v4776
    %v4849 = vunpack.c.l.b16 %v4777
    %v4850 = vunpack.c.l.b16 %v4778
    %v4851 = vunpack.c.l.b16 %v4779
    %v4852 = vunpack.c.l.b16 %v4780
    %v4853 = vunpack.c.l.b16 %v4781
    %v4854 = vunpack.c.l.b16 %v4782
    %v4855 = vunpack.c.l.b16 %v4783
    %v4856 = vunpack.c.l.b16 %v4784
    %v4857 = vunpack.c.l.b16 %v4785
    %v4858 = vunpack.c.l.b16 %v4786
    %v4859 = vunpack.c.l.b16 %v4787
    %v4860 = vunpack.c.l.b16 %v4788
    %v4861 = vunpack.c.l.b16 %v4789
    %v4862 = vpack.c.b16 %v4835, %v4834
    %v4863 = vpack.c.b16 %v4837, %v4836
    %v4864 = vpack.c.b16 %v4839, %v4838
    %v4865 = vpack.c.b16 %v4841, %v4840
    %v4866 = vpack.c.b16 %v4843, %v4842
    %v4867 = vpack.c.b16 %v4845, %v4844
    %v4868 = vpack.c.b16 %v4847, %v4846
    %v4869 = vpack.c.b16 %v4849, %v4848
    %v4870 = vpack.c.b16 %v4851, %v4850
    %v4871 = vpack.c.b16 %v4853, %v4852
    %v4872 = vpack.c.b16 %v4855, %v4854
    %v4873 = vpack.c.b16 %v4857, %v4856
    %v4874 = vpack.c.b16 %v4859, %v4858
    %v4875 = vpack.c.b16 %v4861, %v4860
    %v4906 = vunpack.c.l.b16 %v4790
    %v4907 = vunpack.c.l.b16 %v4791
    %v4908 = vunpack.c.l.b16 %v4792
    %v4909 = vunpack.c.l.b16 %v4793
    %v4910 = vunpack.c.l.b16 %v4794
    %v4911 = vunpack.c.l.b16 %v4795
    %v4912 = vunpack.c.l.b16 %v4796
    %v4913 = vunpack.c.l.b16 %v4797
    %v4914 = vunpack.c.l.b16 %v4798
    %v4915 = vunpack.c.l.b16 %v4799
    %v4916 = vunpack.c.l.b16 %v4800
    %v4917 = vunpack.c.l.b16 %v4801
    %v4918 = vunpack.c.l.b16 %v4802
    %v4919 = vunpack.c.l.b16 %v4803
    %v4920 = vunpack.c.l.b16 %v4804
    %v4921 = vunpack.c.l.b16 %v4805
    %v4922 = vpack.c.b16 %v4907, %v4906
    %v4923 = vpack.c.b16 %v4909, %v4908
    %v4924 = vpack.c.b16 %v4911, %v4910
    %v4925 = vpack.c.b16 %v4913, %v4912
    %v4926 = vpack.c.b16 %v4915, %v4914
    %v4927 = vpack.c.b16 %v4917, %v4916
    %v4928 = vpack.c.b16 %v4919, %v4918
    %v4929 = vpack.c.b16 %v4921, %v4920
    %4938 = vmatpush.bf16.msra.mxu0 %v4929
    %4939 = vmatpush.bf16.msra.mxu0 %v4928
    %4940 = vmatpush.bf16.msra.mxu0 %v4927
    %4941 = vmatpush.bf16.msra.mxu0 %v4926
    %4942 = vmatpush.bf16.msra.mxu0 %v4925
    %4943 = vmatpush.bf16.msra.mxu0 %v4924
    %4944 = vmatpush.bf16.msra.mxu0 %v4923
    %4945 = vmatpush.bf16.msra.mxu0 %v4922
    %4946 = vmatmul.bf16.gmra.mxu0 %v4862
    %v4947 = vpop.f32.mrf.mxu0
    %v4948 = vadd.f32 0.0, %v4947
    %v4949 = vpop.f32.mrf.mxu0
    %v4950 = vadd.f32 0.0, %v4949
    %4951 = vmatmul.bf16.gmra.mxu0 %v4863
    %v4952 = vpop.f32.mrf.mxu0
    %v4953 = vadd.f32 0.0, %v4952
    %v4954 = vpop.f32.mrf.mxu0
    %v4955 = vadd.f32 0.0, %v4954
    %4956 = vmatmul.bf16.gmra.mxu0 %v4864
    %v4957 = vpop.f32.mrf.mxu0
    %v4958 = vadd.f32 0.0, %v4957
    %v4959 = vpop.f32.mrf.mxu0
    %v4960 = vadd.f32 0.0, %v4959
    %4961 = vmatmul.bf16.gmra.mxu0 %v4865
    %v4962 = vpop.f32.mrf.mxu0
    %v4963 = vadd.f32 0.0, %v4962
    %v4964 = vpop.f32.mrf.mxu0
    %v4965 = vadd.f32 0.0, %v4964
    %4966 = vmatmul.bf16.gmra.mxu0 %v4866
    %v4967 = vpop.f32.mrf.mxu0
    %v4968 = vadd.f32 0.0, %v4967
    %v4969 = vpop.f32.mrf.mxu0
    %v4970 = vadd.f32 0.0, %v4969
    %4971 = vmatmul.bf16.gmra.mxu0 %v4867
    %v4972 = vpop.f32.mrf.mxu0
    %v4973 = vadd.f32 0.0, %v4972
    %v4974 = vpop.f32.mrf.mxu0
    %v4975 = vadd.f32 0.0, %v4974
    %4976 = vmatmul.bf16.gmra.mxu0 %v4868
    %v4977 = vpop.f32.mrf.mxu0
    %v4978 = vadd.f32 0.0, %v4977
    %v4979 = vpop.f32.mrf.mxu0
    %v4980 = vadd.f32 0.0, %v4979
    %4981 = vmatmul.bf16.gmra.mxu0 %v4869
    %v4982 = vpop.f32.mrf.mxu0
    %v4983 = vadd.f32 0.0, %v4982
    %v4984 = vpop.f32.mrf.mxu0
    %v4985 = vadd.f32 0.0, %v4984
    %4986 = vmatmul.bf16.gmra.mxu0 %v4870
    %v4987 = vpop.f32.mrf.mxu0
    %v4988 = vadd.f32 0.0, %v4987
    %v4989 = vpop.f32.mrf.mxu0
    %v4990 = vadd.f32 0.0, %v4989
    %4991 = vmatmul.bf16.gmra.mxu0 %v4871
    %v4992 = vpop.f32.mrf.mxu0
    %v4993 = vadd.f32 0.0, %v4992
    %v4994 = vpop.f32.mrf.mxu0
    %v4995 = vadd.f32 0.0, %v4994
    %4996 = vmatmul.bf16.gmra.mxu0 %v4872
    %v4997 = vpop.f32.mrf.mxu0
    %v4998 = vadd.f32 0.0, %v4997
    %v4999 = vpop.f32.mrf.mxu0
    %v5000 = vadd.f32 0.0, %v4999
    %5001 = vmatmul.bf16.gmra.mxu0 %v4873
    %v5002 = vpop.f32.mrf.mxu0
    %v5003 = vadd.f32 0.0, %v5002
    %v5004 = vpop.f32.mrf.mxu0
    %v5005 = vadd.f32 0.0, %v5004
    %5006 = vmatmul.bf16.gmra.mxu0 %v4874
    %v5007 = vpop.f32.mrf.mxu0
    %v5008 = vadd.f32 0.0, %v5007
    %v5009 = vpop.f32.mrf.mxu0
    %v5010 = vadd.f32 0.0, %v5009
    %5011 = vmatmul.bf16.gmra.mxu0 %v4875
    %v5012 = vpop.f32.mrf.mxu0
    %v5013 = vadd.f32 0.0, %v5012
    %v5014 = vpop.f32.mrf.mxu0
    %v5015 = vadd.f32 0.0, %v5014
    %5016 = vdwg.mxu0
    %v5017 = vadd.f32 %v4734, %v4948
    %v5018 = vadd.f32 %v4735, %v4950
    %v5019 = vadd.f32 %v4736, %v4953
    %v5020 = vadd.f32 %v4737, %v4955
    %v5021 = vadd.f32 %v4738, %v4958
    %v5022 = vadd.f32 %v4739, %v4960
    %v5023 = vadd.f32 %v4740, %v4963
    %v5024 = vadd.f32 %v4741, %v4965
    %v5025 = vadd.f32 %v4742, %v4968
    %v5026 = vadd.f32 %v4743, %v4970
    %v5027 = vadd.f32 %v4744, %v4973
    %v5028 = vadd.f32 %v4745, %v4975
    %v5029 = vadd.f32 %v4746, %v4978
    %v5030 = vadd.f32 %v4747, %v4980
    %v5031 = vadd.f32 %v4748, %v4983
    %v5032 = vadd.f32 %v4749, %v4985
    %v5033 = vadd.f32 %v4750, %v4988
    %v5034 = vadd.f32 %v4751, %v4990
    %v5035 = vadd.f32 %v4752, %v4993
    %v5036 = vadd.f32 %v4753, %v4995
    %v5037 = vadd.f32 %v4754, %v4998
    %v5038 = vadd.f32 %v4755, %v5000
    %v5039 = vadd.f32 %v4756, %v5003
    %v5040 = vadd.f32 %v4757, %v5005
    %v5041 = vadd.f32 %v4758, %v5008
    %v5042 = vadd.f32 %v4759, %v5010
    %v5043 = vadd.f32 %v4760, %v5013
    %v5044 = vadd.f32 %v4761, %v5015
    %v5046 = vperm.slane %v3789, 0
    %v5048 = vadd.f32 %v5017, %v5046
    %v5049 = vadd.f32 %v5018, %v5046
    %v5050 = vadd.f32 %v5019, %v5046
    %v5051 = vadd.f32 %v5020, %v5046
    %v5052 = vadd.f32 %v5021, %v5046
    %v5053 = vadd.f32 %v5022, %v5046
    %v5054 = vadd.f32 %v5023, %v5046
    %v5055 = vadd.f32 %v5024, %v5046
    %v5056 = vadd.f32 %v5025, %v5046
    %v5057 = vadd.f32 %v5026, %v5046
    %v5058 = vadd.f32 %v5027, %v5046
    %v5059 = vadd.f32 %v5028, %v5046
    %v5060 = vadd.f32 %v5029, %v5046
    %v5061 = vadd.f32 %v5030, %v5046
    %v5062 = vadd.f32 %v5031, %v5046
    %v5063 = vadd.f32 %v5032, %v5046
    %v5064 = vadd.f32 %v5033, %v5046
    %v5065 = vadd.f32 %v5034, %v5046
    %v5066 = vadd.f32 %v5035, %v5046
    %v5067 = vadd.f32 %v5036, %v5046
    %v5068 = vadd.f32 %v5037, %v5046
    %v5069 = vadd.f32 %v5038, %v5046
    %v5070 = vadd.f32 %v5039, %v5046
    %v5071 = vadd.f32 %v5040, %v5046
    %v5072 = vadd.f32 %v5041, %v5046
    %v5073 = vadd.f32 %v5042, %v5046
    %v5074 = vadd.f32 %v5043, %v5046
    %v5075 = vadd.f32 %v5044, %v5046
    %v5076 = vmax.f32 %v5048, 0.0
    %v5077 = vmax.f32 %v5049, 0.0
    %v5078 = vmax.f32 %v5050, 0.0
    %v5079 = vmax.f32 %v5051, 0.0
    %v5080 = vmax.f32 %v5052, 0.0
    %v5081 = vmax.f32 %v5053, 0.0
    %v5082 = vmax.f32 %v5054, 0.0
    %v5083 = vmax.f32 %v5055, 0.0
    %v5084 = vmax.f32 %v5056, 0.0
    %v5085 = vmax.f32 %v5057, 0.0
    %v5086 = vmax.f32 %v5058, 0.0
    %v5087 = vmax.f32 %v5059, 0.0
    %v5088 = vmax.f32 %v5060, 0.0
    %v5089 = vmax.f32 %v5061, 0.0
    %v5090 = vmax.f32 %v5062, 0.0
    %v5091 = vmax.f32 %v5063, 0.0
    %v5092 = vmax.f32 %v5064, 0.0
    %v5093 = vmax.f32 %v5065, 0.0
    %v5094 = vmax.f32 %v5066, 0.0
    %v5095 = vmax.f32 %v5067, 0.0
    %v5096 = vmax.f32 %v5068, 0.0
    %v5097 = vmax.f32 %v5069, 0.0
    %v5098 = vmax.f32 %v5070, 0.0
    %v5099 = vmax.f32 %v5071, 0.0
    %v5100 = vmax.f32 %v5072, 0.0
    %v5101 = vmax.f32 %v5073, 0.0
    %v5102 = vmax.f32 %v5074, 0.0
    %v5103 = vmax.f32 %v5075, 0.0
    %5104 = vst [vmem:[#allocation5] sm:$0xff] %v5076
    %5105 = vst [vmem:[#allocation5 + $0x8] sm:$0xff] %v5077
    %5106 = vst [vmem:[#allocation5 + $0x10] sm:$0xff] %v5078
    %5107 = vst [vmem:[#allocation5 + $0x18] sm:$0xff] %v5079
    %5108 = vst [vmem:[#allocation5 + $0x20] sm:$0xff] %v5080
    %5109 = vst [vmem:[#allocation5 + $0x28] sm:$0xff] %v5081
    %5110 = vst [vmem:[#allocation5 + $0x30] sm:$0xff] %v5082
    %5111 = vst [vmem:[#allocation5 + $0x38] sm:$0xff] %v5083
    %5112 = vst [vmem:[#allocation5 + $0x40] sm:$0xff] %v5084
    %5113 = vst [vmem:[#allocation5 + $0x48] sm:$0xff] %v5085
    %5114 = vst [vmem:[#allocation5 + $0x50] sm:$0xff] %v5086
    %5115 = vst [vmem:[#allocation5 + $0x58] sm:$0xff] %v5087
    %5116 = vst [vmem:[#allocation5 + $0x60] sm:$0xff] %v5088
    %5117 = vst [vmem:[#allocation5 + $0x68] sm:$0xff] %v5089
    %5118 = vst [vmem:[#allocation5 + $0x70] sm:$0xff] %v5090
    %5119 = vst [vmem:[#allocation5 + $0x78] sm:$0xff] %v5091
    %5120 = vst [vmem:[#allocation5 + $0x80] sm:$0xff] %v5092
    %5121 = vst [vmem:[#allocation5 + $0x88] sm:$0xff] %v5093
    %5122 = vst [vmem:[#allocation5 + $0x90] sm:$0xff] %v5094
    %5123 = vst [vmem:[#allocation5 + $0x98] sm:$0xff] %v5095
    %5124 = vst [vmem:[#allocation5 + $0xa0] sm:$0xff] %v5096
    %5125 = vst [vmem:[#allocation5 + $0xa8] sm:$0xff] %v5097
    %5126 = vst [vmem:[#allocation5 + $0xb0] sm:$0xff] %v5098
    %5127 = vst [vmem:[#allocation5 + $0xb8] sm:$0xff] %v5099
    %5128 = vst [vmem:[#allocation5 + $0xc0] sm:$0xff] %v5100
    %5129 = vst [vmem:[#allocation5 + $0xc8] sm:$0xff] %v5101
    %5130 = vst [vmem:[#allocation5 + $0xd0] sm:$0xff] %v5102
    %5131 = vst [vmem:[#allocation5 + $0xd8] sm:$0xff] %v5103
    %v5132 = vld [vmem:[#allocation4 + $0x70] sm:$0xf]
    %v5133 = vld [vmem:[#allocation4 + $0x74] sm:$0xf]
    %v5134 = vld [vmem:[#allocation4 + $0x78] sm:$0xf]
    %v5135 = vld [vmem:[#allocation4 + $0x7c] sm:$0xf]
    %v5136 = vld [vmem:[#allocation4 + $0x80] sm:$0xf]
    %v5137 = vld [vmem:[#allocation4 + $0x84] sm:$0xf]
    %v5138 = vld [vmem:[#allocation4 + $0x88] sm:$0xf]
    %v5139 = vld [vmem:[#allocation4 + $0x8c] sm:$0xf]
    %v5140 = vld [vmem:[#allocation4 + $0x90] sm:$0xf]
    %v5141 = vld [vmem:[#allocation4 + $0x94] sm:$0xf]
    %v5142 = vld [vmem:[#allocation4 + $0x98] sm:$0xf]
    %v5143 = vld [vmem:[#allocation4 + $0x9c] sm:$0xf]
    %v5144 = vld [vmem:[#allocation4 + $0xa0] sm:$0xf]
    %v5145 = vld [vmem:[#allocation4 + $0xa4] sm:$0xf]
    %v5146 = vld [vmem:[#allocation4 + $0xa8] sm:$0xf]
    %v5147 = vld [vmem:[#allocation4 + $0xac] sm:$0xf]
    %v5148 = vld [vmem:[#allocation4 + $0xb0] sm:$0xf]
    %v5149 = vld [vmem:[#allocation4 + $0xb4] sm:$0xf]
    %v5150 = vld [vmem:[#allocation4 + $0xb8] sm:$0xf]
    %v5151 = vld [vmem:[#allocation4 + $0xbc] sm:$0xf]
    %v5152 = vld [vmem:[#allocation4 + $0xc0] sm:$0xf]
    %v5153 = vld [vmem:[#allocation4 + $0xc4] sm:$0xf]
    %v5154 = vld [vmem:[#allocation4 + $0xc8] sm:$0xf]
    %v5155 = vld [vmem:[#allocation4 + $0xcc] sm:$0xf]
    %v5156 = vld [vmem:[#allocation4 + $0xd0] sm:$0xf]
    %v5157 = vld [vmem:[#allocation4 + $0xd4] sm:$0xf]
    %v5158 = vld [vmem:[#allocation4 + $0xd8] sm:$0xf]
    %v5159 = vld [vmem:[#allocation4 + $0xdc] sm:$0xf]
    %v5160 = vld [vmem:[%s3] sm:$0xf]
    %v5161 = vld [vmem:[%s3 + $0x4] sm:$0xf]
    %v5162 = vld [vmem:[%s3 + $0x8] sm:$0xf]
    %v5163 = vld [vmem:[%s3 + $0xc] sm:$0xf]
    %v5164 = vld [vmem:[%s3 + $0x10] sm:$0xf]
    %v5165 = vld [vmem:[%s3 + $0x14] sm:$0xf]
    %v5166 = vld [vmem:[%s3 + $0x18] sm:$0xf]
    %v5167 = vld [vmem:[%s3 + $0x1c] sm:$0xf]
    %v5168 = vld [vmem:[%s3 + $0x20] sm:$0xf]
    %v5169 = vld [vmem:[%s3 + $0x24] sm:$0xf]
    %v5170 = vld [vmem:[%s3 + $0x28] sm:$0xf]
    %v5171 = vld [vmem:[%s3 + $0x2c] sm:$0xf]
    %v5172 = vld [vmem:[%s3 + $0x30] sm:$0xf]
    %v5173 = vld [vmem:[%s3 + $0x34] sm:$0xf]
    %v5174 = vld [vmem:[%s3 + $0x38] sm:$0xf]
    %v5175 = vld [vmem:[%s3 + $0x3c] sm:$0xf]
    %v5176 = vld [vmem:[#allocation4 + $0xe0] sm:$0xf]
    %v5177 = vld [vmem:[#allocation4 + $0xe4] sm:$0xf]
    %v5178 = vld [vmem:[%s3 + $0x40] sm:$0xf]
    %v5179 = vld [vmem:[%s3 + $0x44] sm:$0xf]
    %v5180 = vld [vmem:[%s3 + $0x48] sm:$0xf]
    %v5181 = vld [vmem:[%s3 + $0x4c] sm:$0xf]
    %v5182 = vld [vmem:[%s3 + $0x50] sm:$0xf]
    %v5183 = vld [vmem:[%s3 + $0x54] sm:$0xf]
    %v5184 = vld [vmem:[%s3 + $0x58] sm:$0xf]
    %v5185 = vld [vmem:[%s3 + $0x5c] sm:$0xf]
    %v5186 = vld [vmem:[%s3 + $0x60] sm:$0xf]
    %v5187 = vld [vmem:[%s3 + $0x64] sm:$0xf]
    %v5188 = vld [vmem:[%s3 + $0x68] sm:$0xf]
    %v5189 = vld [vmem:[%s3 + $0x6c] sm:$0xf]
    %v5190 = vld [vmem:[%s3 + $0x70] sm:$0xf]
    %v5191 = vld [vmem:[%s3 + $0x74] sm:$0xf]
    %v5192 = vld [vmem:[%s3 + $0x78] sm:$0xf]
    %v5193 = vld [vmem:[%s3 + $0x7c] sm:$0xf]
    %v5222 = vunpack.c.l.b16 %v5134
    %v5223 = vunpack.c.l.b16 %v5135
    %v5224 = vunpack.c.l.b16 %v5136
    %v5225 = vunpack.c.l.b16 %v5137
    %v5226 = vunpack.c.l.b16 %v5138
    %v5227 = vunpack.c.l.b16 %v5139
    %v5228 = vunpack.c.l.b16 %v5140
    %v5229 = vunpack.c.l.b16 %v5141
    %v5230 = vunpack.c.l.b16 %v5142
    %v5231 = vunpack.c.l.b16 %v5143
    %v5232 = vunpack.c.l.b16 %v5144
    %v5233 = vunpack.c.l.b16 %v5145
    %v5234 = vunpack.c.l.b16 %v5146
    %v5235 = vunpack.c.l.b16 %v5147
    %v5236 = vunpack.c.l.b16 %v5148
    %v5237 = vunpack.c.l.b16 %v5149
    %v5238 = vunpack.c.l.b16 %v5150
    %v5239 = vunpack.c.l.b16 %v5151
    %v5240 = vunpack.c.l.b16 %v5152
    %v5241 = vunpack.c.l.b16 %v5153
    %v5242 = vunpack.c.l.b16 %v5154
    %v5243 = vunpack.c.l.b16 %v5155
    %v5244 = vunpack.c.l.b16 %v5156
    %v5245 = vunpack.c.l.b16 %v5157
    %v5246 = vunpack.c.l.b16 %v5158
    %v5247 = vunpack.c.l.b16 %v5159
    %v5248 = vunpack.c.l.b16 %v5176
    %v5249 = vunpack.c.l.b16 %v5177
    %v5250 = vpack.c.b16 %v5223, %v5222
    %v5251 = vpack.c.b16 %v5225, %v5224
    %v5252 = vpack.c.b16 %v5227, %v5226
    %v5253 = vpack.c.b16 %v5229, %v5228
    %v5254 = vpack.c.b16 %v5231, %v5230
    %v5255 = vpack.c.b16 %v5233, %v5232
    %v5256 = vpack.c.b16 %v5235, %v5234
    %v5257 = vpack.c.b16 %v5237, %v5236
    %v5258 = vpack.c.b16 %v5239, %v5238
    %v5259 = vpack.c.b16 %v5241, %v5240
    %v5260 = vpack.c.b16 %v5243, %v5242
    %v5261 = vpack.c.b16 %v5245, %v5244
    %v5262 = vpack.c.b16 %v5247, %v5246
    %v5263 = vpack.c.b16 %v5249, %v5248
    %v5294 = vunpack.c.l.b16 %v5178
    %v5295 = vunpack.c.l.b16 %v5179
    %v5296 = vunpack.c.l.b16 %v5180
    %v5297 = vunpack.c.l.b16 %v5181
    %v5298 = vunpack.c.l.b16 %v5182
    %v5299 = vunpack.c.l.b16 %v5183
    %v5300 = vunpack.c.l.b16 %v5184
    %v5301 = vunpack.c.l.b16 %v5185
    %v5302 = vunpack.c.l.b16 %v5186
    %v5303 = vunpack.c.l.b16 %v5187
    %v5304 = vunpack.c.l.b16 %v5188
    %v5305 = vunpack.c.l.b16 %v5189
    %v5306 = vunpack.c.l.b16 %v5190
    %v5307 = vunpack.c.l.b16 %v5191
    %v5308 = vunpack.c.l.b16 %v5192
    %v5309 = vunpack.c.l.b16 %v5193
    %v5310 = vpack.c.b16 %v5295, %v5294
    %v5311 = vpack.c.b16 %v5297, %v5296
    %v5312 = vpack.c.b16 %v5299, %v5298
    %v5313 = vpack.c.b16 %v5301, %v5300
    %v5314 = vpack.c.b16 %v5303, %v5302
    %v5315 = vpack.c.b16 %v5305, %v5304
    %v5316 = vpack.c.b16 %v5307, %v5306
    %v5317 = vpack.c.b16 %v5309, %v5308
    %5326 = vmatpush.bf16.msra.mxu0 %v5317
    %5327 = vmatpush.bf16.msra.mxu0 %v5316
    %5328 = vmatpush.bf16.msra.mxu0 %v5315
    %5329 = vmatpush.bf16.msra.mxu0 %v5314
    %5330 = vmatpush.bf16.msra.mxu0 %v5313
    %5331 = vmatpush.bf16.msra.mxu0 %v5312
    %5332 = vmatpush.bf16.msra.mxu0 %v5311
    %5333 = vmatpush.bf16.msra.mxu0 %v5310
    %5334 = vmatmul.bf16.gmra.mxu0 %v5250
    %v5335 = vpop.f32.mrf.mxu0
    %v5336 = vadd.f32 0.0, %v5335
    %v5337 = vpop.f32.mrf.mxu0
    %v5338 = vadd.f32 0.0, %v5337
    %5339 = vmatmul.bf16.gmra.mxu0 %v5251
    %v5340 = vpop.f32.mrf.mxu0
    %v5341 = vadd.f32 0.0, %v5340
    %v5342 = vpop.f32.mrf.mxu0
    %v5343 = vadd.f32 0.0, %v5342
    %5344 = vmatmul.bf16.gmra.mxu0 %v5252
    %v5345 = vpop.f32.mrf.mxu0
    %v5346 = vadd.f32 0.0, %v5345
    %v5347 = vpop.f32.mrf.mxu0
    %v5348 = vadd.f32 0.0, %v5347
    %5349 = vmatmul.bf16.gmra.mxu0 %v5253
    %v5350 = vpop.f32.mrf.mxu0
    %v5351 = vadd.f32 0.0, %v5350
    %v5352 = vpop.f32.mrf.mxu0
    %v5353 = vadd.f32 0.0, %v5352
    %5354 = vmatmul.bf16.gmra.mxu0 %v5254
    %v5355 = vpop.f32.mrf.mxu0
    %v5356 = vadd.f32 0.0, %v5355
    %v5357 = vpop.f32.mrf.mxu0
    %v5358 = vadd.f32 0.0, %v5357
    %5359 = vmatmul.bf16.gmra.mxu0 %v5255
    %v5360 = vpop.f32.mrf.mxu0
    %v5361 = vadd.f32 0.0, %v5360
    %v5362 = vpop.f32.mrf.mxu0
    %v5363 = vadd.f32 0.0, %v5362
    %5364 = vmatmul.bf16.gmra.mxu0 %v5256
    %v5365 = vpop.f32.mrf.mxu0
    %v5366 = vadd.f32 0.0, %v5365
    %v5367 = vpop.f32.mrf.mxu0
    %v5368 = vadd.f32 0.0, %v5367
    %5369 = vmatmul.bf16.gmra.mxu0 %v5257
    %v5370 = vpop.f32.mrf.mxu0
    %v5371 = vadd.f32 0.0, %v5370
    %v5372 = vpop.f32.mrf.mxu0
    %v5373 = vadd.f32 0.0, %v5372
    %5374 = vmatmul.bf16.gmra.mxu0 %v5258
    %v5375 = vpop.f32.mrf.mxu0
    %v5376 = vadd.f32 0.0, %v5375
    %v5377 = vpop.f32.mrf.mxu0
    %v5378 = vadd.f32 0.0, %v5377
    %5379 = vmatmul.bf16.gmra.mxu0 %v5259
    %v5380 = vpop.f32.mrf.mxu0
    %v5381 = vadd.f32 0.0, %v5380
    %v5382 = vpop.f32.mrf.mxu0
    %v5383 = vadd.f32 0.0, %v5382
    %5384 = vmatmul.bf16.gmra.mxu0 %v5260
    %v5385 = vpop.f32.mrf.mxu0
    %v5386 = vadd.f32 0.0, %v5385
    %v5387 = vpop.f32.mrf.mxu0
    %v5388 = vadd.f32 0.0, %v5387
    %5389 = vmatmul.bf16.gmra.mxu0 %v5261
    %v5390 = vpop.f32.mrf.mxu0
    %v5391 = vadd.f32 0.0, %v5390
    %v5392 = vpop.f32.mrf.mxu0
    %v5393 = vadd.f32 0.0, %v5392
    %5394 = vmatmul.bf16.gmra.mxu0 %v5262
    %v5395 = vpop.f32.mrf.mxu0
    %v5396 = vadd.f32 0.0, %v5395
    %v5397 = vpop.f32.mrf.mxu0
    %v5398 = vadd.f32 0.0, %v5397
    %5399 = vmatmul.bf16.gmra.mxu0 %v5263
    %v5400 = vpop.f32.mrf.mxu0
    %v5401 = vadd.f32 0.0, %v5400
    %v5402 = vpop.f32.mrf.mxu0
    %v5403 = vadd.f32 0.0, %v5402
    %5404 = vdwg.mxu0
    %v5407 = vunpack.c.l.b16 %v5132
    %v5408 = vunpack.c.l.b16 %v5133
    %v5409 = vpack.c.b16 %v5408, %v5407
    %v5427 = vunpack.c.l.b16 %v5160
    %v5428 = vunpack.c.l.b16 %v5161
    %v5429 = vunpack.c.l.b16 %v5162
    %v5430 = vunpack.c.l.b16 %v5163
    %v5431 = vunpack.c.l.b16 %v5164
    %v5432 = vunpack.c.l.b16 %v5165
    %v5433 = vunpack.c.l.b16 %v5166
    %v5434 = vunpack.c.l.b16 %v5167
    %v5435 = vunpack.c.l.b16 %v5168
    %v5436 = vunpack.c.l.b16 %v5169
    %v5437 = vunpack.c.l.b16 %v5170
    %v5438 = vunpack.c.l.b16 %v5171
    %v5439 = vunpack.c.l.b16 %v5172
    %v5440 = vunpack.c.l.b16 %v5173
    %v5441 = vunpack.c.l.b16 %v5174
    %v5442 = vunpack.c.l.b16 %v5175
    %v5443 = vpack.c.b16 %v5428, %v5427
    %v5444 = vpack.c.b16 %v5430, %v5429
    %v5445 = vpack.c.b16 %v5432, %v5431
    %v5446 = vpack.c.b16 %v5434, %v5433
    %v5447 = vpack.c.b16 %v5436, %v5435
    %v5448 = vpack.c.b16 %v5438, %v5437
    %v5449 = vpack.c.b16 %v5440, %v5439
    %v5450 = vpack.c.b16 %v5442, %v5441
    %5459 = vmatpush.bf16.msra.mxu0 %v5450
    %5460 = vmatpush.bf16.msra.mxu0 %v5449
    %5461 = vmatpush.bf16.msra.mxu0 %v5448
    %5462 = vmatpush.bf16.msra.mxu0 %v5447
    %5463 = vmatpush.bf16.msra.mxu0 %v5446
    %5464 = vmatpush.bf16.msra.mxu0 %v5445
    %5465 = vmatpush.bf16.msra.mxu0 %v5444
    %5466 = vmatpush.bf16.msra.mxu0 %v5443
    %5467 = vmatmul.bf16.gmra.mxu0 %v5409
    %v5468 = vpop.f32.mrf.mxu0
    %v5469 = vadd.f32 %v5336, %v5468
    %v5470 = vpop.f32.mrf.mxu0
    %v5471 = vadd.f32 %v5338, %v5470
    %5472 = vmatmul.bf16.gmra.mxu0 %v5250
    %v5473 = vpop.f32.mrf.mxu0
    %v5474 = vadd.f32 %v5341, %v5473
    %v5475 = vpop.f32.mrf.mxu0
    %v5476 = vadd.f32 %v5343, %v5475
    %5477 = vmatmul.bf16.gmra.mxu0 %v5251
    %v5478 = vpop.f32.mrf.mxu0
    %v5479 = vadd.f32 %v5346, %v5478
    %v5480 = vpop.f32.mrf.mxu0
    %v5481 = vadd.f32 %v5348, %v5480
    %5482 = vmatmul.bf16.gmra.mxu0 %v5252
    %v5483 = vpop.f32.mrf.mxu0
    %v5484 = vadd.f32 %v5351, %v5483
    %v5485 = vpop.f32.mrf.mxu0
    %v5486 = vadd.f32 %v5353, %v5485
    %5487 = vmatmul.bf16.gmra.mxu0 %v5253
    %v5488 = vpop.f32.mrf.mxu0
    %v5489 = vadd.f32 %v5356, %v5488
    %v5490 = vpop.f32.mrf.mxu0
    %v5491 = vadd.f32 %v5358, %v5490
    %5492 = vmatmul.bf16.gmra.mxu0 %v5254
    %v5493 = vpop.f32.mrf.mxu0
    %v5494 = vadd.f32 %v5361, %v5493
    %v5495 = vpop.f32.mrf.mxu0
    %v5496 = vadd.f32 %v5363, %v5495
    %5497 = vmatmul.bf16.gmra.mxu0 %v5255
    %v5498 = vpop.f32.mrf.mxu0
    %v5499 = vadd.f32 %v5366, %v5498
    %v5500 = vpop.f32.mrf.mxu0
    %v5501 = vadd.f32 %v5368, %v5500
    %5502 = vmatmul.bf16.gmra.mxu0 %v5256
    %v5503 = vpop.f32.mrf.mxu0
    %v5504 = vadd.f32 %v5371, %v5503
    %v5505 = vpop.f32.mrf.mxu0
    %v5506 = vadd.f32 %v5373, %v5505
    %5507 = vmatmul.bf16.gmra.mxu0 %v5257
    %v5508 = vpop.f32.mrf.mxu0
    %v5509 = vadd.f32 %v5376, %v5508
    %v5510 = vpop.f32.mrf.mxu0
    %v5511 = vadd.f32 %v5378, %v5510
    %5512 = vmatmul.bf16.gmra.mxu0 %v5258
    %v5513 = vpop.f32.mrf.mxu0
    %v5514 = vadd.f32 %v5381, %v5513
    %v5515 = vpop.f32.mrf.mxu0
    %v5516 = vadd.f32 %v5383, %v5515
    %5517 = vmatmul.bf16.gmra.mxu0 %v5259
    %v5518 = vpop.f32.mrf.mxu0
    %v5519 = vadd.f32 %v5386, %v5518
    %v5520 = vpop.f32.mrf.mxu0
    %v5521 = vadd.f32 %v5388, %v5520
    %5522 = vmatmul.bf16.gmra.mxu0 %v5260
    %v5523 = vpop.f32.mrf.mxu0
    %v5524 = vadd.f32 %v5391, %v5523
    %v5525 = vpop.f32.mrf.mxu0
    %v5526 = vadd.f32 %v5393, %v5525
    %5527 = vmatmul.bf16.gmra.mxu0 %v5261
    %v5528 = vpop.f32.mrf.mxu0
    %v5529 = vadd.f32 %v5396, %v5528
    %v5530 = vpop.f32.mrf.mxu0
    %v5531 = vadd.f32 %v5398, %v5530
    %5532 = vmatmul.bf16.gmra.mxu0 %v5262
    %v5533 = vpop.f32.mrf.mxu0
    %v5534 = vadd.f32 %v5401, %v5533
    %v5535 = vpop.f32.mrf.mxu0
    %v5536 = vadd.f32 %v5403, %v5535
    %5537 = vdwg.mxu0
    %v5538 = vld [vmem:[#allocation4 + $0x80] sm:$0xf]
    %v5539 = vld [vmem:[#allocation4 + $0x84] sm:$0xf]
    %v5540 = vld [vmem:[#allocation4 + $0x88] sm:$0xf]
    %v5541 = vld [vmem:[#allocation4 + $0x8c] sm:$0xf]
    %v5542 = vld [vmem:[#allocation4 + $0x90] sm:$0xf]
    %v5543 = vld [vmem:[#allocation4 + $0x94] sm:$0xf]
    %v5544 = vld [vmem:[#allocation4 + $0x98] sm:$0xf]
    %v5545 = vld [vmem:[#allocation4 + $0x9c] sm:$0xf]
    %v5546 = vld [vmem:[#allocation4 + $0xa0] sm:$0xf]
    %v5547 = vld [vmem:[#allocation4 + $0xa4] sm:$0xf]
    %v5548 = vld [vmem:[#allocation4 + $0xa8] sm:$0xf]
    %v5549 = vld [vmem:[#allocation4 + $0xac] sm:$0xf]
    %v5550 = vld [vmem:[#allocation4 + $0xb0] sm:$0xf]
    %v5551 = vld [vmem:[#allocation4 + $0xb4] sm:$0xf]
    %v5552 = vld [vmem:[#allocation4 + $0xb8] sm:$0xf]
    %v5553 = vld [vmem:[#allocation4 + $0xbc] sm:$0xf]
    %v5554 = vld [vmem:[#allocation4 + $0xc0] sm:$0xf]
    %v5555 = vld [vmem:[#allocation4 + $0xc4] sm:$0xf]
    %v5556 = vld [vmem:[#allocation4 + $0xc8] sm:$0xf]
    %v5557 = vld [vmem:[#allocation4 + $0xcc] sm:$0xf]
    %v5558 = vld [vmem:[#allocation4 + $0xd0] sm:$0xf]
    %v5559 = vld [vmem:[#allocation4 + $0xd4] sm:$0xf]
    %v5560 = vld [vmem:[#allocation4 + $0xd8] sm:$0xf]
    %v5561 = vld [vmem:[#allocation4 + $0xdc] sm:$0xf]
    %v5562 = vld [vmem:[#allocation4 + $0xe0] sm:$0xf]
    %v5563 = vld [vmem:[#allocation4 + $0xe4] sm:$0xf]
    %v5564 = vld [vmem:[#allocation4 + $0xe8] sm:$0xf]
    %v5565 = vld [vmem:[#allocation4 + $0xec] sm:$0xf]
    %v5566 = vld [vmem:[%s3 + $0x80] sm:$0xf]
    %v5567 = vld [vmem:[%s3 + $0x84] sm:$0xf]
    %v5568 = vld [vmem:[%s3 + $0x88] sm:$0xf]
    %v5569 = vld [vmem:[%s3 + $0x8c] sm:$0xf]
    %v5570 = vld [vmem:[%s3 + $0x90] sm:$0xf]
    %v5571 = vld [vmem:[%s3 + $0x94] sm:$0xf]
    %v5572 = vld [vmem:[%s3 + $0x98] sm:$0xf]
    %v5573 = vld [vmem:[%s3 + $0x9c] sm:$0xf]
    %v5574 = vld [vmem:[%s3 + $0xa0] sm:$0xf]
    %v5575 = vld [vmem:[%s3 + $0xa4] sm:$0xf]
    %v5576 = vld [vmem:[%s3 + $0xa8] sm:$0xf]
    %v5577 = vld [vmem:[%s3 + $0xac] sm:$0xf]
    %v5578 = vld [vmem:[%s3 + $0xb0] sm:$0xf]
    %v5579 = vld [vmem:[%s3 + $0xb4] sm:$0xf]
    %v5580 = vld [vmem:[%s3 + $0xb8] sm:$0xf]
    %v5581 = vld [vmem:[%s3 + $0xbc] sm:$0xf]
    %v5610 = vunpack.c.l.b16 %v5538
    %v5611 = vunpack.c.l.b16 %v5539
    %v5612 = vunpack.c.l.b16 %v5540
    %v5613 = vunpack.c.l.b16 %v5541
    %v5614 = vunpack.c.l.b16 %v5542
    %v5615 = vunpack.c.l.b16 %v5543
    %v5616 = vunpack.c.l.b16 %v5544
    %v5617 = vunpack.c.l.b16 %v5545
    %v5618 = vunpack.c.l.b16 %v5546
    %v5619 = vunpack.c.l.b16 %v5547
    %v5620 = vunpack.c.l.b16 %v5548
    %v5621 = vunpack.c.l.b16 %v5549
    %v5622 = vunpack.c.l.b16 %v5550
    %v5623 = vunpack.c.l.b16 %v5551
    %v5624 = vunpack.c.l.b16 %v5552
    %v5625 = vunpack.c.l.b16 %v5553
    %v5626 = vunpack.c.l.b16 %v5554
    %v5627 = vunpack.c.l.b16 %v5555
    %v5628 = vunpack.c.l.b16 %v5556
    %v5629 = vunpack.c.l.b16 %v5557
    %v5630 = vunpack.c.l.b16 %v5558
    %v5631 = vunpack.c.l.b16 %v5559
    %v5632 = vunpack.c.l.b16 %v5560
    %v5633 = vunpack.c.l.b16 %v5561
    %v5634 = vunpack.c.l.b16 %v5562
    %v5635 = vunpack.c.l.b16 %v5563
    %v5636 = vunpack.c.l.b16 %v5564
    %v5637 = vunpack.c.l.b16 %v5565
    %v5638 = vpack.c.b16 %v5611, %v5610
    %v5639 = vpack.c.b16 %v5613, %v5612
    %v5640 = vpack.c.b16 %v5615, %v5614
    %v5641 = vpack.c.b16 %v5617, %v5616
    %v5642 = vpack.c.b16 %v5619, %v5618
    %v5643 = vpack.c.b16 %v5621, %v5620
    %v5644 = vpack.c.b16 %v5623, %v5622
    %v5645 = vpack.c.b16 %v5625, %v5624
    %v5646 = vpack.c.b16 %v5627, %v5626
    %v5647 = vpack.c.b16 %v5629, %v5628
    %v5648 = vpack.c.b16 %v5631, %v5630
    %v5649 = vpack.c.b16 %v5633, %v5632
    %v5650 = vpack.c.b16 %v5635, %v5634
    %v5651 = vpack.c.b16 %v5637, %v5636
    %v5682 = vunpack.c.l.b16 %v5566
    %v5683 = vunpack.c.l.b16 %v5567
    %v5684 = vunpack.c.l.b16 %v5568
    %v5685 = vunpack.c.l.b16 %v5569
    %v5686 = vunpack.c.l.b16 %v5570
    %v5687 = vunpack.c.l.b16 %v5571
    %v5688 = vunpack.c.l.b16 %v5572
    %v5689 = vunpack.c.l.b16 %v5573
    %v5690 = vunpack.c.l.b16 %v5574
    %v5691 = vunpack.c.l.b16 %v5575
    %v5692 = vunpack.c.l.b16 %v5576
    %v5693 = vunpack.c.l.b16 %v5577
    %v5694 = vunpack.c.l.b16 %v5578
    %v5695 = vunpack.c.l.b16 %v5579
    %v5696 = vunpack.c.l.b16 %v5580
    %v5697 = vunpack.c.l.b16 %v5581
    %v5698 = vpack.c.b16 %v5683, %v5682
    %v5699 = vpack.c.b16 %v5685, %v5684
    %v5700 = vpack.c.b16 %v5687, %v5686
    %v5701 = vpack.c.b16 %v5689, %v5688
    %v5702 = vpack.c.b16 %v5691, %v5690
    %v5703 = vpack.c.b16 %v5693, %v5692
    %v5704 = vpack.c.b16 %v5695, %v5694
    %v5705 = vpack.c.b16 %v5697, %v5696
    %5714 = vmatpush.bf16.msra.mxu0 %v5705
    %5715 = vmatpush.bf16.msra.mxu0 %v5704
    %5716 = vmatpush.bf16.msra.mxu0 %v5703
    %5717 = vmatpush.bf16.msra.mxu0 %v5702
    %5718 = vmatpush.bf16.msra.mxu0 %v5701
    %5719 = vmatpush.bf16.msra.mxu0 %v5700
    %5720 = vmatpush.bf16.msra.mxu0 %v5699
    %5721 = vmatpush.bf16.msra.mxu0 %v5698
    %5722 = vmatmul.bf16.gmra.mxu0 %v5638
    %v5723 = vpop.f32.mrf.mxu0
    %v5724 = vadd.f32 0.0, %v5723
    %v5725 = vpop.f32.mrf.mxu0
    %v5726 = vadd.f32 0.0, %v5725
    %5727 = vmatmul.bf16.gmra.mxu0 %v5639
    %v5728 = vpop.f32.mrf.mxu0
    %v5729 = vadd.f32 0.0, %v5728
    %v5730 = vpop.f32.mrf.mxu0
    %v5731 = vadd.f32 0.0, %v5730
    %5732 = vmatmul.bf16.gmra.mxu0 %v5640
    %v5733 = vpop.f32.mrf.mxu0
    %v5734 = vadd.f32 0.0, %v5733
    %v5735 = vpop.f32.mrf.mxu0
    %v5736 = vadd.f32 0.0, %v5735
    %5737 = vmatmul.bf16.gmra.mxu0 %v5641
    %v5738 = vpop.f32.mrf.mxu0
    %v5739 = vadd.f32 0.0, %v5738
    %v5740 = vpop.f32.mrf.mxu0
    %v5741 = vadd.f32 0.0, %v5740
    %5742 = vmatmul.bf16.gmra.mxu0 %v5642
    %v5743 = vpop.f32.mrf.mxu0
    %v5744 = vadd.f32 0.0, %v5743
    %v5745 = vpop.f32.mrf.mxu0
    %v5746 = vadd.f32 0.0, %v5745
    %5747 = vmatmul.bf16.gmra.mxu0 %v5643
    %v5748 = vpop.f32.mrf.mxu0
    %v5749 = vadd.f32 0.0, %v5748
    %v5750 = vpop.f32.mrf.mxu0
    %v5751 = vadd.f32 0.0, %v5750
    %5752 = vmatmul.bf16.gmra.mxu0 %v5644
    %v5753 = vpop.f32.mrf.mxu0
    %v5754 = vadd.f32 0.0, %v5753
    %v5755 = vpop.f32.mrf.mxu0
    %v5756 = vadd.f32 0.0, %v5755
    %5757 = vmatmul.bf16.gmra.mxu0 %v5645
    %v5758 = vpop.f32.mrf.mxu0
    %v5759 = vadd.f32 0.0, %v5758
    %v5760 = vpop.f32.mrf.mxu0
    %v5761 = vadd.f32 0.0, %v5760
    %5762 = vmatmul.bf16.gmra.mxu0 %v5646
    %v5763 = vpop.f32.mrf.mxu0
    %v5764 = vadd.f32 0.0, %v5763
    %v5765 = vpop.f32.mrf.mxu0
    %v5766 = vadd.f32 0.0, %v5765
    %5767 = vmatmul.bf16.gmra.mxu0 %v5647
    %v5768 = vpop.f32.mrf.mxu0
    %v5769 = vadd.f32 0.0, %v5768
    %v5770 = vpop.f32.mrf.mxu0
    %v5771 = vadd.f32 0.0, %v5770
    %5772 = vmatmul.bf16.gmra.mxu0 %v5648
    %v5773 = vpop.f32.mrf.mxu0
    %v5774 = vadd.f32 0.0, %v5773
    %v5775 = vpop.f32.mrf.mxu0
    %v5776 = vadd.f32 0.0, %v5775
    %5777 = vmatmul.bf16.gmra.mxu0 %v5649
    %v5778 = vpop.f32.mrf.mxu0
    %v5779 = vadd.f32 0.0, %v5778
    %v5780 = vpop.f32.mrf.mxu0
    %v5781 = vadd.f32 0.0, %v5780
    %5782 = vmatmul.bf16.gmra.mxu0 %v5650
    %v5783 = vpop.f32.mrf.mxu0
    %v5784 = vadd.f32 0.0, %v5783
    %v5785 = vpop.f32.mrf.mxu0
    %v5786 = vadd.f32 0.0, %v5785
    %5787 = vmatmul.bf16.gmra.mxu0 %v5651
    %v5788 = vpop.f32.mrf.mxu0
    %v5789 = vadd.f32 0.0, %v5788
    %v5790 = vpop.f32.mrf.mxu0
    %v5791 = vadd.f32 0.0, %v5790
    %5792 = vdwg.mxu0
    %v5793 = vadd.f32 %v5469, %v5724
    %v5794 = vadd.f32 %v5471, %v5726
    %v5795 = vadd.f32 %v5474, %v5729
    %v5796 = vadd.f32 %v5476, %v5731
    %v5797 = vadd.f32 %v5479, %v5734
    %v5798 = vadd.f32 %v5481, %v5736
    %v5799 = vadd.f32 %v5484, %v5739
    %v5800 = vadd.f32 %v5486, %v5741
    %v5801 = vadd.f32 %v5489, %v5744
    %v5802 = vadd.f32 %v5491, %v5746
    %v5803 = vadd.f32 %v5494, %v5749
    %v5804 = vadd.f32 %v5496, %v5751
    %v5805 = vadd.f32 %v5499, %v5754
    %v5806 = vadd.f32 %v5501, %v5756
    %v5807 = vadd.f32 %v5504, %v5759
    %v5808 = vadd.f32 %v5506, %v5761
    %v5809 = vadd.f32 %v5509, %v5764
    %v5810 = vadd.f32 %v5511, %v5766
    %v5811 = vadd.f32 %v5514, %v5769
    %v5812 = vadd.f32 %v5516, %v5771
    %v5813 = vadd.f32 %v5519, %v5774
    %v5814 = vadd.f32 %v5521, %v5776
    %v5815 = vadd.f32 %v5524, %v5779
    %v5816 = vadd.f32 %v5526, %v5781
    %v5817 = vadd.f32 %v5529, %v5784
    %v5818 = vadd.f32 %v5531, %v5786
    %v5819 = vadd.f32 %v5534, %v5789
    %v5820 = vadd.f32 %v5536, %v5791
    %v5821 = vld [vmem:[#allocation4 + $0x88] sm:$0xf]
    %v5822 = vld [vmem:[#allocation4 + $0x8c] sm:$0xf]
    %v5823 = vld [vmem:[#allocation4 + $0x90] sm:$0xf]
    %v5824 = vld [vmem:[#allocation4 + $0x94] sm:$0xf]
    %v5825 = vld [vmem:[#allocation4 + $0x98] sm:$0xf]
    %v5826 = vld [vmem:[#allocation4 + $0x9c] sm:$0xf]
    %v5827 = vld [vmem:[#allocation4 + $0xa0] sm:$0xf]
    %v5828 = vld [vmem:[#allocation4 + $0xa4] sm:$0xf]
    %v5829 = vld [vmem:[#allocation4 + $0xa8] sm:$0xf]
    %v5830 = vld [vmem:[#allocation4 + $0xac] sm:$0xf]
    %v5831 = vld [vmem:[#allocation4 + $0xb0] sm:$0xf]
    %v5832 = vld [vmem:[#allocation4 + $0xb4] sm:$0xf]
    %v5833 = vld [vmem:[#allocation4 + $0xb8] sm:$0xf]
    %v5834 = vld [vmem:[#allocation4 + $0xbc] sm:$0xf]
    %v5835 = vld [vmem:[#allocation4 + $0xc0] sm:$0xf]
    %v5836 = vld [vmem:[#allocation4 + $0xc4] sm:$0xf]
    %v5837 = vld [vmem:[#allocation4 + $0xc8] sm:$0xf]
    %v5838 = vld [vmem:[#allocation4 + $0xcc] sm:$0xf]
    %v5839 = vld [vmem:[#allocation4 + $0xd0] sm:$0xf]
    %v5840 = vld [vmem:[#allocation4 + $0xd4] sm:$0xf]
    %v5841 = vld [vmem:[#allocation4 + $0xd8] sm:$0xf]
    %v5842 = vld [vmem:[#allocation4 + $0xdc] sm:$0xf]
    %v5843 = vld [vmem:[#allocation4 + $0xe0] sm:$0xf]
    %v5844 = vld [vmem:[#allocation4 + $0xe4] sm:$0xf]
    %v5845 = vld [vmem:[#allocation4 + $0xe8] sm:$0xf]
    %v5846 = vld [vmem:[#allocation4 + $0xec] sm:$0xf]
    %v5847 = vld [vmem:[#allocation4 + $0xf0] sm:$0xf]
    %v5848 = vld [vmem:[#allocation4 + $0xf4] sm:$0xf]
    %v5849 = vld [vmem:[%s3 + $0xc0] sm:$0xf]
    %v5850 = vld [vmem:[%s3 + $0xc4] sm:$0xf]
    %v5851 = vld [vmem:[%s3 + $0xc8] sm:$0xf]
    %v5852 = vld [vmem:[%s3 + $0xcc] sm:$0xf]
    %v5853 = vld [vmem:[%s3 + $0xd0] sm:$0xf]
    %v5854 = vld [vmem:[%s3 + $0xd4] sm:$0xf]
    %v5855 = vld [vmem:[%s3 + $0xd8] sm:$0xf]
    %v5856 = vld [vmem:[%s3 + $0xdc] sm:$0xf]
    %v5857 = vld [vmem:[%s3 + $0xe0] sm:$0xf]
    %v5858 = vld [vmem:[%s3 + $0xe4] sm:$0xf]
    %v5859 = vld [vmem:[%s3 + $0xe8] sm:$0xf]
    %v5860 = vld [vmem:[%s3 + $0xec] sm:$0xf]
    %v5861 = vld [vmem:[%s3 + $0xf0] sm:$0xf]
    %v5862 = vld [vmem:[%s3 + $0xf4] sm:$0xf]
    %v5863 = vld [vmem:[%s3 + $0xf8] sm:$0xf]
    %v5864 = vld [vmem:[%s3 + $0xfc] sm:$0xf]
    %v5893 = vunpack.c.l.b16 %v5821
    %v5894 = vunpack.c.l.b16 %v5822
    %v5895 = vunpack.c.l.b16 %v5823
    %v5896 = vunpack.c.l.b16 %v5824
    %v5897 = vunpack.c.l.b16 %v5825
    %v5898 = vunpack.c.l.b16 %v5826
    %v5899 = vunpack.c.l.b16 %v5827
    %v5900 = vunpack.c.l.b16 %v5828
    %v5901 = vunpack.c.l.b16 %v5829
    %v5902 = vunpack.c.l.b16 %v5830
    %v5903 = vunpack.c.l.b16 %v5831
    %v5904 = vunpack.c.l.b16 %v5832
    %v5905 = vunpack.c.l.b16 %v5833
    %v5906 = vunpack.c.l.b16 %v5834
    %v5907 = vunpack.c.l.b16 %v5835
    %v5908 = vunpack.c.l.b16 %v5836
    %v5909 = vunpack.c.l.b16 %v5837
    %v5910 = vunpack.c.l.b16 %v5838
    %v5911 = vunpack.c.l.b16 %v5839
    %v5912 = vunpack.c.l.b16 %v5840
    %v5913 = vunpack.c.l.b16 %v5841
    %v5914 = vunpack.c.l.b16 %v5842
    %v5915 = vunpack.c.l.b16 %v5843
    %v5916 = vunpack.c.l.b16 %v5844
    %v5917 = vunpack.c.l.b16 %v5845
    %v5918 = vunpack.c.l.b16 %v5846
    %v5919 = vunpack.c.l.b16 %v5847
    %v5920 = vunpack.c.l.b16 %v5848
    %v5921 = vpack.c.b16 %v5894, %v5893
    %v5922 = vpack.c.b16 %v5896, %v5895
    %v5923 = vpack.c.b16 %v5898, %v5897
    %v5924 = vpack.c.b16 %v5900, %v5899
    %v5925 = vpack.c.b16 %v5902, %v5901
    %v5926 = vpack.c.b16 %v5904, %v5903
    %v5927 = vpack.c.b16 %v5906, %v5905
    %v5928 = vpack.c.b16 %v5908, %v5907
    %v5929 = vpack.c.b16 %v5910, %v5909
    %v5930 = vpack.c.b16 %v5912, %v5911
    %v5931 = vpack.c.b16 %v5914, %v5913
    %v5932 = vpack.c.b16 %v5916, %v5915
    %v5933 = vpack.c.b16 %v5918, %v5917
    %v5934 = vpack.c.b16 %v5920, %v5919
    %v5965 = vunpack.c.l.b16 %v5849
    %v5966 = vunpack.c.l.b16 %v5850
    %v5967 = vunpack.c.l.b16 %v5851
    %v5968 = vunpack.c.l.b16 %v5852
    %v5969 = vunpack.c.l.b16 %v5853
    %v5970 = vunpack.c.l.b16 %v5854
    %v5971 = vunpack.c.l.b16 %v5855
    %v5972 = vunpack.c.l.b16 %v5856
    %v5973 = vunpack.c.l.b16 %v5857
    %v5974 = vunpack.c.l.b16 %v5858
    %v5975 = vunpack.c.l.b16 %v5859
    %v5976 = vunpack.c.l.b16 %v5860
    %v5977 = vunpack.c.l.b16 %v5861
    %v5978 = vunpack.c.l.b16 %v5862
    %v5979 = vunpack.c.l.b16 %v5863
    %v5980 = vunpack.c.l.b16 %v5864
    %v5981 = vpack.c.b16 %v5966, %v5965
    %v5982 = vpack.c.b16 %v5968, %v5967
    %v5983 = vpack.c.b16 %v5970, %v5969
    %v5984 = vpack.c.b16 %v5972, %v5971
    %v5985 = vpack.c.b16 %v5974, %v5973
    %v5986 = vpack.c.b16 %v5976, %v5975
    %v5987 = vpack.c.b16 %v5978, %v5977
    %v5988 = vpack.c.b16 %v5980, %v5979
    %5997 = vmatpush.bf16.msra.mxu0 %v5988
    %5998 = vmatpush.bf16.msra.mxu0 %v5987
    %5999 = vmatpush.bf16.msra.mxu0 %v5986
    %6000 = vmatpush.bf16.msra.mxu0 %v5985
    %6001 = vmatpush.bf16.msra.mxu0 %v5984
    %6002 = vmatpush.bf16.msra.mxu0 %v5983
    %6003 = vmatpush.bf16.msra.mxu0 %v5982
    %6004 = vmatpush.bf16.msra.mxu0 %v5981
    %6005 = vmatmul.bf16.gmra.mxu0 %v5921
    %v6006 = vpop.f32.mrf.mxu0
    %v6007 = vadd.f32 0.0, %v6006
    %v6008 = vpop.f32.mrf.mxu0
    %v6009 = vadd.f32 0.0, %v6008
    %6010 = vmatmul.bf16.gmra.mxu0 %v5922
    %v6011 = vpop.f32.mrf.mxu0
    %v6012 = vadd.f32 0.0, %v6011
    %v6013 = vpop.f32.mrf.mxu0
    %v6014 = vadd.f32 0.0, %v6013
    %6015 = vmatmul.bf16.gmra.mxu0 %v5923
    %v6016 = vpop.f32.mrf.mxu0
    %v6017 = vadd.f32 0.0, %v6016
    %v6018 = vpop.f32.mrf.mxu0
    %v6019 = vadd.f32 0.0, %v6018
    %6020 = vmatmul.bf16.gmra.mxu0 %v5924
    %v6021 = vpop.f32.mrf.mxu0
    %v6022 = vadd.f32 0.0, %v6021
    %v6023 = vpop.f32.mrf.mxu0
    %v6024 = vadd.f32 0.0, %v6023
    %6025 = vmatmul.bf16.gmra.mxu0 %v5925
    %v6026 = vpop.f32.mrf.mxu0
    %v6027 = vadd.f32 0.0, %v6026
    %v6028 = vpop.f32.mrf.mxu0
    %v6029 = vadd.f32 0.0, %v6028
    %6030 = vmatmul.bf16.gmra.mxu0 %v5926
    %v6031 = vpop.f32.mrf.mxu0
    %v6032 = vadd.f32 0.0, %v6031
    %v6033 = vpop.f32.mrf.mxu0
    %v6034 = vadd.f32 0.0, %v6033
    %6035 = vmatmul.bf16.gmra.mxu0 %v5927
    %v6036 = vpop.f32.mrf.mxu0
    %v6037 = vadd.f32 0.0, %v6036
    %v6038 = vpop.f32.mrf.mxu0
    %v6039 = vadd.f32 0.0, %v6038
    %6040 = vmatmul.bf16.gmra.mxu0 %v5928
    %v6041 = vpop.f32.mrf.mxu0
    %v6042 = vadd.f32 0.0, %v6041
    %v6043 = vpop.f32.mrf.mxu0
    %v6044 = vadd.f32 0.0, %v6043
    %6045 = vmatmul.bf16.gmra.mxu0 %v5929
    %v6046 = vpop.f32.mrf.mxu0
    %v6047 = vadd.f32 0.0, %v6046
    %v6048 = vpop.f32.mrf.mxu0
    %v6049 = vadd.f32 0.0, %v6048
    %6050 = vmatmul.bf16.gmra.mxu0 %v5930
    %v6051 = vpop.f32.mrf.mxu0
    %v6052 = vadd.f32 0.0, %v6051
    %v6053 = vpop.f32.mrf.mxu0
    %v6054 = vadd.f32 0.0, %v6053
    %6055 = vmatmul.bf16.gmra.mxu0 %v5931
    %v6056 = vpop.f32.mrf.mxu0
    %v6057 = vadd.f32 0.0, %v6056
    %v6058 = vpop.f32.mrf.mxu0
    %v6059 = vadd.f32 0.0, %v6058
    %6060 = vmatmul.bf16.gmra.mxu0 %v5932
    %v6061 = vpop.f32.mrf.mxu0
    %v6062 = vadd.f32 0.0, %v6061
    %v6063 = vpop.f32.mrf.mxu0
    %v6064 = vadd.f32 0.0, %v6063
    %6065 = vmatmul.bf16.gmra.mxu0 %v5933
    %v6066 = vpop.f32.mrf.mxu0
    %v6067 = vadd.f32 0.0, %v6066
    %v6068 = vpop.f32.mrf.mxu0
    %v6069 = vadd.f32 0.0, %v6068
    %6070 = vmatmul.bf16.gmra.mxu0 %v5934
    %v6071 = vpop.f32.mrf.mxu0
    %v6072 = vadd.f32 0.0, %v6071
    %v6073 = vpop.f32.mrf.mxu0
    %v6074 = vadd.f32 0.0, %v6073
    %6075 = vdwg.mxu0
    %v6076 = vadd.f32 %v5793, %v6007
    %v6077 = vadd.f32 %v5794, %v6009
    %v6078 = vadd.f32 %v5795, %v6012
    %v6079 = vadd.f32 %v5796, %v6014
    %v6080 = vadd.f32 %v5797, %v6017
    %v6081 = vadd.f32 %v5798, %v6019
    %v6082 = vadd.f32 %v5799, %v6022
    %v6083 = vadd.f32 %v5800, %v6024
    %v6084 = vadd.f32 %v5801, %v6027
    %v6085 = vadd.f32 %v5802, %v6029
    %v6086 = vadd.f32 %v5803, %v6032
    %v6087 = vadd.f32 %v5804, %v6034
    %v6088 = vadd.f32 %v5805, %v6037
    %v6089 = vadd.f32 %v5806, %v6039
    %v6090 = vadd.f32 %v5807, %v6042
    %v6091 = vadd.f32 %v5808, %v6044
    %v6092 = vadd.f32 %v5809, %v6047
    %v6093 = vadd.f32 %v5810, %v6049
    %v6094 = vadd.f32 %v5811, %v6052
    %v6095 = vadd.f32 %v5812, %v6054
    %v6096 = vadd.f32 %v5813, %v6057
    %v6097 = vadd.f32 %v5814, %v6059
    %v6098 = vadd.f32 %v5815, %v6062
    %v6099 = vadd.f32 %v5816, %v6064
    %v6100 = vadd.f32 %v5817, %v6067
    %v6101 = vadd.f32 %v5818, %v6069
    %v6102 = vadd.f32 %v5819, %v6072
    %v6103 = vadd.f32 %v5820, %v6074
    %v6104 = vld [vmem:[#allocation4 + $0x90] sm:$0xf]
    %v6105 = vld [vmem:[#allocation4 + $0x94] sm:$0xf]
    %v6106 = vld [vmem:[#allocation4 + $0x98] sm:$0xf]
    %v6107 = vld [vmem:[#allocation4 + $0x9c] sm:$0xf]
    %v6108 = vld [vmem:[#allocation4 + $0xa0] sm:$0xf]
    %v6109 = vld [vmem:[#allocation4 + $0xa4] sm:$0xf]
    %v6110 = vld [vmem:[#allocation4 + $0xa8] sm:$0xf]
    %v6111 = vld [vmem:[#allocation4 + $0xac] sm:$0xf]
    %v6112 = vld [vmem:[#allocation4 + $0xb0] sm:$0xf]
    %v6113 = vld [vmem:[#allocation4 + $0xb4] sm:$0xf]
    %v6114 = vld [vmem:[#allocation4 + $0xb8] sm:$0xf]
    %v6115 = vld [vmem:[#allocation4 + $0xbc] sm:$0xf]
    %v6116 = vld [vmem:[#allocation4 + $0xc0] sm:$0xf]
    %v6117 = vld [vmem:[#allocation4 + $0xc4] sm:$0xf]
    %v6118 = vld [vmem:[#allocation4 + $0xc8] sm:$0xf]
    %v6119 = vld [vmem:[#allocation4 + $0xcc] sm:$0xf]
    %v6120 = vld [vmem:[#allocation4 + $0xd0] sm:$0xf]
    %v6121 = vld [vmem:[#allocation4 + $0xd4] sm:$0xf]
    %v6122 = vld [vmem:[#allocation4 + $0xd8] sm:$0xf]
    %v6123 = vld [vmem:[#allocation4 + $0xdc] sm:$0xf]
    %v6124 = vld [vmem:[#allocation4 + $0xe0] sm:$0xf]
    %v6125 = vld [vmem:[#allocation4 + $0xe4] sm:$0xf]
    %v6126 = vld [vmem:[#allocation4 + $0xe8] sm:$0xf]
    %v6127 = vld [vmem:[#allocation4 + $0xec] sm:$0xf]
    %v6128 = vld [vmem:[#allocation4 + $0xf0] sm:$0xf]
    %v6129 = vld [vmem:[#allocation4 + $0xf4] sm:$0xf]
    %v6130 = vld [vmem:[#allocation4 + $0xf8] sm:$0xf]
    %v6131 = vld [vmem:[#allocation4 + $0xfc] sm:$0xf]
    %v6132 = vld [vmem:[%s3 + $0x100] sm:$0xf]
    %v6133 = vld [vmem:[%s3 + $0x104] sm:$0xf]
    %v6134 = vld [vmem:[%s3 + $0x108] sm:$0xf]
    %v6135 = vld [vmem:[%s3 + $0x10c] sm:$0xf]
    %v6136 = vld [vmem:[%s3 + $0x110] sm:$0xf]
    %v6137 = vld [vmem:[%s3 + $0x114] sm:$0xf]
    %v6138 = vld [vmem:[%s3 + $0x118] sm:$0xf]
    %v6139 = vld [vmem:[%s3 + $0x11c] sm:$0xf]
    %v6140 = vld [vmem:[%s3 + $0x120] sm:$0xf]
    %v6141 = vld [vmem:[%s3 + $0x124] sm:$0xf]
    %v6142 = vld [vmem:[%s3 + $0x128] sm:$0xf]
    %v6143 = vld [vmem:[%s3 + $0x12c] sm:$0xf]
    %v6144 = vld [vmem:[%s3 + $0x130] sm:$0xf]
    %v6145 = vld [vmem:[%s3 + $0x134] sm:$0xf]
    %v6146 = vld [vmem:[%s3 + $0x138] sm:$0xf]
    %v6147 = vld [vmem:[%s3 + $0x13c] sm:$0xf]
    %v6176 = vunpack.c.l.b16 %v6104
    %v6177 = vunpack.c.l.b16 %v6105
    %v6178 = vunpack.c.l.b16 %v6106
    %v6179 = vunpack.c.l.b16 %v6107
    %v6180 = vunpack.c.l.b16 %v6108
    %v6181 = vunpack.c.l.b16 %v6109
    %v6182 = vunpack.c.l.b16 %v6110
    %v6183 = vunpack.c.l.b16 %v6111
    %v6184 = vunpack.c.l.b16 %v6112
    %v6185 = vunpack.c.l.b16 %v6113
    %v6186 = vunpack.c.l.b16 %v6114
    %v6187 = vunpack.c.l.b16 %v6115
    %v6188 = vunpack.c.l.b16 %v6116
    %v6189 = vunpack.c.l.b16 %v6117
    %v6190 = vunpack.c.l.b16 %v6118
    %v6191 = vunpack.c.l.b16 %v6119
    %v6192 = vunpack.c.l.b16 %v6120
    %v6193 = vunpack.c.l.b16 %v6121
    %v6194 = vunpack.c.l.b16 %v6122
    %v6195 = vunpack.c.l.b16 %v6123
    %v6196 = vunpack.c.l.b16 %v6124
    %v6197 = vunpack.c.l.b16 %v6125
    %v6198 = vunpack.c.l.b16 %v6126
    %v6199 = vunpack.c.l.b16 %v6127
    %v6200 = vunpack.c.l.b16 %v6128
    %v6201 = vunpack.c.l.b16 %v6129
    %v6202 = vunpack.c.l.b16 %v6130
    %v6203 = vunpack.c.l.b16 %v6131
    %v6204 = vpack.c.b16 %v6177, %v6176
    %v6205 = vpack.c.b16 %v6179, %v6178
    %v6206 = vpack.c.b16 %v6181, %v6180
    %v6207 = vpack.c.b16 %v6183, %v6182
    %v6208 = vpack.c.b16 %v6185, %v6184
    %v6209 = vpack.c.b16 %v6187, %v6186
    %v6210 = vpack.c.b16 %v6189, %v6188
    %v6211 = vpack.c.b16 %v6191, %v6190
    %v6212 = vpack.c.b16 %v6193, %v6192
    %v6213 = vpack.c.b16 %v6195, %v6194
    %v6214 = vpack.c.b16 %v6197, %v6196
    %v6215 = vpack.c.b16 %v6199, %v6198
    %v6216 = vpack.c.b16 %v6201, %v6200
    %v6217 = vpack.c.b16 %v6203, %v6202
    %v6248 = vunpack.c.l.b16 %v6132
    %v6249 = vunpack.c.l.b16 %v6133
    %v6250 = vunpack.c.l.b16 %v6134
    %v6251 = vunpack.c.l.b16 %v6135
    %v6252 = vunpack.c.l.b16 %v6136
    %v6253 = vunpack.c.l.b16 %v6137
    %v6254 = vunpack.c.l.b16 %v6138
    %v6255 = vunpack.c.l.b16 %v6139
    %v6256 = vunpack.c.l.b16 %v6140
    %v6257 = vunpack.c.l.b16 %v6141
    %v6258 = vunpack.c.l.b16 %v6142
    %v6259 = vunpack.c.l.b16 %v6143
    %v6260 = vunpack.c.l.b16 %v6144
    %v6261 = vunpack.c.l.b16 %v6145
    %v6262 = vunpack.c.l.b16 %v6146
    %v6263 = vunpack.c.l.b16 %v6147
    %v6264 = vpack.c.b16 %v6249, %v6248
    %v6265 = vpack.c.b16 %v6251, %v6250
    %v6266 = vpack.c.b16 %v6253, %v6252
    %v6267 = vpack.c.b16 %v6255, %v6254
    %v6268 = vpack.c.b16 %v6257, %v6256
    %v6269 = vpack.c.b16 %v6259, %v6258
    %v6270 = vpack.c.b16 %v6261, %v6260
    %v6271 = vpack.c.b16 %v6263, %v6262
    %6280 = vmatpush.bf16.msra.mxu0 %v6271
    %6281 = vmatpush.bf16.msra.mxu0 %v6270
    %6282 = vmatpush.bf16.msra.mxu0 %v6269
    %6283 = vmatpush.bf16.msra.mxu0 %v6268
    %6284 = vmatpush.bf16.msra.mxu0 %v6267
    %6285 = vmatpush.bf16.msra.mxu0 %v6266
    %6286 = vmatpush.bf16.msra.mxu0 %v6265
    %6287 = vmatpush.bf16.msra.mxu0 %v6264
    %6288 = vmatmul.bf16.gmra.mxu0 %v6204
    %v6289 = vpop.f32.mrf.mxu0
    %v6290 = vadd.f32 0.0, %v6289
    %v6291 = vpop.f32.mrf.mxu0
    %v6292 = vadd.f32 0.0, %v6291
    %6293 = vmatmul.bf16.gmra.mxu0 %v6205
    %v6294 = vpop.f32.mrf.mxu0
    %v6295 = vadd.f32 0.0, %v6294
    %v6296 = vpop.f32.mrf.mxu0
    %v6297 = vadd.f32 0.0, %v6296
    %6298 = vmatmul.bf16.gmra.mxu0 %v6206
    %v6299 = vpop.f32.mrf.mxu0
    %v6300 = vadd.f32 0.0, %v6299
    %v6301 = vpop.f32.mrf.mxu0
    %v6302 = vadd.f32 0.0, %v6301
    %6303 = vmatmul.bf16.gmra.mxu0 %v6207
    %v6304 = vpop.f32.mrf.mxu0
    %v6305 = vadd.f32 0.0, %v6304
    %v6306 = vpop.f32.mrf.mxu0
    %v6307 = vadd.f32 0.0, %v6306
    %6308 = vmatmul.bf16.gmra.mxu0 %v6208
    %v6309 = vpop.f32.mrf.mxu0
    %v6310 = vadd.f32 0.0, %v6309
    %v6311 = vpop.f32.mrf.mxu0
    %v6312 = vadd.f32 0.0, %v6311
    %6313 = vmatmul.bf16.gmra.mxu0 %v6209
    %v6314 = vpop.f32.mrf.mxu0
    %v6315 = vadd.f32 0.0, %v6314
    %v6316 = vpop.f32.mrf.mxu0
    %v6317 = vadd.f32 0.0, %v6316
    %6318 = vmatmul.bf16.gmra.mxu0 %v6210
    %v6319 = vpop.f32.mrf.mxu0
    %v6320 = vadd.f32 0.0, %v6319
    %v6321 = vpop.f32.mrf.mxu0
    %v6322 = vadd.f32 0.0, %v6321
    %6323 = vmatmul.bf16.gmra.mxu0 %v6211
    %v6324 = vpop.f32.mrf.mxu0
    %v6325 = vadd.f32 0.0, %v6324
    %v6326 = vpop.f32.mrf.mxu0
    %v6327 = vadd.f32 0.0, %v6326
    %6328 = vmatmul.bf16.gmra.mxu0 %v6212
    %v6329 = vpop.f32.mrf.mxu0
    %v6330 = vadd.f32 0.0, %v6329
    %v6331 = vpop.f32.mrf.mxu0
    %v6332 = vadd.f32 0.0, %v6331
    %6333 = vmatmul.bf16.gmra.mxu0 %v6213
    %v6334 = vpop.f32.mrf.mxu0
    %v6335 = vadd.f32 0.0, %v6334
    %v6336 = vpop.f32.mrf.mxu0
    %v6337 = vadd.f32 0.0, %v6336
    %6338 = vmatmul.bf16.gmra.mxu0 %v6214
    %v6339 = vpop.f32.mrf.mxu0
    %v6340 = vadd.f32 0.0, %v6339
    %v6341 = vpop.f32.mrf.mxu0
    %v6342 = vadd.f32 0.0, %v6341
    %6343 = vmatmul.bf16.gmra.mxu0 %v6215
    %v6344 = vpop.f32.mrf.mxu0
    %v6345 = vadd.f32 0.0, %v6344
    %v6346 = vpop.f32.mrf.mxu0
    %v6347 = vadd.f32 0.0, %v6346
    %6348 = vmatmul.bf16.gmra.mxu0 %v6216
    %v6349 = vpop.f32.mrf.mxu0
    %v6350 = vadd.f32 0.0, %v6349
    %v6351 = vpop.f32.mrf.mxu0
    %v6352 = vadd.f32 0.0, %v6351
    %6353 = vmatmul.bf16.gmra.mxu0 %v6217
    %v6354 = vpop.f32.mrf.mxu0
    %v6355 = vadd.f32 0.0, %v6354
    %v6356 = vpop.f32.mrf.mxu0
    %v6357 = vadd.f32 0.0, %v6356
    %6358 = vdwg.mxu0
    %v6359 = vadd.f32 %v6076, %v6290
    %v6360 = vadd.f32 %v6077, %v6292
    %v6361 = vadd.f32 %v6078, %v6295
    %v6362 = vadd.f32 %v6079, %v6297
    %v6363 = vadd.f32 %v6080, %v6300
    %v6364 = vadd.f32 %v6081, %v6302
    %v6365 = vadd.f32 %v6082, %v6305
    %v6366 = vadd.f32 %v6083, %v6307
    %v6367 = vadd.f32 %v6084, %v6310
    %v6368 = vadd.f32 %v6085, %v6312
    %v6369 = vadd.f32 %v6086, %v6315
    %v6370 = vadd.f32 %v6087, %v6317
    %v6371 = vadd.f32 %v6088, %v6320
    %v6372 = vadd.f32 %v6089, %v6322
    %v6373 = vadd.f32 %v6090, %v6325
    %v6374 = vadd.f32 %v6091, %v6327
    %v6375 = vadd.f32 %v6092, %v6330
    %v6376 = vadd.f32 %v6093, %v6332
    %v6377 = vadd.f32 %v6094, %v6335
    %v6378 = vadd.f32 %v6095, %v6337
    %v6379 = vadd.f32 %v6096, %v6340
    %v6380 = vadd.f32 %v6097, %v6342
    %v6381 = vadd.f32 %v6098, %v6345
    %v6382 = vadd.f32 %v6099, %v6347
    %v6383 = vadd.f32 %v6100, %v6350
    %v6384 = vadd.f32 %v6101, %v6352
    %v6385 = vadd.f32 %v6102, %v6355
    %v6386 = vadd.f32 %v6103, %v6357
    %v6387 = vadd.f32 %v6359, %v5046
    %v6388 = vadd.f32 %v6360, %v5046
    %v6389 = vadd.f32 %v6361, %v5046
    %v6390 = vadd.f32 %v6362, %v5046
    %v6391 = vadd.f32 %v6363, %v5046
    %v6392 = vadd.f32 %v6364, %v5046
    %v6393 = vadd.f32 %v6365, %v5046
    %v6394 = vadd.f32 %v6366, %v5046
    %v6395 = vadd.f32 %v6367, %v5046
    %v6396 = vadd.f32 %v6368, %v5046
    %v6397 = vadd.f32 %v6369, %v5046
    %v6398 = vadd.f32 %v6370, %v5046
    %v6399 = vadd.f32 %v6371, %v5046
    %v6400 = vadd.f32 %v6372, %v5046
    %v6401 = vadd.f32 %v6373, %v5046
    %v6402 = vadd.f32 %v6374, %v5046
    %v6403 = vadd.f32 %v6375, %v5046
    %v6404 = vadd.f32 %v6376, %v5046
    %v6405 = vadd.f32 %v6377, %v5046
    %v6406 = vadd.f32 %v6378, %v5046
    %v6407 = vadd.f32 %v6379, %v5046
    %v6408 = vadd.f32 %v6380, %v5046
    %v6409 = vadd.f32 %v6381, %v5046
    %v6410 = vadd.f32 %v6382, %v5046
    %v6411 = vadd.f32 %v6383, %v5046
    %v6412 = vadd.f32 %v6384, %v5046
    %v6413 = vadd.f32 %v6385, %v5046
    %v6414 = vadd.f32 %v6386, %v5046
    %v6415 = vmax.f32 %v6387, 0.0
    %v6416 = vmax.f32 %v6388, 0.0
    %v6417 = vmax.f32 %v6389, 0.0
    %v6418 = vmax.f32 %v6390, 0.0
    %v6419 = vmax.f32 %v6391, 0.0
    %v6420 = vmax.f32 %v6392, 0.0
    %v6421 = vmax.f32 %v6393, 0.0
    %v6422 = vmax.f32 %v6394, 0.0
    %v6423 = vmax.f32 %v6395, 0.0
    %v6424 = vmax.f32 %v6396, 0.0
    %v6425 = vmax.f32 %v6397, 0.0
    %v6426 = vmax.f32 %v6398, 0.0
    %v6427 = vmax.f32 %v6399, 0.0
    %v6428 = vmax.f32 %v6400, 0.0
    %v6429 = vmax.f32 %v6401, 0.0
    %v6430 = vmax.f32 %v6402, 0.0
    %v6431 = vmax.f32 %v6403, 0.0
    %v6432 = vmax.f32 %v6404, 0.0
    %v6433 = vmax.f32 %v6405, 0.0
    %v6434 = vmax.f32 %v6406, 0.0
    %v6435 = vmax.f32 %v6407, 0.0
    %v6436 = vmax.f32 %v6408, 0.0
    %v6437 = vmax.f32 %v6409, 0.0
    %v6438 = vmax.f32 %v6410, 0.0
    %v6439 = vmax.f32 %v6411, 0.0
    %v6440 = vmax.f32 %v6412, 0.0
    %v6441 = vmax.f32 %v6413, 0.0
    %v6442 = vmax.f32 %v6414, 0.0
    %6443 = vst [vmem:[#allocation5 + $0xe0] sm:$0xff] %v6415
    %6444 = vst [vmem:[#allocation5 + $0xe8] sm:$0xff] %v6416
    %6445 = vst [vmem:[#allocation5 + $0xf0] sm:$0xff] %v6417
    %6446 = vst [vmem:[#allocation5 + $0xf8] sm:$0xff] %v6418
    %6447 = vst [vmem:[#allocation5 + $0x100] sm:$0xff] %v6419
    %6448 = vst [vmem:[#allocation5 + $0x108] sm:$0xff] %v6420
    %6449 = vst [vmem:[#allocation5 + $0x110] sm:$0xff] %v6421
    %6450 = vst [vmem:[#allocation5 + $0x118] sm:$0xff] %v6422
    %6451 = vst [vmem:[#allocation5 + $0x120] sm:$0xff] %v6423
    %6452 = vst [vmem:[#allocation5 + $0x128] sm:$0xff] %v6424
    %6453 = vst [vmem:[#allocation5 + $0x130] sm:$0xff] %v6425
    %6454 = vst [vmem:[#allocation5 + $0x138] sm:$0xff] %v6426
    %6455 = vst [vmem:[#allocation5 + $0x140] sm:$0xff] %v6427
    %6456 = vst [vmem:[#allocation5 + $0x148] sm:$0xff] %v6428
    %6457 = vst [vmem:[#allocation5 + $0x150] sm:$0xff] %v6429
    %6458 = vst [vmem:[#allocation5 + $0x158] sm:$0xff] %v6430
    %6459 = vst [vmem:[#allocation5 + $0x160] sm:$0xff] %v6431
    %6460 = vst [vmem:[#allocation5 + $0x168] sm:$0xff] %v6432
    %6461 = vst [vmem:[#allocation5 + $0x170] sm:$0xff] %v6433
    %6462 = vst [vmem:[#allocation5 + $0x178] sm:$0xff] %v6434
    %6463 = vst [vmem:[#allocation5 + $0x180] sm:$0xff] %v6435
    %6464 = vst [vmem:[#allocation5 + $0x188] sm:$0xff] %v6436
    %6465 = vst [vmem:[#allocation5 + $0x190] sm:$0xff] %v6437
    %6466 = vst [vmem:[#allocation5 + $0x198] sm:$0xff] %v6438
    %6467 = vst [vmem:[#allocation5 + $0x1a0] sm:$0xff] %v6439
    %6468 = vst [vmem:[#allocation5 + $0x1a8] sm:$0xff] %v6440
    %6469 = vst [vmem:[#allocation5 + $0x1b0] sm:$0xff] %v6441
    %6470 = vst [vmem:[#allocation5 + $0x1b8] sm:$0xff] %v6442
    %v6471 = vld [vmem:[#allocation5] ss:$2 sm:$0x1f]
    %s6472 = scalar_lea.vmem [#allocation5], 1
    %v6473 = vld [vmem:[%s6472] ss:$2 sm:$0x1f]
    %v6474 = vmax.f32 %v6471, %v6473
    %s6475 = scalar_lea.vmem [#allocation5], 16
    %v6476 = vld [vmem:[%s6475] ss:$2 sm:$0x1f]
    %s6477 = scalar_lea.vmem [#allocation5], 17
    %v6478 = vld [vmem:[%s6477] ss:$2 sm:$0x1f]
    %v6479 = vmax.f32 %v6476, %v6478
    %v6480 = vmax.f32 %v6474, %v6479
    %6481 = vst [vmem:[#allocation6] sm:$0x1f] %v6480
    %s6482 = scalar_lea.vmem [#allocation5], 32
    %v6483 = vld [vmem:[%s6482] ss:$2 sm:$0x1f]
    %s6484 = scalar_lea.vmem [#allocation5], 33
    %v6485 = vld [vmem:[%s6484] ss:$2 sm:$0x1f]
    %v6486 = vmax.f32 %v6483, %v6485
    %s6487 = scalar_lea.vmem [#allocation5], 48
    %v6488 = vld [vmem:[%s6487] ss:$2 sm:$0x1f]
    %s6489 = scalar_lea.vmem [#allocation5], 49
    %v6490 = vld [vmem:[%s6489] ss:$2 sm:$0x1f]
    %v6491 = vmax.f32 %v6488, %v6490
    %v6492 = vmax.f32 %v6486, %v6491
    %6493 = vst [vmem:[#allocation6 + $0x5] sm:$0x1f] %v6492
    %s6494 = scalar_lea.vmem [#allocation5], 64
    %v6495 = vld [vmem:[%s6494] ss:$2 sm:$0x1f]
    %s6496 = scalar_lea.vmem [#allocation5], 65
    %v6497 = vld [vmem:[%s6496] ss:$2 sm:$0x1f]
    %v6498 = vmax.f32 %v6495, %v6497
    %s6499 = scalar_lea.vmem [#allocation5], 80
    %v6500 = vld [vmem:[%s6499] ss:$2 sm:$0x1f]
    %s6501 = scalar_lea.vmem [#allocation5], 81
    %v6502 = vld [vmem:[%s6501] ss:$2 sm:$0x1f]
    %v6503 = vmax.f32 %v6500, %v6502
    %v6504 = vmax.f32 %v6498, %v6503
    %6505 = vst [vmem:[#allocation6 + $0xa] sm:$0x1f] %v6504
    %s6506 = scalar_lea.vmem [#allocation5], 96
    %v6507 = vld [vmem:[%s6506] ss:$2 sm:$0x1f]
    %s6508 = scalar_lea.vmem [#allocation5], 97
    %v6509 = vld [vmem:[%s6508] ss:$2 sm:$0x1f]
    %v6510 = vmax.f32 %v6507, %v6509
    %s6511 = scalar_lea.vmem [#allocation5], 112
    %v6512 = vld [vmem:[%s6511] ss:$2 sm:$0x1f]
    %s6513 = scalar_lea.vmem [#allocation5], 113
    %v6514 = vld [vmem:[%s6513] ss:$2 sm:$0x1f]
    %v6515 = vmax.f32 %v6512, %v6514
    %v6516 = vmax.f32 %v6510, %v6515
    %6517 = vst [vmem:[#allocation6 + $0xf] sm:$0x1f] %v6516
    %s6518 = scalar_lea.vmem [#allocation5], 128
    %v6519 = vld [vmem:[%s6518] ss:$2 sm:$0x1f]
    %s6520 = scalar_lea.vmem [#allocation5], 129
    %v6521 = vld [vmem:[%s6520] ss:$2 sm:$0x1f]
    %v6522 = vmax.f32 %v6519, %v6521
    %s6523 = scalar_lea.vmem [#allocation5], 144
    %v6524 = vld [vmem:[%s6523] ss:$2 sm:$0x1f]
    %s6525 = scalar_lea.vmem [#allocation5], 145
    %v6526 = vld [vmem:[%s6525] ss:$2 sm:$0x1f]
    %v6527 = vmax.f32 %v6524, %v6526
    %v6528 = vmax.f32 %v6522, %v6527
    %6529 = vst [vmem:[#allocation6 + $0x14] sm:$0x1f] %v6528
    %s6530 = scalar_lea.vmem [#allocation5], 224
    %v6531 = vld [vmem:[%s6530] ss:$2 sm:$0x1f]
    %s6532 = scalar_lea.vmem [#allocation5], 225
    %v6533 = vld [vmem:[%s6532] ss:$2 sm:$0x1f]
    %v6534 = vmax.f32 %v6531, %v6533
    %s6535 = scalar_lea.vmem [#allocation5], 240
    %v6536 = vld [vmem:[%s6535] ss:$2 sm:$0x1f]
    %s6537 = scalar_lea.vmem [#allocation5], 241
    %v6538 = vld [vmem:[%s6537] ss:$2 sm:$0x1f]
    %v6539 = vmax.f32 %v6536, %v6538
    %v6540 = vmax.f32 %v6534, %v6539
    %6541 = vst [vmem:[#allocation6 + $0x19] sm:$0x1f] %v6540
    %s6542 = scalar_lea.vmem [#allocation5], 256
    %v6543 = vld [vmem:[%s6542] ss:$2 sm:$0x1f]
    %s6544 = scalar_lea.vmem [#allocation5], 257
    %v6545 = vld [vmem:[%s6544] ss:$2 sm:$0x1f]
    %v6546 = vmax.f32 %v6543, %v6545
    %s6547 = scalar_lea.vmem [#allocation5], 272
    %v6548 = vld [vmem:[%s6547] ss:$2 sm:$0x1f]
    %s6549 = scalar_lea.vmem [#allocation5], 273
    %v6550 = vld [vmem:[%s6549] ss:$2 sm:$0x1f]
    %v6551 = vmax.f32 %v6548, %v6550
    %v6552 = vmax.f32 %v6546, %v6551
    %6553 = vst [vmem:[#allocation6 + $0x1e] sm:$0x1f] %v6552
    %s6554 = scalar_lea.vmem [#allocation5], 288
    %v6555 = vld [vmem:[%s6554] ss:$2 sm:$0x1f]
    %s6556 = scalar_lea.vmem [#allocation5], 289
    %v6557 = vld [vmem:[%s6556] ss:$2 sm:$0x1f]
    %v6558 = vmax.f32 %v6555, %v6557
    %s6559 = scalar_lea.vmem [#allocation5], 304
    %v6560 = vld [vmem:[%s6559] ss:$2 sm:$0x1f]
    %s6561 = scalar_lea.vmem [#allocation5], 305
    %v6562 = vld [vmem:[%s6561] ss:$2 sm:$0x1f]
    %v6563 = vmax.f32 %v6560, %v6562
    %v6564 = vmax.f32 %v6558, %v6563
    %6565 = vst [vmem:[#allocation6 + $0x23] sm:$0x1f] %v6564
    %s6566 = scalar_lea.vmem [#allocation5], 320
    %v6567 = vld [vmem:[%s6566] ss:$2 sm:$0x1f]
    %s6568 = scalar_lea.vmem [#allocation5], 321
    %v6569 = vld [vmem:[%s6568] ss:$2 sm:$0x1f]
    %v6570 = vmax.f32 %v6567, %v6569
    %s6571 = scalar_lea.vmem [#allocation5], 336
    %v6572 = vld [vmem:[%s6571] ss:$2 sm:$0x1f]
    %s6573 = scalar_lea.vmem [#allocation5], 337
    %v6574 = vld [vmem:[%s6573] ss:$2 sm:$0x1f]
    %v6575 = vmax.f32 %v6572, %v6574
    %v6576 = vmax.f32 %v6570, %v6575
    %6577 = vst [vmem:[#allocation6 + $0x28] sm:$0x1f] %v6576
    %s6578 = scalar_lea.vmem [#allocation5], 352
    %v6579 = vld [vmem:[%s6578] ss:$2 sm:$0x1f]
    %s6580 = scalar_lea.vmem [#allocation5], 353
    %v6581 = vld [vmem:[%s6580] ss:$2 sm:$0x1f]
    %v6582 = vmax.f32 %v6579, %v6581
    %s6583 = scalar_lea.vmem [#allocation5], 368
    %v6584 = vld [vmem:[%s6583] ss:$2 sm:$0x1f]
    %s6585 = scalar_lea.vmem [#allocation5], 369
    %v6586 = vld [vmem:[%s6585] ss:$2 sm:$0x1f]
    %v6587 = vmax.f32 %v6584, %v6586
    %v6588 = vmax.f32 %v6582, %v6587
    %6589 = vst [vmem:[#allocation6 + $0x2d] sm:$0x1f] %v6588
    %v6590 = vld [vmem:[%s6] sm:$0x1]
    %v6592 = vperm.slane %v6590, 0
    %v6594 = vadd.f32 %v6592, 0.0
    %v6595 = vld [vmem:[#allocation6] ss:$25 sm:$0x3]
    %v6596 = vpack.c.bf16 %v6595, %v6595
    %v6597 = vld [vmem:[%s5] sm:$0xf]
    %v6598 = vld [vmem:[%s5 + $0x4] sm:$0xf]
    %v6599 = vld [vmem:[%s5 + $0x8] sm:$0xf]
    %v6600 = vld [vmem:[%s5 + $0xc] sm:$0xf]
    %v6601 = vld [vmem:[%s5 + $0x10] sm:$0xf]
    %v6602 = vld [vmem:[%s5 + $0x14] sm:$0xf]
    %v6603 = vld [vmem:[%s5 + $0x18] sm:$0xf]
    %v6604 = vld [vmem:[%s5 + $0x1c] sm:$0xf]
    %v6605 = vld [vmem:[%s5 + $0x20] sm:$0xf]
    %v6606 = vld [vmem:[%s5 + $0x24] sm:$0xf]
    %v6607 = vld [vmem:[%s5 + $0x28] sm:$0xf]
    %v6608 = vld [vmem:[%s5 + $0x2c] sm:$0xf]
    %v6609 = vld [vmem:[%s5 + $0x30] sm:$0xf]
    %v6610 = vld [vmem:[%s5 + $0x34] sm:$0xf]
    %v6611 = vld [vmem:[%s5 + $0x38] sm:$0xf]
    %v6612 = vld [vmem:[%s5 + $0x3c] sm:$0xf]
    %v6629 = vunpack.c.l.b16 %v6597
    %v6630 = vunpack.c.l.b16 %v6598
    %v6631 = vunpack.c.l.b16 %v6599
    %v6632 = vunpack.c.l.b16 %v6600
    %v6633 = vunpack.c.l.b16 %v6601
    %v6634 = vunpack.c.l.b16 %v6602
    %v6635 = vunpack.c.l.b16 %v6603
    %v6636 = vunpack.c.l.b16 %v6604
    %v6637 = vunpack.c.l.b16 %v6605
    %v6638 = vunpack.c.l.b16 %v6606
    %v6639 = vunpack.c.l.b16 %v6607
    %v6640 = vunpack.c.l.b16 %v6608
    %v6641 = vunpack.c.l.b16 %v6609
    %v6642 = vunpack.c.l.b16 %v6610
    %v6643 = vunpack.c.l.b16 %v6611
    %v6644 = vunpack.c.l.b16 %v6612
    %v6645 = vpack.c.b16 %v6630, %v6629
    %v6646 = vpack.c.b16 %v6632, %v6631
    %v6647 = vpack.c.b16 %v6634, %v6633
    %v6648 = vpack.c.b16 %v6636, %v6635
    %v6649 = vpack.c.b16 %v6638, %v6637
    %v6650 = vpack.c.b16 %v6640, %v6639
    %v6651 = vpack.c.b16 %v6642, %v6641
    %v6652 = vpack.c.b16 %v6644, %v6643
    %6661 = vmatpush.bf16.msra.mxu0 %v6652
    %6662 = vmatpush.bf16.msra.mxu0 %v6651
    %6663 = vmatpush.bf16.msra.mxu0 %v6650
    %6664 = vmatpush.bf16.msra.mxu0 %v6649
    %6665 = vmatpush.bf16.msra.mxu0 %v6648
    %6666 = vmatpush.bf16.msra.mxu0 %v6647
    %6667 = vmatpush.bf16.msra.mxu0 %v6646
    %6668 = vmatpush.bf16.msra.mxu0 %v6645
    %6669 = vmatmul.bf16.gmra.mxu0 %v6596
    %v6670 = vpop.f32.mrf.mxu0
    %v6671 = vadd.f32 0.0, %v6670
    %v6672 = vpop.f32.mrf.mxu0
    %6673 = vdwg.mxu0
    %v6674 = vadd.f32 %v6594, %v6671
    %s6675 = scalar_lea.vmem [#allocation6], 1
    %v6676 = vld [vmem:[%s6675] ss:$25 sm:$0x3]
    %v6677 = vpack.c.bf16 %v6676, %v6676
    %v6678 = vld [vmem:[%s5 + $0x40] sm:$0xf]
    %v6679 = vld [vmem:[%s5 + $0x44] sm:$0xf]
    %v6680 = vld [vmem:[%s5 + $0x48] sm:$0xf]
    %v6681 = vld [vmem:[%s5 + $0x4c] sm:$0xf]
    %v6682 = vld [vmem:[%s5 + $0x50] sm:$0xf]
    %v6683 = vld [vmem:[%s5 + $0x54] sm:$0xf]
    %v6684 = vld [vmem:[%s5 + $0x58] sm:$0xf]
    %v6685 = vld [vmem:[%s5 + $0x5c] sm:$0xf]
    %v6686 = vld [vmem:[%s5 + $0x60] sm:$0xf]
    %v6687 = vld [vmem:[%s5 + $0x64] sm:$0xf]
    %v6688 = vld [vmem:[%s5 + $0x68] sm:$0xf]
    %v6689 = vld [vmem:[%s5 + $0x6c] sm:$0xf]
    %v6690 = vld [vmem:[%s5 + $0x70] sm:$0xf]
    %v6691 = vld [vmem:[%s5 + $0x74] sm:$0xf]
    %v6692 = vld [vmem:[%s5 + $0x78] sm:$0xf]
    %v6693 = vld [vmem:[%s5 + $0x7c] sm:$0xf]
    %v6710 = vunpack.c.l.b16 %v6678
    %v6711 = vunpack.c.l.b16 %v6679
    %v6712 = vunpack.c.l.b16 %v6680
    %v6713 = vunpack.c.l.b16 %v6681
    %v6714 = vunpack.c.l.b16 %v6682
    %v6715 = vunpack.c.l.b16 %v6683
    %v6716 = vunpack.c.l.b16 %v6684
    %v6717 = vunpack.c.l.b16 %v6685
    %v6718 = vunpack.c.l.b16 %v6686
    %v6719 = vunpack.c.l.b16 %v6687
    %v6720 = vunpack.c.l.b16 %v6688
    %v6721 = vunpack.c.l.b16 %v6689
    %v6722 = vunpack.c.l.b16 %v6690
    %v6723 = vunpack.c.l.b16 %v6691
    %v6724 = vunpack.c.l.b16 %v6692
    %v6725 = vunpack.c.l.b16 %v6693
    %v6726 = vpack.c.b16 %v6711, %v6710
    %v6727 = vpack.c.b16 %v6713, %v6712
    %v6728 = vpack.c.b16 %v6715, %v6714
    %v6729 = vpack.c.b16 %v6717, %v6716
    %v6730 = vpack.c.b16 %v6719, %v6718
    %v6731 = vpack.c.b16 %v6721, %v6720
    %v6732 = vpack.c.b16 %v6723, %v6722
    %v6733 = vpack.c.b16 %v6725, %v6724
    %6742 = vmatpush.bf16.msra.mxu0 %v6733
    %6743 = vmatpush.bf16.msra.mxu0 %v6732
    %6744 = vmatpush.bf16.msra.mxu0 %v6731
    %6745 = vmatpush.bf16.msra.mxu0 %v6730
    %6746 = vmatpush.bf16.msra.mxu0 %v6729
    %6747 = vmatpush.bf16.msra.mxu0 %v6728
    %6748 = vmatpush.bf16.msra.mxu0 %v6727
    %6749 = vmatpush.bf16.msra.mxu0 %v6726
    %6750 = vmatmul.bf16.gmra.mxu0 %v6677
    %v6751 = vpop.f32.mrf.mxu0
    %v6752 = vadd.f32 0.0, %v6751
    %v6753 = vpop.f32.mrf.mxu0
    %6754 = vdwg.mxu0
    %v6755 = vadd.f32 %v6674, %v6752
    %s6756 = scalar_lea.vmem [#allocation6], 2
    %v6757 = vld [vmem:[%s6756] ss:$25 sm:$0x3]
    %v6758 = vpack.c.bf16 %v6757, %v6757
    %v6759 = vld [vmem:[%s5 + $0x80] sm:$0xf]
    %v6760 = vld [vmem:[%s5 + $0x84] sm:$0xf]
    %v6761 = vld [vmem:[%s5 + $0x88] sm:$0xf]
    %v6762 = vld [vmem:[%s5 + $0x8c] sm:$0xf]
    %v6763 = vld [vmem:[%s5 + $0x90] sm:$0xf]
    %v6764 = vld [vmem:[%s5 + $0x94] sm:$0xf]
    %v6765 = vld [vmem:[%s5 + $0x98] sm:$0xf]
    %v6766 = vld [vmem:[%s5 + $0x9c] sm:$0xf]
    %v6767 = vld [vmem:[%s5 + $0xa0] sm:$0xf]
    %v6768 = vld [vmem:[%s5 + $0xa4] sm:$0xf]
    %v6769 = vld [vmem:[%s5 + $0xa8] sm:$0xf]
    %v6770 = vld [vmem:[%s5 + $0xac] sm:$0xf]
    %v6771 = vld [vmem:[%s5 + $0xb0] sm:$0xf]
    %v6772 = vld [vmem:[%s5 + $0xb4] sm:$0xf]
    %v6773 = vld [vmem:[%s5 + $0xb8] sm:$0xf]
    %v6774 = vld [vmem:[%s5 + $0xbc] sm:$0xf]
    %v6791 = vunpack.c.l.b16 %v6759
    %v6792 = vunpack.c.l.b16 %v6760
    %v6793 = vunpack.c.l.b16 %v6761
    %v6794 = vunpack.c.l.b16 %v6762
    %v6795 = vunpack.c.l.b16 %v6763
    %v6796 = vunpack.c.l.b16 %v6764
    %v6797 = vunpack.c.l.b16 %v6765
    %v6798 = vunpack.c.l.b16 %v6766
    %v6799 = vunpack.c.l.b16 %v6767
    %v6800 = vunpack.c.l.b16 %v6768
    %v6801 = vunpack.c.l.b16 %v6769
    %v6802 = vunpack.c.l.b16 %v6770
    %v6803 = vunpack.c.l.b16 %v6771
    %v6804 = vunpack.c.l.b16 %v6772
    %v6805 = vunpack.c.l.b16 %v6773
    %v6806 = vunpack.c.l.b16 %v6774
    %v6807 = vpack.c.b16 %v6792, %v6791
    %v6808 = vpack.c.b16 %v6794, %v6793
    %v6809 = vpack.c.b16 %v6796, %v6795
    %v6810 = vpack.c.b16 %v6798, %v6797
    %v6811 = vpack.c.b16 %v6800, %v6799
    %v6812 = vpack.c.b16 %v6802, %v6801
    %v6813 = vpack.c.b16 %v6804, %v6803
    %v6814 = vpack.c.b16 %v6806, %v6805
    %6823 = vmatpush.bf16.msra.mxu0 %v6814
    %6824 = vmatpush.bf16.msra.mxu0 %v6813
    %6825 = vmatpush.bf16.msra.mxu0 %v6812
    %6826 = vmatpush.bf16.msra.mxu0 %v6811
    %6827 = vmatpush.bf16.msra.mxu0 %v6810
    %6828 = vmatpush.bf16.msra.mxu0 %v6809
    %6829 = vmatpush.bf16.msra.mxu0 %v6808
    %6830 = vmatpush.bf16.msra.mxu0 %v6807
    %6831 = vmatmul.bf16.gmra.mxu0 %v6758
    %v6832 = vpop.f32.mrf.mxu0
    %v6833 = vadd.f32 0.0, %v6832
    %v6834 = vpop.f32.mrf.mxu0
    %6835 = vdwg.mxu0
    %v6836 = vadd.f32 %v6755, %v6833
    %s6837 = scalar_lea.vmem [#allocation6], 3
    %v6838 = vld [vmem:[%s6837] ss:$25 sm:$0x3]
    %v6839 = vpack.c.bf16 %v6838, %v6838
    %v6840 = vld [vmem:[%s5 + $0xc0] sm:$0xf]
    %v6841 = vld [vmem:[%s5 + $0xc4] sm:$0xf]
    %v6842 = vld [vmem:[%s5 + $0xc8] sm:$0xf]
    %v6843 = vld [vmem:[%s5 + $0xcc] sm:$0xf]
    %v6844 = vld [vmem:[%s5 + $0xd0] sm:$0xf]
    %v6845 = vld [vmem:[%s5 + $0xd4] sm:$0xf]
    %v6846 = vld [vmem:[%s5 + $0xd8] sm:$0xf]
    %v6847 = vld [vmem:[%s5 + $0xdc] sm:$0xf]
    %v6848 = vld [vmem:[%s5 + $0xe0] sm:$0xf]
    %v6849 = vld [vmem:[%s5 + $0xe4] sm:$0xf]
    %v6850 = vld [vmem:[%s5 + $0xe8] sm:$0xf]
    %v6851 = vld [vmem:[%s5 + $0xec] sm:$0xf]
    %v6852 = vld [vmem:[%s5 + $0xf0] sm:$0xf]
    %v6853 = vld [vmem:[%s5 + $0xf4] sm:$0xf]
    %v6854 = vld [vmem:[%s5 + $0xf8] sm:$0xf]
    %v6855 = vld [vmem:[%s5 + $0xfc] sm:$0xf]
    %v6872 = vunpack.c.l.b16 %v6840
    %v6873 = vunpack.c.l.b16 %v6841
    %v6874 = vunpack.c.l.b16 %v6842
    %v6875 = vunpack.c.l.b16 %v6843
    %v6876 = vunpack.c.l.b16 %v6844
    %v6877 = vunpack.c.l.b16 %v6845
    %v6878 = vunpack.c.l.b16 %v6846
    %v6879 = vunpack.c.l.b16 %v6847
    %v6880 = vunpack.c.l.b16 %v6848
    %v6881 = vunpack.c.l.b16 %v6849
    %v6882 = vunpack.c.l.b16 %v6850
    %v6883 = vunpack.c.l.b16 %v6851
    %v6884 = vunpack.c.l.b16 %v6852
    %v6885 = vunpack.c.l.b16 %v6853
    %v6886 = vunpack.c.l.b16 %v6854
    %v6887 = vunpack.c.l.b16 %v6855
    %v6888 = vpack.c.b16 %v6873, %v6872
    %v6889 = vpack.c.b16 %v6875, %v6874
    %v6890 = vpack.c.b16 %v6877, %v6876
    %v6891 = vpack.c.b16 %v6879, %v6878
    %v6892 = vpack.c.b16 %v6881, %v6880
    %v6893 = vpack.c.b16 %v6883, %v6882
    %v6894 = vpack.c.b16 %v6885, %v6884
    %v6895 = vpack.c.b16 %v6887, %v6886
    %6904 = vmatpush.bf16.msra.mxu0 %v6895
    %6905 = vmatpush.bf16.msra.mxu0 %v6894
    %6906 = vmatpush.bf16.msra.mxu0 %v6893
    %6907 = vmatpush.bf16.msra.mxu0 %v6892
    %6908 = vmatpush.bf16.msra.mxu0 %v6891
    %6909 = vmatpush.bf16.msra.mxu0 %v6890
    %6910 = vmatpush.bf16.msra.mxu0 %v6889
    %6911 = vmatpush.bf16.msra.mxu0 %v6888
    %6912 = vmatmul.bf16.gmra.mxu0 %v6839
    %v6913 = vpop.f32.mrf.mxu0
    %v6914 = vadd.f32 0.0, %v6913
    %v6915 = vpop.f32.mrf.mxu0
    %6916 = vdwg.mxu0
    %v6917 = vadd.f32 %v6836, %v6914
    %s6918 = scalar_lea.vmem [#allocation6], 4
    %v6919 = vld [vmem:[%s6918] ss:$25 sm:$0x3]
    %v6920 = vpack.c.bf16 %v6919, %v6919
    %v6921 = vld [vmem:[%s5 + $0x100] sm:$0xf]
    %v6922 = vld [vmem:[%s5 + $0x104] sm:$0xf]
    %v6923 = vld [vmem:[%s5 + $0x108] sm:$0xf]
    %v6924 = vld [vmem:[%s5 + $0x10c] sm:$0xf]
    %v6925 = vld [vmem:[%s5 + $0x110] sm:$0xf]
    %v6926 = vld [vmem:[%s5 + $0x114] sm:$0xf]
    %v6927 = vld [vmem:[%s5 + $0x118] sm:$0xf]
    %v6928 = vld [vmem:[%s5 + $0x11c] sm:$0xf]
    %v6929 = vld [vmem:[%s5 + $0x120] sm:$0xf]
    %v6930 = vld [vmem:[%s5 + $0x124] sm:$0xf]
    %v6931 = vld [vmem:[%s5 + $0x128] sm:$0xf]
    %v6932 = vld [vmem:[%s5 + $0x12c] sm:$0xf]
    %v6933 = vld [vmem:[%s5 + $0x130] sm:$0xf]
    %v6934 = vld [vmem:[%s5 + $0x134] sm:$0xf]
    %v6935 = vld [vmem:[%s5 + $0x138] sm:$0xf]
    %v6936 = vld [vmem:[%s5 + $0x13c] sm:$0xf]
    %v6953 = vunpack.c.l.b16 %v6921
    %v6954 = vunpack.c.l.b16 %v6922
    %v6955 = vunpack.c.l.b16 %v6923
    %v6956 = vunpack.c.l.b16 %v6924
    %v6957 = vunpack.c.l.b16 %v6925
    %v6958 = vunpack.c.l.b16 %v6926
    %v6959 = vunpack.c.l.b16 %v6927
    %v6960 = vunpack.c.l.b16 %v6928
    %v6961 = vunpack.c.l.b16 %v6929
    %v6962 = vunpack.c.l.b16 %v6930
    %v6963 = vunpack.c.l.b16 %v6931
    %v6964 = vunpack.c.l.b16 %v6932
    %v6965 = vunpack.c.l.b16 %v6933
    %v6966 = vunpack.c.l.b16 %v6934
    %v6967 = vunpack.c.l.b16 %v6935
    %v6968 = vunpack.c.l.b16 %v6936
    %v6969 = vpack.c.b16 %v6954, %v6953
    %v6970 = vpack.c.b16 %v6956, %v6955
    %v6971 = vpack.c.b16 %v6958, %v6957
    %v6972 = vpack.c.b16 %v6960, %v6959
    %v6973 = vpack.c.b16 %v6962, %v6961
    %v6974 = vpack.c.b16 %v6964, %v6963
    %v6975 = vpack.c.b16 %v6966, %v6965
    %v6976 = vpack.c.b16 %v6968, %v6967
    %6985 = vmatpush.bf16.msra.mxu0 %v6976
    %6986 = vmatpush.bf16.msra.mxu0 %v6975
    %6987 = vmatpush.bf16.msra.mxu0 %v6974
    %6988 = vmatpush.bf16.msra.mxu0 %v6973
    %6989 = vmatpush.bf16.msra.mxu0 %v6972
    %6990 = vmatpush.bf16.msra.mxu0 %v6971
    %6991 = vmatpush.bf16.msra.mxu0 %v6970
    %6992 = vmatpush.bf16.msra.mxu0 %v6969
    %6993 = vmatmul.bf16.gmra.mxu0 %v6920
    %v6994 = vpop.f32.mrf.mxu0
    %v6995 = vadd.f32 0.0, %v6994
    %v6996 = vpop.f32.mrf.mxu0
    %6997 = vdwg.mxu0
    %v6998 = vadd.f32 %v6917, %v6995
    %s6999 = scalar_lea.vmem [#allocation6], 5
    %v7000 = vld [vmem:[%s6999] ss:$25 sm:$0x3]
    %v7001 = vpack.c.bf16 %v7000, %v7000
    %v7002 = vld [vmem:[%s5 + $0x140] sm:$0xf]
    %v7003 = vld [vmem:[%s5 + $0x144] sm:$0xf]
    %v7004 = vld [vmem:[%s5 + $0x148] sm:$0xf]
    %v7005 = vld [vmem:[%s5 + $0x14c] sm:$0xf]
    %v7006 = vld [vmem:[%s5 + $0x150] sm:$0xf]
    %v7007 = vld [vmem:[%s5 + $0x154] sm:$0xf]
    %v7008 = vld [vmem:[%s5 + $0x158] sm:$0xf]
    %v7009 = vld [vmem:[%s5 + $0x15c] sm:$0xf]
    %v7010 = vld [vmem:[%s5 + $0x160] sm:$0xf]
    %v7011 = vld [vmem:[%s5 + $0x164] sm:$0xf]
    %v7012 = vld [vmem:[%s5 + $0x168] sm:$0xf]
    %v7013 = vld [vmem:[%s5 + $0x16c] sm:$0xf]
    %v7014 = vld [vmem:[%s5 + $0x170] sm:$0xf]
    %v7015 = vld [vmem:[%s5 + $0x174] sm:$0xf]
    %v7016 = vld [vmem:[%s5 + $0x178] sm:$0xf]
    %v7017 = vld [vmem:[%s5 + $0x17c] sm:$0xf]
    %v7034 = vunpack.c.l.b16 %v7002
    %v7035 = vunpack.c.l.b16 %v7003
    %v7036 = vunpack.c.l.b16 %v7004
    %v7037 = vunpack.c.l.b16 %v7005
    %v7038 = vunpack.c.l.b16 %v7006
    %v7039 = vunpack.c.l.b16 %v7007
    %v7040 = vunpack.c.l.b16 %v7008
    %v7041 = vunpack.c.l.b16 %v7009
    %v7042 = vunpack.c.l.b16 %v7010
    %v7043 = vunpack.c.l.b16 %v7011
    %v7044 = vunpack.c.l.b16 %v7012
    %v7045 = vunpack.c.l.b16 %v7013
    %v7046 = vunpack.c.l.b16 %v7014
    %v7047 = vunpack.c.l.b16 %v7015
    %v7048 = vunpack.c.l.b16 %v7016
    %v7049 = vunpack.c.l.b16 %v7017
    %v7050 = vpack.c.b16 %v7035, %v7034
    %v7051 = vpack.c.b16 %v7037, %v7036
    %v7052 = vpack.c.b16 %v7039, %v7038
    %v7053 = vpack.c.b16 %v7041, %v7040
    %v7054 = vpack.c.b16 %v7043, %v7042
    %v7055 = vpack.c.b16 %v7045, %v7044
    %v7056 = vpack.c.b16 %v7047, %v7046
    %v7057 = vpack.c.b16 %v7049, %v7048
    %7066 = vmatpush.bf16.msra.mxu0 %v7057
    %7067 = vmatpush.bf16.msra.mxu0 %v7056
    %7068 = vmatpush.bf16.msra.mxu0 %v7055
    %7069 = vmatpush.bf16.msra.mxu0 %v7054
    %7070 = vmatpush.bf16.msra.mxu0 %v7053
    %7071 = vmatpush.bf16.msra.mxu0 %v7052
    %7072 = vmatpush.bf16.msra.mxu0 %v7051
    %7073 = vmatpush.bf16.msra.mxu0 %v7050
    %7074 = vmatmul.bf16.gmra.mxu0 %v7001
    %v7075 = vpop.f32.mrf.mxu0
    %v7076 = vadd.f32 0.0, %v7075
    %v7077 = vpop.f32.mrf.mxu0
    %7078 = vdwg.mxu0
    %v7079 = vadd.f32 %v6998, %v7076
    %s7080 = scalar_lea.vmem [#allocation6], 6
    %v7081 = vld [vmem:[%s7080] ss:$25 sm:$0x3]
    %v7082 = vpack.c.bf16 %v7081, %v7081
    %v7083 = vld [vmem:[%s5 + $0x180] sm:$0xf]
    %v7084 = vld [vmem:[%s5 + $0x184] sm:$0xf]
    %v7085 = vld [vmem:[%s5 + $0x188] sm:$0xf]
    %v7086 = vld [vmem:[%s5 + $0x18c] sm:$0xf]
    %v7087 = vld [vmem:[%s5 + $0x190] sm:$0xf]
    %v7088 = vld [vmem:[%s5 + $0x194] sm:$0xf]
    %v7089 = vld [vmem:[%s5 + $0x198] sm:$0xf]
    %v7090 = vld [vmem:[%s5 + $0x19c] sm:$0xf]
    %v7091 = vld [vmem:[%s5 + $0x1a0] sm:$0xf]
    %v7092 = vld [vmem:[%s5 + $0x1a4] sm:$0xf]
    %v7093 = vld [vmem:[%s5 + $0x1a8] sm:$0xf]
    %v7094 = vld [vmem:[%s5 + $0x1ac] sm:$0xf]
    %v7095 = vld [vmem:[%s5 + $0x1b0] sm:$0xf]
    %v7096 = vld [vmem:[%s5 + $0x1b4] sm:$0xf]
    %v7097 = vld [vmem:[%s5 + $0x1b8] sm:$0xf]
    %v7098 = vld [vmem:[%s5 + $0x1bc] sm:$0xf]
    %v7115 = vunpack.c.l.b16 %v7083
    %v7116 = vunpack.c.l.b16 %v7084
    %v7117 = vunpack.c.l.b16 %v7085
    %v7118 = vunpack.c.l.b16 %v7086
    %v7119 = vunpack.c.l.b16 %v7087
    %v7120 = vunpack.c.l.b16 %v7088
    %v7121 = vunpack.c.l.b16 %v7089
    %v7122 = vunpack.c.l.b16 %v7090
    %v7123 = vunpack.c.l.b16 %v7091
    %v7124 = vunpack.c.l.b16 %v7092
    %v7125 = vunpack.c.l.b16 %v7093
    %v7126 = vunpack.c.l.b16 %v7094
    %v7127 = vunpack.c.l.b16 %v7095
    %v7128 = vunpack.c.l.b16 %v7096
    %v7129 = vunpack.c.l.b16 %v7097
    %v7130 = vunpack.c.l.b16 %v7098
    %v7131 = vpack.c.b16 %v7116, %v7115
    %v7132 = vpack.c.b16 %v7118, %v7117
    %v7133 = vpack.c.b16 %v7120, %v7119
    %v7134 = vpack.c.b16 %v7122, %v7121
    %v7135 = vpack.c.b16 %v7124, %v7123
    %v7136 = vpack.c.b16 %v7126, %v7125
    %v7137 = vpack.c.b16 %v7128, %v7127
    %v7138 = vpack.c.b16 %v7130, %v7129
    %7147 = vmatpush.bf16.msra.mxu0 %v7138
    %7148 = vmatpush.bf16.msra.mxu0 %v7137
    %7149 = vmatpush.bf16.msra.mxu0 %v7136
    %7150 = vmatpush.bf16.msra.mxu0 %v7135
    %7151 = vmatpush.bf16.msra.mxu0 %v7134
    %7152 = vmatpush.bf16.msra.mxu0 %v7133
    %7153 = vmatpush.bf16.msra.mxu0 %v7132
    %7154 = vmatpush.bf16.msra.mxu0 %v7131
    %7155 = vmatmul.bf16.gmra.mxu0 %v7082
    %v7156 = vpop.f32.mrf.mxu0
    %v7157 = vadd.f32 0.0, %v7156
    %v7158 = vpop.f32.mrf.mxu0
    %7159 = vdwg.mxu0
    %v7160 = vadd.f32 %v7079, %v7157
    %s7161 = scalar_lea.vmem [#allocation6], 7
    %v7162 = vld [vmem:[%s7161] ss:$25 sm:$0x3]
    %v7163 = vpack.c.bf16 %v7162, %v7162
    %v7164 = vld [vmem:[%s5 + $0x1c0] sm:$0xf]
    %v7165 = vld [vmem:[%s5 + $0x1c4] sm:$0xf]
    %v7166 = vld [vmem:[%s5 + $0x1c8] sm:$0xf]
    %v7167 = vld [vmem:[%s5 + $0x1cc] sm:$0xf]
    %v7168 = vld [vmem:[%s5 + $0x1d0] sm:$0xf]
    %v7169 = vld [vmem:[%s5 + $0x1d4] sm:$0xf]
    %v7170 = vld [vmem:[%s5 + $0x1d8] sm:$0xf]
    %v7171 = vld [vmem:[%s5 + $0x1dc] sm:$0xf]
    %v7172 = vld [vmem:[%s5 + $0x1e0] sm:$0xf]
    %v7173 = vld [vmem:[%s5 + $0x1e4] sm:$0xf]
    %v7174 = vld [vmem:[%s5 + $0x1e8] sm:$0xf]
    %v7175 = vld [vmem:[%s5 + $0x1ec] sm:$0xf]
    %v7176 = vld [vmem:[%s5 + $0x1f0] sm:$0xf]
    %v7177 = vld [vmem:[%s5 + $0x1f4] sm:$0xf]
    %v7178 = vld [vmem:[%s5 + $0x1f8] sm:$0xf]
    %v7179 = vld [vmem:[%s5 + $0x1fc] sm:$0xf]
    %v7196 = vunpack.c.l.b16 %v7164
    %v7197 = vunpack.c.l.b16 %v7165
    %v7198 = vunpack.c.l.b16 %v7166
    %v7199 = vunpack.c.l.b16 %v7167
    %v7200 = vunpack.c.l.b16 %v7168
    %v7201 = vunpack.c.l.b16 %v7169
    %v7202 = vunpack.c.l.b16 %v7170
    %v7203 = vunpack.c.l.b16 %v7171
    %v7204 = vunpack.c.l.b16 %v7172
    %v7205 = vunpack.c.l.b16 %v7173
    %v7206 = vunpack.c.l.b16 %v7174
    %v7207 = vunpack.c.l.b16 %v7175
    %v7208 = vunpack.c.l.b16 %v7176
    %v7209 = vunpack.c.l.b16 %v7177
    %v7210 = vunpack.c.l.b16 %v7178
    %v7211 = vunpack.c.l.b16 %v7179
    %v7212 = vpack.c.b16 %v7197, %v7196
    %v7213 = vpack.c.b16 %v7199, %v7198
    %v7214 = vpack.c.b16 %v7201, %v7200
    %v7215 = vpack.c.b16 %v7203, %v7202
    %v7216 = vpack.c.b16 %v7205, %v7204
    %v7217 = vpack.c.b16 %v7207, %v7206
    %v7218 = vpack.c.b16 %v7209, %v7208
    %v7219 = vpack.c.b16 %v7211, %v7210
    %7228 = vmatpush.bf16.msra.mxu0 %v7219
    %7229 = vmatpush.bf16.msra.mxu0 %v7218
    %7230 = vmatpush.bf16.msra.mxu0 %v7217
    %7231 = vmatpush.bf16.msra.mxu0 %v7216
    %7232 = vmatpush.bf16.msra.mxu0 %v7215
    %7233 = vmatpush.bf16.msra.mxu0 %v7214
    %7234 = vmatpush.bf16.msra.mxu0 %v7213
    %7235 = vmatpush.bf16.msra.mxu0 %v7212
    %7236 = vmatmul.bf16.gmra.mxu0 %v7163
    %v7237 = vpop.f32.mrf.mxu0
    %v7238 = vadd.f32 0.0, %v7237
    %v7239 = vpop.f32.mrf.mxu0
    %7240 = vdwg.mxu0
    %v7241 = vadd.f32 %v7160, %v7238
    %s7242 = scalar_lea.vmem [#allocation6], 8
    %v7243 = vld [vmem:[%s7242] ss:$25 sm:$0x3]
    %v7244 = vpack.c.bf16 %v7243, %v7243
    %v7245 = vld [vmem:[%s5 + $0x200] sm:$0xf]
    %v7246 = vld [vmem:[%s5 + $0x204] sm:$0xf]
    %v7247 = vld [vmem:[%s5 + $0x208] sm:$0xf]
    %v7248 = vld [vmem:[%s5 + $0x20c] sm:$0xf]
    %v7249 = vld [vmem:[%s5 + $0x210] sm:$0xf]
    %v7250 = vld [vmem:[%s5 + $0x214] sm:$0xf]
    %v7251 = vld [vmem:[%s5 + $0x218] sm:$0xf]
    %v7252 = vld [vmem:[%s5 + $0x21c] sm:$0xf]
    %v7253 = vld [vmem:[%s5 + $0x220] sm:$0xf]
    %v7254 = vld [vmem:[%s5 + $0x224] sm:$0xf]
    %v7255 = vld [vmem:[%s5 + $0x228] sm:$0xf]
    %v7256 = vld [vmem:[%s5 + $0x22c] sm:$0xf]
    %v7257 = vld [vmem:[%s5 + $0x230] sm:$0xf]
    %v7258 = vld [vmem:[%s5 + $0x234] sm:$0xf]
    %v7259 = vld [vmem:[%s5 + $0x238] sm:$0xf]
    %v7260 = vld [vmem:[%s5 + $0x23c] sm:$0xf]
    %v7277 = vunpack.c.l.b16 %v7245
    %v7278 = vunpack.c.l.b16 %v7246
    %v7279 = vunpack.c.l.b16 %v7247
    %v7280 = vunpack.c.l.b16 %v7248
    %v7281 = vunpack.c.l.b16 %v7249
    %v7282 = vunpack.c.l.b16 %v7250
    %v7283 = vunpack.c.l.b16 %v7251
    %v7284 = vunpack.c.l.b16 %v7252
    %v7285 = vunpack.c.l.b16 %v7253
    %v7286 = vunpack.c.l.b16 %v7254
    %v7287 = vunpack.c.l.b16 %v7255
    %v7288 = vunpack.c.l.b16 %v7256
    %v7289 = vunpack.c.l.b16 %v7257
    %v7290 = vunpack.c.l.b16 %v7258
    %v7291 = vunpack.c.l.b16 %v7259
    %v7292 = vunpack.c.l.b16 %v7260
    %v7293 = vpack.c.b16 %v7278, %v7277
    %v7294 = vpack.c.b16 %v7280, %v7279
    %v7295 = vpack.c.b16 %v7282, %v7281
    %v7296 = vpack.c.b16 %v7284, %v7283
    %v7297 = vpack.c.b16 %v7286, %v7285
    %v7298 = vpack.c.b16 %v7288, %v7287
    %v7299 = vpack.c.b16 %v7290, %v7289
    %v7300 = vpack.c.b16 %v7292, %v7291
    %7309 = vmatpush.bf16.msra.mxu0 %v7300
    %7310 = vmatpush.bf16.msra.mxu0 %v7299
    %7311 = vmatpush.bf16.msra.mxu0 %v7298
    %7312 = vmatpush.bf16.msra.mxu0 %v7297
    %7313 = vmatpush.bf16.msra.mxu0 %v7296
    %7314 = vmatpush.bf16.msra.mxu0 %v7295
    %7315 = vmatpush.bf16.msra.mxu0 %v7294
    %7316 = vmatpush.bf16.msra.mxu0 %v7293
    %7317 = vmatmul.bf16.gmra.mxu0 %v7244
    %v7318 = vpop.f32.mrf.mxu0
    %v7319 = vadd.f32 0.0, %v7318
    %v7320 = vpop.f32.mrf.mxu0
    %7321 = vdwg.mxu0
    %v7322 = vadd.f32 %v7241, %v7319
    %s7323 = scalar_lea.vmem [#allocation6], 9
    %v7324 = vld [vmem:[%s7323] ss:$25 sm:$0x3]
    %v7325 = vpack.c.bf16 %v7324, %v7324
    %v7326 = vld [vmem:[%s5 + $0x240] sm:$0xf]
    %v7327 = vld [vmem:[%s5 + $0x244] sm:$0xf]
    %v7328 = vld [vmem:[%s5 + $0x248] sm:$0xf]
    %v7329 = vld [vmem:[%s5 + $0x24c] sm:$0xf]
    %v7330 = vld [vmem:[%s5 + $0x250] sm:$0xf]
    %v7331 = vld [vmem:[%s5 + $0x254] sm:$0xf]
    %v7332 = vld [vmem:[%s5 + $0x258] sm:$0xf]
    %v7333 = vld [vmem:[%s5 + $0x25c] sm:$0xf]
    %v7334 = vld [vmem:[%s5 + $0x260] sm:$0xf]
    %v7335 = vld [vmem:[%s5 + $0x264] sm:$0xf]
    %v7336 = vld [vmem:[%s5 + $0x268] sm:$0xf]
    %v7337 = vld [vmem:[%s5 + $0x26c] sm:$0xf]
    %v7338 = vld [vmem:[%s5 + $0x270] sm:$0xf]
    %v7339 = vld [vmem:[%s5 + $0x274] sm:$0xf]
    %v7340 = vld [vmem:[%s5 + $0x278] sm:$0xf]
    %v7341 = vld [vmem:[%s5 + $0x27c] sm:$0xf]
    %v7358 = vunpack.c.l.b16 %v7326
    %v7359 = vunpack.c.l.b16 %v7327
    %v7360 = vunpack.c.l.b16 %v7328
    %v7361 = vunpack.c.l.b16 %v7329
    %v7362 = vunpack.c.l.b16 %v7330
    %v7363 = vunpack.c.l.b16 %v7331
    %v7364 = vunpack.c.l.b16 %v7332
    %v7365 = vunpack.c.l.b16 %v7333
    %v7366 = vunpack.c.l.b16 %v7334
    %v7367 = vunpack.c.l.b16 %v7335
    %v7368 = vunpack.c.l.b16 %v7336
    %v7369 = vunpack.c.l.b16 %v7337
    %v7370 = vunpack.c.l.b16 %v7338
    %v7371 = vunpack.c.l.b16 %v7339
    %v7372 = vunpack.c.l.b16 %v7340
    %v7373 = vunpack.c.l.b16 %v7341
    %v7374 = vpack.c.b16 %v7359, %v7358
    %v7375 = vpack.c.b16 %v7361, %v7360
    %v7376 = vpack.c.b16 %v7363, %v7362
    %v7377 = vpack.c.b16 %v7365, %v7364
    %v7378 = vpack.c.b16 %v7367, %v7366
    %v7379 = vpack.c.b16 %v7369, %v7368
    %v7380 = vpack.c.b16 %v7371, %v7370
    %v7381 = vpack.c.b16 %v7373, %v7372
    %7390 = vmatpush.bf16.msra.mxu0 %v7381
    %7391 = vmatpush.bf16.msra.mxu0 %v7380
    %7392 = vmatpush.bf16.msra.mxu0 %v7379
    %7393 = vmatpush.bf16.msra.mxu0 %v7378
    %7394 = vmatpush.bf16.msra.mxu0 %v7377
    %7395 = vmatpush.bf16.msra.mxu0 %v7376
    %7396 = vmatpush.bf16.msra.mxu0 %v7375
    %7397 = vmatpush.bf16.msra.mxu0 %v7374
    %7398 = vmatmul.bf16.gmra.mxu0 %v7325
    %v7399 = vpop.f32.mrf.mxu0
    %v7400 = vadd.f32 0.0, %v7399
    %v7401 = vpop.f32.mrf.mxu0
    %7402 = vdwg.mxu0
    %v7403 = vadd.f32 %v7322, %v7400
    %s7404 = scalar_lea.vmem [#allocation6], 10
    %v7405 = vld [vmem:[%s7404] ss:$25 sm:$0x3]
    %v7406 = vpack.c.bf16 %v7405, %v7405
    %v7407 = vld [vmem:[%s5 + $0x280] sm:$0xf]
    %v7408 = vld [vmem:[%s5 + $0x284] sm:$0xf]
    %v7409 = vld [vmem:[%s5 + $0x288] sm:$0xf]
    %v7410 = vld [vmem:[%s5 + $0x28c] sm:$0xf]
    %v7411 = vld [vmem:[%s5 + $0x290] sm:$0xf]
    %v7412 = vld [vmem:[%s5 + $0x294] sm:$0xf]
    %v7413 = vld [vmem:[%s5 + $0x298] sm:$0xf]
    %v7414 = vld [vmem:[%s5 + $0x29c] sm:$0xf]
    %v7415 = vld [vmem:[%s5 + $0x2a0] sm:$0xf]
    %v7416 = vld [vmem:[%s5 + $0x2a4] sm:$0xf]
    %v7417 = vld [vmem:[%s5 + $0x2a8] sm:$0xf]
    %v7418 = vld [vmem:[%s5 + $0x2ac] sm:$0xf]
    %v7419 = vld [vmem:[%s5 + $0x2b0] sm:$0xf]
    %v7420 = vld [vmem:[%s5 + $0x2b4] sm:$0xf]
    %v7421 = vld [vmem:[%s5 + $0x2b8] sm:$0xf]
    %v7422 = vld [vmem:[%s5 + $0x2bc] sm:$0xf]
    %v7439 = vunpack.c.l.b16 %v7407
    %v7440 = vunpack.c.l.b16 %v7408
    %v7441 = vunpack.c.l.b16 %v7409
    %v7442 = vunpack.c.l.b16 %v7410
    %v7443 = vunpack.c.l.b16 %v7411
    %v7444 = vunpack.c.l.b16 %v7412
    %v7445 = vunpack.c.l.b16 %v7413
    %v7446 = vunpack.c.l.b16 %v7414
    %v7447 = vunpack.c.l.b16 %v7415
    %v7448 = vunpack.c.l.b16 %v7416
    %v7449 = vunpack.c.l.b16 %v7417
    %v7450 = vunpack.c.l.b16 %v7418
    %v7451 = vunpack.c.l.b16 %v7419
    %v7452 = vunpack.c.l.b16 %v7420
    %v7453 = vunpack.c.l.b16 %v7421
    %v7454 = vunpack.c.l.b16 %v7422
    %v7455 = vpack.c.b16 %v7440, %v7439
    %v7456 = vpack.c.b16 %v7442, %v7441
    %v7457 = vpack.c.b16 %v7444, %v7443
    %v7458 = vpack.c.b16 %v7446, %v7445
    %v7459 = vpack.c.b16 %v7448, %v7447
    %v7460 = vpack.c.b16 %v7450, %v7449
    %v7461 = vpack.c.b16 %v7452, %v7451
    %v7462 = vpack.c.b16 %v7454, %v7453
    %7471 = vmatpush.bf16.msra.mxu0 %v7462
    %7472 = vmatpush.bf16.msra.mxu0 %v7461
    %7473 = vmatpush.bf16.msra.mxu0 %v7460
    %7474 = vmatpush.bf16.msra.mxu0 %v7459
    %7475 = vmatpush.bf16.msra.mxu0 %v7458
    %7476 = vmatpush.bf16.msra.mxu0 %v7457
    %7477 = vmatpush.bf16.msra.mxu0 %v7456
    %7478 = vmatpush.bf16.msra.mxu0 %v7455
    %7479 = vmatmul.bf16.gmra.mxu0 %v7406
    %v7480 = vpop.f32.mrf.mxu0
    %v7481 = vadd.f32 0.0, %v7480
    %v7482 = vpop.f32.mrf.mxu0
    %7483 = vdwg.mxu0
    %v7484 = vadd.f32 %v7403, %v7481
    %s7485 = scalar_lea.vmem [#allocation6], 11
    %v7486 = vld [vmem:[%s7485] ss:$25 sm:$0x3]
    %v7487 = vpack.c.bf16 %v7486, %v7486
    %v7488 = vld [vmem:[%s5 + $0x2c0] sm:$0xf]
    %v7489 = vld [vmem:[%s5 + $0x2c4] sm:$0xf]
    %v7490 = vld [vmem:[%s5 + $0x2c8] sm:$0xf]
    %v7491 = vld [vmem:[%s5 + $0x2cc] sm:$0xf]
    %v7492 = vld [vmem:[%s5 + $0x2d0] sm:$0xf]
    %v7493 = vld [vmem:[%s5 + $0x2d4] sm:$0xf]
    %v7494 = vld [vmem:[%s5 + $0x2d8] sm:$0xf]
    %v7495 = vld [vmem:[%s5 + $0x2dc] sm:$0xf]
    %v7496 = vld [vmem:[%s5 + $0x2e0] sm:$0xf]
    %v7497 = vld [vmem:[%s5 + $0x2e4] sm:$0xf]
    %v7498 = vld [vmem:[%s5 + $0x2e8] sm:$0xf]
    %v7499 = vld [vmem:[%s5 + $0x2ec] sm:$0xf]
    %v7500 = vld [vmem:[%s5 + $0x2f0] sm:$0xf]
    %v7501 = vld [vmem:[%s5 + $0x2f4] sm:$0xf]
    %v7502 = vld [vmem:[%s5 + $0x2f8] sm:$0xf]
    %v7503 = vld [vmem:[%s5 + $0x2fc] sm:$0xf]
    %v7520 = vunpack.c.l.b16 %v7488
    %v7521 = vunpack.c.l.b16 %v7489
    %v7522 = vunpack.c.l.b16 %v7490
    %v7523 = vunpack.c.l.b16 %v7491
    %v7524 = vunpack.c.l.b16 %v7492
    %v7525 = vunpack.c.l.b16 %v7493
    %v7526 = vunpack.c.l.b16 %v7494
    %v7527 = vunpack.c.l.b16 %v7495
    %v7528 = vunpack.c.l.b16 %v7496
    %v7529 = vunpack.c.l.b16 %v7497
    %v7530 = vunpack.c.l.b16 %v7498
    %v7531 = vunpack.c.l.b16 %v7499
    %v7532 = vunpack.c.l.b16 %v7500
    %v7533 = vunpack.c.l.b16 %v7501
    %v7534 = vunpack.c.l.b16 %v7502
    %v7535 = vunpack.c.l.b16 %v7503
    %v7536 = vpack.c.b16 %v7521, %v7520
    %v7537 = vpack.c.b16 %v7523, %v7522
    %v7538 = vpack.c.b16 %v7525, %v7524
    %v7539 = vpack.c.b16 %v7527, %v7526
    %v7540 = vpack.c.b16 %v7529, %v7528
    %v7541 = vpack.c.b16 %v7531, %v7530
    %v7542 = vpack.c.b16 %v7533, %v7532
    %v7543 = vpack.c.b16 %v7535, %v7534
    %7552 = vmatpush.bf16.msra.mxu0 %v7543
    %7553 = vmatpush.bf16.msra.mxu0 %v7542
    %7554 = vmatpush.bf16.msra.mxu0 %v7541
    %7555 = vmatpush.bf16.msra.mxu0 %v7540
    %7556 = vmatpush.bf16.msra.mxu0 %v7539
    %7557 = vmatpush.bf16.msra.mxu0 %v7538
    %7558 = vmatpush.bf16.msra.mxu0 %v7537
    %7559 = vmatpush.bf16.msra.mxu0 %v7536
    %7560 = vmatmul.bf16.gmra.mxu0 %v7487
    %v7561 = vpop.f32.mrf.mxu0
    %v7562 = vadd.f32 0.0, %v7561
    %v7563 = vpop.f32.mrf.mxu0
    %7564 = vdwg.mxu0
    %v7565 = vadd.f32 %v7484, %v7562
    %s7566 = scalar_lea.vmem [#allocation6], 12
    %v7567 = vld [vmem:[%s7566] ss:$25 sm:$0x3]
    %v7568 = vpack.c.bf16 %v7567, %v7567
    %v7569 = vld [vmem:[%s5 + $0x300] sm:$0xf]
    %v7570 = vld [vmem:[%s5 + $0x304] sm:$0xf]
    %v7571 = vld [vmem:[%s5 + $0x308] sm:$0xf]
    %v7572 = vld [vmem:[%s5 + $0x30c] sm:$0xf]
    %v7573 = vld [vmem:[%s5 + $0x310] sm:$0xf]
    %v7574 = vld [vmem:[%s5 + $0x314] sm:$0xf]
    %v7575 = vld [vmem:[%s5 + $0x318] sm:$0xf]
    %v7576 = vld [vmem:[%s5 + $0x31c] sm:$0xf]
    %v7577 = vld [vmem:[%s5 + $0x320] sm:$0xf]
    %v7578 = vld [vmem:[%s5 + $0x324] sm:$0xf]
    %v7579 = vld [vmem:[%s5 + $0x328] sm:$0xf]
    %v7580 = vld [vmem:[%s5 + $0x32c] sm:$0xf]
    %v7581 = vld [vmem:[%s5 + $0x330] sm:$0xf]
    %v7582 = vld [vmem:[%s5 + $0x334] sm:$0xf]
    %v7583 = vld [vmem:[%s5 + $0x338] sm:$0xf]
    %v7584 = vld [vmem:[%s5 + $0x33c] sm:$0xf]
    %v7601 = vunpack.c.l.b16 %v7569
    %v7602 = vunpack.c.l.b16 %v7570
    %v7603 = vunpack.c.l.b16 %v7571
    %v7604 = vunpack.c.l.b16 %v7572
    %v7605 = vunpack.c.l.b16 %v7573
    %v7606 = vunpack.c.l.b16 %v7574
    %v7607 = vunpack.c.l.b16 %v7575
    %v7608 = vunpack.c.l.b16 %v7576
    %v7609 = vunpack.c.l.b16 %v7577
    %v7610 = vunpack.c.l.b16 %v7578
    %v7611 = vunpack.c.l.b16 %v7579
    %v7612 = vunpack.c.l.b16 %v7580
    %v7613 = vunpack.c.l.b16 %v7581
    %v7614 = vunpack.c.l.b16 %v7582
    %v7615 = vunpack.c.l.b16 %v7583
    %v7616 = vunpack.c.l.b16 %v7584
    %v7617 = vpack.c.b16 %v7602, %v7601
    %v7618 = vpack.c.b16 %v7604, %v7603
    %v7619 = vpack.c.b16 %v7606, %v7605
    %v7620 = vpack.c.b16 %v7608, %v7607
    %v7621 = vpack.c.b16 %v7610, %v7609
    %v7622 = vpack.c.b16 %v7612, %v7611
    %v7623 = vpack.c.b16 %v7614, %v7613
    %v7624 = vpack.c.b16 %v7616, %v7615
    %7633 = vmatpush.bf16.msra.mxu0 %v7624
    %7634 = vmatpush.bf16.msra.mxu0 %v7623
    %7635 = vmatpush.bf16.msra.mxu0 %v7622
    %7636 = vmatpush.bf16.msra.mxu0 %v7621
    %7637 = vmatpush.bf16.msra.mxu0 %v7620
    %7638 = vmatpush.bf16.msra.mxu0 %v7619
    %7639 = vmatpush.bf16.msra.mxu0 %v7618
    %7640 = vmatpush.bf16.msra.mxu0 %v7617
    %7641 = vmatmul.bf16.gmra.mxu0 %v7568
    %v7642 = vpop.f32.mrf.mxu0
    %v7643 = vadd.f32 0.0, %v7642
    %v7644 = vpop.f32.mrf.mxu0
    %7645 = vdwg.mxu0
    %v7646 = vadd.f32 %v7565, %v7643
    %s7647 = scalar_lea.vmem [#allocation6], 13
    %v7648 = vld [vmem:[%s7647] ss:$25 sm:$0x3]
    %v7649 = vpack.c.bf16 %v7648, %v7648
    %v7650 = vld [vmem:[%s5 + $0x340] sm:$0xf]
    %v7651 = vld [vmem:[%s5 + $0x344] sm:$0xf]
    %v7652 = vld [vmem:[%s5 + $0x348] sm:$0xf]
    %v7653 = vld [vmem:[%s5 + $0x34c] sm:$0xf]
    %v7654 = vld [vmem:[%s5 + $0x350] sm:$0xf]
    %v7655 = vld [vmem:[%s5 + $0x354] sm:$0xf]
    %v7656 = vld [vmem:[%s5 + $0x358] sm:$0xf]
    %v7657 = vld [vmem:[%s5 + $0x35c] sm:$0xf]
    %v7658 = vld [vmem:[%s5 + $0x360] sm:$0xf]
    %v7659 = vld [vmem:[%s5 + $0x364] sm:$0xf]
    %v7660 = vld [vmem:[%s5 + $0x368] sm:$0xf]
    %v7661 = vld [vmem:[%s5 + $0x36c] sm:$0xf]
    %v7662 = vld [vmem:[%s5 + $0x370] sm:$0xf]
    %v7663 = vld [vmem:[%s5 + $0x374] sm:$0xf]
    %v7664 = vld [vmem:[%s5 + $0x378] sm:$0xf]
    %v7665 = vld [vmem:[%s5 + $0x37c] sm:$0xf]
    %v7682 = vunpack.c.l.b16 %v7650
    %v7683 = vunpack.c.l.b16 %v7651
    %v7684 = vunpack.c.l.b16 %v7652
    %v7685 = vunpack.c.l.b16 %v7653
    %v7686 = vunpack.c.l.b16 %v7654
    %v7687 = vunpack.c.l.b16 %v7655
    %v7688 = vunpack.c.l.b16 %v7656
    %v7689 = vunpack.c.l.b16 %v7657
    %v7690 = vunpack.c.l.b16 %v7658
    %v7691 = vunpack.c.l.b16 %v7659
    %v7692 = vunpack.c.l.b16 %v7660
    %v7693 = vunpack.c.l.b16 %v7661
    %v7694 = vunpack.c.l.b16 %v7662
    %v7695 = vunpack.c.l.b16 %v7663
    %v7696 = vunpack.c.l.b16 %v7664
    %v7697 = vunpack.c.l.b16 %v7665
    %v7698 = vpack.c.b16 %v7683, %v7682
    %v7699 = vpack.c.b16 %v7685, %v7684
    %v7700 = vpack.c.b16 %v7687, %v7686
    %v7701 = vpack.c.b16 %v7689, %v7688
    %v7702 = vpack.c.b16 %v7691, %v7690
    %v7703 = vpack.c.b16 %v7693, %v7692
    %v7704 = vpack.c.b16 %v7695, %v7694
    %v7705 = vpack.c.b16 %v7697, %v7696
    %7714 = vmatpush.bf16.msra.mxu0 %v7705
    %7715 = vmatpush.bf16.msra.mxu0 %v7704
    %7716 = vmatpush.bf16.msra.mxu0 %v7703
    %7717 = vmatpush.bf16.msra.mxu0 %v7702
    %7718 = vmatpush.bf16.msra.mxu0 %v7701
    %7719 = vmatpush.bf16.msra.mxu0 %v7700
    %7720 = vmatpush.bf16.msra.mxu0 %v7699
    %7721 = vmatpush.bf16.msra.mxu0 %v7698
    %7722 = vmatmul.bf16.gmra.mxu0 %v7649
    %v7723 = vpop.f32.mrf.mxu0
    %v7724 = vadd.f32 0.0, %v7723
    %v7725 = vpop.f32.mrf.mxu0
    %7726 = vdwg.mxu0
    %v7727 = vadd.f32 %v7646, %v7724
    %s7728 = scalar_lea.vmem [#allocation6], 14
    %v7729 = vld [vmem:[%s7728] ss:$25 sm:$0x3]
    %v7730 = vpack.c.bf16 %v7729, %v7729
    %v7731 = vld [vmem:[%s5 + $0x380] sm:$0xf]
    %v7732 = vld [vmem:[%s5 + $0x384] sm:$0xf]
    %v7733 = vld [vmem:[%s5 + $0x388] sm:$0xf]
    %v7734 = vld [vmem:[%s5 + $0x38c] sm:$0xf]
    %v7735 = vld [vmem:[%s5 + $0x390] sm:$0xf]
    %v7736 = vld [vmem:[%s5 + $0x394] sm:$0xf]
    %v7737 = vld [vmem:[%s5 + $0x398] sm:$0xf]
    %v7738 = vld [vmem:[%s5 + $0x39c] sm:$0xf]
    %v7739 = vld [vmem:[%s5 + $0x3a0] sm:$0xf]
    %v7740 = vld [vmem:[%s5 + $0x3a4] sm:$0xf]
    %v7741 = vld [vmem:[%s5 + $0x3a8] sm:$0xf]
    %v7742 = vld [vmem:[%s5 + $0x3ac] sm:$0xf]
    %v7743 = vld [vmem:[%s5 + $0x3b0] sm:$0xf]
    %v7744 = vld [vmem:[%s5 + $0x3b4] sm:$0xf]
    %v7745 = vld [vmem:[%s5 + $0x3b8] sm:$0xf]
    %v7746 = vld [vmem:[%s5 + $0x3bc] sm:$0xf]
    %v7763 = vunpack.c.l.b16 %v7731
    %v7764 = vunpack.c.l.b16 %v7732
    %v7765 = vunpack.c.l.b16 %v7733
    %v7766 = vunpack.c.l.b16 %v7734
    %v7767 = vunpack.c.l.b16 %v7735
    %v7768 = vunpack.c.l.b16 %v7736
    %v7769 = vunpack.c.l.b16 %v7737
    %v7770 = vunpack.c.l.b16 %v7738
    %v7771 = vunpack.c.l.b16 %v7739
    %v7772 = vunpack.c.l.b16 %v7740
    %v7773 = vunpack.c.l.b16 %v7741
    %v7774 = vunpack.c.l.b16 %v7742
    %v7775 = vunpack.c.l.b16 %v7743
    %v7776 = vunpack.c.l.b16 %v7744
    %v7777 = vunpack.c.l.b16 %v7745
    %v7778 = vunpack.c.l.b16 %v7746
    %v7779 = vpack.c.b16 %v7764, %v7763
    %v7780 = vpack.c.b16 %v7766, %v7765
    %v7781 = vpack.c.b16 %v7768, %v7767
    %v7782 = vpack.c.b16 %v7770, %v7769
    %v7783 = vpack.c.b16 %v7772, %v7771
    %v7784 = vpack.c.b16 %v7774, %v7773
    %v7785 = vpack.c.b16 %v7776, %v7775
    %v7786 = vpack.c.b16 %v7778, %v7777
    %7795 = vmatpush.bf16.msra.mxu0 %v7786
    %7796 = vmatpush.bf16.msra.mxu0 %v7785
    %7797 = vmatpush.bf16.msra.mxu0 %v7784
    %7798 = vmatpush.bf16.msra.mxu0 %v7783
    %7799 = vmatpush.bf16.msra.mxu0 %v7782
    %7800 = vmatpush.bf16.msra.mxu0 %v7781
    %7801 = vmatpush.bf16.msra.mxu0 %v7780
    %7802 = vmatpush.bf16.msra.mxu0 %v7779
    %7803 = vmatmul.bf16.gmra.mxu0 %v7730
    %v7804 = vpop.f32.mrf.mxu0
    %v7805 = vadd.f32 0.0, %v7804
    %v7806 = vpop.f32.mrf.mxu0
    %7807 = vdwg.mxu0
    %v7808 = vadd.f32 %v7727, %v7805
    %s7809 = scalar_lea.vmem [#allocation6], 15
    %v7810 = vld [vmem:[%s7809] ss:$25 sm:$0x3]
    %v7811 = vpack.c.bf16 %v7810, %v7810
    %v7812 = vld [vmem:[%s5 + $0x3c0] sm:$0xf]
    %v7813 = vld [vmem:[%s5 + $0x3c4] sm:$0xf]
    %v7814 = vld [vmem:[%s5 + $0x3c8] sm:$0xf]
    %v7815 = vld [vmem:[%s5 + $0x3cc] sm:$0xf]
    %v7816 = vld [vmem:[%s5 + $0x3d0] sm:$0xf]
    %v7817 = vld [vmem:[%s5 + $0x3d4] sm:$0xf]
    %v7818 = vld [vmem:[%s5 + $0x3d8] sm:$0xf]
    %v7819 = vld [vmem:[%s5 + $0x3dc] sm:$0xf]
    %v7820 = vld [vmem:[%s5 + $0x3e0] sm:$0xf]
    %v7821 = vld [vmem:[%s5 + $0x3e4] sm:$0xf]
    %v7822 = vld [vmem:[%s5 + $0x3e8] sm:$0xf]
    %v7823 = vld [vmem:[%s5 + $0x3ec] sm:$0xf]
    %v7824 = vld [vmem:[%s5 + $0x3f0] sm:$0xf]
    %v7825 = vld [vmem:[%s5 + $0x3f4] sm:$0xf]
    %v7826 = vld [vmem:[%s5 + $0x3f8] sm:$0xf]
    %v7827 = vld [vmem:[%s5 + $0x3fc] sm:$0xf]
    %v7844 = vunpack.c.l.b16 %v7812
    %v7845 = vunpack.c.l.b16 %v7813
    %v7846 = vunpack.c.l.b16 %v7814
    %v7847 = vunpack.c.l.b16 %v7815
    %v7848 = vunpack.c.l.b16 %v7816
    %v7849 = vunpack.c.l.b16 %v7817
    %v7850 = vunpack.c.l.b16 %v7818
    %v7851 = vunpack.c.l.b16 %v7819
    %v7852 = vunpack.c.l.b16 %v7820
    %v7853 = vunpack.c.l.b16 %v7821
    %v7854 = vunpack.c.l.b16 %v7822
    %v7855 = vunpack.c.l.b16 %v7823
    %v7856 = vunpack.c.l.b16 %v7824
    %v7857 = vunpack.c.l.b16 %v7825
    %v7858 = vunpack.c.l.b16 %v7826
    %v7859 = vunpack.c.l.b16 %v7827
    %v7860 = vpack.c.b16 %v7845, %v7844
    %v7861 = vpack.c.b16 %v7847, %v7846
    %v7862 = vpack.c.b16 %v7849, %v7848
    %v7863 = vpack.c.b16 %v7851, %v7850
    %v7864 = vpack.c.b16 %v7853, %v7852
    %v7865 = vpack.c.b16 %v7855, %v7854
    %v7866 = vpack.c.b16 %v7857, %v7856
    %v7867 = vpack.c.b16 %v7859, %v7858
    %7876 = vmatpush.bf16.msra.mxu0 %v7867
    %7877 = vmatpush.bf16.msra.mxu0 %v7866
    %7878 = vmatpush.bf16.msra.mxu0 %v7865
    %7879 = vmatpush.bf16.msra.mxu0 %v7864
    %7880 = vmatpush.bf16.msra.mxu0 %v7863
    %7881 = vmatpush.bf16.msra.mxu0 %v7862
    %7882 = vmatpush.bf16.msra.mxu0 %v7861
    %7883 = vmatpush.bf16.msra.mxu0 %v7860
    %7884 = vmatmul.bf16.gmra.mxu0 %v7811
    %v7885 = vpop.f32.mrf.mxu0
    %v7886 = vadd.f32 0.0, %v7885
    %v7887 = vpop.f32.mrf.mxu0
    %7888 = vdwg.mxu0
    %v7889 = vadd.f32 %v7808, %v7886
    %s7890 = scalar_lea.vmem [#allocation6], 16
    %v7891 = vld [vmem:[%s7890] ss:$25 sm:$0x3]
    %v7892 = vpack.c.bf16 %v7891, %v7891
    %v7893 = vld [vmem:[%s5 + $0x400] sm:$0xf]
    %v7894 = vld [vmem:[%s5 + $0x404] sm:$0xf]
    %v7895 = vld [vmem:[%s5 + $0x408] sm:$0xf]
    %v7896 = vld [vmem:[%s5 + $0x40c] sm:$0xf]
    %v7897 = vld [vmem:[%s5 + $0x410] sm:$0xf]
    %v7898 = vld [vmem:[%s5 + $0x414] sm:$0xf]
    %v7899 = vld [vmem:[%s5 + $0x418] sm:$0xf]
    %v7900 = vld [vmem:[%s5 + $0x41c] sm:$0xf]
    %v7901 = vld [vmem:[%s5 + $0x420] sm:$0xf]
    %v7902 = vld [vmem:[%s5 + $0x424] sm:$0xf]
    %v7903 = vld [vmem:[%s5 + $0x428] sm:$0xf]
    %v7904 = vld [vmem:[%s5 + $0x42c] sm:$0xf]
    %v7905 = vld [vmem:[%s5 + $0x430] sm:$0xf]
    %v7906 = vld [vmem:[%s5 + $0x434] sm:$0xf]
    %v7907 = vld [vmem:[%s5 + $0x438] sm:$0xf]
    %v7908 = vld [vmem:[%s5 + $0x43c] sm:$0xf]
    %v7925 = vunpack.c.l.b16 %v7893
    %v7926 = vunpack.c.l.b16 %v7894
    %v7927 = vunpack.c.l.b16 %v7895
    %v7928 = vunpack.c.l.b16 %v7896
    %v7929 = vunpack.c.l.b16 %v7897
    %v7930 = vunpack.c.l.b16 %v7898
    %v7931 = vunpack.c.l.b16 %v7899
    %v7932 = vunpack.c.l.b16 %v7900
    %v7933 = vunpack.c.l.b16 %v7901
    %v7934 = vunpack.c.l.b16 %v7902
    %v7935 = vunpack.c.l.b16 %v7903
    %v7936 = vunpack.c.l.b16 %v7904
    %v7937 = vunpack.c.l.b16 %v7905
    %v7938 = vunpack.c.l.b16 %v7906
    %v7939 = vunpack.c.l.b16 %v7907
    %v7940 = vunpack.c.l.b16 %v7908
    %v7941 = vpack.c.b16 %v7926, %v7925
    %v7942 = vpack.c.b16 %v7928, %v7927
    %v7943 = vpack.c.b16 %v7930, %v7929
    %v7944 = vpack.c.b16 %v7932, %v7931
    %v7945 = vpack.c.b16 %v7934, %v7933
    %v7946 = vpack.c.b16 %v7936, %v7935
    %v7947 = vpack.c.b16 %v7938, %v7937
    %v7948 = vpack.c.b16 %v7940, %v7939
    %7957 = vmatpush.bf16.msra.mxu0 %v7948
    %7958 = vmatpush.bf16.msra.mxu0 %v7947
    %7959 = vmatpush.bf16.msra.mxu0 %v7946
    %7960 = vmatpush.bf16.msra.mxu0 %v7945
    %7961 = vmatpush.bf16.msra.mxu0 %v7944
    %7962 = vmatpush.bf16.msra.mxu0 %v7943
    %7963 = vmatpush.bf16.msra.mxu0 %v7942
    %7964 = vmatpush.bf16.msra.mxu0 %v7941
    %7965 = vmatmul.bf16.gmra.mxu0 %v7892
    %v7966 = vpop.f32.mrf.mxu0
    %v7967 = vadd.f32 0.0, %v7966
    %v7968 = vpop.f32.mrf.mxu0
    %7969 = vdwg.mxu0
    %v7970 = vadd.f32 %v7889, %v7967
    %s7971 = scalar_lea.vmem [#allocation6], 17
    %v7972 = vld [vmem:[%s7971] ss:$25 sm:$0x3]
    %v7973 = vpack.c.bf16 %v7972, %v7972
    %v7974 = vld [vmem:[%s5 + $0x440] sm:$0xf]
    %v7975 = vld [vmem:[%s5 + $0x444] sm:$0xf]
    %v7976 = vld [vmem:[%s5 + $0x448] sm:$0xf]
    %v7977 = vld [vmem:[%s5 + $0x44c] sm:$0xf]
    %v7978 = vld [vmem:[%s5 + $0x450] sm:$0xf]
    %v7979 = vld [vmem:[%s5 + $0x454] sm:$0xf]
    %v7980 = vld [vmem:[%s5 + $0x458] sm:$0xf]
    %v7981 = vld [vmem:[%s5 + $0x45c] sm:$0xf]
    %v7982 = vld [vmem:[%s5 + $0x460] sm:$0xf]
    %v7983 = vld [vmem:[%s5 + $0x464] sm:$0xf]
    %v7984 = vld [vmem:[%s5 + $0x468] sm:$0xf]
    %v7985 = vld [vmem:[%s5 + $0x46c] sm:$0xf]
    %v7986 = vld [vmem:[%s5 + $0x470] sm:$0xf]
    %v7987 = vld [vmem:[%s5 + $0x474] sm:$0xf]
    %v7988 = vld [vmem:[%s5 + $0x478] sm:$0xf]
    %v7989 = vld [vmem:[%s5 + $0x47c] sm:$0xf]
    %v8006 = vunpack.c.l.b16 %v7974
    %v8007 = vunpack.c.l.b16 %v7975
    %v8008 = vunpack.c.l.b16 %v7976
    %v8009 = vunpack.c.l.b16 %v7977
    %v8010 = vunpack.c.l.b16 %v7978
    %v8011 = vunpack.c.l.b16 %v7979
    %v8012 = vunpack.c.l.b16 %v7980
    %v8013 = vunpack.c.l.b16 %v7981
    %v8014 = vunpack.c.l.b16 %v7982
    %v8015 = vunpack.c.l.b16 %v7983
    %v8016 = vunpack.c.l.b16 %v7984
    %v8017 = vunpack.c.l.b16 %v7985
    %v8018 = vunpack.c.l.b16 %v7986
    %v8019 = vunpack.c.l.b16 %v7987
    %v8020 = vunpack.c.l.b16 %v7988
    %v8021 = vunpack.c.l.b16 %v7989
    %v8022 = vpack.c.b16 %v8007, %v8006
    %v8023 = vpack.c.b16 %v8009, %v8008
    %v8024 = vpack.c.b16 %v8011, %v8010
    %v8025 = vpack.c.b16 %v8013, %v8012
    %v8026 = vpack.c.b16 %v8015, %v8014
    %v8027 = vpack.c.b16 %v8017, %v8016
    %v8028 = vpack.c.b16 %v8019, %v8018
    %v8029 = vpack.c.b16 %v8021, %v8020
    %8038 = vmatpush.bf16.msra.mxu0 %v8029
    %8039 = vmatpush.bf16.msra.mxu0 %v8028
    %8040 = vmatpush.bf16.msra.mxu0 %v8027
    %8041 = vmatpush.bf16.msra.mxu0 %v8026
    %8042 = vmatpush.bf16.msra.mxu0 %v8025
    %8043 = vmatpush.bf16.msra.mxu0 %v8024
    %8044 = vmatpush.bf16.msra.mxu0 %v8023
    %8045 = vmatpush.bf16.msra.mxu0 %v8022
    %8046 = vmatmul.bf16.gmra.mxu0 %v7973
    %v8047 = vpop.f32.mrf.mxu0
    %v8048 = vadd.f32 0.0, %v8047
    %v8049 = vpop.f32.mrf.mxu0
    %8050 = vdwg.mxu0
    %v8051 = vadd.f32 %v7970, %v8048
    %s8052 = scalar_lea.vmem [#allocation6], 18
    %v8053 = vld [vmem:[%s8052] ss:$25 sm:$0x3]
    %v8054 = vpack.c.bf16 %v8053, %v8053
    %v8055 = vld [vmem:[%s5 + $0x480] sm:$0xf]
    %v8056 = vld [vmem:[%s5 + $0x484] sm:$0xf]
    %v8057 = vld [vmem:[%s5 + $0x488] sm:$0xf]
    %v8058 = vld [vmem:[%s5 + $0x48c] sm:$0xf]
    %v8059 = vld [vmem:[%s5 + $0x490] sm:$0xf]
    %v8060 = vld [vmem:[%s5 + $0x494] sm:$0xf]
    %v8061 = vld [vmem:[%s5 + $0x498] sm:$0xf]
    %v8062 = vld [vmem:[%s5 + $0x49c] sm:$0xf]
    %v8063 = vld [vmem:[%s5 + $0x4a0] sm:$0xf]
    %v8064 = vld [vmem:[%s5 + $0x4a4] sm:$0xf]
    %v8065 = vld [vmem:[%s5 + $0x4a8] sm:$0xf]
    %v8066 = vld [vmem:[%s5 + $0x4ac] sm:$0xf]
    %v8067 = vld [vmem:[%s5 + $0x4b0] sm:$0xf]
    %v8068 = vld [vmem:[%s5 + $0x4b4] sm:$0xf]
    %v8069 = vld [vmem:[%s5 + $0x4b8] sm:$0xf]
    %v8070 = vld [vmem:[%s5 + $0x4bc] sm:$0xf]
    %v8087 = vunpack.c.l.b16 %v8055
    %v8088 = vunpack.c.l.b16 %v8056
    %v8089 = vunpack.c.l.b16 %v8057
    %v8090 = vunpack.c.l.b16 %v8058
    %v8091 = vunpack.c.l.b16 %v8059
    %v8092 = vunpack.c.l.b16 %v8060
    %v8093 = vunpack.c.l.b16 %v8061
    %v8094 = vunpack.c.l.b16 %v8062
    %v8095 = vunpack.c.l.b16 %v8063
    %v8096 = vunpack.c.l.b16 %v8064
    %v8097 = vunpack.c.l.b16 %v8065
    %v8098 = vunpack.c.l.b16 %v8066
    %v8099 = vunpack.c.l.b16 %v8067
    %v8100 = vunpack.c.l.b16 %v8068
    %v8101 = vunpack.c.l.b16 %v8069
    %v8102 = vunpack.c.l.b16 %v8070
    %v8103 = vpack.c.b16 %v8088, %v8087
    %v8104 = vpack.c.b16 %v8090, %v8089
    %v8105 = vpack.c.b16 %v8092, %v8091
    %v8106 = vpack.c.b16 %v8094, %v8093
    %v8107 = vpack.c.b16 %v8096, %v8095
    %v8108 = vpack.c.b16 %v8098, %v8097
    %v8109 = vpack.c.b16 %v8100, %v8099
    %v8110 = vpack.c.b16 %v8102, %v8101
    %8119 = vmatpush.bf16.msra.mxu0 %v8110
    %8120 = vmatpush.bf16.msra.mxu0 %v8109
    %8121 = vmatpush.bf16.msra.mxu0 %v8108
    %8122 = vmatpush.bf16.msra.mxu0 %v8107
    %8123 = vmatpush.bf16.msra.mxu0 %v8106
    %8124 = vmatpush.bf16.msra.mxu0 %v8105
    %8125 = vmatpush.bf16.msra.mxu0 %v8104
    %8126 = vmatpush.bf16.msra.mxu0 %v8103
    %8127 = vmatmul.bf16.gmra.mxu0 %v8054
    %v8128 = vpop.f32.mrf.mxu0
    %v8129 = vadd.f32 0.0, %v8128
    %v8130 = vpop.f32.mrf.mxu0
    %8131 = vdwg.mxu0
    %v8132 = vadd.f32 %v8051, %v8129
    %s8133 = scalar_lea.vmem [#allocation6], 19
    %v8134 = vld [vmem:[%s8133] ss:$25 sm:$0x3]
    %v8135 = vpack.c.bf16 %v8134, %v8134
    %v8136 = vld [vmem:[%s5 + $0x4c0] sm:$0xf]
    %v8137 = vld [vmem:[%s5 + $0x4c4] sm:$0xf]
    %v8138 = vld [vmem:[%s5 + $0x4c8] sm:$0xf]
    %v8139 = vld [vmem:[%s5 + $0x4cc] sm:$0xf]
    %v8140 = vld [vmem:[%s5 + $0x4d0] sm:$0xf]
    %v8141 = vld [vmem:[%s5 + $0x4d4] sm:$0xf]
    %v8142 = vld [vmem:[%s5 + $0x4d8] sm:$0xf]
    %v8143 = vld [vmem:[%s5 + $0x4dc] sm:$0xf]
    %v8144 = vld [vmem:[%s5 + $0x4e0] sm:$0xf]
    %v8145 = vld [vmem:[%s5 + $0x4e4] sm:$0xf]
    %v8146 = vld [vmem:[%s5 + $0x4e8] sm:$0xf]
    %v8147 = vld [vmem:[%s5 + $0x4ec] sm:$0xf]
    %v8148 = vld [vmem:[%s5 + $0x4f0] sm:$0xf]
    %v8149 = vld [vmem:[%s5 + $0x4f4] sm:$0xf]
    %v8150 = vld [vmem:[%s5 + $0x4f8] sm:$0xf]
    %v8151 = vld [vmem:[%s5 + $0x4fc] sm:$0xf]
    %v8168 = vunpack.c.l.b16 %v8136
    %v8169 = vunpack.c.l.b16 %v8137
    %v8170 = vunpack.c.l.b16 %v8138
    %v8171 = vunpack.c.l.b16 %v8139
    %v8172 = vunpack.c.l.b16 %v8140
    %v8173 = vunpack.c.l.b16 %v8141
    %v8174 = vunpack.c.l.b16 %v8142
    %v8175 = vunpack.c.l.b16 %v8143
    %v8176 = vunpack.c.l.b16 %v8144
    %v8177 = vunpack.c.l.b16 %v8145
    %v8178 = vunpack.c.l.b16 %v8146
    %v8179 = vunpack.c.l.b16 %v8147
    %v8180 = vunpack.c.l.b16 %v8148
    %v8181 = vunpack.c.l.b16 %v8149
    %v8182 = vunpack.c.l.b16 %v8150
    %v8183 = vunpack.c.l.b16 %v8151
    %v8184 = vpack.c.b16 %v8169, %v8168
    %v8185 = vpack.c.b16 %v8171, %v8170
    %v8186 = vpack.c.b16 %v8173, %v8172
    %v8187 = vpack.c.b16 %v8175, %v8174
    %v8188 = vpack.c.b16 %v8177, %v8176
    %v8189 = vpack.c.b16 %v8179, %v8178
    %v8190 = vpack.c.b16 %v8181, %v8180
    %v8191 = vpack.c.b16 %v8183, %v8182
    %8200 = vmatpush.bf16.msra.mxu0 %v8191
    %8201 = vmatpush.bf16.msra.mxu0 %v8190
    %8202 = vmatpush.bf16.msra.mxu0 %v8189
    %8203 = vmatpush.bf16.msra.mxu0 %v8188
    %8204 = vmatpush.bf16.msra.mxu0 %v8187
    %8205 = vmatpush.bf16.msra.mxu0 %v8186
    %8206 = vmatpush.bf16.msra.mxu0 %v8185
    %8207 = vmatpush.bf16.msra.mxu0 %v8184
    %8208 = vmatmul.bf16.gmra.mxu0 %v8135
    %v8209 = vpop.f32.mrf.mxu0
    %v8210 = vadd.f32 0.0, %v8209
    %v8211 = vpop.f32.mrf.mxu0
    %8212 = vdwg.mxu0
    %v8213 = vadd.f32 %v8132, %v8210
    %s8214 = scalar_lea.vmem [#allocation6], 20
    %v8215 = vld [vmem:[%s8214] ss:$25 sm:$0x3]
    %v8216 = vpack.c.bf16 %v8215, %v8215
    %v8217 = vld [vmem:[%s5 + $0x500] sm:$0xf]
    %v8218 = vld [vmem:[%s5 + $0x504] sm:$0xf]
    %v8219 = vld [vmem:[%s5 + $0x508] sm:$0xf]
    %v8220 = vld [vmem:[%s5 + $0x50c] sm:$0xf]
    %v8221 = vld [vmem:[%s5 + $0x510] sm:$0xf]
    %v8222 = vld [vmem:[%s5 + $0x514] sm:$0xf]
    %v8223 = vld [vmem:[%s5 + $0x518] sm:$0xf]
    %v8224 = vld [vmem:[%s5 + $0x51c] sm:$0xf]
    %v8225 = vld [vmem:[%s5 + $0x520] sm:$0xf]
    %v8226 = vld [vmem:[%s5 + $0x524] sm:$0xf]
    %v8227 = vld [vmem:[%s5 + $0x528] sm:$0xf]
    %v8228 = vld [vmem:[%s5 + $0x52c] sm:$0xf]
    %v8229 = vld [vmem:[%s5 + $0x530] sm:$0xf]
    %v8230 = vld [vmem:[%s5 + $0x534] sm:$0xf]
    %v8231 = vld [vmem:[%s5 + $0x538] sm:$0xf]
    %v8232 = vld [vmem:[%s5 + $0x53c] sm:$0xf]
    %v8249 = vunpack.c.l.b16 %v8217
    %v8250 = vunpack.c.l.b16 %v8218
    %v8251 = vunpack.c.l.b16 %v8219
    %v8252 = vunpack.c.l.b16 %v8220
    %v8253 = vunpack.c.l.b16 %v8221
    %v8254 = vunpack.c.l.b16 %v8222
    %v8255 = vunpack.c.l.b16 %v8223
    %v8256 = vunpack.c.l.b16 %v8224
    %v8257 = vunpack.c.l.b16 %v8225
    %v8258 = vunpack.c.l.b16 %v8226
    %v8259 = vunpack.c.l.b16 %v8227
    %v8260 = vunpack.c.l.b16 %v8228
    %v8261 = vunpack.c.l.b16 %v8229
    %v8262 = vunpack.c.l.b16 %v8230
    %v8263 = vunpack.c.l.b16 %v8231
    %v8264 = vunpack.c.l.b16 %v8232
    %v8265 = vpack.c.b16 %v8250, %v8249
    %v8266 = vpack.c.b16 %v8252, %v8251
    %v8267 = vpack.c.b16 %v8254, %v8253
    %v8268 = vpack.c.b16 %v8256, %v8255
    %v8269 = vpack.c.b16 %v8258, %v8257
    %v8270 = vpack.c.b16 %v8260, %v8259
    %v8271 = vpack.c.b16 %v8262, %v8261
    %v8272 = vpack.c.b16 %v8264, %v8263
    %8281 = vmatpush.bf16.msra.mxu0 %v8272
    %8282 = vmatpush.bf16.msra.mxu0 %v8271
    %8283 = vmatpush.bf16.msra.mxu0 %v8270
    %8284 = vmatpush.bf16.msra.mxu0 %v8269
    %8285 = vmatpush.bf16.msra.mxu0 %v8268
    %8286 = vmatpush.bf16.msra.mxu0 %v8267
    %8287 = vmatpush.bf16.msra.mxu0 %v8266
    %8288 = vmatpush.bf16.msra.mxu0 %v8265
    %8289 = vmatmul.bf16.gmra.mxu0 %v8216
    %v8290 = vpop.f32.mrf.mxu0
    %v8291 = vadd.f32 0.0, %v8290
    %v8292 = vpop.f32.mrf.mxu0
    %8293 = vdwg.mxu0
    %v8294 = vadd.f32 %v8213, %v8291
    %s8295 = scalar_lea.vmem [#allocation6], 21
    %v8296 = vld [vmem:[%s8295] ss:$25 sm:$0x3]
    %v8297 = vpack.c.bf16 %v8296, %v8296
    %v8298 = vld [vmem:[%s5 + $0x540] sm:$0xf]
    %v8299 = vld [vmem:[%s5 + $0x544] sm:$0xf]
    %v8300 = vld [vmem:[%s5 + $0x548] sm:$0xf]
    %v8301 = vld [vmem:[%s5 + $0x54c] sm:$0xf]
    %v8302 = vld [vmem:[%s5 + $0x550] sm:$0xf]
    %v8303 = vld [vmem:[%s5 + $0x554] sm:$0xf]
    %v8304 = vld [vmem:[%s5 + $0x558] sm:$0xf]
    %v8305 = vld [vmem:[%s5 + $0x55c] sm:$0xf]
    %v8306 = vld [vmem:[%s5 + $0x560] sm:$0xf]
    %v8307 = vld [vmem:[%s5 + $0x564] sm:$0xf]
    %v8308 = vld [vmem:[%s5 + $0x568] sm:$0xf]
    %v8309 = vld [vmem:[%s5 + $0x56c] sm:$0xf]
    %v8310 = vld [vmem:[%s5 + $0x570] sm:$0xf]
    %v8311 = vld [vmem:[%s5 + $0x574] sm:$0xf]
    %v8312 = vld [vmem:[%s5 + $0x578] sm:$0xf]
    %v8313 = vld [vmem:[%s5 + $0x57c] sm:$0xf]
    %v8330 = vunpack.c.l.b16 %v8298
    %v8331 = vunpack.c.l.b16 %v8299
    %v8332 = vunpack.c.l.b16 %v8300
    %v8333 = vunpack.c.l.b16 %v8301
    %v8334 = vunpack.c.l.b16 %v8302
    %v8335 = vunpack.c.l.b16 %v8303
    %v8336 = vunpack.c.l.b16 %v8304
    %v8337 = vunpack.c.l.b16 %v8305
    %v8338 = vunpack.c.l.b16 %v8306
    %v8339 = vunpack.c.l.b16 %v8307
    %v8340 = vunpack.c.l.b16 %v8308
    %v8341 = vunpack.c.l.b16 %v8309
    %v8342 = vunpack.c.l.b16 %v8310
    %v8343 = vunpack.c.l.b16 %v8311
    %v8344 = vunpack.c.l.b16 %v8312
    %v8345 = vunpack.c.l.b16 %v8313
    %v8346 = vpack.c.b16 %v8331, %v8330
    %v8347 = vpack.c.b16 %v8333, %v8332
    %v8348 = vpack.c.b16 %v8335, %v8334
    %v8349 = vpack.c.b16 %v8337, %v8336
    %v8350 = vpack.c.b16 %v8339, %v8338
    %v8351 = vpack.c.b16 %v8341, %v8340
    %v8352 = vpack.c.b16 %v8343, %v8342
    %v8353 = vpack.c.b16 %v8345, %v8344
    %8362 = vmatpush.bf16.msra.mxu0 %v8353
    %8363 = vmatpush.bf16.msra.mxu0 %v8352
    %8364 = vmatpush.bf16.msra.mxu0 %v8351
    %8365 = vmatpush.bf16.msra.mxu0 %v8350
    %8366 = vmatpush.bf16.msra.mxu0 %v8349
    %8367 = vmatpush.bf16.msra.mxu0 %v8348
    %8368 = vmatpush.bf16.msra.mxu0 %v8347
    %8369 = vmatpush.bf16.msra.mxu0 %v8346
    %8370 = vmatmul.bf16.gmra.mxu0 %v8297
    %v8371 = vpop.f32.mrf.mxu0
    %v8372 = vadd.f32 0.0, %v8371
    %v8373 = vpop.f32.mrf.mxu0
    %8374 = vdwg.mxu0
    %v8375 = vadd.f32 %v8294, %v8372
    %s8376 = scalar_lea.vmem [#allocation6], 22
    %v8377 = vld [vmem:[%s8376] ss:$25 sm:$0x3]
    %v8378 = vpack.c.bf16 %v8377, %v8377
    %v8379 = vld [vmem:[%s5 + $0x580] sm:$0xf]
    %v8380 = vld [vmem:[%s5 + $0x584] sm:$0xf]
    %v8381 = vld [vmem:[%s5 + $0x588] sm:$0xf]
    %v8382 = vld [vmem:[%s5 + $0x58c] sm:$0xf]
    %v8383 = vld [vmem:[%s5 + $0x590] sm:$0xf]
    %v8384 = vld [vmem:[%s5 + $0x594] sm:$0xf]
    %v8385 = vld [vmem:[%s5 + $0x598] sm:$0xf]
    %v8386 = vld [vmem:[%s5 + $0x59c] sm:$0xf]
    %v8387 = vld [vmem:[%s5 + $0x5a0] sm:$0xf]
    %v8388 = vld [vmem:[%s5 + $0x5a4] sm:$0xf]
    %v8389 = vld [vmem:[%s5 + $0x5a8] sm:$0xf]
    %v8390 = vld [vmem:[%s5 + $0x5ac] sm:$0xf]
    %v8391 = vld [vmem:[%s5 + $0x5b0] sm:$0xf]
    %v8392 = vld [vmem:[%s5 + $0x5b4] sm:$0xf]
    %v8393 = vld [vmem:[%s5 + $0x5b8] sm:$0xf]
    %v8394 = vld [vmem:[%s5 + $0x5bc] sm:$0xf]
    %v8411 = vunpack.c.l.b16 %v8379
    %v8412 = vunpack.c.l.b16 %v8380
    %v8413 = vunpack.c.l.b16 %v8381
    %v8414 = vunpack.c.l.b16 %v8382
    %v8415 = vunpack.c.l.b16 %v8383
    %v8416 = vunpack.c.l.b16 %v8384
    %v8417 = vunpack.c.l.b16 %v8385
    %v8418 = vunpack.c.l.b16 %v8386
    %v8419 = vunpack.c.l.b16 %v8387
    %v8420 = vunpack.c.l.b16 %v8388
    %v8421 = vunpack.c.l.b16 %v8389
    %v8422 = vunpack.c.l.b16 %v8390
    %v8423 = vunpack.c.l.b16 %v8391
    %v8424 = vunpack.c.l.b16 %v8392
    %v8425 = vunpack.c.l.b16 %v8393
    %v8426 = vunpack.c.l.b16 %v8394
    %v8427 = vpack.c.b16 %v8412, %v8411
    %v8428 = vpack.c.b16 %v8414, %v8413
    %v8429 = vpack.c.b16 %v8416, %v8415
    %v8430 = vpack.c.b16 %v8418, %v8417
    %v8431 = vpack.c.b16 %v8420, %v8419
    %v8432 = vpack.c.b16 %v8422, %v8421
    %v8433 = vpack.c.b16 %v8424, %v8423
    %v8434 = vpack.c.b16 %v8426, %v8425
    %8443 = vmatpush.bf16.msra.mxu0 %v8434
    %8444 = vmatpush.bf16.msra.mxu0 %v8433
    %8445 = vmatpush.bf16.msra.mxu0 %v8432
    %8446 = vmatpush.bf16.msra.mxu0 %v8431
    %8447 = vmatpush.bf16.msra.mxu0 %v8430
    %8448 = vmatpush.bf16.msra.mxu0 %v8429
    %8449 = vmatpush.bf16.msra.mxu0 %v8428
    %8450 = vmatpush.bf16.msra.mxu0 %v8427
    %8451 = vmatmul.bf16.gmra.mxu0 %v8378
    %v8452 = vpop.f32.mrf.mxu0
    %v8453 = vadd.f32 0.0, %v8452
    %v8454 = vpop.f32.mrf.mxu0
    %8455 = vdwg.mxu0
    %v8456 = vadd.f32 %v8375, %v8453
    %s8457 = scalar_lea.vmem [#allocation6], 23
    %v8458 = vld [vmem:[%s8457] ss:$25 sm:$0x3]
    %v8459 = vpack.c.bf16 %v8458, %v8458
    %v8460 = vld [vmem:[%s5 + $0x5c0] sm:$0xf]
    %v8461 = vld [vmem:[%s5 + $0x5c4] sm:$0xf]
    %v8462 = vld [vmem:[%s5 + $0x5c8] sm:$0xf]
    %v8463 = vld [vmem:[%s5 + $0x5cc] sm:$0xf]
    %v8464 = vld [vmem:[%s5 + $0x5d0] sm:$0xf]
    %v8465 = vld [vmem:[%s5 + $0x5d4] sm:$0xf]
    %v8466 = vld [vmem:[%s5 + $0x5d8] sm:$0xf]
    %v8467 = vld [vmem:[%s5 + $0x5dc] sm:$0xf]
    %v8468 = vld [vmem:[%s5 + $0x5e0] sm:$0xf]
    %v8469 = vld [vmem:[%s5 + $0x5e4] sm:$0xf]
    %v8470 = vld [vmem:[%s5 + $0x5e8] sm:$0xf]
    %v8471 = vld [vmem:[%s5 + $0x5ec] sm:$0xf]
    %v8472 = vld [vmem:[%s5 + $0x5f0] sm:$0xf]
    %v8473 = vld [vmem:[%s5 + $0x5f4] sm:$0xf]
    %v8474 = vld [vmem:[%s5 + $0x5f8] sm:$0xf]
    %v8475 = vld [vmem:[%s5 + $0x5fc] sm:$0xf]
    %v8492 = vunpack.c.l.b16 %v8460
    %v8493 = vunpack.c.l.b16 %v8461
    %v8494 = vunpack.c.l.b16 %v8462
    %v8495 = vunpack.c.l.b16 %v8463
    %v8496 = vunpack.c.l.b16 %v8464
    %v8497 = vunpack.c.l.b16 %v8465
    %v8498 = vunpack.c.l.b16 %v8466
    %v8499 = vunpack.c.l.b16 %v8467
    %v8500 = vunpack.c.l.b16 %v8468
    %v8501 = vunpack.c.l.b16 %v8469
    %v8502 = vunpack.c.l.b16 %v8470
    %v8503 = vunpack.c.l.b16 %v8471
    %v8504 = vunpack.c.l.b16 %v8472
    %v8505 = vunpack.c.l.b16 %v8473
    %v8506 = vunpack.c.l.b16 %v8474
    %v8507 = vunpack.c.l.b16 %v8475
    %v8508 = vpack.c.b16 %v8493, %v8492
    %v8509 = vpack.c.b16 %v8495, %v8494
    %v8510 = vpack.c.b16 %v8497, %v8496
    %v8511 = vpack.c.b16 %v8499, %v8498
    %v8512 = vpack.c.b16 %v8501, %v8500
    %v8513 = vpack.c.b16 %v8503, %v8502
    %v8514 = vpack.c.b16 %v8505, %v8504
    %v8515 = vpack.c.b16 %v8507, %v8506
    %8524 = vmatpush.bf16.msra.mxu0 %v8515
    %8525 = vmatpush.bf16.msra.mxu0 %v8514
    %8526 = vmatpush.bf16.msra.mxu0 %v8513
    %8527 = vmatpush.bf16.msra.mxu0 %v8512
    %8528 = vmatpush.bf16.msra.mxu0 %v8511
    %8529 = vmatpush.bf16.msra.mxu0 %v8510
    %8530 = vmatpush.bf16.msra.mxu0 %v8509
    %8531 = vmatpush.bf16.msra.mxu0 %v8508
    %8532 = vmatmul.bf16.gmra.mxu0 %v8459
    %v8533 = vpop.f32.mrf.mxu0
    %v8534 = vadd.f32 0.0, %v8533
    %v8535 = vpop.f32.mrf.mxu0
    %8536 = vdwg.mxu0
    %v8537 = vadd.f32 %v8456, %v8534
    %s8538 = scalar_lea.vmem [#allocation6], 24
    %v8539 = vld [vmem:[%s8538] ss:$25 sm:$0x3]
    %v8540 = vpack.c.bf16 %v8539, %v8539
    %v8541 = vld [vmem:[%s5 + $0x600] sm:$0xf]
    %v8542 = vld [vmem:[%s5 + $0x604] sm:$0xf]
    %v8543 = vld [vmem:[%s5 + $0x608] sm:$0xf]
    %v8544 = vld [vmem:[%s5 + $0x60c] sm:$0xf]
    %v8545 = vld [vmem:[%s5 + $0x610] sm:$0xf]
    %v8546 = vld [vmem:[%s5 + $0x614] sm:$0xf]
    %v8547 = vld [vmem:[%s5 + $0x618] sm:$0xf]
    %v8548 = vld [vmem:[%s5 + $0x61c] sm:$0xf]
    %v8549 = vld [vmem:[%s5 + $0x620] sm:$0xf]
    %v8550 = vld [vmem:[%s5 + $0x624] sm:$0xf]
    %v8551 = vld [vmem:[%s5 + $0x628] sm:$0xf]
    %v8552 = vld [vmem:[%s5 + $0x62c] sm:$0xf]
    %v8553 = vld [vmem:[%s5 + $0x630] sm:$0xf]
    %v8554 = vld [vmem:[%s5 + $0x634] sm:$0xf]
    %v8555 = vld [vmem:[%s5 + $0x638] sm:$0xf]
    %v8556 = vld [vmem:[%s5 + $0x63c] sm:$0xf]
    %v8573 = vunpack.c.l.b16 %v8541
    %v8574 = vunpack.c.l.b16 %v8542
    %v8575 = vunpack.c.l.b16 %v8543
    %v8576 = vunpack.c.l.b16 %v8544
    %v8577 = vunpack.c.l.b16 %v8545
    %v8578 = vunpack.c.l.b16 %v8546
    %v8579 = vunpack.c.l.b16 %v8547
    %v8580 = vunpack.c.l.b16 %v8548
    %v8581 = vunpack.c.l.b16 %v8549
    %v8582 = vunpack.c.l.b16 %v8550
    %v8583 = vunpack.c.l.b16 %v8551
    %v8584 = vunpack.c.l.b16 %v8552
    %v8585 = vunpack.c.l.b16 %v8553
    %v8586 = vunpack.c.l.b16 %v8554
    %v8587 = vunpack.c.l.b16 %v8555
    %v8588 = vunpack.c.l.b16 %v8556
    %v8589 = vpack.c.b16 %v8574, %v8573
    %v8590 = vpack.c.b16 %v8576, %v8575
    %v8591 = vpack.c.b16 %v8578, %v8577
    %v8592 = vpack.c.b16 %v8580, %v8579
    %v8593 = vpack.c.b16 %v8582, %v8581
    %v8594 = vpack.c.b16 %v8584, %v8583
    %v8595 = vpack.c.b16 %v8586, %v8585
    %v8596 = vpack.c.b16 %v8588, %v8587
    %8605 = vmatpush.bf16.msra.mxu0 %v8596
    %8606 = vmatpush.bf16.msra.mxu0 %v8595
    %8607 = vmatpush.bf16.msra.mxu0 %v8594
    %8608 = vmatpush.bf16.msra.mxu0 %v8593
    %8609 = vmatpush.bf16.msra.mxu0 %v8592
    %8610 = vmatpush.bf16.msra.mxu0 %v8591
    %8611 = vmatpush.bf16.msra.mxu0 %v8590
    %8612 = vmatpush.bf16.msra.mxu0 %v8589
    %8613 = vmatmul.bf16.gmra.mxu0 %v8540
    %v8614 = vpop.f32.mrf.mxu0
    %v8615 = vadd.f32 0.0, %v8614
    %v8616 = vpop.f32.mrf.mxu0
    %8617 = vdwg.mxu0
    %v8618 = vadd.f32 %v8537, %v8615
    %v8619 = vmax.f32 %v8618, 0.0
    %v8620 = vpack.c.bf16 %v8619, %v8619
    %v8621 = vld [vmem:[%s7] sm:$0xf]
    %v8622 = vld [vmem:[%s7 + $0x4] sm:$0xf]
    %v8623 = vld [vmem:[%s7 + $0x8] sm:$0xf]
    %v8624 = vld [vmem:[%s7 + $0xc] sm:$0xf]
    %v8625 = vld [vmem:[%s7 + $0x10] sm:$0xf]
    %v8626 = vld [vmem:[%s7 + $0x14] sm:$0xf]
    %v8627 = vld [vmem:[%s7 + $0x18] sm:$0xf]
    %v8628 = vld [vmem:[%s7 + $0x1c] sm:$0xf]
    %v8629 = vld [vmem:[%s7 + $0x20] sm:$0xf]
    %v8630 = vld [vmem:[%s7 + $0x24] sm:$0xf]
    %v8631 = vld [vmem:[%s7 + $0x28] sm:$0xf]
    %v8632 = vld [vmem:[%s7 + $0x2c] sm:$0xf]
    %v8633 = vld [vmem:[%s7 + $0x30] sm:$0xf]
    %v8634 = vld [vmem:[%s7 + $0x34] sm:$0xf]
    %v8635 = vld [vmem:[%s7 + $0x38] sm:$0xf]
    %v8636 = vld [vmem:[%s7 + $0x3c] sm:$0xf]
    %v8637 = vld [vmem:[%s8] sm:$0x1]
    %v8639 = vperm.slane %v8637, 0
    %v8657 = vunpack.c.l.b16 %v8621
    %v8658 = vunpack.c.l.b16 %v8622
    %v8659 = vunpack.c.l.b16 %v8623
    %v8660 = vunpack.c.l.b16 %v8624
    %v8661 = vunpack.c.l.b16 %v8625
    %v8662 = vunpack.c.l.b16 %v8626
    %v8663 = vunpack.c.l.b16 %v8627
    %v8664 = vunpack.c.l.b16 %v8628
    %v8665 = vunpack.c.l.b16 %v8629
    %v8666 = vunpack.c.l.b16 %v8630
    %v8667 = vunpack.c.l.b16 %v8631
    %v8668 = vunpack.c.l.b16 %v8632
    %v8669 = vunpack.c.l.b16 %v8633
    %v8670 = vunpack.c.l.b16 %v8634
    %v8671 = vunpack.c.l.b16 %v8635
    %v8672 = vunpack.c.l.b16 %v8636
    %v8673 = vpack.c.b16 %v8658, %v8657
    %v8674 = vpack.c.b16 %v8660, %v8659
    %v8675 = vpack.c.b16 %v8662, %v8661
    %v8676 = vpack.c.b16 %v8664, %v8663
    %v8677 = vpack.c.b16 %v8666, %v8665
    %v8678 = vpack.c.b16 %v8668, %v8667
    %v8679 = vpack.c.b16 %v8670, %v8669
    %v8680 = vpack.c.b16 %v8672, %v8671
    %8689 = vmatpush.bf16.msra.mxu0 %v8680
    %8690 = vmatpush.bf16.msra.mxu0 %v8679
    %8691 = vmatpush.bf16.msra.mxu0 %v8678
    %8692 = vmatpush.bf16.msra.mxu0 %v8677
    %8693 = vmatpush.bf16.msra.mxu0 %v8676
    %8694 = vmatpush.bf16.msra.mxu0 %v8675
    %8695 = vmatpush.bf16.msra.mxu0 %v8674
    %8696 = vmatpush.bf16.msra.mxu0 %v8673
    %8697 = vmatmul.bf16.gmra.mxu0 %v8620
    %v8698 = vpop.f32.mrf.mxu0
    %v8699 = vadd.f32 %v8639, %v8698
    %v8700 = vpop.f32.mrf.mxu0
    %8701 = vdwg.mxu0
    %v8702 = vmax.f32 %v8699, 0.0
    %v8703 = vpack.c.bf16 %v8702, %v8702
    %v8704 = vld [vmem:[%s9] sm:$0xf]
    %v8705 = vld [vmem:[%s9 + $0x4] sm:$0xf]
    %v8706 = vld [vmem:[%s9 + $0x8] sm:$0xf]
    %v8707 = vld [vmem:[%s9 + $0xc] sm:$0xf]
    %v8708 = vld [vmem:[%s9 + $0x10] sm:$0xf]
    %v8709 = vld [vmem:[%s9 + $0x14] sm:$0xf]
    %v8710 = vld [vmem:[%s9 + $0x18] sm:$0xf]
    %v8711 = vld [vmem:[%s9 + $0x1c] sm:$0xf]
    %v8712 = vld [vmem:[%s9 + $0x20] sm:$0xf]
    %v8713 = vld [vmem:[%s9 + $0x24] sm:$0xf]
    %v8714 = vld [vmem:[%s9 + $0x28] sm:$0xf]
    %v8715 = vld [vmem:[%s9 + $0x2c] sm:$0xf]
    %v8716 = vld [vmem:[%s9 + $0x30] sm:$0xf]
    %v8717 = vld [vmem:[%s9 + $0x34] sm:$0xf]
    %v8718 = vld [vmem:[%s9 + $0x38] sm:$0xf]
    %v8719 = vld [vmem:[%s9 + $0x3c] sm:$0xf]
    %v8720 = vld [vmem:[%s10] sm:$0x1]
    %v8722 = vperm.slane %v8720, 0
    %v8740 = vunpack.c.l.b16 %v8704
    %v8741 = vunpack.c.l.b16 %v8705
    %v8742 = vunpack.c.l.b16 %v8706
    %v8743 = vunpack.c.l.b16 %v8707
    %v8744 = vunpack.c.l.b16 %v8708
    %v8745 = vunpack.c.l.b16 %v8709
    %v8746 = vunpack.c.l.b16 %v8710
    %v8747 = vunpack.c.l.b16 %v8711
    %v8748 = vunpack.c.l.b16 %v8712
    %v8749 = vunpack.c.l.b16 %v8713
    %v8750 = vunpack.c.l.b16 %v8714
    %v8751 = vunpack.c.l.b16 %v8715
    %v8752 = vunpack.c.l.b16 %v8716
    %v8753 = vunpack.c.l.b16 %v8717
    %v8754 = vunpack.c.l.b16 %v8718
    %v8755 = vunpack.c.l.b16 %v8719
    %v8756 = vpack.c.b16 %v8741, %v8740
    %v8757 = vpack.c.b16 %v8743, %v8742
    %v8758 = vpack.c.b16 %v8745, %v8744
    %v8759 = vpack.c.b16 %v8747, %v8746
    %v8760 = vpack.c.b16 %v8749, %v8748
    %v8761 = vpack.c.b16 %v8751, %v8750
    %v8762 = vpack.c.b16 %v8753, %v8752
    %v8763 = vpack.c.b16 %v8755, %v8754
    %8772 = vmatpush.bf16.msra.mxu0 %v8763
    %8773 = vmatpush.bf16.msra.mxu0 %v8762
    %8774 = vmatpush.bf16.msra.mxu0 %v8761
    %8775 = vmatpush.bf16.msra.mxu0 %v8760
    %8776 = vmatpush.bf16.msra.mxu0 %v8759
    %8777 = vmatpush.bf16.msra.mxu0 %v8758
    %8778 = vmatpush.bf16.msra.mxu0 %v8757
    %8779 = vmatpush.bf16.msra.mxu0 %v8756
    %8780 = vmatmul.bf16.gmra.mxu0 %v8703
    %v8781 = vpop.f32.mrf.mxu0
    %v8782 = vadd.f32 %v8722, %v8781
    %v8783 = vpop.f32.mrf.mxu0
    %8784 = vdwg.mxu0
    %8785 = vst [vmem:[#allocation7] sm:$0x3] %v8782
    // Predicated region
    $region46: #{lenet_forward.1} parent=1 // pred_check
      _
    $region47: #{lenet_forward.1} parent=1 // pred_check_branch
      %8787 = sbr.rel (0) target = $region49
    $region48: #{lenet_forward.1} parent=1 // pred_region
      %8789 = vsyncadd [#allocation8], 0
      %s8791 = sshll.u32 [#allocation7], 4
      %s8792 = int_to_ptr.vmem [resolvable:$true] %s8791
      %s8793 = sshll.u32 %s11, 4
      %s8794 = int_to_ptr.hbm [resolvable:$true] %s8793
      %8796 = dma.vmem_to_hbm [thread:$0]  %s8792, 32, %s8794, [#allocation8]
    $region49: #{lenet_forward.1} parent=1 // pred_fallthru
      _
    // Predicated region
    $region50: #{lenet_forward.1} parent=1 // pred_check
      _
    $region51: #{lenet_forward.1} parent=1 // pred_check_branch
      %8798 = sbr.rel (0) target = $region53
    $region52: #{lenet_forward.1} parent=1 // pred_region
      %8800 = dma.done [#allocation8], 32
    $region53: #{lenet_forward.1} parent=1 // pred_fallthru
      _
    %8801 = vsyncpa [#allocation8], 1

</llo_original>
